<compile_context>
chip_gen: v5e
topology: v5e:2x2
jax: 0.10.0
libtpu: 0.0.40
codegen_flags: <defaults>
</compile_context>

<pallas_src>
import functools

import jax
import jax.numpy as jnp
import numpy as np
from jax.experimental import pallas as pl
from jax.experimental.pallas import tpu as pltpu


# ----------------------------------------------------------------------------
# Pallas kernels
# ----------------------------------------------------------------------------
def _conv1_relu_pool_kernel(p_ref, w_ref, b_ref, o_ref, *, bt, npos):
    """Fused im2col-conv1 + bias + ReLU + 2x2 max-pool for a tile of images.

    p_ref: (bt*4*npos, 75) bf16 patch rows ordered (image, pool-window, position)
    w_ref: (75, 6) bf16    b_ref: (1, 6) f32    o_ref: (bt*npos, 6) bf16
    """
    w = w_ref[...]
    cout = b_ref.shape[1]
    bb = jnp.broadcast_to(b_ref[...], (npos, cout))      # hoisted out of the loop
    rows = 4 * npos
    # Per-image matmul inside the (small, static) loop keeps live ranges bounded.
    for i in range(bt):
        y = jnp.dot(p_ref[i * rows:(i + 1) * rows, :], w,
                    preferred_element_type=jnp.float32)               # (4*npos, 6)
        m = jnp.maximum(jnp.maximum(y[0:npos], y[npos:2 * npos]),
                        jnp.maximum(y[2 * npos:3 * npos], y[3 * npos:4 * npos]))
        # relu(max_w(y_w) + b) == max_w(relu(y_w + b))  (bias/ReLU hoisted out of max)
        o_ref[i * npos:(i + 1) * npos, :] = jnp.maximum(m + bb, 0.0).astype(o_ref.dtype)


def _conv2_mlp_kernel(p_ref, w2_ref, b2_ref, fw1_ref, fb1_ref, fw2_ref, fb2_ref,
                      fw3_ref, fb3_ref, o_ref, *, bt, npos, real_pos, cin2):
    """Fused conv2 (+bias+ReLU+2x2 pool) and fc1/fc2/fc3 for a tile of images.

    p_ref  : (4*npos*bt, 150) bf16 conv2 patch rows ordered (window, pos, image)
    w2_ref : (150, 16) bf16      b2_ref : (1, 16) f32
    fw1_ref: (real_pos*16, 128) bf16, rows ordered (pos, cin);  fb1: (1,128) f32
    fw2_ref, fw3_ref: (128,128) bf16;  fb2, fb3: (1,128) f32
    o_ref  : (bt, 128) f32 lane-dense logits (cols 10..127 are zero padding)
    """
    n = npos * bt
    # One MXU push for all images / pool windows in the tile (M = 4*npos*bt).
    y = jnp.dot(p_ref[...], w2_ref[...], preferred_element_type=jnp.float32)   # (4n, 16)
    m = jnp.maximum(jnp.maximum(y[0:n], y[n:2 * n]),
                    jnp.maximum(y[2 * n:3 * n], y[3 * n:4 * n]))                # (n, 16)
    h2 = jnp.maximum(m + b2_ref[...], 0.0)          # pooled conv2 act, stays in VMEM

    # fc1 contracting (pos, cin): real_pos accumulated (bt,16)x(16,128) dots.
    # No flatten/reshape; padded pool positions (>= real_pos) are never touched.
    acc = jnp.zeros((bt, fw1_ref.shape[1]), jnp.float32)
    for pos in range(real_pos):
        xs = h2[pos * bt:(pos + 1) * bt, :].astype(jnp.bfloat16)
        acc = acc + jnp.dot(xs, fw1_ref[pos * cin2:(pos + 1) * cin2, :],
                            preferred_element_type=jnp.float32)
    h = jnp.maximum(acc + fb1_ref[...], 0.0).astype(jnp.bfloat16)
    g = jnp.maximum(jnp.dot(h, fw2_ref[...], preferred_element_type=jnp.float32)
                    + fb2_ref[...], 0.0).astype(jnp.bfloat16)
    o_ref[...] = (jnp.dot(g, fw3_ref[...], preferred_element_type=jnp.float32)
                  + fb3_ref[...]).astype(o_ref.dtype)


# ----------------------------------------------------------------------------
# pallas_call wrappers
# ----------------------------------------------------------------------------
def conv1_relu_pool(p_rows, w, b, *, batch, bt, npos):
    M, K = p_rows.shape
    cout = w.shape[1]
    assert M == batch * 4 * npos and batch % bt == 0 and npos % 8 == 0
    nb = batch // bt
    kern = functools.partial(_conv1_relu_pool_kernel, bt=bt, npos=npos)
    flops = 2 * batch * 4 * npos * K * cout
    bytes_acc = p_rows.size * 2 + w.size * 2 + b.size * 4 + batch * npos * cout * 2
    return pl.pallas_call(
        kern,
        out_shape=jax.ShapeDtypeStruct((batch * npos, cout), jnp.bfloat16),
        grid=(nb,),
        in_specs=[
            pl.BlockSpec((bt * 4 * npos, K), lambda i: (i, 0)),
            pl.BlockSpec((K, cout), lambda i: (0, 0)),
            pl.BlockSpec((1, cout), lambda i: (0, 0)),
        ],
        out_specs=pl.BlockSpec((bt * npos, cout), lambda i: (i, 0)),
        compiler_params=pltpu.CompilerParams(dimension_semantics=("parallel",)),
        cost_estimate=pl.CostEstimate(flops=flops, transcendentals=0,
                                      bytes_accessed=bytes_acc),
    )(p_rows, w, b)


def conv2_mlp(p_rows, w2, b2, fw1, fb1, fw2, fb2, fw3, fb3, *,
              batch, bt, npos, real_pos):
    K = p_rows.shape[1]
    cin2 = w2.shape[1]
    nout = fw3.shape[1]
    assert p_rows.shape[0] == batch * 4 * npos and batch % bt == 0 and bt % 8 == 0
    nb = batch // bt
    kern = functools.partial(_conv2_mlp_kernel, bt=bt, npos=npos,
                             real_pos=real_pos, cin2=cin2)
    flops = 2 * batch * (4 * npos * K * cin2
                         + real_pos * cin2 * fw1.shape[1]
                         + fw2.shape[0] * fw2.shape[1]
                         + fw3.shape[0] * fw3.shape[1])
    bytes_acc = (p_rows.size * 2
                 + (w2.size + fw1.size + fw2.size + fw3.size) * 2
                 + (b2.size + fb1.size + fb2.size + fb3.size) * 4
                 + batch * nout * 4)
    return pl.pallas_call(
        kern,
        out_shape=jax.ShapeDtypeStruct((batch, nout), jnp.float32),
        grid=(nb,),
        in_specs=[
            pl.BlockSpec((4 * npos * bt, K), lambda i: (i, 0)),
            pl.BlockSpec(w2.shape, lambda i: (0, 0)),
            pl.BlockSpec(b2.shape, lambda i: (0, 0)),
            pl.BlockSpec(fw1.shape, lambda i: (0, 0)),
            pl.BlockSpec(fb1.shape, lambda i: (0, 0)),
            pl.BlockSpec(fw2.shape, lambda i: (0, 0)),
            pl.BlockSpec(fb2.shape, lambda i: (0, 0)),
            pl.BlockSpec(fw3.shape, lambda i: (0, 0)),
            pl.BlockSpec(fb3.shape, lambda i: (0, 0)),
        ],
        out_specs=pl.BlockSpec((bt, nout), lambda i: (i, 0)),
        compiler_params=pltpu.CompilerParams(dimension_semantics=("parallel",)),
        cost_estimate=pl.CostEstimate(flops=flops, transcendentals=0,
                                      bytes_accessed=bytes_acc),
    )(p_rows, w2, b2, fw1, fb1, fw2, fb2, fw3, fb3)


# ----------------------------------------------------------------------------
# One-time parameter prep (transpose / permute / zero-pad / bf16) -- outside fwd
# ----------------------------------------------------------------------------
def prepare_params(params):
    (c1w, c1b, c2w, c2b, f1w, f1b, f2w, f2b, f3w, f3b) = params
    # conv weights OIHW -> rows ordered (kh, kw, cin), cols = cout.
    w1 = jnp.transpose(c1w, (2, 3, 1, 0)).reshape(5 * 5 * 3, 6).astype(jnp.bfloat16)
    w2 = jnp.transpose(c2w, (2, 3, 1, 0)).reshape(5 * 5 * 6, 16).astype(jnp.bfloat16)
    b1 = c1b.reshape(1, 6).astype(jnp.float32)
    b2 = c2b.reshape(1, 16).astype(jnp.float32)
    # fc1: torch flattens conv2's (cin, ph, pw) output as j = cin*25 + (ph*5+pw).
    # Re-order fc1 weight rows to (pos, cin) so the kernel can consume the
    # pooled conv2 activation (rows = pos, lanes = cin) position-by-position
    # with no flatten; pad the 120 output lanes to 128.
    pos = np.arange(25)
    cin = np.arange(16)
    row_perm = (cin[None, :] * 25 + pos[:, None]).reshape(-1)       # (400,), (pos,cin)-major
    fw1 = jnp.zeros((400, 128), jnp.float32).at[:, :120].set(jnp.asarray(f1w).T[row_perm])
    fb1 = jnp.zeros((1, 128), jnp.float32).at[0, :120].set(f1b)
    fw2 = jnp.zeros((128, 128), jnp.float32).at[:120, :84].set(f2w.T)
    fb2 = jnp.zeros((1, 128), jnp.float32).at[0, :84].set(f2b)
    fw3 = jnp.zeros((128, 128), jnp.float32).at[:84, :10].set(f3w.T)
    fb3 = jnp.zeros((1, 128), jnp.float32).at[0, :10].set(f3b)
    return (w1, b1, w2, b2,
            fw1.astype(jnp.bfloat16), fb1,
            fw2.astype(jnp.bfloat16), fb2,
            fw3.astype(jnp.bfloat16), fb3)


# ----------------------------------------------------------------------------
# JAX glue: im2col grouped by 2x2 pool windows (pure data movement, bf16)
# ----------------------------------------------------------------------------
def _im2col_pool_windows(x, k, npos_pad):
    """x: (B, H, W, C) NHWC -> (B, 4, npos_pad, k*k*C): patch rows grouped by
    pool window (dh, dw), pooled position row-major, features ordered (kh,kw,c)."""
    B, H, W, C = x.shape
    OH, OW = H - k + 1, W - k + 1
    PH, PW = OH // 2, OW // 2
    cols = [x[:, kh:kh + OH, kw:kw + OW, :] for kh in range(k) for kw in range(k)]
    p = jnp.stack(cols, axis=3).reshape(B, OH, OW, k * k * C)
    p = p.reshape(B, PH, 2, PW, 2, k * k * C)
    p = jnp.transpose(p, (0, 2, 4, 1, 3, 5)).reshape(B, 4, PH * PW, k * k * C)
    if npos_pad != PH * PW:
        p = jnp.pad(p, ((0, 0), (0, 0), (0, npos_pad - PH * PW), (0, 0)))
    return p


def _conv1_patch_rows(x, k, npos_pad):
    """Rows ordered (image, pool-window, position) -- conv1 kernel layout."""
    B = x.shape[0]
    p = _im2col_pool_windows(x, k, npos_pad)
    return p.reshape(B * 4 * npos_pad, p.shape[-1])


def _conv2_patch_rows(h1, k, npos_pad, bt):
    """Rows ordered (batch-tile, pool-window, position, image-in-tile) -- the
    layout the fused conv2+MLP kernel consumes (contiguous, 8-aligned slices
    for both the 4-way pool max and the per-position fc1 blocks)."""
    B = h1.shape[0]
    p = _im2col_pool_windows(h1, k, npos_pad)                 # (B, 4, npos, K)
    K = p.shape[-1]
    nb = B // bt
    p = p.reshape(nb, bt, 4, npos_pad, K)
    p = jnp.transpose(p, (0, 2, 3, 1, 4))                     # (nb, 4, npos, bt, K)
    return p.reshape(B * 4 * npos_pad, K)


def _pick_batch_tile(padded_batch, max_tile=16, min_grid_steps=1):
    """padded_batch is a multiple of 8.  Largest multiple-of-8 tile <= max_tile
    dividing the batch while keeping >= min_grid_steps grid steps.
    Single-TC v5e/v6e: min_grid_steps=1 (fewest, biggest steps).
    Dual-TC v7x: pass min_grid_steps=2 once the batch allows it."""
    best = 8
    for t in range(8, min(padded_batch, max_tile) + 1, 8):
        if padded_batch % t == 0 and padded_batch // t >= min_grid_steps:
            best = t
    return best


def net_forward_pallas(x_nchw, prepped, *, min_grid_steps=1):
    (w1, b1, w2, b2, fw1, fb1, fw2, fb2, fw3, fb3) = prepped
    B = x_nchw.shape[0]
    Bp = -(-B // 8) * 8                         # pad batch to a multiple of 8 sublanes
    bt = _pick_batch_tile(Bp, min_grid_steps=min_grid_steps)

    x = x_nchw.astype(jnp.bfloat16)             # bf16 storage; f32 accumulation in-kernel
    if Bp != B:
        x = jnp.pad(x, ((0, Bp - B), (0, 0), (0, 0), (0, 0)))
    x = jnp.transpose(x, (0, 2, 3, 1))                                   # NCHW -> NHWC

    # conv1 (3->6, k=5) + ReLU + 2x2 max-pool.
    p1 = _conv1_patch_rows(x, k=5, npos_pad=200)                         # (Bp*800, 75) bf16
    h1 = conv1_relu_pool(p1, w1, b1, batch=Bp, bt=bt, npos=200)          # (Bp*200, 6) bf16
    # rows 196..199 of each image are relu(b1) padding garbage -> sliced off here.
    h1 = h1.reshape(Bp, 200, 6)[:, :196, :].reshape(Bp, 14, 14, 6)

    # conv2 (6->16, k=5) + ReLU + pool + fc1/fc2/fc3: ONE fused kernel; the
    # pooled conv2 activation never leaves VMEM, output is lane-dense (bt,128).
    p2 = _conv2_patch_rows(h1, k=5, npos_pad=32, bt=bt)                  # (Bp*128, 150) bf16
    logits = conv2_mlp(p2, w2, b2, fw1, fb1, fw2, fb2, fw3, fb3,
                       batch=Bp, bt=bt, npos=32, real_pos=25)            # (Bp, 128) f32
    return logits[:B, :10]


# ----------------------------------------------------------------------------
# Pure-JAX reference (PyTorch semantics, NCHW, f32) for validation
# ----------------------------------------------------------------------------
def net_forward_ref(x, params):
    (c1w, c1b, c2w, c2b, f1w, f1b, f2w, f2b, f3w, f3b) = params

    def conv(x, w, b):
        y = jax.lax.conv_general_dilated(
            x, w, (1, 1), "VALID",
            dimension_numbers=("NCHW", "OIHW", "NCHW"),
            precision=jax.lax.Precision.HIGHEST)
        return y + b[None, :, None, None]

    def pool(x):
        B, C, H, W = x.shape
        return x.reshape(B, C, H // 2, 2, W // 2, 2).max(axis=(3, 5))

    h = pool(jnp.maximum(conv(x, c1w, c1b), 0.0))
    h = pool(jnp.maximum(conv(h, c2w, c2b), 0.0))
    h = h.reshape(h.shape[0], -1)
    h = jnp.maximum(jnp.dot(h, f1w.T, precision=jax.lax.Precision.HIGHEST) + f1b, 0.0)
    h = jnp.maximum(jnp.dot(h, f2w.T, precision=jax.lax.Precision.HIGHEST) + f2b, 0.0)
    return jnp.dot(h, f3w.T, precision=jax.lax.Precision.HIGHEST) + f3b


# ----------------------------------------------------------------------------
# main
# ----------------------------------------------------------------------------
if __name__ == "__main__":
    key = jax.random.PRNGKey(0)
    ks = jax.random.split(key, 11)

    # deterministic synthetic parameters (PyTorch layouts)
    params = (
        jax.random.normal(ks[0], (6, 3, 5, 5), jnp.float32) * 0.1,    # conv1.weight (O,I,KH,KW)
        jax.random.normal(ks[1], (6,), jnp.float32) * 0.1,            # conv1.bias
        jax.random.normal(ks[2], (16, 6, 5, 5), jnp.float32) * 0.1,   # conv2.weight
        jax.random.normal(ks[3], (16,), jnp.float32) * 0.1,           # conv2.bias
        jax.random.normal(ks[4], (120, 400), jnp.float32) * 0.05,     # fc1.weight (out, in)
        jax.random.normal(ks[5], (120,), jnp.float32) * 0.05,         # fc1.bias
        jax.random.normal(ks[6], (84, 120), jnp.float32) * 0.05,      # fc2.weight
        jax.random.normal(ks[7], (84,), jnp.float32) * 0.05,          # fc2.bias
        jax.random.normal(ks[8], (10, 84), jnp.float32) * 0.05,       # fc3.weight
        jax.random.normal(ks[9], (10,), jnp.float32) * 0.05,          # fc3.bias
    )

    # input: NCHW, CIFAR-10 geometry (required by the 16*5*5 flatten)
    x = jax.random.normal(ks[10], (2, 3, 32, 32), jnp.float32)

    prepped = prepare_params(params)                 # one-time weight prep, outside forward
    fwd = jax.jit(net_forward_pallas)

    out = jax.block_until_ready(fwd(x, prepped))
    assert out.shape == (2, 10)

    ref = jax.block_until_ready(net_forward_ref(x, params))
    # bf16 storage of activations/weights (f32 accumulate) per the perf review,
    # so the tolerance vs. the f32 HIGHEST-precision reference is 2e-2.
    np.testing.assert_allclose(np.asarray(out), np.asarray(ref), atol=2e-2, rtol=2e-2)

    print("KERNEL_OK")
</pallas_src>

<mosaic_0001>
module attributes {stable_mosaic.version = 11 : i64} {
  func.func @_conv1_relu_pool_kernel(%arg0: i32, %arg1: memref<6400x75xbf16, #tpu.memory_space<vmem>>, %arg2: memref<75x6xbf16, #tpu.memory_space<vmem>>, %arg3: memref<1x6xf32, #tpu.memory_space<vmem>>, %arg4: memref<1600x6xbf16, #tpu.memory_space<vmem>>) attributes {dimension_semantics = [#tpu.dimension_semantics<parallel>], iteration_bounds = array<i64: 1>, scalar_prefetch = 0 : i64, scratch_operands = 0 : i64, tpu.core_type = #tpu.core_type<tc>, window_params = [{transform_indices = @transform_0, window_bounds = array<i64: 6400, 75>}, {pipeline_mode = #tpu.pipeline_mode<synchronous>, transform_indices = @transform_1, window_bounds = array<i64: 75, 6>}, {pipeline_mode = #tpu.pipeline_mode<synchronous>, transform_indices = @transform_2, window_bounds = array<i64: 1, 6>}, {transform_indices = @transform_3, window_bounds = array<i64: 1600, 6>}]} {
    %c0 = arith.constant 0 : index
    %c0_0 = arith.constant 0 : index
    %0 = vector.load %arg2[%c0, %c0_0] : memref<75x6xbf16, #tpu.memory_space<vmem>>, vector<75x6xbf16>
    %c0_1 = arith.constant 0 : index
    %c0_2 = arith.constant 0 : index
    %1 = vector.load %arg3[%c0_1, %c0_2] : memref<1x6xf32, #tpu.memory_space<vmem>>, vector<1x6xf32>
    %2 = vector.shape_cast %1 : vector<1x6xf32> to vector<1x6xf32>
    %3 = vector.broadcast %2 : vector<1x6xf32> to vector<200x6xf32>
    %c0_3 = arith.constant 0 : index
    %c0_4 = arith.constant 0 : index
    %4 = vector.load %arg1[%c0_3, %c0_4] : memref<6400x75xbf16, #tpu.memory_space<vmem>>, vector<800x75xbf16>
    %cst = arith.constant dense<0.000000e+00> : vector<800x6xf32>
    %5 = tpu.matmul %4, %0, %cst {dimension_numbers = #tpu.dot_dimension_numbers<[1], [0], [0], [1], [0, 0, 1, 1], [], []>} : vector<800x75xbf16>, vector<75x6xbf16>, vector<800x6xf32> -> vector<800x6xf32>
    %6 = vector.extract_strided_slice %5 {offsets = [0, 0], sizes = [200, 6], strides = [1, 1]} : vector<800x6xf32> to vector<200x6xf32>
    %7 = vector.extract_strided_slice %5 {offsets = [200, 0], sizes = [200, 6], strides = [1, 1]} : vector<800x6xf32> to vector<200x6xf32>
    %8 = arith.maximumf %6, %7 : vector<200x6xf32>
    %9 = vector.extract_strided_slice %5 {offsets = [400, 0], sizes = [200, 6], strides = [1, 1]} : vector<800x6xf32> to vector<200x6xf32>
    %10 = vector.extract_strided_slice %5 {offsets = [600, 0], sizes = [200, 6], strides = [1, 1]} : vector<800x6xf32> to vector<200x6xf32>
    %11 = arith.maximumf %9, %10 : vector<200x6xf32>
    %12 = arith.maximumf %8, %11 : vector<200x6xf32>
    %13 = arith.addf %12, %3 : vector<200x6xf32>
    %cst_5 = arith.constant 0.000000e+00 : f32
    %14 = vector.broadcast %cst_5 : f32 to vector<200x6xf32>
    %15 = arith.maximumf %13, %14 : vector<200x6xf32>
    %16 = arith.truncf %15 : vector<200x6xf32> to vector<200x6xbf16>
    %c0_6 = arith.constant 0 : index
    %c0_7 = arith.constant 0 : index
    %17 = vector.load %arg4[%c0_6, %c0_7] : memref<1600x6xbf16, #tpu.memory_space<vmem>>, vector<200x6xbf16>
    tpu.vector_store %arg4[%c0_6, %c0_7], %16 {strides = array<i32>} : memref<1600x6xbf16, #tpu.memory_space<vmem>>, vector<200x6xbf16>,
    %c800 = arith.constant 800 : index
    %c0_8 = arith.constant 0 : index
    %18 = vector.load %arg1[%c800, %c0_8] : memref<6400x75xbf16, #tpu.memory_space<vmem>>, vector<800x75xbf16>
    %cst_9 = arith.constant dense<0.000000e+00> : vector<800x6xf32>
    %19 = tpu.matmul %18, %0, %cst_9 {dimension_numbers = #tpu.dot_dimension_numbers<[1], [0], [0], [1], [0, 0, 1, 1], [], []>} : vector<800x75xbf16>, vector<75x6xbf16>, vector<800x6xf32> -> vector<800x6xf32>
    %20 = vector.extract_strided_slice %19 {offsets = [0, 0], sizes = [200, 6], strides = [1, 1]} : vector<800x6xf32> to vector<200x6xf32>
    %21 = vector.extract_strided_slice %19 {offsets = [200, 0], sizes = [200, 6], strides = [1, 1]} : vector<800x6xf32> to vector<200x6xf32>
    %22 = arith.maximumf %20, %21 : vector<200x6xf32>
    %23 = vector.extract_strided_slice %19 {offsets = [400, 0], sizes = [200, 6], strides = [1, 1]} : vector<800x6xf32> to vector<200x6xf32>
    %24 = vector.extract_strided_slice %19 {offsets = [600, 0], sizes = [200, 6], strides = [1, 1]} : vector<800x6xf32> to vector<200x6xf32>
    %25 = arith.maximumf %23, %24 : vector<200x6xf32>
    %26 = arith.maximumf %22, %25 : vector<200x6xf32>
    %27 = arith.addf %26, %3 : vector<200x6xf32>
    %cst_10 = arith.constant 0.000000e+00 : f32
    %28 = vector.broadcast %cst_10 : f32 to vector<200x6xf32>
    %29 = arith.maximumf %27, %28 : vector<200x6xf32>
    %30 = arith.truncf %29 : vector<200x6xf32> to vector<200x6xbf16>
    %c200 = arith.constant 200 : index
    %c0_11 = arith.constant 0 : index
    %31 = vector.load %arg4[%c200, %c0_11] : memref<1600x6xbf16, #tpu.memory_space<vmem>>, vector<200x6xbf16>
    tpu.vector_store %arg4[%c200, %c0_11], %30 {strides = array<i32>} : memref<1600x6xbf16, #tpu.memory_space<vmem>>, vector<200x6xbf16>,
    %c1600 = arith.constant 1600 : index
    %c0_12 = arith.constant 0 : index
    %32 = vector.load %arg1[%c1600, %c0_12] : memref<6400x75xbf16, #tpu.memory_space<vmem>>, vector<800x75xbf16>
    %cst_13 = arith.constant dense<0.000000e+00> : vector<800x6xf32>
    %33 = tpu.matmul %32, %0, %cst_13 {dimension_numbers = #tpu.dot_dimension_numbers<[1], [0], [0], [1], [0, 0, 1, 1], [], []>} : vector<800x75xbf16>, vector<75x6xbf16>, vector<800x6xf32> -> vector<800x6xf32>
    %34 = vector.extract_strided_slice %33 {offsets = [0, 0], sizes = [200, 6], strides = [1, 1]} : vector<800x6xf32> to vector<200x6xf32>
    %35 = vector.extract_strided_slice %33 {offsets = [200, 0], sizes = [200, 6], strides = [1, 1]} : vector<800x6xf32> to vector<200x6xf32>
    %36 = arith.maximumf %34, %35 : vector<200x6xf32>
    %37 = vector.extract_strided_slice %33 {offsets = [400, 0], sizes = [200, 6], strides = [1, 1]} : vector<800x6xf32> to vector<200x6xf32>
    %38 = vector.extract_strided_slice %33 {offsets = [600, 0], sizes = [200, 6], strides = [1, 1]} : vector<800x6xf32> to vector<200x6xf32>
    %39 = arith.maximumf %37, %38 : vector<200x6xf32>
    %40 = arith.maximumf %36, %39 : vector<200x6xf32>
    %41 = arith.addf %40, %3 : vector<200x6xf32>
    %cst_14 = arith.constant 0.000000e+00 : f32
    %42 = vector.broadcast %cst_14 : f32 to vector<200x6xf32>
    %43 = arith.maximumf %41, %42 : vector<200x6xf32>
    %44 = arith.truncf %43 : vector<200x6xf32> to vector<200x6xbf16>
    %c400 = arith.constant 400 : index
    %c0_15 = arith.constant 0 : index
    %45 = vector.load %arg4[%c400, %c0_15] : memref<1600x6xbf16, #tpu.memory_space<vmem>>, vector<200x6xbf16>
    tpu.vector_store %arg4[%c400, %c0_15], %44 {strides = array<i32>} : memref<1600x6xbf16, #tpu.memory_space<vmem>>, vector<200x6xbf16>,
    %c2400 = arith.constant 2400 : index
    %c0_16 = arith.constant 0 : index
    %46 = vector.load %arg1[%c2400, %c0_16] : memref<6400x75xbf16, #tpu.memory_space<vmem>>, vector<800x75xbf16>
    %cst_17 = arith.constant dense<0.000000e+00> : vector<800x6xf32>
    %47 = tpu.matmul %46, %0, %cst_17 {dimension_numbers = #tpu.dot_dimension_numbers<[1], [0], [0], [1], [0, 0, 1, 1], [], []>} : vector<800x75xbf16>, vector<75x6xbf16>, vector<800x6xf32> -> vector<800x6xf32>
    %48 = vector.extract_strided_slice %47 {offsets = [0, 0], sizes = [200, 6], strides = [1, 1]} : vector<800x6xf32> to vector<200x6xf32>
    %49 = vector.extract_strided_slice %47 {offsets = [200, 0], sizes = [200, 6], strides = [1, 1]} : vector<800x6xf32> to vector<200x6xf32>
    %50 = arith.maximumf %48, %49 : vector<200x6xf32>
    %51 = vector.extract_strided_slice %47 {offsets = [400, 0], sizes = [200, 6], strides = [1, 1]} : vector<800x6xf32> to vector<200x6xf32>
    %52 = vector.extract_strided_slice %47 {offsets = [600, 0], sizes = [200, 6], strides = [1, 1]} : vector<800x6xf32> to vector<200x6xf32>
    %53 = arith.maximumf %51, %52 : vector<200x6xf32>
    %54 = arith.maximumf %50, %53 : vector<200x6xf32>
    %55 = arith.addf %54, %3 : vector<200x6xf32>
    %cst_18 = arith.constant 0.000000e+00 : f32
    %56 = vector.broadcast %cst_18 : f32 to vector<200x6xf32>
    %57 = arith.maximumf %55, %56 : vector<200x6xf32>
    %58 = arith.truncf %57 : vector<200x6xf32> to vector<200x6xbf16>
    %c600 = arith.constant 600 : index
    %c0_19 = arith.constant 0 : index
    %59 = vector.load %arg4[%c600, %c0_19] : memref<1600x6xbf16, #tpu.memory_space<vmem>>, vector<200x6xbf16>
    tpu.vector_store %arg4[%c600, %c0_19], %58 {strides = array<i32>} : memref<1600x6xbf16, #tpu.memory_space<vmem>>, vector<200x6xbf16>,
    %c3200 = arith.constant 3200 : index
    %c0_20 = arith.constant 0 : index
    %60 = vector.load %arg1[%c3200, %c0_20] : memref<6400x75xbf16, #tpu.memory_space<vmem>>, vector<800x75xbf16>
    %cst_21 = arith.constant dense<0.000000e+00> : vector<800x6xf32>
    %61 = tpu.matmul %60, %0, %cst_21 {dimension_numbers = #tpu.dot_dimension_numbers<[1], [0], [0], [1], [0, 0, 1, 1], [], []>} : vector<800x75xbf16>, vector<75x6xbf16>, vector<800x6xf32> -> vector<800x6xf32>
    %62 = vector.extract_strided_slice %61 {offsets = [0, 0], sizes = [200, 6], strides = [1, 1]} : vector<800x6xf32> to vector<200x6xf32>
    %63 = vector.extract_strided_slice %61 {offsets = [200, 0], sizes = [200, 6], strides = [1, 1]} : vector<800x6xf32> to vector<200x6xf32>
    %64 = arith.maximumf %62, %63 : vector<200x6xf32>
    %65 = vector.extract_strided_slice %61 {offsets = [400, 0], sizes = [200, 6], strides = [1, 1]} : vector<800x6xf32> to vector<200x6xf32>
    %66 = vector.extract_strided_slice %61 {offsets = [600, 0], sizes = [200, 6], strides = [1, 1]} : vector<800x6xf32> to vector<200x6xf32>
    %67 = arith.maximumf %65, %66 : vector<200x6xf32>
    %68 = arith.maximumf %64, %67 : vector<200x6xf32>
    %69 = arith.addf %68, %3 : vector<200x6xf32>
    %cst_22 = arith.constant 0.000000e+00 : f32
    %70 = vector.broadcast %cst_22 : f32 to vector<200x6xf32>
    %71 = arith.maximumf %69, %70 : vector<200x6xf32>
    %72 = arith.truncf %71 : vector<200x6xf32> to vector<200x6xbf16>
    %c800_23 = arith.constant 800 : index
    %c0_24 = arith.constant 0 : index
    %73 = vector.load %arg4[%c800_23, %c0_24] : memref<1600x6xbf16, #tpu.memory_space<vmem>>, vector<200x6xbf16>
    tpu.vector_store %arg4[%c800_23, %c0_24], %72 {strides = array<i32>} : memref<1600x6xbf16, #tpu.memory_space<vmem>>, vector<200x6xbf16>,
    %c4000 = arith.constant 4000 : index
    %c0_25 = arith.constant 0 : index
    %74 = vector.load %arg1[%c4000, %c0_25] : memref<6400x75xbf16, #tpu.memory_space<vmem>>, vector<800x75xbf16>
    %cst_26 = arith.constant dense<0.000000e+00> : vector<800x6xf32>
    %75 = tpu.matmul %74, %0, %cst_26 {dimension_numbers = #tpu.dot_dimension_numbers<[1], [0], [0], [1], [0, 0, 1, 1], [], []>} : vector<800x75xbf16>, vector<75x6xbf16>, vector<800x6xf32> -> vector<800x6xf32>
    %76 = vector.extract_strided_slice %75 {offsets = [0, 0], sizes = [200, 6], strides = [1, 1]} : vector<800x6xf32> to vector<200x6xf32>
    %77 = vector.extract_strided_slice %75 {offsets = [200, 0], sizes = [200, 6], strides = [1, 1]} : vector<800x6xf32> to vector<200x6xf32>
    %78 = arith.maximumf %76, %77 : vector<200x6xf32>
    %79 = vector.extract_strided_slice %75 {offsets = [400, 0], sizes = [200, 6], strides = [1, 1]} : vector<800x6xf32> to vector<200x6xf32>
    %80 = vector.extract_strided_slice %75 {offsets = [600, 0], sizes = [200, 6], strides = [1, 1]} : vector<800x6xf32> to vector<200x6xf32>
    %81 = arith.maximumf %79, %80 : vector<200x6xf32>
    %82 = arith.maximumf %78, %81 : vector<200x6xf32>
    %83 = arith.addf %82, %3 : vector<200x6xf32>
    %cst_27 = arith.constant 0.000000e+00 : f32
    %84 = vector.broadcast %cst_27 : f32 to vector<200x6xf32>
    %85 = arith.maximumf %83, %84 : vector<200x6xf32>
    %86 = arith.truncf %85 : vector<200x6xf32> to vector<200x6xbf16>
    %c1000 = arith.constant 1000 : index
    %c0_28 = arith.constant 0 : index
    %87 = vector.load %arg4[%c1000, %c0_28] : memref<1600x6xbf16, #tpu.memory_space<vmem>>, vector<200x6xbf16>
    tpu.vector_store %arg4[%c1000, %c0_28], %86 {strides = array<i32>} : memref<1600x6xbf16, #tpu.memory_space<vmem>>, vector<200x6xbf16>,
    %c4800 = arith.constant 4800 : index
    %c0_29 = arith.constant 0 : index
    %88 = vector.load %arg1[%c4800, %c0_29] : memref<6400x75xbf16, #tpu.memory_space<vmem>>, vector<800x75xbf16>
    %cst_30 = arith.constant dense<0.000000e+00> : vector<800x6xf32>
    %89 = tpu.matmul %88, %0, %cst_30 {dimension_numbers = #tpu.dot_dimension_numbers<[1], [0], [0], [1], [0, 0, 1, 1], [], []>} : vector<800x75xbf16>, vector<75x6xbf16>, vector<800x6xf32> -> vector<800x6xf32>
    %90 = vector.extract_strided_slice %89 {offsets = [0, 0], sizes = [200, 6], strides = [1, 1]} : vector<800x6xf32> to vector<200x6xf32>
    %91 = vector.extract_strided_slice %89 {offsets = [200, 0], sizes = [200, 6], strides = [1, 1]} : vector<800x6xf32> to vector<200x6xf32>
    %92 = arith.maximumf %90, %91 : vector<200x6xf32>
    %93 = vector.extract_strided_slice %89 {offsets = [400, 0], sizes = [200, 6], strides = [1, 1]} : vector<800x6xf32> to vector<200x6xf32>
    %94 = vector.extract_strided_slice %89 {offsets = [600, 0], sizes = [200, 6], strides = [1, 1]} : vector<800x6xf32> to vector<200x6xf32>
    %95 = arith.maximumf %93, %94 : vector<200x6xf32>
    %96 = arith.maximumf %92, %95 : vector<200x6xf32>
    %97 = arith.addf %96, %3 : vector<200x6xf32>
    %cst_31 = arith.constant 0.000000e+00 : f32
    %98 = vector.broadcast %cst_31 : f32 to vector<200x6xf32>
    %99 = arith.maximumf %97, %98 : vector<200x6xf32>
    %100 = arith.truncf %99 : vector<200x6xf32> to vector<200x6xbf16>
    %c1200 = arith.constant 1200 : index
    %c0_32 = arith.constant 0 : index
    %101 = vector.load %arg4[%c1200, %c0_32] : memref<1600x6xbf16, #tpu.memory_space<vmem>>, vector<200x6xbf16>
    tpu.vector_store %arg4[%c1200, %c0_32], %100 {strides = array<i32>} : memref<1600x6xbf16, #tpu.memory_space<vmem>>, vector<200x6xbf16>,
    %c5600 = arith.constant 5600 : index
    %c0_33 = arith.constant 0 : index
    %102 = vector.load %arg1[%c5600, %c0_33] : memref<6400x75xbf16, #tpu.memory_space<vmem>>, vector<800x75xbf16>
    %cst_34 = arith.constant dense<0.000000e+00> : vector<800x6xf32>
    %103 = tpu.matmul %102, %0, %cst_34 {dimension_numbers = #tpu.dot_dimension_numbers<[1], [0], [0], [1], [0, 0, 1, 1], [], []>} : vector<800x75xbf16>, vector<75x6xbf16>, vector<800x6xf32> -> vector<800x6xf32>
    %104 = vector.extract_strided_slice %103 {offsets = [0, 0], sizes = [200, 6], strides = [1, 1]} : vector<800x6xf32> to vector<200x6xf32>
    %105 = vector.extract_strided_slice %103 {offsets = [200, 0], sizes = [200, 6], strides = [1, 1]} : vector<800x6xf32> to vector<200x6xf32>
    %106 = arith.maximumf %104, %105 : vector<200x6xf32>
    %107 = vector.extract_strided_slice %103 {offsets = [400, 0], sizes = [200, 6], strides = [1, 1]} : vector<800x6xf32> to vector<200x6xf32>
    %108 = vector.extract_strided_slice %103 {offsets = [600, 0], sizes = [200, 6], strides = [1, 1]} : vector<800x6xf32> to vector<200x6xf32>
    %109 = arith.maximumf %107, %108 : vector<200x6xf32>
    %110 = arith.maximumf %106, %109 : vector<200x6xf32>
    %111 = arith.addf %110, %3 : vector<200x6xf32>
    %cst_35 = arith.constant 0.000000e+00 : f32
    %112 = vector.broadcast %cst_35 : f32 to vector<200x6xf32>
    %113 = arith.maximumf %111, %112 : vector<200x6xf32>
    %114 = arith.truncf %113 : vector<200x6xf32> to vector<200x6xbf16>
    %c1400 = arith.constant 1400 : index
    %c0_36 = arith.constant 0 : index
    %115 = vector.load %arg4[%c1400, %c0_36] : memref<1600x6xbf16, #tpu.memory_space<vmem>>, vector<200x6xbf16>
    tpu.vector_store %arg4[%c1400, %c0_36], %114 {strides = array<i32>} : memref<1600x6xbf16, #tpu.memory_space<vmem>>, vector<200x6xbf16>,
    return
  }
  func.func @transform_0(%arg0: i32) -> (i32, i32) {
    %c0_i32 = arith.constant 0 : i32
    %c0_i32_0 = arith.constant 0 : i32
    return %arg0, %c0_i32 : i32, i32
  }
  func.func @transform_1(%arg0: i32) -> (i32, i32) {
    %c0_i32 = arith.constant 0 : i32
    %c0_i32_0 = arith.constant 0 : i32
    %c0_i32_1 = arith.constant 0 : i32
    return %c0_i32, %c0_i32_0 : i32, i32
  }
  func.func @transform_2(%arg0: i32) -> (i32, i32) {
    %c0_i32 = arith.constant 0 : i32
    %c0_i32_0 = arith.constant 0 : i32
    %c0_i32_1 = arith.constant 0 : i32
    return %c0_i32, %c0_i32_0 : i32, i32
  }
  func.func @transform_3(%arg0: i32) -> (i32, i32) {
    %c0_i32 = arith.constant 0 : i32
    %c0_i32_0 = arith.constant 0 : i32
    return %arg0, %c0_i32 : i32, i32
  }
}

module attributes {stable_mosaic.version = 11 : i64} {
  func.func @_conv2_mlp_kernel(%arg0: i32, %arg1: memref<1024x150xbf16, #tpu.memory_space<vmem>>, %arg2: memref<150x16xbf16, #tpu.memory_space<vmem>>, %arg3: memref<1x16xf32, #tpu.memory_space<vmem>>, %arg4: memref<400x128xbf16, #tpu.memory_space<vmem>>, %arg5: memref<1x128xf32, #tpu.memory_space<vmem>>, %arg6: memref<128x128xbf16, #tpu.memory_space<vmem>>, %arg7: memref<1x128xf32, #tpu.memory_space<vmem>>, %arg8: memref<128x128xbf16, #tpu.memory_space<vmem>>, %arg9: memref<1x128xf32, #tpu.memory_space<vmem>>, %arg10: memref<8x128xf32, #tpu.memory_space<vmem>>) attributes {dimension_semantics = [#tpu.dimension_semantics<parallel>], iteration_bounds = array<i64: 1>, scalar_prefetch = 0 : i64, scratch_operands = 0 : i64, tpu.core_type = #tpu.core_type<tc>, window_params = [{transform_indices = @transform_0, window_bounds = array<i64: 1024, 150>}, {pipeline_mode = #tpu.pipeline_mode<synchronous>, transform_indices = @transform_1, window_bounds = array<i64: 150, 16>}, {pipeline_mode = #tpu.pipeline_mode<synchronous>, transform_indices = @transform_2, window_bounds = array<i64: 1, 16>}, {pipeline_mode = #tpu.pipeline_mode<synchronous>, transform_indices = @transform_3, window_bounds = array<i64: 400, 128>}, {pipeline_mode = #tpu.pipeline_mode<synchronous>, transform_indices = @transform_4, window_bounds = array<i64: 1, 128>}, {pipeline_mode = #tpu.pipeline_mode<synchronous>, transform_indices = @transform_5, window_bounds = array<i64: 128, 128>}, {pipeline_mode = #tpu.pipeline_mode<synchronous>, transform_indices = @transform_6, window_bounds = array<i64: 1, 128>}, {pipeline_mode = #tpu.pipeline_mode<synchronous>, transform_indices = @transform_7, window_bounds = array<i64: 128, 128>}, {pipeline_mode = #tpu.pipeline_mode<synchronous>, transform_indices = @transform_8, window_bounds = array<i64: 1, 128>}, {transform_indices = @transform_9, window_bounds = array<i64: 8, 128>}]} {
    %c0 = arith.constant 0 : index
    %c0_0 = arith.constant 0 : index
    %0 = vector.load %arg1[%c0, %c0_0] : memref<1024x150xbf16, #tpu.memory_space<vmem>>, vector<1024x150xbf16>
    %c0_1 = arith.constant 0 : index
    %c0_2 = arith.constant 0 : index
    %1 = vector.load %arg2[%c0_1, %c0_2] : memref<150x16xbf16, #tpu.memory_space<vmem>>, vector<150x16xbf16>
    %cst = arith.constant dense<0.000000e+00> : vector<1024x16xf32>
    %2 = tpu.matmul %0, %1, %cst {dimension_numbers = #tpu.dot_dimension_numbers<[1], [0], [0], [1], [0, 0, 1, 1], [], []>} : vector<1024x150xbf16>, vector<150x16xbf16>, vector<1024x16xf32> -> vector<1024x16xf32>
    %3 = vector.extract_strided_slice %2 {offsets = [0, 0], sizes = [256, 16], strides = [1, 1]} : vector<1024x16xf32> to vector<256x16xf32>
    %4 = vector.extract_strided_slice %2 {offsets = [256, 0], sizes = [256, 16], strides = [1, 1]} : vector<1024x16xf32> to vector<256x16xf32>
    %5 = arith.maximumf %3, %4 : vector<256x16xf32>
    %6 = vector.extract_strided_slice %2 {offsets = [512, 0], sizes = [256, 16], strides = [1, 1]} : vector<1024x16xf32> to vector<256x16xf32>
    %7 = vector.extract_strided_slice %2 {offsets = [768, 0], sizes = [256, 16], strides = [1, 1]} : vector<1024x16xf32> to vector<256x16xf32>
    %8 = arith.maximumf %6, %7 : vector<256x16xf32>
    %9 = arith.maximumf %5, %8 : vector<256x16xf32>
    %c0_3 = arith.constant 0 : index
    %c0_4 = arith.constant 0 : index
    %10 = vector.load %arg3[%c0_3, %c0_4] : memref<1x16xf32, #tpu.memory_space<vmem>>, vector<1x16xf32>
    %11 = vector.broadcast %10 : vector<1x16xf32> to vector<256x16xf32>
    %12 = arith.addf %9, %11 : vector<256x16xf32>
    %cst_5 = arith.constant 0.000000e+00 : f32
    %13 = vector.broadcast %cst_5 : f32 to vector<256x16xf32>
    %14 = arith.maximumf %12, %13 : vector<256x16xf32>
    %cst_6 = arith.constant 0.000000e+00 : f32
    %15 = vector.broadcast %cst_6 : f32 to vector<8x128xf32>
    %16 = vector.extract_strided_slice %14 {offsets = [0, 0], sizes = [8, 16], strides = [1, 1]} : vector<256x16xf32> to vector<8x16xf32>
    %17 = arith.truncf %16 : vector<8x16xf32> to vector<8x16xbf16>
    %c0_7 = arith.constant 0 : index
    %c0_8 = arith.constant 0 : index
    %18 = vector.load %arg4[%c0_7, %c0_8] : memref<400x128xbf16, #tpu.memory_space<vmem>>, vector<16x128xbf16>
    %cst_9 = arith.constant dense<0.000000e+00> : vector<8x128xf32>
    %19 = tpu.matmul %17, %18, %cst_9 {dimension_numbers = #tpu.dot_dimension_numbers<[1], [0], [0], [1], [0, 0, 1, 1], [], []>} : vector<8x16xbf16>, vector<16x128xbf16>, vector<8x128xf32> -> vector<8x128xf32>
    %20 = arith.addf %15, %19 : vector<8x128xf32>
    %21 = vector.extract_strided_slice %14 {offsets = [8, 0], sizes = [8, 16], strides = [1, 1]} : vector<256x16xf32> to vector<8x16xf32>
    %22 = arith.truncf %21 : vector<8x16xf32> to vector<8x16xbf16>
    %c16 = arith.constant 16 : index
    %c0_10 = arith.constant 0 : index
    %23 = vector.load %arg4[%c16, %c0_10] : memref<400x128xbf16, #tpu.memory_space<vmem>>, vector<16x128xbf16>
    %cst_11 = arith.constant dense<0.000000e+00> : vector<8x128xf32>
    %24 = tpu.matmul %22, %23, %cst_11 {dimension_numbers = #tpu.dot_dimension_numbers<[1], [0], [0], [1], [0, 0, 1, 1], [], []>} : vector<8x16xbf16>, vector<16x128xbf16>, vector<8x128xf32> -> vector<8x128xf32>
    %25 = arith.addf %20, %24 : vector<8x128xf32>
    %26 = vector.extract_strided_slice %14 {offsets = [16, 0], sizes = [8, 16], strides = [1, 1]} : vector<256x16xf32> to vector<8x16xf32>
    %27 = arith.truncf %26 : vector<8x16xf32> to vector<8x16xbf16>
    %c32 = arith.constant 32 : index
    %c0_12 = arith.constant 0 : index
    %28 = vector.load %arg4[%c32, %c0_12] : memref<400x128xbf16, #tpu.memory_space<vmem>>, vector<16x128xbf16>
    %cst_13 = arith.constant dense<0.000000e+00> : vector<8x128xf32>
    %29 = tpu.matmul %27, %28, %cst_13 {dimension_numbers = #tpu.dot_dimension_numbers<[1], [0], [0], [1], [0, 0, 1, 1], [], []>} : vector<8x16xbf16>, vector<16x128xbf16>, vector<8x128xf32> -> vector<8x128xf32>
    %30 = arith.addf %25, %29 : vector<8x128xf32>
    %31 = vector.extract_strided_slice %14 {offsets = [24, 0], sizes = [8, 16], strides = [1, 1]} : vector<256x16xf32> to vector<8x16xf32>
    %32 = arith.truncf %31 : vector<8x16xf32> to vector<8x16xbf16>
    %c48 = arith.constant 48 : index
    %c0_14 = arith.constant 0 : index
    %33 = vector.load %arg4[%c48, %c0_14] : memref<400x128xbf16, #tpu.memory_space<vmem>>, vector<16x128xbf16>
    %cst_15 = arith.constant dense<0.000000e+00> : vector<8x128xf32>
    %34 = tpu.matmul %32, %33, %cst_15 {dimension_numbers = #tpu.dot_dimension_numbers<[1], [0], [0], [1], [0, 0, 1, 1], [], []>} : vector<8x16xbf16>, vector<16x128xbf16>, vector<8x128xf32> -> vector<8x128xf32>
    %35 = arith.addf %30, %34 : vector<8x128xf32>
    %36 = vector.extract_strided_slice %14 {offsets = [32, 0], sizes = [8, 16], strides = [1, 1]} : vector<256x16xf32> to vector<8x16xf32>
    %37 = arith.truncf %36 : vector<8x16xf32> to vector<8x16xbf16>
    %c64 = arith.constant 64 : index
    %c0_16 = arith.constant 0 : index
    %38 = vector.load %arg4[%c64, %c0_16] : memref<400x128xbf16, #tpu.memory_space<vmem>>, vector<16x128xbf16>
    %cst_17 = arith.constant dense<0.000000e+00> : vector<8x128xf32>
    %39 = tpu.matmul %37, %38, %cst_17 {dimension_numbers = #tpu.dot_dimension_numbers<[1], [0], [0], [1], [0, 0, 1, 1], [], []>} : vector<8x16xbf16>, vector<16x128xbf16>, vector<8x128xf32> -> vector<8x128xf32>
    %40 = arith.addf %35, %39 : vector<8x128xf32>
    %41 = vector.extract_strided_slice %14 {offsets = [40, 0], sizes = [8, 16], strides = [1, 1]} : vector<256x16xf32> to vector<8x16xf32>
    %42 = arith.truncf %41 : vector<8x16xf32> to vector<8x16xbf16>
    %c80 = arith.constant 80 : index
    %c0_18 = arith.constant 0 : index
    %43 = vector.load %arg4[%c80, %c0_18] : memref<400x128xbf16, #tpu.memory_space<vmem>>, vector<16x128xbf16>
    %cst_19 = arith.constant dense<0.000000e+00> : vector<8x128xf32>
    %44 = tpu.matmul %42, %43, %cst_19 {dimension_numbers = #tpu.dot_dimension_numbers<[1], [0], [0], [1], [0, 0, 1, 1], [], []>} : vector<8x16xbf16>, vector<16x128xbf16>, vector<8x128xf32> -> vector<8x128xf32>
    %45 = arith.addf %40, %44 : vector<8x128xf32>
    %46 = vector.extract_strided_slice %14 {offsets = [48, 0], sizes = [8, 16], strides = [1, 1]} : vector<256x16xf32> to vector<8x16xf32>
    %47 = arith.truncf %46 : vector<8x16xf32> to vector<8x16xbf16>
    %c96 = arith.constant 96 : index
    %c0_20 = arith.constant 0 : index
    %48 = vector.load %arg4[%c96, %c0_20] : memref<400x128xbf16, #tpu.memory_space<vmem>>, vector<16x128xbf16>
    %cst_21 = arith.constant dense<0.000000e+00> : vector<8x128xf32>
    %49 = tpu.matmul %47, %48, %cst_21 {dimension_numbers = #tpu.dot_dimension_numbers<[1], [0], [0], [1], [0, 0, 1, 1], [], []>} : vector<8x16xbf16>, vector<16x128xbf16>, vector<8x128xf32> -> vector<8x128xf32>
    %50 = arith.addf %45, %49 : vector<8x128xf32>
    %51 = vector.extract_strided_slice %14 {offsets = [56, 0], sizes = [8, 16], strides = [1, 1]} : vector<256x16xf32> to vector<8x16xf32>
    %52 = arith.truncf %51 : vector<8x16xf32> to vector<8x16xbf16>
    %c112 = arith.constant 112 : index
    %c0_22 = arith.constant 0 : index
    %53 = vector.load %arg4[%c112, %c0_22] : memref<400x128xbf16, #tpu.memory_space<vmem>>, vector<16x128xbf16>
    %cst_23 = arith.constant dense<0.000000e+00> : vector<8x128xf32>
    %54 = tpu.matmul %52, %53, %cst_23 {dimension_numbers = #tpu.dot_dimension_numbers<[1], [0], [0], [1], [0, 0, 1, 1], [], []>} : vector<8x16xbf16>, vector<16x128xbf16>, vector<8x128xf32> -> vector<8x128xf32>
    %55 = arith.addf %50, %54 : vector<8x128xf32>
    %56 = vector.extract_strided_slice %14 {offsets = [64, 0], sizes = [8, 16], strides = [1, 1]} : vector<256x16xf32> to vector<8x16xf32>
    %57 = arith.truncf %56 : vector<8x16xf32> to vector<8x16xbf16>
    %c128 = arith.constant 128 : index
    %c0_24 = arith.constant 0 : index
    %58 = vector.load %arg4[%c128, %c0_24] : memref<400x128xbf16, #tpu.memory_space<vmem>>, vector<16x128xbf16>
    %cst_25 = arith.constant dense<0.000000e+00> : vector<8x128xf32>
    %59 = tpu.matmul %57, %58, %cst_25 {dimension_numbers = #tpu.dot_dimension_numbers<[1], [0], [0], [1], [0, 0, 1, 1], [], []>} : vector<8x16xbf16>, vector<16x128xbf16>, vector<8x128xf32> -> vector<8x128xf32>
    %60 = arith.addf %55, %59 : vector<8x128xf32>
    %61 = vector.extract_strided_slice %14 {offsets = [72, 0], sizes = [8, 16], strides = [1, 1]} : vector<256x16xf32> to vector<8x16xf32>
    %62 = arith.truncf %61 : vector<8x16xf32> to vector<8x16xbf16>
    %c144 = arith.constant 144 : index
    %c0_26 = arith.constant 0 : index
    %63 = vector.load %arg4[%c144, %c0_26] : memref<400x128xbf16, #tpu.memory_space<vmem>>, vector<16x128xbf16>
    %cst_27 = arith.constant dense<0.000000e+00> : vector<8x128xf32>
    %64 = tpu.matmul %62, %63, %cst_27 {dimension_numbers = #tpu.dot_dimension_numbers<[1], [0], [0], [1], [0, 0, 1, 1], [], []>} : vector<8x16xbf16>, vector<16x128xbf16>, vector<8x128xf32> -> vector<8x128xf32>
    %65 = arith.addf %60, %64 : vector<8x128xf32>
    %66 = vector.extract_strided_slice %14 {offsets = [80, 0], sizes = [8, 16], strides = [1, 1]} : vector<256x16xf32> to vector<8x16xf32>
    %67 = arith.truncf %66 : vector<8x16xf32> to vector<8x16xbf16>
    %c160 = arith.constant 160 : index
    %c0_28 = arith.constant 0 : index
    %68 = vector.load %arg4[%c160, %c0_28] : memref<400x128xbf16, #tpu.memory_space<vmem>>, vector<16x128xbf16>
    %cst_29 = arith.constant dense<0.000000e+00> : vector<8x128xf32>
    %69 = tpu.matmul %67, %68, %cst_29 {dimension_numbers = #tpu.dot_dimension_numbers<[1], [0], [0], [1], [0, 0, 1, 1], [], []>} : vector<8x16xbf16>, vector<16x128xbf16>, vector<8x128xf32> -> vector<8x128xf32>
    %70 = arith.addf %65, %69 : vector<8x128xf32>
    %71 = vector.extract_strided_slice %14 {offsets = [88, 0], sizes = [8, 16], strides = [1, 1]} : vector<256x16xf32> to vector<8x16xf32>
    %72 = arith.truncf %71 : vector<8x16xf32> to vector<8x16xbf16>
    %c176 = arith.constant 176 : index
    %c0_30 = arith.constant 0 : index
    %73 = vector.load %arg4[%c176, %c0_30] : memref<400x128xbf16, #tpu.memory_space<vmem>>, vector<16x128xbf16>
    %cst_31 = arith.constant dense<0.000000e+00> : vector<8x128xf32>
    %74 = tpu.matmul %72, %73, %cst_31 {dimension_numbers = #tpu.dot_dimension_numbers<[1], [0], [0], [1], [0, 0, 1, 1], [], []>} : vector<8x16xbf16>, vector<16x128xbf16>, vector<8x128xf32> -> vector<8x128xf32>
    %75 = arith.addf %70, %74 : vector<8x128xf32>
    %76 = vector.extract_strided_slice %14 {offsets = [96, 0], sizes = [8, 16], strides = [1, 1]} : vector<256x16xf32> to vector<8x16xf32>
    %77 = arith.truncf %76 : vector<8x16xf32> to vector<8x16xbf16>
    %c192 = arith.constant 192 : index
    %c0_32 = arith.constant 0 : index
    %78 = vector.load %arg4[%c192, %c0_32] : memref<400x128xbf16, #tpu.memory_space<vmem>>, vector<16x128xbf16>
    %cst_33 = arith.constant dense<0.000000e+00> : vector<8x128xf32>
    %79 = tpu.matmul %77, %78, %cst_33 {dimension_numbers = #tpu.dot_dimension_numbers<[1], [0], [0], [1], [0, 0, 1, 1], [], []>} : vector<8x16xbf16>, vector<16x128xbf16>, vector<8x128xf32> -> vector<8x128xf32>
    %80 = arith.addf %75, %79 : vector<8x128xf32>
    %81 = vector.extract_strided_slice %14 {offsets = [104, 0], sizes = [8, 16], strides = [1, 1]} : vector<256x16xf32> to vector<8x16xf32>
    %82 = arith.truncf %81 : vector<8x16xf32> to vector<8x16xbf16>
    %c208 = arith.constant 208 : index
    %c0_34 = arith.constant 0 : index
    %83 = vector.load %arg4[%c208, %c0_34] : memref<400x128xbf16, #tpu.memory_space<vmem>>, vector<16x128xbf16>
    %cst_35 = arith.constant dense<0.000000e+00> : vector<8x128xf32>
    %84 = tpu.matmul %82, %83, %cst_35 {dimension_numbers = #tpu.dot_dimension_numbers<[1], [0], [0], [1], [0, 0, 1, 1], [], []>} : vector<8x16xbf16>, vector<16x128xbf16>, vector<8x128xf32> -> vector<8x128xf32>
    %85 = arith.addf %80, %84 : vector<8x128xf32>
    %86 = vector.extract_strided_slice %14 {offsets = [112, 0], sizes = [8, 16], strides = [1, 1]} : vector<256x16xf32> to vector<8x16xf32>
    %87 = arith.truncf %86 : vector<8x16xf32> to vector<8x16xbf16>
    %c224 = arith.constant 224 : index
    %c0_36 = arith.constant 0 : index
    %88 = vector.load %arg4[%c224, %c0_36] : memref<400x128xbf16, #tpu.memory_space<vmem>>, vector<16x128xbf16>
    %cst_37 = arith.constant dense<0.000000e+00> : vector<8x128xf32>
    %89 = tpu.matmul %87, %88, %cst_37 {dimension_numbers = #tpu.dot_dimension_numbers<[1], [0], [0], [1], [0, 0, 1, 1], [], []>} : vector<8x16xbf16>, vector<16x128xbf16>, vector<8x128xf32> -> vector<8x128xf32>
    %90 = arith.addf %85, %89 : vector<8x128xf32>
    %91 = vector.extract_strided_slice %14 {offsets = [120, 0], sizes = [8, 16], strides = [1, 1]} : vector<256x16xf32> to vector<8x16xf32>
    %92 = arith.truncf %91 : vector<8x16xf32> to vector<8x16xbf16>
    %c240 = arith.constant 240 : index
    %c0_38 = arith.constant 0 : index
    %93 = vector.load %arg4[%c240, %c0_38] : memref<400x128xbf16, #tpu.memory_space<vmem>>, vector<16x128xbf16>
    %cst_39 = arith.constant dense<0.000000e+00> : vector<8x128xf32>
    %94 = tpu.matmul %92, %93, %cst_39 {dimension_numbers = #tpu.dot_dimension_numbers<[1], [0], [0], [1], [0, 0, 1, 1], [], []>} : vector<8x16xbf16>, vector<16x128xbf16>, vector<8x128xf32> -> vector<8x128xf32>
    %95 = arith.addf %90, %94 : vector<8x128xf32>
    %96 = vector.extract_strided_slice %14 {offsets = [128, 0], sizes = [8, 16], strides = [1, 1]} : vector<256x16xf32> to vector<8x16xf32>
    %97 = arith.truncf %96 : vector<8x16xf32> to vector<8x16xbf16>
    %c256 = arith.constant 256 : index
    %c0_40 = arith.constant 0 : index
    %98 = vector.load %arg4[%c256, %c0_40] : memref<400x128xbf16, #tpu.memory_space<vmem>>, vector<16x128xbf16>
    %cst_41 = arith.constant dense<0.000000e+00> : vector<8x128xf32>
    %99 = tpu.matmul %97, %98, %cst_41 {dimension_numbers = #tpu.dot_dimension_numbers<[1], [0], [0], [1], [0, 0, 1, 1], [], []>} : vector<8x16xbf16>, vector<16x128xbf16>, vector<8x128xf32> -> vector<8x128xf32>
    %100 = arith.addf %95, %99 : vector<8x128xf32>
    %101 = vector.extract_strided_slice %14 {offsets = [136, 0], sizes = [8, 16], strides = [1, 1]} : vector<256x16xf32> to vector<8x16xf32>
    %102 = arith.truncf %101 : vector<8x16xf32> to vector<8x16xbf16>
    %c272 = arith.constant 272 : index
    %c0_42 = arith.constant 0 : index
    %103 = vector.load %arg4[%c272, %c0_42] : memref<400x128xbf16, #tpu.memory_space<vmem>>, vector<16x128xbf16>
    %cst_43 = arith.constant dense<0.000000e+00> : vector<8x128xf32>
    %104 = tpu.matmul %102, %103, %cst_43 {dimension_numbers = #tpu.dot_dimension_numbers<[1], [0], [0], [1], [0, 0, 1, 1], [], []>} : vector<8x16xbf16>, vector<16x128xbf16>, vector<8x128xf32> -> vector<8x128xf32>
    %105 = arith.addf %100, %104 : vector<8x128xf32>
    %106 = vector.extract_strided_slice %14 {offsets = [144, 0], sizes = [8, 16], strides = [1, 1]} : vector<256x16xf32> to vector<8x16xf32>
    %107 = arith.truncf %106 : vector<8x16xf32> to vector<8x16xbf16>
    %c288 = arith.constant 288 : index
    %c0_44 = arith.constant 0 : index
    %108 = vector.load %arg4[%c288, %c0_44] : memref<400x128xbf16, #tpu.memory_space<vmem>>, vector<16x128xbf16>
    %cst_45 = arith.constant dense<0.000000e+00> : vector<8x128xf32>
    %109 = tpu.matmul %107, %108, %cst_45 {dimension_numbers = #tpu.dot_dimension_numbers<[1], [0], [0], [1], [0, 0, 1, 1], [], []>} : vector<8x16xbf16>, vector<16x128xbf16>, vector<8x128xf32> -> vector<8x128xf32>
    %110 = arith.addf %105, %109 : vector<8x128xf32>
    %111 = vector.extract_strided_slice %14 {offsets = [152, 0], sizes = [8, 16], strides = [1, 1]} : vector<256x16xf32> to vector<8x16xf32>
    %112 = arith.truncf %111 : vector<8x16xf32> to vector<8x16xbf16>
    %c304 = arith.constant 304 : index
    %c0_46 = arith.constant 0 : index
    %113 = vector.load %arg4[%c304, %c0_46] : memref<400x128xbf16, #tpu.memory_space<vmem>>, vector<16x128xbf16>
    %cst_47 = arith.constant dense<0.000000e+00> : vector<8x128xf32>
    %114 = tpu.matmul %112, %113, %cst_47 {dimension_numbers = #tpu.dot_dimension_numbers<[1], [0], [0], [1], [0, 0, 1, 1], [], []>} : vector<8x16xbf16>, vector<16x128xbf16>, vector<8x128xf32> -> vector<8x128xf32>
    %115 = arith.addf %110, %114 : vector<8x128xf32>
    %116 = vector.extract_strided_slice %14 {offsets = [160, 0], sizes = [8, 16], strides = [1, 1]} : vector<256x16xf32> to vector<8x16xf32>
    %117 = arith.truncf %116 : vector<8x16xf32> to vector<8x16xbf16>
    %c320 = arith.constant 320 : index
    %c0_48 = arith.constant 0 : index
    %118 = vector.load %arg4[%c320, %c0_48] : memref<400x128xbf16, #tpu.memory_space<vmem>>, vector<16x128xbf16>
    %cst_49 = arith.constant dense<0.000000e+00> : vector<8x128xf32>
    %119 = tpu.matmul %117, %118, %cst_49 {dimension_numbers = #tpu.dot_dimension_numbers<[1], [0], [0], [1], [0, 0, 1, 1], [], []>} : vector<8x16xbf16>, vector<16x128xbf16>, vector<8x128xf32> -> vector<8x128xf32>
    %120 = arith.addf %115, %119 : vector<8x128xf32>
    %121 = vector.extract_strided_slice %14 {offsets = [168, 0], sizes = [8, 16], strides = [1, 1]} : vector<256x16xf32> to vector<8x16xf32>
    %122 = arith.truncf %121 : vector<8x16xf32> to vector<8x16xbf16>
    %c336 = arith.constant 336 : index
    %c0_50 = arith.constant 0 : index
    %123 = vector.load %arg4[%c336, %c0_50] : memref<400x128xbf16, #tpu.memory_space<vmem>>, vector<16x128xbf16>
    %cst_51 = arith.constant dense<0.000000e+00> : vector<8x128xf32>
    %124 = tpu.matmul %122, %123, %cst_51 {dimension_numbers = #tpu.dot_dimension_numbers<[1], [0], [0], [1], [0, 0, 1, 1], [], []>} : vector<8x16xbf16>, vector<16x128xbf16>, vector<8x128xf32> -> vector<8x128xf32>
    %125 = arith.addf %120, %124 : vector<8x128xf32>
    %126 = vector.extract_strided_slice %14 {offsets = [176, 0], sizes = [8, 16], strides = [1, 1]} : vector<256x16xf32> to vector<8x16xf32>
    %127 = arith.truncf %126 : vector<8x16xf32> to vector<8x16xbf16>
    %c352 = arith.constant 352 : index
    %c0_52 = arith.constant 0 : index
    %128 = vector.load %arg4[%c352, %c0_52] : memref<400x128xbf16, #tpu.memory_space<vmem>>, vector<16x128xbf16>
    %cst_53 = arith.constant dense<0.000000e+00> : vector<8x128xf32>
    %129 = tpu.matmul %127, %128, %cst_53 {dimension_numbers = #tpu.dot_dimension_numbers<[1], [0], [0], [1], [0, 0, 1, 1], [], []>} : vector<8x16xbf16>, vector<16x128xbf16>, vector<8x128xf32> -> vector<8x128xf32>
    %130 = arith.addf %125, %129 : vector<8x128xf32>
    %131 = vector.extract_strided_slice %14 {offsets = [184, 0], sizes = [8, 16], strides = [1, 1]} : vector<256x16xf32> to vector<8x16xf32>
    %132 = arith.truncf %131 : vector<8x16xf32> to vector<8x16xbf16>
    %c368 = arith.constant 368 : index
    %c0_54 = arith.constant 0 : index
    %133 = vector.load %arg4[%c368, %c0_54] : memref<400x128xbf16, #tpu.memory_space<vmem>>, vector<16x128xbf16>
    %cst_55 = arith.constant dense<0.000000e+00> : vector<8x128xf32>
    %134 = tpu.matmul %132, %133, %cst_55 {dimension_numbers = #tpu.dot_dimension_numbers<[1], [0], [0], [1], [0, 0, 1, 1], [], []>} : vector<8x16xbf16>, vector<16x128xbf16>, vector<8x128xf32> -> vector<8x128xf32>
    %135 = arith.addf %130, %134 : vector<8x128xf32>
    %136 = vector.extract_strided_slice %14 {offsets = [192, 0], sizes = [8, 16], strides = [1, 1]} : vector<256x16xf32> to vector<8x16xf32>
    %137 = arith.truncf %136 : vector<8x16xf32> to vector<8x16xbf16>
    %c384 = arith.constant 384 : index
    %c0_56 = arith.constant 0 : index
    %138 = vector.load %arg4[%c384, %c0_56] : memref<400x128xbf16, #tpu.memory_space<vmem>>, vector<16x128xbf16>
    %cst_57 = arith.constant dense<0.000000e+00> : vector<8x128xf32>
    %139 = tpu.matmul %137, %138, %cst_57 {dimension_numbers = #tpu.dot_dimension_numbers<[1], [0], [0], [1], [0, 0, 1, 1], [], []>} : vector<8x16xbf16>, vector<16x128xbf16>, vector<8x128xf32> -> vector<8x128xf32>
    %140 = arith.addf %135, %139 : vector<8x128xf32>
    %c0_58 = arith.constant 0 : index
    %c0_59 = arith.constant 0 : index
    %141 = vector.load %arg5[%c0_58, %c0_59] : memref<1x128xf32, #tpu.memory_space<vmem>>, vector<1x128xf32>
    %142 = vector.broadcast %141 : vector<1x128xf32> to vector<8x128xf32>
    %143 = arith.addf %140, %142 : vector<8x128xf32>
    %cst_60 = arith.constant 0.000000e+00 : f32
    %144 = vector.broadcast %cst_60 : f32 to vector<8x128xf32>
    %145 = arith.maximumf %143, %144 : vector<8x128xf32>
    %146 = arith.truncf %145 : vector<8x128xf32> to vector<8x128xbf16>
    %c0_61 = arith.constant 0 : index
    %c0_62 = arith.constant 0 : index
    %147 = vector.load %arg6[%c0_61, %c0_62] : memref<128x128xbf16, #tpu.memory_space<vmem>>, vector<128x128xbf16>
    %cst_63 = arith.constant dense<0.000000e+00> : vector<8x128xf32>
    %148 = tpu.matmul %146, %147, %cst_63 {dimension_numbers = #tpu.dot_dimension_numbers<[1], [0], [0], [1], [0, 0, 1, 1], [], []>} : vector<8x128xbf16>, vector<128x128xbf16>, vector<8x128xf32> -> vector<8x128xf32>
    %c0_64 = arith.constant 0 : index
    %c0_65 = arith.constant 0 : index
    %149 = vector.load %arg7[%c0_64, %c0_65] : memref<1x128xf32, #tpu.memory_space<vmem>>, vector<1x128xf32>
    %150 = vector.broadcast %149 : vector<1x128xf32> to vector<8x128xf32>
    %151 = arith.addf %148, %150 : vector<8x128xf32>
    %cst_66 = arith.constant 0.000000e+00 : f32
    %152 = vector.broadcast %cst_66 : f32 to vector<8x128xf32>
    %153 = arith.maximumf %151, %152 : vector<8x128xf32>
    %154 = arith.truncf %153 : vector<8x128xf32> to vector<8x128xbf16>
    %c0_67 = arith.constant 0 : index
    %c0_68 = arith.constant 0 : index
    %155 = vector.load %arg8[%c0_67, %c0_68] : memref<128x128xbf16, #tpu.memory_space<vmem>>, vector<128x128xbf16>
    %cst_69 = arith.constant dense<0.000000e+00> : vector<8x128xf32>
    %156 = tpu.matmul %154, %155, %cst_69 {dimension_numbers = #tpu.dot_dimension_numbers<[1], [0], [0], [1], [0, 0, 1, 1], [], []>} : vector<8x128xbf16>, vector<128x128xbf16>, vector<8x128xf32> -> vector<8x128xf32>
    %c0_70 = arith.constant 0 : index
    %c0_71 = arith.constant 0 : index
    %157 = vector.load %arg9[%c0_70, %c0_71] : memref<1x128xf32, #tpu.memory_space<vmem>>, vector<1x128xf32>
    %158 = vector.broadcast %157 : vector<1x128xf32> to vector<8x128xf32>
    %159 = arith.addf %156, %158 : vector<8x128xf32>
    %c0_72 = arith.constant 0 : index
    %c0_73 = arith.constant 0 : index
    %160 = vector.load %arg10[%c0_72, %c0_73] : memref<8x128xf32, #tpu.memory_space<vmem>>, vector<8x128xf32>
    tpu.vector_store %arg10[%c0_72, %c0_73], %159 {strides = array<i32>} : memref<8x128xf32, #tpu.memory_space<vmem>>, vector<8x128xf32>,
    return
  }
  func.func @transform_0(%arg0: i32) -> (i32, i32) {
    %c0_i32 = arith.constant 0 : i32
    %c0_i32_0 = arith.constant 0 : i32
    return %arg0, %c0_i32 : i32, i32
  }
  func.func @transform_1(%arg0: i32) -> (i32, i32) {
    %c0_i32 = arith.constant 0 : i32
    %c0_i32_0 = arith.constant 0 : i32
    %c0_i32_1 = arith.constant 0 : i32
    return %c0_i32, %c0_i32_0 : i32, i32
  }
  func.func @transform_2(%arg0: i32) -> (i32, i32) {
    %c0_i32 = arith.constant 0 : i32
    %c0_i32_0 = arith.constant 0 : i32
    %c0_i32_1 = arith.constant 0 : i32
    return %c0_i32, %c0_i32_0 : i32, i32
  }
  func.func @transform_3(%arg0: i32) -> (i32, i32) {
    %c0_i32 = arith.constant 0 : i32
    %c0_i32_0 = arith.constant 0 : i32
    %c0_i32_1 = arith.constant 0 : i32
    return %c0_i32, %c0_i32_0 : i32, i32
  }
  func.func @transform_4(%arg0: i32) -> (i32, i32) {
    %c0_i32 = arith.constant 0 : i32
    %c0_i32_0 = arith.constant 0 : i32
    %c0_i32_1 = arith.constant 0 : i32
    return %c0_i32, %c0_i32_0 : i32, i32
  }
  func.func @transform_5(%arg0: i32) -> (i32, i32) {
    %c0_i32 = arith.constant 0 : i32
    %c0_i32_0 = arith.constant 0 : i32
    %c0_i32_1 = arith.constant 0 : i32
    return %c0_i32, %c0_i32_0 : i32, i32
  }
  func.func @transform_6(%arg0: i32) -> (i32, i32) {
    %c0_i32 = arith.constant 0 : i32
    %c0_i32_0 = arith.constant 0 : i32
    %c0_i32_1 = arith.constant 0 : i32
    return %c0_i32, %c0_i32_0 : i32, i32
  }
  func.func @transform_7(%arg0: i32) -> (i32, i32) {
    %c0_i32 = arith.constant 0 : i32
    %c0_i32_0 = arith.constant 0 : i32
    %c0_i32_1 = arith.constant 0 : i32
    return %c0_i32, %c0_i32_0 : i32, i32
  }
  func.func @transform_8(%arg0: i32) -> (i32, i32) {
    %c0_i32 = arith.constant 0 : i32
    %c0_i32_0 = arith.constant 0 : i32
    %c0_i32_1 = arith.constant 0 : i32
    return %c0_i32, %c0_i32_0 : i32, i32
  }
  func.func @transform_9(%arg0: i32) -> (i32, i32) {
    %c0_i32 = arith.constant 0 : i32
    %c0_i32_0 = arith.constant 0 : i32
    return %arg0, %c0_i32 : i32, i32
  }
}

</mosaic_0001>

<llo_original>
// kernel: net_forward_pallas.2
$region0: #{net_forward_pallas.2}
  #allocation0 [shape = 'u32[]', space=smem, size = 0x4, offset = 0x4, fixed_abs, tag = 'smem constant byte address 0x4 - core index']
  #allocation1 [shape = 'u32[72,128]{1,0:T(1,128)}', space=vmem, size = 0x9000, scoped, tag = 'internal scratch']
  %s0 = inlined_call_operand.vmem [shape: bf16[6400,75], index: 0, kind: input, shape index: {}]
  %s1 = inlined_call_operand.vmem [shape: bf16[75,6], index: 1, kind: input, shape index: {}]
  %s2 = inlined_call_operand.vmem [shape: f32[1,6], index: 2, kind: input, shape index: {}]
  %s3 = inlined_call_operand.vmem [shape: bf16[1600,6], index: 3, kind: output, shape index: {}]
  %s4 = sld [smem:[#allocation0]]
  $region22: #{net_forward_pallas.2} parent=0
    _
  %s6 = ssub.s32 1, %s4
  %s7 = scalar_select 0, %s6, %s4
  // Predicated region
  $region2: #{net_forward_pallas.2} parent=0 // pred_check
    _
  $region3: #{net_forward_pallas.2} parent=0 // pred_check_branch
    %9 = sbr.rel (0) target = $region5
  $region4: #{net_forward_pallas.2} parent=0 // pred_region
    _
  $region5: #{net_forward_pallas.2} parent=0 // pred_fallthru
    _
  // Predicated region
  $region6: #{net_forward_pallas.2} parent=0 // pred_check
    _
  $region7: #{net_forward_pallas.2} parent=0 // pred_check_branch
    %11 = sbr.rel (0) target = $region9
  $region8: #{net_forward_pallas.2} parent=0 // pred_region
    _
  $region9: #{net_forward_pallas.2} parent=0 // pred_fallthru
    _
  // Predicated region
  $region10: #{net_forward_pallas.2} parent=0 // pred_check
    _
  $region11: #{net_forward_pallas.2} parent=0 // pred_check_branch
    %13 = sbr.rel (0) target = $region13
  $region12: #{net_forward_pallas.2} parent=0 // pred_region
    _
  $region13: #{net_forward_pallas.2} parent=0 // pred_fallthru
    _
  %v15 = vld [vmem:[%s1] sm:$0xf]
  %v16 = vld [vmem:[%s1 + $0x4] sm:$0xf]
  %v17 = vld [vmem:[%s1 + $0x8] sm:$0xf]
  %v18 = vld [vmem:[%s1 + $0xc] sm:$0xf]
  %v19 = vld [vmem:[%s1 + $0x10] sm:$0xf]
  %v20 = vld [vmem:[%s1 + $0x14] sm:$0xf]
  %v21 = vld [vmem:[%s1 + $0x18] sm:$0xf]
  %v22 = vld [vmem:[%s1 + $0x1c] sm:$0xf]
  %v23 = vld [vmem:[%s1 + $0x20] sm:$0xf]
  %v24 = vld [vmem:[%s1 + $0x24] sm:$0x3]
  %v25 = vld [vmem:[%s2] sm:$0x1]
  %v27 = vperm.slane %v25, 0
  %v29 = vld [vmem:[%s0] sm:$0xf]
  %v30 = vld [vmem:[%s0 + $0x4] sm:$0xf]
  %v31 = vld [vmem:[%s0 + $0x8] sm:$0xf]
  %v32 = vld [vmem:[%s0 + $0xc] sm:$0xf]
  %v33 = vld [vmem:[%s0 + $0x10] sm:$0xf]
  %v34 = vld [vmem:[%s0 + $0x14] sm:$0xf]
  %v35 = vld [vmem:[%s0 + $0x18] sm:$0xf]
  %v36 = vld [vmem:[%s0 + $0x1c] sm:$0xf]
  %v37 = vld [vmem:[%s0 + $0x20] sm:$0xf]
  %v38 = vld [vmem:[%s0 + $0x24] sm:$0xf]
  %v39 = vld [vmem:[%s0 + $0x28] sm:$0xf]
  %v40 = vld [vmem:[%s0 + $0x2c] sm:$0xf]
  %v41 = vld [vmem:[%s0 + $0x30] sm:$0xf]
  %v42 = vld [vmem:[%s0 + $0x34] sm:$0xf]
  %v43 = vld [vmem:[%s0 + $0x38] sm:$0xf]
  %v44 = vld [vmem:[%s0 + $0x3c] sm:$0xf]
  %v45 = vld [vmem:[%s0 + $0x40] sm:$0xf]
  %v46 = vld [vmem:[%s0 + $0x44] sm:$0xf]
  %v47 = vld [vmem:[%s0 + $0x48] sm:$0xf]
  %v48 = vld [vmem:[%s0 + $0x4c] sm:$0xf]
  %v49 = vld [vmem:[%s0 + $0x50] sm:$0xf]
  %v50 = vld [vmem:[%s0 + $0x54] sm:$0xf]
  %v51 = vld [vmem:[%s0 + $0x58] sm:$0xf]
  %v52 = vld [vmem:[%s0 + $0x5c] sm:$0xf]
  %v53 = vld [vmem:[%s0 + $0x60] sm:$0xf]
  %v54 = vld [vmem:[%s0 + $0x64] sm:$0xf]
  %v55 = vld [vmem:[%s0 + $0x68] sm:$0xf]
  %v56 = vld [vmem:[%s0 + $0x6c] sm:$0xf]
  %v57 = vld [vmem:[%s0 + $0x70] sm:$0xf]
  %v58 = vld [vmem:[%s0 + $0x74] sm:$0xf]
  %v59 = vld [vmem:[%s0 + $0x78] sm:$0xf]
  %v60 = vld [vmem:[%s0 + $0x7c] sm:$0xf]
  %v61 = vld [vmem:[%s0 + $0x80] sm:$0xf]
  %v62 = vld [vmem:[%s0 + $0x84] sm:$0xf]
  %v63 = vld [vmem:[%s0 + $0x88] sm:$0xf]
  %v64 = vld [vmem:[%s0 + $0x8c] sm:$0xf]
  %v65 = vld [vmem:[%s0 + $0x90] sm:$0xf]
  %v66 = vld [vmem:[%s0 + $0x94] sm:$0xf]
  %v67 = vld [vmem:[%s0 + $0x98] sm:$0xf]
  %v68 = vld [vmem:[%s0 + $0x9c] sm:$0xf]
  %v69 = vld [vmem:[%s0 + $0xa0] sm:$0xf]
  %v70 = vld [vmem:[%s0 + $0xa4] sm:$0xf]
  %v71 = vld [vmem:[%s0 + $0xa8] sm:$0xf]
  %v72 = vld [vmem:[%s0 + $0xac] sm:$0xf]
  %v73 = vld [vmem:[%s0 + $0xb0] sm:$0xf]
  %v74 = vld [vmem:[%s0 + $0xb4] sm:$0xf]
  %v75 = vld [vmem:[%s0 + $0xb8] sm:$0xf]
  %v76 = vld [vmem:[%s0 + $0xbc] sm:$0xf]
  %v77 = vld [vmem:[%s0 + $0xc0] sm:$0xf]
  %v78 = vld [vmem:[%s0 + $0xc4] sm:$0xf]
  %v79 = vld [vmem:[%s0 + $0xc8] sm:$0xf]
  %v80 = vld [vmem:[%s0 + $0xcc] sm:$0xf]
  %v81 = vld [vmem:[%s0 + $0xd0] sm:$0xf]
  %v82 = vld [vmem:[%s0 + $0xd4] sm:$0xf]
  %v83 = vld [vmem:[%s0 + $0xd8] sm:$0xf]
  %v84 = vld [vmem:[%s0 + $0xdc] sm:$0xf]
  %v85 = vld [vmem:[%s0 + $0xe0] sm:$0xf]
  %v86 = vld [vmem:[%s0 + $0xe4] sm:$0xf]
  %v87 = vld [vmem:[%s0 + $0xe8] sm:$0xf]
  %v88 = vld [vmem:[%s0 + $0xec] sm:$0xf]
  %v89 = vld [vmem:[%s0 + $0xf0] sm:$0xf]
  %v90 = vld [vmem:[%s0 + $0xf4] sm:$0xf]
  %v91 = vld [vmem:[%s0 + $0xf8] sm:$0xf]
  %v92 = vld [vmem:[%s0 + $0xfc] sm:$0xf]
  %v93 = vld [vmem:[%s0 + $0x100] sm:$0xf]
  %v94 = vld [vmem:[%s0 + $0x104] sm:$0xf]
  %v95 = vld [vmem:[%s0 + $0x108] sm:$0xf]
  %v96 = vld [vmem:[%s0 + $0x10c] sm:$0xf]
  %v97 = vld [vmem:[%s0 + $0x110] sm:$0xf]
  %v98 = vld [vmem:[%s0 + $0x114] sm:$0xf]
  %v99 = vld [vmem:[%s0 + $0x118] sm:$0xf]
  %v100 = vld [vmem:[%s0 + $0x11c] sm:$0xf]
  %v101 = vld [vmem:[%s0 + $0x120] sm:$0xf]
  %v102 = vld [vmem:[%s0 + $0x124] sm:$0xf]
  %v103 = vld [vmem:[%s0 + $0x128] sm:$0xf]
  %v104 = vld [vmem:[%s0 + $0x12c] sm:$0xf]
  %v105 = vld [vmem:[%s0 + $0x130] sm:$0xf]
  %v106 = vld [vmem:[%s0 + $0x134] sm:$0xf]
  %v107 = vld [vmem:[%s0 + $0x138] sm:$0xf]
  %v108 = vld [vmem:[%s0 + $0x13c] sm:$0xf]
  %v109 = vld [vmem:[%s0 + $0x140] sm:$0xf]
  %v110 = vld [vmem:[%s0 + $0x144] sm:$0xf]
  %v111 = vld [vmem:[%s0 + $0x148] sm:$0xf]
  %v112 = vld [vmem:[%s0 + $0x14c] sm:$0xf]
  %v113 = vld [vmem:[%s0 + $0x150] sm:$0xf]
  %v114 = vld [vmem:[%s0 + $0x154] sm:$0xf]
  %v115 = vld [vmem:[%s0 + $0x158] sm:$0xf]
  %v116 = vld [vmem:[%s0 + $0x15c] sm:$0xf]
  %v117 = vld [vmem:[%s0 + $0x160] sm:$0xf]
  %v118 = vld [vmem:[%s0 + $0x164] sm:$0xf]
  %v119 = vld [vmem:[%s0 + $0x168] sm:$0xf]
  %v120 = vld [vmem:[%s0 + $0x16c] sm:$0xf]
  %v121 = vld [vmem:[%s0 + $0x170] sm:$0xf]
  %v122 = vld [vmem:[%s0 + $0x174] sm:$0xf]
  %v123 = vld [vmem:[%s0 + $0x178] sm:$0xf]
  %v124 = vld [vmem:[%s0 + $0x17c] sm:$0xf]
  %v125 = vld [vmem:[%s0 + $0x180] sm:$0xf]
  %v126 = vld [vmem:[%s0 + $0x184] sm:$0xf]
  %v127 = vld [vmem:[%s0 + $0x188] sm:$0xf]
  %v128 = vld [vmem:[%s0 + $0x18c] sm:$0xf]
  %v229 = vunpack.c.l.b16 %v29
  %v230 = vunpack.c.l.b16 %v30
  %v231 = vunpack.c.l.b16 %v31
  %v232 = vunpack.c.l.b16 %v32
  %v233 = vunpack.c.l.b16 %v33
  %v234 = vunpack.c.l.b16 %v34
  %v235 = vunpack.c.l.b16 %v35
  %v236 = vunpack.c.l.b16 %v36
  %v237 = vunpack.c.l.b16 %v37
  %v238 = vunpack.c.l.b16 %v38
  %v239 = vunpack.c.l.b16 %v39
  %v240 = vunpack.c.l.b16 %v40
  %v241 = vunpack.c.l.b16 %v41
  %v242 = vunpack.c.l.b16 %v42
  %v243 = vunpack.c.l.b16 %v43
  %v244 = vunpack.c.l.b16 %v44
  %v245 = vunpack.c.l.b16 %v45
  %v246 = vunpack.c.l.b16 %v46
  %v247 = vunpack.c.l.b16 %v47
  %v248 = vunpack.c.l.b16 %v48
  %v249 = vunpack.c.l.b16 %v49
  %v250 = vunpack.c.l.b16 %v50
  %v251 = vunpack.c.l.b16 %v51
  %v252 = vunpack.c.l.b16 %v52
  %v253 = vunpack.c.l.b16 %v53
  %v254 = vunpack.c.l.b16 %v54
  %v255 = vunpack.c.l.b16 %v55
  %v256 = vunpack.c.l.b16 %v56
  %v257 = vunpack.c.l.b16 %v57
  %v258 = vunpack.c.l.b16 %v58
  %v259 = vunpack.c.l.b16 %v59
  %v260 = vunpack.c.l.b16 %v60
  %v261 = vunpack.c.l.b16 %v61
  %v262 = vunpack.c.l.b16 %v62
  %v263 = vunpack.c.l.b16 %v63
  %v264 = vunpack.c.l.b16 %v64
  %v265 = vunpack.c.l.b16 %v65
  %v266 = vunpack.c.l.b16 %v66
  %v267 = vunpack.c.l.b16 %v67
  %v268 = vunpack.c.l.b16 %v68
  %v269 = vunpack.c.l.b16 %v69
  %v270 = vunpack.c.l.b16 %v70
  %v271 = vunpack.c.l.b16 %v71
  %v272 = vunpack.c.l.b16 %v72
  %v273 = vunpack.c.l.b16 %v73
  %v274 = vunpack.c.l.b16 %v74
  %v275 = vunpack.c.l.b16 %v75
  %v276 = vunpack.c.l.b16 %v76
  %v277 = vunpack.c.l.b16 %v77
  %v278 = vunpack.c.l.b16 %v78
  %v279 = vunpack.c.l.b16 %v79
  %v280 = vunpack.c.l.b16 %v80
  %v281 = vunpack.c.l.b16 %v81
  %v282 = vunpack.c.l.b16 %v82
  %v283 = vunpack.c.l.b16 %v83
  %v284 = vunpack.c.l.b16 %v84
  %v285 = vunpack.c.l.b16 %v85
  %v286 = vunpack.c.l.b16 %v86
  %v287 = vunpack.c.l.b16 %v87
  %v288 = vunpack.c.l.b16 %v88
  %v289 = vunpack.c.l.b16 %v89
  %v290 = vunpack.c.l.b16 %v90
  %v291 = vunpack.c.l.b16 %v91
  %v292 = vunpack.c.l.b16 %v92
  %v293 = vunpack.c.l.b16 %v93
  %v294 = vunpack.c.l.b16 %v94
  %v295 = vunpack.c.l.b16 %v95
  %v296 = vunpack.c.l.b16 %v96
  %v297 = vunpack.c.l.b16 %v97
  %v298 = vunpack.c.l.b16 %v98
  %v299 = vunpack.c.l.b16 %v99
  %v300 = vunpack.c.l.b16 %v100
  %v301 = vunpack.c.l.b16 %v101
  %v302 = vunpack.c.l.b16 %v102
  %v303 = vunpack.c.l.b16 %v103
  %v304 = vunpack.c.l.b16 %v104
  %v305 = vunpack.c.l.b16 %v105
  %v306 = vunpack.c.l.b16 %v106
  %v307 = vunpack.c.l.b16 %v107
  %v308 = vunpack.c.l.b16 %v108
  %v309 = vunpack.c.l.b16 %v109
  %v310 = vunpack.c.l.b16 %v110
  %v311 = vunpack.c.l.b16 %v111
  %v312 = vunpack.c.l.b16 %v112
  %v313 = vunpack.c.l.b16 %v113
  %v314 = vunpack.c.l.b16 %v114
  %v315 = vunpack.c.l.b16 %v115
  %v316 = vunpack.c.l.b16 %v116
  %v317 = vunpack.c.l.b16 %v117
  %v318 = vunpack.c.l.b16 %v118
  %v319 = vunpack.c.l.b16 %v119
  %v320 = vunpack.c.l.b16 %v120
  %v321 = vunpack.c.l.b16 %v121
  %v322 = vunpack.c.l.b16 %v122
  %v323 = vunpack.c.l.b16 %v123
  %v324 = vunpack.c.l.b16 %v124
  %v325 = vunpack.c.l.b16 %v125
  %v326 = vunpack.c.l.b16 %v126
  %v327 = vunpack.c.l.b16 %v127
  %v328 = vunpack.c.l.b16 %v128
  %v329 = vpack.c.b16 %v230, %v229
  %v330 = vpack.c.b16 %v232, %v231
  %v331 = vpack.c.b16 %v234, %v233
  %v332 = vpack.c.b16 %v236, %v235
  %v333 = vpack.c.b16 %v238, %v237
  %v334 = vpack.c.b16 %v240, %v239
  %v335 = vpack.c.b16 %v242, %v241
  %v336 = vpack.c.b16 %v244, %v243
  %v337 = vpack.c.b16 %v246, %v245
  %v338 = vpack.c.b16 %v248, %v247
  %v339 = vpack.c.b16 %v250, %v249
  %v340 = vpack.c.b16 %v252, %v251
  %v341 = vpack.c.b16 %v254, %v253
  %v342 = vpack.c.b16 %v256, %v255
  %v343 = vpack.c.b16 %v258, %v257
  %v344 = vpack.c.b16 %v260, %v259
  %v345 = vpack.c.b16 %v262, %v261
  %v346 = vpack.c.b16 %v264, %v263
  %v347 = vpack.c.b16 %v266, %v265
  %v348 = vpack.c.b16 %v268, %v267
  %v349 = vpack.c.b16 %v270, %v269
  %v350 = vpack.c.b16 %v272, %v271
  %v351 = vpack.c.b16 %v274, %v273
  %v352 = vpack.c.b16 %v276, %v275
  %v353 = vpack.c.b16 %v278, %v277
  %v354 = vpack.c.b16 %v280, %v279
  %v355 = vpack.c.b16 %v282, %v281
  %v356 = vpack.c.b16 %v284, %v283
  %v357 = vpack.c.b16 %v286, %v285
  %v358 = vpack.c.b16 %v288, %v287
  %v359 = vpack.c.b16 %v290, %v289
  %v360 = vpack.c.b16 %v292, %v291
  %v361 = vpack.c.b16 %v294, %v293
  %v362 = vpack.c.b16 %v296, %v295
  %v363 = vpack.c.b16 %v298, %v297
  %v364 = vpack.c.b16 %v300, %v299
  %v365 = vpack.c.b16 %v302, %v301
  %v366 = vpack.c.b16 %v304, %v303
  %v367 = vpack.c.b16 %v306, %v305
  %v368 = vpack.c.b16 %v308, %v307
  %v369 = vpack.c.b16 %v310, %v309
  %v370 = vpack.c.b16 %v312, %v311
  %v371 = vpack.c.b16 %v314, %v313
  %v372 = vpack.c.b16 %v316, %v315
  %v373 = vpack.c.b16 %v318, %v317
  %v374 = vpack.c.b16 %v320, %v319
  %v375 = vpack.c.b16 %v322, %v321
  %v376 = vpack.c.b16 %v324, %v323
  %v377 = vpack.c.b16 %v326, %v325
  %v378 = vpack.c.b16 %v328, %v327
  %v389 = vunpack.c.l.b16 %v15
  %v390 = vunpack.c.l.b16 %v16
  %v391 = vunpack.c.l.b16 %v17
  %v392 = vunpack.c.l.b16 %v18
  %v393 = vunpack.c.l.b16 %v19
  %v394 = vunpack.c.l.b16 %v20
  %v395 = vunpack.c.l.b16 %v21
  %v396 = vunpack.c.l.b16 %v22
  %v397 = vunpack.c.l.b16 %v23
  %v398 = vunpack.c.l.b16 %v24
  %v399 = vpack.c.b16 %v390, %v389
  %v400 = vpack.c.b16 %v392, %v391
  %v401 = vpack.c.b16 %v394, %v393
  %v402 = vpack.c.b16 %v396, %v395
  %v403 = vpack.c.b16 %v398, %v397
  %vm408 = vcmask 613376
  %v410 = vsel %vm408, %v329, 0
  %v413 = vsel %vm408, %v330, 0
  %v416 = vsel %vm408, %v331, 0
  %v419 = vsel %vm408, %v332, 0
  %v422 = vsel %vm408, %v333, 0
  %v425 = vsel %vm408, %v334, 0
  %v428 = vsel %vm408, %v335, 0
  %v431 = vsel %vm408, %v336, 0
  %v434 = vsel %vm408, %v337, 0
  %v437 = vsel %vm408, %v338, 0
  %v440 = vsel %vm408, %v339, 0
  %v443 = vsel %vm408, %v340, 0
  %v446 = vsel %vm408, %v341, 0
  %v449 = vsel %vm408, %v342, 0
  %v452 = vsel %vm408, %v343, 0
  %v455 = vsel %vm408, %v344, 0
  %v458 = vsel %vm408, %v345, 0
  %v461 = vsel %vm408, %v346, 0
  %v464 = vsel %vm408, %v347, 0
  %v467 = vsel %vm408, %v348, 0
  %v470 = vsel %vm408, %v349, 0
  %v473 = vsel %vm408, %v350, 0
  %v476 = vsel %vm408, %v351, 0
  %v479 = vsel %vm408, %v352, 0
  %v482 = vsel %vm408, %v353, 0
  %v485 = vsel %vm408, %v354, 0
  %v488 = vsel %vm408, %v355, 0
  %v491 = vsel %vm408, %v356, 0
  %v494 = vsel %vm408, %v357, 0
  %v497 = vsel %vm408, %v358, 0
  %v500 = vsel %vm408, %v359, 0
  %v503 = vsel %vm408, %v360, 0
  %v506 = vsel %vm408, %v361, 0
  %v509 = vsel %vm408, %v362, 0
  %v512 = vsel %vm408, %v363, 0
  %v515 = vsel %vm408, %v364, 0
  %v518 = vsel %vm408, %v365, 0
  %v521 = vsel %vm408, %v366, 0
  %v524 = vsel %vm408, %v367, 0
  %v527 = vsel %vm408, %v368, 0
  %v530 = vsel %vm408, %v369, 0
  %v533 = vsel %vm408, %v370, 0
  %v536 = vsel %vm408, %v371, 0
  %v539 = vsel %vm408, %v372, 0
  %v542 = vsel %vm408, %v373, 0
  %v545 = vsel %vm408, %v374, 0
  %v548 = vsel %vm408, %v375, 0
  %v551 = vsel %vm408, %v376, 0
  %v554 = vsel %vm408, %v377, 0
  %v557 = vsel %vm408, %v378, 0
  %vm559 = vcmask 1044480
  %vm560 = vcmask 1045504
  %v561 = vsel %vm559, 4294967295, 65535
  %v562 = vsel %vm560, %v561, 0
  %v564 = vand.u32 %v403, %v562
  %566 = vmatpush.bf16.msra.mxu0 0
  %567 = vmatpush.bf16.msra.mxu0 0
  %568 = vmatpush.bf16.msra.mxu0 0
  %569 = vmatpush.bf16.msra.mxu0 %v564
  %570 = vmatpush.bf16.msra.mxu0 %v402
  %571 = vmatpush.bf16.msra.mxu0 %v401
  %572 = vmatpush.bf16.msra.mxu0 %v400
  %573 = vmatpush.bf16.msra.mxu0 %v399
  %574 = vmatmul.bf16.gmra.mxu0 %v410
  %v575 = vpop.f32.mrf.mxu0
  %v576 = vadd.f32 0.0, %v575
  %v577 = vpop.f32.mrf.mxu0
  %v578 = vadd.f32 0.0, %v577
  %579 = vmatmul.bf16.gmra.mxu0 %v413
  %v580 = vpop.f32.mrf.mxu0
  %v581 = vadd.f32 0.0, %v580
  %v582 = vpop.f32.mrf.mxu0
  %v583 = vadd.f32 0.0, %v582
  %584 = vmatmul.bf16.gmra.mxu0 %v416
  %v585 = vpop.f32.mrf.mxu0
  %v586 = vadd.f32 0.0, %v585
  %v587 = vpop.f32.mrf.mxu0
  %v588 = vadd.f32 0.0, %v587
  %589 = vmatmul.bf16.gmra.mxu0 %v419
  %v590 = vpop.f32.mrf.mxu0
  %v591 = vadd.f32 0.0, %v590
  %v592 = vpop.f32.mrf.mxu0
  %v593 = vadd.f32 0.0, %v592
  %594 = vmatmul.bf16.gmra.mxu0 %v422
  %v595 = vpop.f32.mrf.mxu0
  %v596 = vadd.f32 0.0, %v595
  %v597 = vpop.f32.mrf.mxu0
  %v598 = vadd.f32 0.0, %v597
  %599 = vmatmul.bf16.gmra.mxu0 %v425
  %v600 = vpop.f32.mrf.mxu0
  %v601 = vadd.f32 0.0, %v600
  %v602 = vpop.f32.mrf.mxu0
  %v603 = vadd.f32 0.0, %v602
  %604 = vmatmul.bf16.gmra.mxu0 %v428
  %v605 = vpop.f32.mrf.mxu0
  %v606 = vadd.f32 0.0, %v605
  %v607 = vpop.f32.mrf.mxu0
  %v608 = vadd.f32 0.0, %v607
  %609 = vmatmul.bf16.gmra.mxu0 %v431
  %v610 = vpop.f32.mrf.mxu0
  %v611 = vadd.f32 0.0, %v610
  %v612 = vpop.f32.mrf.mxu0
  %v613 = vadd.f32 0.0, %v612
  %614 = vmatmul.bf16.gmra.mxu0 %v434
  %v615 = vpop.f32.mrf.mxu0
  %v616 = vadd.f32 0.0, %v615
  %v617 = vpop.f32.mrf.mxu0
  %v618 = vadd.f32 0.0, %v617
  %619 = vmatmul.bf16.gmra.mxu0 %v437
  %v620 = vpop.f32.mrf.mxu0
  %v621 = vadd.f32 0.0, %v620
  %v622 = vpop.f32.mrf.mxu0
  %v623 = vadd.f32 0.0, %v622
  %624 = vmatmul.bf16.gmra.mxu0 %v440
  %v625 = vpop.f32.mrf.mxu0
  %v626 = vadd.f32 0.0, %v625
  %v627 = vpop.f32.mrf.mxu0
  %v628 = vadd.f32 0.0, %v627
  %629 = vmatmul.bf16.gmra.mxu0 %v443
  %v630 = vpop.f32.mrf.mxu0
  %v631 = vadd.f32 0.0, %v630
  %v632 = vpop.f32.mrf.mxu0
  %v633 = vadd.f32 0.0, %v632
  %634 = vmatmul.bf16.gmra.mxu0 %v446
  %v635 = vpop.f32.mrf.mxu0
  %v636 = vadd.f32 0.0, %v635
  %v637 = vpop.f32.mrf.mxu0
  %v638 = vadd.f32 0.0, %v637
  %639 = vmatmul.bf16.gmra.mxu0 %v449
  %v640 = vpop.f32.mrf.mxu0
  %v641 = vadd.f32 0.0, %v640
  %v642 = vpop.f32.mrf.mxu0
  %v643 = vadd.f32 0.0, %v642
  %644 = vmatmul.bf16.gmra.mxu0 %v452
  %v645 = vpop.f32.mrf.mxu0
  %v646 = vadd.f32 0.0, %v645
  %v647 = vpop.f32.mrf.mxu0
  %v648 = vadd.f32 0.0, %v647
  %649 = vmatmul.bf16.gmra.mxu0 %v455
  %v650 = vpop.f32.mrf.mxu0
  %v651 = vadd.f32 0.0, %v650
  %v652 = vpop.f32.mrf.mxu0
  %v653 = vadd.f32 0.0, %v652
  %654 = vmatmul.bf16.gmra.mxu0 %v458
  %v655 = vpop.f32.mrf.mxu0
  %v656 = vadd.f32 0.0, %v655
  %v657 = vpop.f32.mrf.mxu0
  %v658 = vadd.f32 0.0, %v657
  %659 = vmatmul.bf16.gmra.mxu0 %v461
  %v660 = vpop.f32.mrf.mxu0
  %v661 = vadd.f32 0.0, %v660
  %v662 = vpop.f32.mrf.mxu0
  %v663 = vadd.f32 0.0, %v662
  %664 = vmatmul.bf16.gmra.mxu0 %v464
  %v665 = vpop.f32.mrf.mxu0
  %v666 = vadd.f32 0.0, %v665
  %v667 = vpop.f32.mrf.mxu0
  %v668 = vadd.f32 0.0, %v667
  %669 = vmatmul.bf16.gmra.mxu0 %v467
  %v670 = vpop.f32.mrf.mxu0
  %v671 = vadd.f32 0.0, %v670
  %v672 = vpop.f32.mrf.mxu0
  %v673 = vadd.f32 0.0, %v672
  %674 = vmatmul.bf16.gmra.mxu0 %v470
  %v675 = vpop.f32.mrf.mxu0
  %v676 = vadd.f32 0.0, %v675
  %v677 = vpop.f32.mrf.mxu0
  %v678 = vadd.f32 0.0, %v677
  %679 = vmatmul.bf16.gmra.mxu0 %v473
  %v680 = vpop.f32.mrf.mxu0
  %v681 = vadd.f32 0.0, %v680
  %v682 = vpop.f32.mrf.mxu0
  %v683 = vadd.f32 0.0, %v682
  %684 = vmatmul.bf16.gmra.mxu0 %v476
  %v685 = vpop.f32.mrf.mxu0
  %v686 = vadd.f32 0.0, %v685
  %v687 = vpop.f32.mrf.mxu0
  %v688 = vadd.f32 0.0, %v687
  %689 = vmatmul.bf16.gmra.mxu0 %v479
  %v690 = vpop.f32.mrf.mxu0
  %v691 = vadd.f32 0.0, %v690
  %v692 = vpop.f32.mrf.mxu0
  %v693 = vadd.f32 0.0, %v692
  %694 = vmatmul.bf16.gmra.mxu0 %v482
  %v695 = vpop.f32.mrf.mxu0
  %v696 = vadd.f32 0.0, %v695
  %v697 = vpop.f32.mrf.mxu0
  %v698 = vadd.f32 0.0, %v697
  %699 = vmatmul.bf16.gmra.mxu0 %v485
  %v700 = vpop.f32.mrf.mxu0
  %v701 = vadd.f32 0.0, %v700
  %v702 = vpop.f32.mrf.mxu0
  %v703 = vadd.f32 0.0, %v702
  %704 = vmatmul.bf16.gmra.mxu0 %v488
  %v705 = vpop.f32.mrf.mxu0
  %v706 = vadd.f32 0.0, %v705
  %v707 = vpop.f32.mrf.mxu0
  %v708 = vadd.f32 0.0, %v707
  %709 = vmatmul.bf16.gmra.mxu0 %v491
  %v710 = vpop.f32.mrf.mxu0
  %v711 = vadd.f32 0.0, %v710
  %v712 = vpop.f32.mrf.mxu0
  %v713 = vadd.f32 0.0, %v712
  %714 = vmatmul.bf16.gmra.mxu0 %v494
  %v715 = vpop.f32.mrf.mxu0
  %v716 = vadd.f32 0.0, %v715
  %v717 = vpop.f32.mrf.mxu0
  %v718 = vadd.f32 0.0, %v717
  %719 = vmatmul.bf16.gmra.mxu0 %v497
  %v720 = vpop.f32.mrf.mxu0
  %v721 = vadd.f32 0.0, %v720
  %v722 = vpop.f32.mrf.mxu0
  %v723 = vadd.f32 0.0, %v722
  %724 = vmatmul.bf16.gmra.mxu0 %v500
  %v725 = vpop.f32.mrf.mxu0
  %v726 = vadd.f32 0.0, %v725
  %v727 = vpop.f32.mrf.mxu0
  %v728 = vadd.f32 0.0, %v727
  %729 = vmatmul.bf16.gmra.mxu0 %v503
  %v730 = vpop.f32.mrf.mxu0
  %v731 = vadd.f32 0.0, %v730
  %v732 = vpop.f32.mrf.mxu0
  %v733 = vadd.f32 0.0, %v732
  %734 = vmatmul.bf16.gmra.mxu0 %v506
  %v735 = vpop.f32.mrf.mxu0
  %v736 = vadd.f32 0.0, %v735
  %v737 = vpop.f32.mrf.mxu0
  %v738 = vadd.f32 0.0, %v737
  %739 = vmatmul.bf16.gmra.mxu0 %v509
  %v740 = vpop.f32.mrf.mxu0
  %v741 = vadd.f32 0.0, %v740
  %v742 = vpop.f32.mrf.mxu0
  %v743 = vadd.f32 0.0, %v742
  %744 = vmatmul.bf16.gmra.mxu0 %v512
  %v745 = vpop.f32.mrf.mxu0
  %v746 = vadd.f32 0.0, %v745
  %v747 = vpop.f32.mrf.mxu0
  %v748 = vadd.f32 0.0, %v747
  %749 = vmatmul.bf16.gmra.mxu0 %v515
  %v750 = vpop.f32.mrf.mxu0
  %v751 = vadd.f32 0.0, %v750
  %v752 = vpop.f32.mrf.mxu0
  %v753 = vadd.f32 0.0, %v752
  %754 = vmatmul.bf16.gmra.mxu0 %v518
  %v755 = vpop.f32.mrf.mxu0
  %v756 = vadd.f32 0.0, %v755
  %v757 = vpop.f32.mrf.mxu0
  %v758 = vadd.f32 0.0, %v757
  %759 = vmatmul.bf16.gmra.mxu0 %v521
  %v760 = vpop.f32.mrf.mxu0
  %v761 = vadd.f32 0.0, %v760
  %v762 = vpop.f32.mrf.mxu0
  %v763 = vadd.f32 0.0, %v762
  %764 = vmatmul.bf16.gmra.mxu0 %v524
  %v765 = vpop.f32.mrf.mxu0
  %v766 = vadd.f32 0.0, %v765
  %v767 = vpop.f32.mrf.mxu0
  %v768 = vadd.f32 0.0, %v767
  %769 = vmatmul.bf16.gmra.mxu0 %v527
  %v770 = vpop.f32.mrf.mxu0
  %v771 = vadd.f32 0.0, %v770
  %v772 = vpop.f32.mrf.mxu0
  %v773 = vadd.f32 0.0, %v772
  %774 = vmatmul.bf16.gmra.mxu0 %v530
  %v775 = vpop.f32.mrf.mxu0
  %v776 = vadd.f32 0.0, %v775
  %v777 = vpop.f32.mrf.mxu0
  %v778 = vadd.f32 0.0, %v777
  %779 = vmatmul.bf16.gmra.mxu0 %v533
  %v780 = vpop.f32.mrf.mxu0
  %v781 = vadd.f32 0.0, %v780
  %v782 = vpop.f32.mrf.mxu0
  %v783 = vadd.f32 0.0, %v782
  %784 = vmatmul.bf16.gmra.mxu0 %v536
  %v785 = vpop.f32.mrf.mxu0
  %v786 = vadd.f32 0.0, %v785
  %v787 = vpop.f32.mrf.mxu0
  %v788 = vadd.f32 0.0, %v787
  %789 = vmatmul.bf16.gmra.mxu0 %v539
  %v790 = vpop.f32.mrf.mxu0
  %v791 = vadd.f32 0.0, %v790
  %v792 = vpop.f32.mrf.mxu0
  %v793 = vadd.f32 0.0, %v792
  %794 = vmatmul.bf16.gmra.mxu0 %v542
  %v795 = vpop.f32.mrf.mxu0
  %v796 = vadd.f32 0.0, %v795
  %v797 = vpop.f32.mrf.mxu0
  %v798 = vadd.f32 0.0, %v797
  %799 = vmatmul.bf16.gmra.mxu0 %v545
  %v800 = vpop.f32.mrf.mxu0
  %v801 = vadd.f32 0.0, %v800
  %v802 = vpop.f32.mrf.mxu0
  %v803 = vadd.f32 0.0, %v802
  %804 = vmatmul.bf16.gmra.mxu0 %v548
  %v805 = vpop.f32.mrf.mxu0
  %v806 = vadd.f32 0.0, %v805
  %v807 = vpop.f32.mrf.mxu0
  %v808 = vadd.f32 0.0, %v807
  %809 = vmatmul.bf16.gmra.mxu0 %v551
  %v810 = vpop.f32.mrf.mxu0
  %v811 = vadd.f32 0.0, %v810
  %v812 = vpop.f32.mrf.mxu0
  %v813 = vadd.f32 0.0, %v812
  %814 = vmatmul.bf16.gmra.mxu0 %v554
  %v815 = vpop.f32.mrf.mxu0
  %v816 = vadd.f32 0.0, %v815
  %v817 = vpop.f32.mrf.mxu0
  %v818 = vadd.f32 0.0, %v817
  %819 = vmatmul.bf16.gmra.mxu0 %v557
  %v820 = vpop.f32.mrf.mxu0
  %v821 = vadd.f32 0.0, %v820
  %v822 = vpop.f32.mrf.mxu0
  %v823 = vadd.f32 0.0, %v822
  %824 = vdwg.mxu0
  %v825 = vmax.f32 %v576, %v638
  %v826 = vmax.f32 %v578, %v641
  %v827 = vmax.f32 %v581, %v643
  %v828 = vmax.f32 %v583, %v646
  %v829 = vmax.f32 %v586, %v648
  %v830 = vmax.f32 %v588, %v651
  %v831 = vmax.f32 %v591, %v653
  %v832 = vmax.f32 %v593, %v656
  %v833 = vmax.f32 %v596, %v658
  %v834 = vmax.f32 %v598, %v661
  %v835 = vmax.f32 %v601, %v663
  %v836 = vmax.f32 %v603, %v666
  %v837 = vmax.f32 %v606, %v668
  %v838 = vmax.f32 %v608, %v671
  %v839 = vmax.f32 %v611, %v673
  %v840 = vmax.f32 %v613, %v676
  %v841 = vmax.f32 %v616, %v678
  %v842 = vmax.f32 %v618, %v681
  %v843 = vmax.f32 %v621, %v683
  %v844 = vmax.f32 %v623, %v686
  %v845 = vmax.f32 %v626, %v688
  %v846 = vmax.f32 %v628, %v691
  %v847 = vmax.f32 %v631, %v693
  %v848 = vmax.f32 %v633, %v696
  %v849 = vmax.f32 %v636, %v698
  %v850 = vmax.f32 %v701, %v763
  %v851 = vmax.f32 %v703, %v766
  %v852 = vmax.f32 %v706, %v768
  %v853 = vmax.f32 %v708, %v771
  %v854 = vmax.f32 %v711, %v773
  %v855 = vmax.f32 %v713, %v776
  %v856 = vmax.f32 %v716, %v778
  %v857 = vmax.f32 %v718, %v781
  %v858 = vmax.f32 %v721, %v783
  %v859 = vmax.f32 %v723, %v786
  %v860 = vmax.f32 %v726, %v788
  %v861 = vmax.f32 %v728, %v791
  %v862 = vmax.f32 %v731, %v793
  %v863 = vmax.f32 %v733, %v796
  %v864 = vmax.f32 %v736, %v798
  %v865 = vmax.f32 %v738, %v801
  %v866 = vmax.f32 %v741, %v803
  %v867 = vmax.f32 %v743, %v806
  %v868 = vmax.f32 %v746, %v808
  %v869 = vmax.f32 %v748, %v811
  %v870 = vmax.f32 %v751, %v813
  %v871 = vmax.f32 %v753, %v816
  %v872 = vmax.f32 %v756, %v818
  %v873 = vmax.f32 %v758, %v821
  %v874 = vmax.f32 %v761, %v823
  %v875 = vmax.f32 %v825, %v850
  %v876 = vmax.f32 %v826, %v851
  %v877 = vmax.f32 %v827, %v852
  %v878 = vmax.f32 %v828, %v853
  %v879 = vmax.f32 %v829, %v854
  %v880 = vmax.f32 %v830, %v855
  %v881 = vmax.f32 %v831, %v856
  %v882 = vmax.f32 %v832, %v857
  %v883 = vmax.f32 %v833, %v858
  %v884 = vmax.f32 %v834, %v859
  %v885 = vmax.f32 %v835, %v860
  %v886 = vmax.f32 %v836, %v861
  %v887 = vmax.f32 %v837, %v862
  %v888 = vmax.f32 %v838, %v863
  %v889 = vmax.f32 %v839, %v864
  %v890 = vmax.f32 %v840, %v865
  %v891 = vmax.f32 %v841, %v866
  %v892 = vmax.f32 %v842, %v867
  %v893 = vmax.f32 %v843, %v868
  %v894 = vmax.f32 %v844, %v869
  %v895 = vmax.f32 %v845, %v870
  %v896 = vmax.f32 %v846, %v871
  %v897 = vmax.f32 %v847, %v872
  %v898 = vmax.f32 %v848, %v873
  %v899 = vmax.f32 %v849, %v874
  %v900 = vadd.f32 %v875, %v27
  %v901 = vadd.f32 %v876, %v27
  %v902 = vadd.f32 %v877, %v27
  %v903 = vadd.f32 %v878, %v27
  %v904 = vadd.f32 %v879, %v27
  %v905 = vadd.f32 %v880, %v27
  %v906 = vadd.f32 %v881, %v27
  %v907 = vadd.f32 %v882, %v27
  %v908 = vadd.f32 %v883, %v27
  %v909 = vadd.f32 %v884, %v27
  %v910 = vadd.f32 %v885, %v27
  %v911 = vadd.f32 %v886, %v27
  %v912 = vadd.f32 %v887, %v27
  %v913 = vadd.f32 %v888, %v27
  %v914 = vadd.f32 %v889, %v27
  %v915 = vadd.f32 %v890, %v27
  %v916 = vadd.f32 %v891, %v27
  %v917 = vadd.f32 %v892, %v27
  %v918 = vadd.f32 %v893, %v27
  %v919 = vadd.f32 %v894, %v27
  %v920 = vadd.f32 %v895, %v27
  %v921 = vadd.f32 %v896, %v27
  %v922 = vadd.f32 %v897, %v27
  %v923 = vadd.f32 %v898, %v27
  %v924 = vadd.f32 %v899, %v27
  %v925 = vmax.f32 %v900, 0.0
  %v926 = vmax.f32 %v901, 0.0
  %v927 = vmax.f32 %v902, 0.0
  %v928 = vmax.f32 %v903, 0.0
  %v929 = vmax.f32 %v904, 0.0
  %v930 = vmax.f32 %v905, 0.0
  %v931 = vmax.f32 %v906, 0.0
  %v932 = vmax.f32 %v907, 0.0
  %v933 = vmax.f32 %v908, 0.0
  %v934 = vmax.f32 %v909, 0.0
  %v935 = vmax.f32 %v910, 0.0
  %v936 = vmax.f32 %v911, 0.0
  %v937 = vmax.f32 %v912, 0.0
  %v938 = vmax.f32 %v913, 0.0
  %v939 = vmax.f32 %v914, 0.0
  %v940 = vmax.f32 %v915, 0.0
  %v941 = vmax.f32 %v916, 0.0
  %v942 = vmax.f32 %v917, 0.0
  %v943 = vmax.f32 %v918, 0.0
  %v944 = vmax.f32 %v919, 0.0
  %v945 = vmax.f32 %v920, 0.0
  %v946 = vmax.f32 %v921, 0.0
  %v947 = vmax.f32 %v922, 0.0
  %v948 = vmax.f32 %v923, 0.0
  %v949 = vmax.f32 %v924, 0.0
  %v950 = vpack.c.bf16 %v925, %v925
  %v951 = vpack.c.bf16 %v926, %v926
  %v952 = vpack.c.bf16 %v927, %v927
  %v953 = vpack.c.bf16 %v928, %v928
  %v954 = vpack.c.bf16 %v929, %v929
  %v955 = vpack.c.bf16 %v930, %v930
  %v956 = vpack.c.bf16 %v931, %v931
  %v957 = vpack.c.bf16 %v932, %v932
  %v958 = vpack.c.bf16 %v933, %v933
  %v959 = vpack.c.bf16 %v934, %v934
  %v960 = vpack.c.bf16 %v935, %v935
  %v961 = vpack.c.bf16 %v936, %v936
  %v962 = vpack.c.bf16 %v937, %v937
  %v963 = vpack.c.bf16 %v938, %v938
  %v964 = vpack.c.bf16 %v939, %v939
  %v965 = vpack.c.bf16 %v940, %v940
  %v966 = vpack.c.bf16 %v941, %v941
  %v967 = vpack.c.bf16 %v942, %v942
  %v968 = vpack.c.bf16 %v943, %v943
  %v969 = vpack.c.bf16 %v944, %v944
  %v970 = vpack.c.bf16 %v945, %v945
  %v971 = vpack.c.bf16 %v946, %v946
  %v972 = vpack.c.bf16 %v947, %v947
  %v973 = vpack.c.bf16 %v948, %v948
  %v974 = vpack.c.bf16 %v949, %v949
  %vm975 = vcmask 44032
  %976 = vst.msk [vmem:[%s3] sm:$0xf] %vm975, %v950
  %977 = vst.msk [vmem:[%s3 + $0x4] sm:$0xf] %vm975, %v951
  %978 = vst.msk [vmem:[%s3 + $0x8] sm:$0xf] %vm975, %v952
  %979 = vst.msk [vmem:[%s3 + $0xc] sm:$0xf] %vm975, %v953
  %980 = vst.msk [vmem:[%s3 + $0x10] sm:$0xf] %vm975, %v954
  %981 = vst.msk [vmem:[%s3 + $0x14] sm:$0xf] %vm975, %v955
  %982 = vst.msk [vmem:[%s3 + $0x18] sm:$0xf] %vm975, %v956
  %983 = vst.msk [vmem:[%s3 + $0x1c] sm:$0xf] %vm975, %v957
  %984 = vst.msk [vmem:[%s3 + $0x20] sm:$0xf] %vm975, %v958
  %985 = vst.msk [vmem:[%s3 + $0x24] sm:$0xf] %vm975, %v959
  %986 = vst.msk [vmem:[%s3 + $0x28] sm:$0xf] %vm975, %v960
  %987 = vst.msk [vmem:[%s3 + $0x2c] sm:$0xf] %vm975, %v961
  %988 = vst.msk [vmem:[%s3 + $0x30] sm:$0xf] %vm975, %v962
  %989 = vst.msk [vmem:[%s3 + $0x34] sm:$0xf] %vm975, %v963
  %990 = vst.msk [vmem:[%s3 + $0x38] sm:$0xf] %vm975, %v964
  %991 = vst.msk [vmem:[%s3 + $0x3c] sm:$0xf] %vm975, %v965
  %992 = vst.msk [vmem:[%s3 + $0x40] sm:$0xf] %vm975, %v966
  %993 = vst.msk [vmem:[%s3 + $0x44] sm:$0xf] %vm975, %v967
  %994 = vst.msk [vmem:[%s3 + $0x48] sm:$0xf] %vm975, %v968
  %995 = vst.msk [vmem:[%s3 + $0x4c] sm:$0xf] %vm975, %v969
  %996 = vst.msk [vmem:[%s3 + $0x50] sm:$0xf] %vm975, %v970
  %997 = vst.msk [vmem:[%s3 + $0x54] sm:$0xf] %vm975, %v971
  %998 = vst.msk [vmem:[%s3 + $0x58] sm:$0xf] %vm975, %v972
  %999 = vst.msk [vmem:[%s3 + $0x5c] sm:$0xf] %vm975, %v973
  %1000 = vst.msk [vmem:[%s3 + $0x60] sm:$0xf] %vm975, %v974
  %v1001 = vld [vmem:[%s0 + $0x190] sm:$0xf]
  %v1002 = vld [vmem:[%s0 + $0x194] sm:$0xf]
  %v1003 = vld [vmem:[%s0 + $0x198] sm:$0xf]
  %v1004 = vld [vmem:[%s0 + $0x19c] sm:$0xf]
  %v1005 = vld [vmem:[%s0 + $0x1a0] sm:$0xf]
  %v1006 = vld [vmem:[%s0 + $0x1a4] sm:$0xf]
  %v1007 = vld [vmem:[%s0 + $0x1a8] sm:$0xf]
  %v1008 = vld [vmem:[%s0 + $0x1ac] sm:$0xf]
  %v1009 = vld [vmem:[%s0 + $0x1b0] sm:$0xf]
  %v1010 = vld [vmem:[%s0 + $0x1b4] sm:$0xf]
  %v1011 = vld [vmem:[%s0 + $0x1b8] sm:$0xf]
  %v1012 = vld [vmem:[%s0 + $0x1bc] sm:$0xf]
  %v1013 = vld [vmem:[%s0 + $0x1c0] sm:$0xf]
  %v1014 = vld [vmem:[%s0 + $0x1c4] sm:$0xf]
  %v1015 = vld [vmem:[%s0 + $0x1c8] sm:$0xf]
  %v1016 = vld [vmem:[%s0 + $0x1cc] sm:$0xf]
  %v1017 = vld [vmem:[%s0 + $0x1d0] sm:$0xf]
  %v1018 = vld [vmem:[%s0 + $0x1d4] sm:$0xf]
  %v1019 = vld [vmem:[%s0 + $0x1d8] sm:$0xf]
  %v1020 = vld [vmem:[%s0 + $0x1dc] sm:$0xf]
  %v1021 = vld [vmem:[%s0 + $0x1e0] sm:$0xf]
  %v1022 = vld [vmem:[%s0 + $0x1e4] sm:$0xf]
  %v1023 = vld [vmem:[%s0 + $0x1e8] sm:$0xf]
  %v1024 = vld [vmem:[%s0 + $0x1ec] sm:$0xf]
  %v1025 = vld [vmem:[%s0 + $0x1f0] sm:$0xf]
  %v1026 = vld [vmem:[%s0 + $0x1f4] sm:$0xf]
  %v1027 = vld [vmem:[%s0 + $0x1f8] sm:$0xf]
  %v1028 = vld [vmem:[%s0 + $0x1fc] sm:$0xf]
  %v1029 = vld [vmem:[%s0 + $0x200] sm:$0xf]
  %v1030 = vld [vmem:[%s0 + $0x204] sm:$0xf]
  %v1031 = vld [vmem:[%s0 + $0x208] sm:$0xf]
  %v1032 = vld [vmem:[%s0 + $0x20c] sm:$0xf]
  %v1033 = vld [vmem:[%s0 + $0x210] sm:$0xf]
  %v1034 = vld [vmem:[%s0 + $0x214] sm:$0xf]
  %v1035 = vld [vmem:[%s0 + $0x218] sm:$0xf]
  %v1036 = vld [vmem:[%s0 + $0x21c] sm:$0xf]
  %v1037 = vld [vmem:[%s0 + $0x220] sm:$0xf]
  %v1038 = vld [vmem:[%s0 + $0x224] sm:$0xf]
  %v1039 = vld [vmem:[%s0 + $0x228] sm:$0xf]
  %v1040 = vld [vmem:[%s0 + $0x22c] sm:$0xf]
  %v1041 = vld [vmem:[%s0 + $0x230] sm:$0xf]
  %v1042 = vld [vmem:[%s0 + $0x234] sm:$0xf]
  %v1043 = vld [vmem:[%s0 + $0x238] sm:$0xf]
  %v1044 = vld [vmem:[%s0 + $0x23c] sm:$0xf]
  %v1045 = vld [vmem:[%s0 + $0x240] sm:$0xf]
  %v1046 = vld [vmem:[%s0 + $0x244] sm:$0xf]
  %v1047 = vld [vmem:[%s0 + $0x248] sm:$0xf]
  %v1048 = vld [vmem:[%s0 + $0x24c] sm:$0xf]
  %v1049 = vld [vmem:[%s0 + $0x250] sm:$0xf]
  %v1050 = vld [vmem:[%s0 + $0x254] sm:$0xf]
  %v1051 = vld [vmem:[%s0 + $0x258] sm:$0xf]
  %v1052 = vld [vmem:[%s0 + $0x25c] sm:$0xf]
  %v1053 = vld [vmem:[%s0 + $0x260] sm:$0xf]
  %v1054 = vld [vmem:[%s0 + $0x264] sm:$0xf]
  %v1055 = vld [vmem:[%s0 + $0x268] sm:$0xf]
  %v1056 = vld [vmem:[%s0 + $0x26c] sm:$0xf]
  %v1057 = vld [vmem:[%s0 + $0x270] sm:$0xf]
  %v1058 = vld [vmem:[%s0 + $0x274] sm:$0xf]
  %v1059 = vld [vmem:[%s0 + $0x278] sm:$0xf]
  %v1060 = vld [vmem:[%s0 + $0x27c] sm:$0xf]
  %v1061 = vld [vmem:[%s0 + $0x280] sm:$0xf]
  %v1062 = vld [vmem:[%s0 + $0x284] sm:$0xf]
  %v1063 = vld [vmem:[%s0 + $0x288] sm:$0xf]
  %v1064 = vld [vmem:[%s0 + $0x28c] sm:$0xf]
  %v1065 = vld [vmem:[%s0 + $0x290] sm:$0xf]
  %v1066 = vld [vmem:[%s0 + $0x294] sm:$0xf]
  %v1067 = vld [vmem:[%s0 + $0x298] sm:$0xf]
  %v1068 = vld [vmem:[%s0 + $0x29c] sm:$0xf]
  %v1069 = vld [vmem:[%s0 + $0x2a0] sm:$0xf]
  %v1070 = vld [vmem:[%s0 + $0x2a4] sm:$0xf]
  %v1071 = vld [vmem:[%s0 + $0x2a8] sm:$0xf]
  %v1072 = vld [vmem:[%s0 + $0x2ac] sm:$0xf]
  %v1073 = vld [vmem:[%s0 + $0x2b0] sm:$0xf]
  %v1074 = vld [vmem:[%s0 + $0x2b4] sm:$0xf]
  %v1075 = vld [vmem:[%s0 + $0x2b8] sm:$0xf]
  %v1076 = vld [vmem:[%s0 + $0x2bc] sm:$0xf]
  %v1077 = vld [vmem:[%s0 + $0x2c0] sm:$0xf]
  %v1078 = vld [vmem:[%s0 + $0x2c4] sm:$0xf]
  %v1079 = vld [vmem:[%s0 + $0x2c8] sm:$0xf]
  %v1080 = vld [vmem:[%s0 + $0x2cc] sm:$0xf]
  %v1081 = vld [vmem:[%s0 + $0x2d0] sm:$0xf]
  %v1082 = vld [vmem:[%s0 + $0x2d4] sm:$0xf]
  %v1083 = vld [vmem:[%s0 + $0x2d8] sm:$0xf]
  %v1084 = vld [vmem:[%s0 + $0x2dc] sm:$0xf]
  %v1085 = vld [vmem:[%s0 + $0x2e0] sm:$0xf]
  %v1086 = vld [vmem:[%s0 + $0x2e4] sm:$0xf]
  %v1087 = vld [vmem:[%s0 + $0x2e8] sm:$0xf]
  %v1088 = vld [vmem:[%s0 + $0x2ec] sm:$0xf]
  %v1089 = vld [vmem:[%s0 + $0x2f0] sm:$0xf]
  %v1090 = vld [vmem:[%s0 + $0x2f4] sm:$0xf]
  %v1091 = vld [vmem:[%s0 + $0x2f8] sm:$0xf]
  %v1092 = vld [vmem:[%s0 + $0x2fc] sm:$0xf]
  %v1093 = vld [vmem:[%s0 + $0x300] sm:$0xf]
  %v1094 = vld [vmem:[%s0 + $0x304] sm:$0xf]
  %v1095 = vld [vmem:[%s0 + $0x308] sm:$0xf]
  %v1096 = vld [vmem:[%s0 + $0x30c] sm:$0xf]
  %v1097 = vld [vmem:[%s0 + $0x310] sm:$0xf]
  %v1098 = vld [vmem:[%s0 + $0x314] sm:$0xf]
  %v1099 = vld [vmem:[%s0 + $0x318] sm:$0xf]
  %v1100 = vld [vmem:[%s0 + $0x31c] sm:$0xf]
  %v1201 = vunpack.c.l.b16 %v1001
  %v1202 = vunpack.c.l.b16 %v1002
  %v1203 = vunpack.c.l.b16 %v1003
  %v1204 = vunpack.c.l.b16 %v1004
  %v1205 = vunpack.c.l.b16 %v1005
  %v1206 = vunpack.c.l.b16 %v1006
  %v1207 = vunpack.c.l.b16 %v1007
  %v1208 = vunpack.c.l.b16 %v1008
  %v1209 = vunpack.c.l.b16 %v1009
  %v1210 = vunpack.c.l.b16 %v1010
  %v1211 = vunpack.c.l.b16 %v1011
  %v1212 = vunpack.c.l.b16 %v1012
  %v1213 = vunpack.c.l.b16 %v1013
  %v1214 = vunpack.c.l.b16 %v1014
  %v1215 = vunpack.c.l.b16 %v1015
  %v1216 = vunpack.c.l.b16 %v1016
  %v1217 = vunpack.c.l.b16 %v1017
  %v1218 = vunpack.c.l.b16 %v1018
  %v1219 = vunpack.c.l.b16 %v1019
  %v1220 = vunpack.c.l.b16 %v1020
  %v1221 = vunpack.c.l.b16 %v1021
  %v1222 = vunpack.c.l.b16 %v1022
  %v1223 = vunpack.c.l.b16 %v1023
  %v1224 = vunpack.c.l.b16 %v1024
  %v1225 = vunpack.c.l.b16 %v1025
  %v1226 = vunpack.c.l.b16 %v1026
  %v1227 = vunpack.c.l.b16 %v1027
  %v1228 = vunpack.c.l.b16 %v1028
  %v1229 = vunpack.c.l.b16 %v1029
  %v1230 = vunpack.c.l.b16 %v1030
  %v1231 = vunpack.c.l.b16 %v1031
  %v1232 = vunpack.c.l.b16 %v1032
  %v1233 = vunpack.c.l.b16 %v1033
  %v1234 = vunpack.c.l.b16 %v1034
  %v1235 = vunpack.c.l.b16 %v1035
  %v1236 = vunpack.c.l.b16 %v1036
  %v1237 = vunpack.c.l.b16 %v1037
  %v1238 = vunpack.c.l.b16 %v1038
  %v1239 = vunpack.c.l.b16 %v1039
  %v1240 = vunpack.c.l.b16 %v1040
  %v1241 = vunpack.c.l.b16 %v1041
  %v1242 = vunpack.c.l.b16 %v1042
  %v1243 = vunpack.c.l.b16 %v1043
  %v1244 = vunpack.c.l.b16 %v1044
  %v1245 = vunpack.c.l.b16 %v1045
  %v1246 = vunpack.c.l.b16 %v1046
  %v1247 = vunpack.c.l.b16 %v1047
  %v1248 = vunpack.c.l.b16 %v1048
  %v1249 = vunpack.c.l.b16 %v1049
  %v1250 = vunpack.c.l.b16 %v1050
  %v1251 = vunpack.c.l.b16 %v1051
  %v1252 = vunpack.c.l.b16 %v1052
  %v1253 = vunpack.c.l.b16 %v1053
  %v1254 = vunpack.c.l.b16 %v1054
  %v1255 = vunpack.c.l.b16 %v1055
  %v1256 = vunpack.c.l.b16 %v1056
  %v1257 = vunpack.c.l.b16 %v1057
  %v1258 = vunpack.c.l.b16 %v1058
  %v1259 = vunpack.c.l.b16 %v1059
  %v1260 = vunpack.c.l.b16 %v1060
  %v1261 = vunpack.c.l.b16 %v1061
  %v1262 = vunpack.c.l.b16 %v1062
  %v1263 = vunpack.c.l.b16 %v1063
  %v1264 = vunpack.c.l.b16 %v1064
  %v1265 = vunpack.c.l.b16 %v1065
  %v1266 = vunpack.c.l.b16 %v1066
  %v1267 = vunpack.c.l.b16 %v1067
  %v1268 = vunpack.c.l.b16 %v1068
  %v1269 = vunpack.c.l.b16 %v1069
  %v1270 = vunpack.c.l.b16 %v1070
  %v1271 = vunpack.c.l.b16 %v1071
  %v1272 = vunpack.c.l.b16 %v1072
  %v1273 = vunpack.c.l.b16 %v1073
  %v1274 = vunpack.c.l.b16 %v1074
  %v1275 = vunpack.c.l.b16 %v1075
  %v1276 = vunpack.c.l.b16 %v1076
  %v1277 = vunpack.c.l.b16 %v1077
  %v1278 = vunpack.c.l.b16 %v1078
  %v1279 = vunpack.c.l.b16 %v1079
  %v1280 = vunpack.c.l.b16 %v1080
  %v1281 = vunpack.c.l.b16 %v1081
  %v1282 = vunpack.c.l.b16 %v1082
  %v1283 = vunpack.c.l.b16 %v1083
  %v1284 = vunpack.c.l.b16 %v1084
  %v1285 = vunpack.c.l.b16 %v1085
  %v1286 = vunpack.c.l.b16 %v1086
  %v1287 = vunpack.c.l.b16 %v1087
  %v1288 = vunpack.c.l.b16 %v1088
  %v1289 = vunpack.c.l.b16 %v1089
  %v1290 = vunpack.c.l.b16 %v1090
  %v1291 = vunpack.c.l.b16 %v1091
  %v1292 = vunpack.c.l.b16 %v1092
  %v1293 = vunpack.c.l.b16 %v1093
  %v1294 = vunpack.c.l.b16 %v1094
  %v1295 = vunpack.c.l.b16 %v1095
  %v1296 = vunpack.c.l.b16 %v1096
  %v1297 = vunpack.c.l.b16 %v1097
  %v1298 = vunpack.c.l.b16 %v1098
  %v1299 = vunpack.c.l.b16 %v1099
  %v1300 = vunpack.c.l.b16 %v1100
  %v1301 = vpack.c.b16 %v1202, %v1201
  %v1302 = vpack.c.b16 %v1204, %v1203
  %v1303 = vpack.c.b16 %v1206, %v1205
  %v1304 = vpack.c.b16 %v1208, %v1207
  %v1305 = vpack.c.b16 %v1210, %v1209
  %v1306 = vpack.c.b16 %v1212, %v1211
  %v1307 = vpack.c.b16 %v1214, %v1213
  %v1308 = vpack.c.b16 %v1216, %v1215
  %v1309 = vpack.c.b16 %v1218, %v1217
  %v1310 = vpack.c.b16 %v1220, %v1219
  %v1311 = vpack.c.b16 %v1222, %v1221
  %v1312 = vpack.c.b16 %v1224, %v1223
  %v1313 = vpack.c.b16 %v1226, %v1225
  %v1314 = vpack.c.b16 %v1228, %v1227
  %v1315 = vpack.c.b16 %v1230, %v1229
  %v1316 = vpack.c.b16 %v1232, %v1231
  %v1317 = vpack.c.b16 %v1234, %v1233
  %v1318 = vpack.c.b16 %v1236, %v1235
  %v1319 = vpack.c.b16 %v1238, %v1237
  %v1320 = vpack.c.b16 %v1240, %v1239
  %v1321 = vpack.c.b16 %v1242, %v1241
  %v1322 = vpack.c.b16 %v1244, %v1243
  %v1323 = vpack.c.b16 %v1246, %v1245
  %v1324 = vpack.c.b16 %v1248, %v1247
  %v1325 = vpack.c.b16 %v1250, %v1249
  %v1326 = vpack.c.b16 %v1252, %v1251
  %v1327 = vpack.c.b16 %v1254, %v1253
  %v1328 = vpack.c.b16 %v1256, %v1255
  %v1329 = vpack.c.b16 %v1258, %v1257
  %v1330 = vpack.c.b16 %v1260, %v1259
  %v1331 = vpack.c.b16 %v1262, %v1261
  %v1332 = vpack.c.b16 %v1264, %v1263
  %v1333 = vpack.c.b16 %v1266, %v1265
  %v1334 = vpack.c.b16 %v1268, %v1267
  %v1335 = vpack.c.b16 %v1270, %v1269
  %v1336 = vpack.c.b16 %v1272, %v1271
  %v1337 = vpack.c.b16 %v1274, %v1273
  %v1338 = vpack.c.b16 %v1276, %v1275
  %v1339 = vpack.c.b16 %v1278, %v1277
  %v1340 = vpack.c.b16 %v1280, %v1279
  %v1341 = vpack.c.b16 %v1282, %v1281
  %v1342 = vpack.c.b16 %v1284, %v1283
  %v1343 = vpack.c.b16 %v1286, %v1285
  %v1344 = vpack.c.b16 %v1288, %v1287
  %v1345 = vpack.c.b16 %v1290, %v1289
  %v1346 = vpack.c.b16 %v1292, %v1291
  %v1347 = vpack.c.b16 %v1294, %v1293
  %v1348 = vpack.c.b16 %v1296, %v1295
  %v1349 = vpack.c.b16 %v1298, %v1297
  %v1350 = vpack.c.b16 %v1300, %v1299
  %v1352 = vsel %vm408, %v1301, 0
  %v1355 = vsel %vm408, %v1302, 0
  %v1358 = vsel %vm408, %v1303, 0
  %v1361 = vsel %vm408, %v1304, 0
  %v1364 = vsel %vm408, %v1305, 0
  %v1367 = vsel %vm408, %v1306, 0
  %v1370 = vsel %vm408, %v1307, 0
  %v1373 = vsel %vm408, %v1308, 0
  %v1376 = vsel %vm408, %v1309, 0
  %v1379 = vsel %vm408, %v1310, 0
  %v1382 = vsel %vm408, %v1311, 0
  %v1385 = vsel %vm408, %v1312, 0
  %v1388 = vsel %vm408, %v1313, 0
  %v1391 = vsel %vm408, %v1314, 0
  %v1394 = vsel %vm408, %v1315, 0
  %v1397 = vsel %vm408, %v1316, 0
  %v1400 = vsel %vm408, %v1317, 0
  %v1403 = vsel %vm408, %v1318, 0
  %v1406 = vsel %vm408, %v1319, 0
  %v1409 = vsel %vm408, %v1320, 0
  %v1412 = vsel %vm408, %v1321, 0
  %v1415 = vsel %vm408, %v1322, 0
  %v1418 = vsel %vm408, %v1323, 0
  %v1421 = vsel %vm408, %v1324, 0
  %v1424 = vsel %vm408, %v1325, 0
  %v1427 = vsel %vm408, %v1326, 0
  %v1430 = vsel %vm408, %v1327, 0
  %v1433 = vsel %vm408, %v1328, 0
  %v1436 = vsel %vm408, %v1329, 0
  %v1439 = vsel %vm408, %v1330, 0
  %v1442 = vsel %vm408, %v1331, 0
  %v1445 = vsel %vm408, %v1332, 0
  %v1448 = vsel %vm408, %v1333, 0
  %v1451 = vsel %vm408, %v1334, 0
  %v1454 = vsel %vm408, %v1335, 0
  %v1457 = vsel %vm408, %v1336, 0
  %v1460 = vsel %vm408, %v1337, 0
  %v1463 = vsel %vm408, %v1338, 0
  %v1466 = vsel %vm408, %v1339, 0
  %v1469 = vsel %vm408, %v1340, 0
  %v1472 = vsel %vm408, %v1341, 0
  %v1475 = vsel %vm408, %v1342, 0
  %v1478 = vsel %vm408, %v1343, 0
  %v1481 = vsel %vm408, %v1344, 0
  %v1484 = vsel %vm408, %v1345, 0
  %v1487 = vsel %vm408, %v1346, 0
  %v1490 = vsel %vm408, %v1347, 0
  %v1493 = vsel %vm408, %v1348, 0
  %v1496 = vsel %vm408, %v1349, 0
  %v1499 = vsel %vm408, %v1350, 0
  %1501 = vmatpush.bf16.msra.mxu0 0
  %1502 = vmatpush.bf16.msra.mxu0 0
  %1503 = vmatpush.bf16.msra.mxu0 0
  %1504 = vmatpush.bf16.msra.mxu0 %v564
  %1505 = vmatpush.bf16.msra.mxu0 %v402
  %1506 = vmatpush.bf16.msra.mxu0 %v401
  %1507 = vmatpush.bf16.msra.mxu0 %v400
  %1508 = vmatpush.bf16.msra.mxu0 %v399
  %1509 = vmatmul.bf16.gmra.mxu0 %v1352
  %v1510 = vpop.f32.mrf.mxu0
  %v1511 = vadd.f32 0.0, %v1510
  %v1512 = vpop.f32.mrf.mxu0
  %v1513 = vadd.f32 0.0, %v1512
  %1514 = vmatmul.bf16.gmra.mxu0 %v1355
  %v1515 = vpop.f32.mrf.mxu0
  %v1516 = vadd.f32 0.0, %v1515
  %v1517 = vpop.f32.mrf.mxu0
  %v1518 = vadd.f32 0.0, %v1517
  %1519 = vmatmul.bf16.gmra.mxu0 %v1358
  %v1520 = vpop.f32.mrf.mxu0
  %v1521 = vadd.f32 0.0, %v1520
  %v1522 = vpop.f32.mrf.mxu0
  %v1523 = vadd.f32 0.0, %v1522
  %1524 = vmatmul.bf16.gmra.mxu0 %v1361
  %v1525 = vpop.f32.mrf.mxu0
  %v1526 = vadd.f32 0.0, %v1525
  %v1527 = vpop.f32.mrf.mxu0
  %v1528 = vadd.f32 0.0, %v1527
  %1529 = vmatmul.bf16.gmra.mxu0 %v1364
  %v1530 = vpop.f32.mrf.mxu0
  %v1531 = vadd.f32 0.0, %v1530
  %v1532 = vpop.f32.mrf.mxu0
  %v1533 = vadd.f32 0.0, %v1532
  %1534 = vmatmul.bf16.gmra.mxu0 %v1367
  %v1535 = vpop.f32.mrf.mxu0
  %v1536 = vadd.f32 0.0, %v1535
  %v1537 = vpop.f32.mrf.mxu0
  %v1538 = vadd.f32 0.0, %v1537
  %1539 = vmatmul.bf16.gmra.mxu0 %v1370
  %v1540 = vpop.f32.mrf.mxu0
  %v1541 = vadd.f32 0.0, %v1540
  %v1542 = vpop.f32.mrf.mxu0
  %v1543 = vadd.f32 0.0, %v1542
  %1544 = vmatmul.bf16.gmra.mxu0 %v1373
  %v1545 = vpop.f32.mrf.mxu0
  %v1546 = vadd.f32 0.0, %v1545
  %v1547 = vpop.f32.mrf.mxu0
  %v1548 = vadd.f32 0.0, %v1547
  %1549 = vmatmul.bf16.gmra.mxu0 %v1376
  %v1550 = vpop.f32.mrf.mxu0
  %v1551 = vadd.f32 0.0, %v1550
  %v1552 = vpop.f32.mrf.mxu0
  %v1553 = vadd.f32 0.0, %v1552
  %1554 = vmatmul.bf16.gmra.mxu0 %v1379
  %v1555 = vpop.f32.mrf.mxu0
  %v1556 = vadd.f32 0.0, %v1555
  %v1557 = vpop.f32.mrf.mxu0
  %v1558 = vadd.f32 0.0, %v1557
  %1559 = vmatmul.bf16.gmra.mxu0 %v1382
  %v1560 = vpop.f32.mrf.mxu0
  %v1561 = vadd.f32 0.0, %v1560
  %v1562 = vpop.f32.mrf.mxu0
  %v1563 = vadd.f32 0.0, %v1562
  %1564 = vmatmul.bf16.gmra.mxu0 %v1385
  %v1565 = vpop.f32.mrf.mxu0
  %v1566 = vadd.f32 0.0, %v1565
  %v1567 = vpop.f32.mrf.mxu0
  %v1568 = vadd.f32 0.0, %v1567
  %1569 = vmatmul.bf16.gmra.mxu0 %v1388
  %v1570 = vpop.f32.mrf.mxu0
  %v1571 = vadd.f32 0.0, %v1570
  %v1572 = vpop.f32.mrf.mxu0
  %v1573 = vadd.f32 0.0, %v1572
  %1574 = vmatmul.bf16.gmra.mxu0 %v1391
  %v1575 = vpop.f32.mrf.mxu0
  %v1576 = vadd.f32 0.0, %v1575
  %v1577 = vpop.f32.mrf.mxu0
  %v1578 = vadd.f32 0.0, %v1577
  %1579 = vmatmul.bf16.gmra.mxu0 %v1394
  %v1580 = vpop.f32.mrf.mxu0
  %v1581 = vadd.f32 0.0, %v1580
  %v1582 = vpop.f32.mrf.mxu0
  %v1583 = vadd.f32 0.0, %v1582
  %1584 = vmatmul.bf16.gmra.mxu0 %v1397
  %v1585 = vpop.f32.mrf.mxu0
  %v1586 = vadd.f32 0.0, %v1585
  %v1587 = vpop.f32.mrf.mxu0
  %v1588 = vadd.f32 0.0, %v1587
  %1589 = vmatmul.bf16.gmra.mxu0 %v1400
  %v1590 = vpop.f32.mrf.mxu0
  %v1591 = vadd.f32 0.0, %v1590
  %v1592 = vpop.f32.mrf.mxu0
  %v1593 = vadd.f32 0.0, %v1592
  %1594 = vmatmul.bf16.gmra.mxu0 %v1403
  %v1595 = vpop.f32.mrf.mxu0
  %v1596 = vadd.f32 0.0, %v1595
  %v1597 = vpop.f32.mrf.mxu0
  %v1598 = vadd.f32 0.0, %v1597
  %1599 = vmatmul.bf16.gmra.mxu0 %v1406
  %v1600 = vpop.f32.mrf.mxu0
  %v1601 = vadd.f32 0.0, %v1600
  %v1602 = vpop.f32.mrf.mxu0
  %v1603 = vadd.f32 0.0, %v1602
  %1604 = vmatmul.bf16.gmra.mxu0 %v1409
  %v1605 = vpop.f32.mrf.mxu0
  %v1606 = vadd.f32 0.0, %v1605
  %v1607 = vpop.f32.mrf.mxu0
  %v1608 = vadd.f32 0.0, %v1607
  %1609 = vmatmul.bf16.gmra.mxu0 %v1412
  %v1610 = vpop.f32.mrf.mxu0
  %v1611 = vadd.f32 0.0, %v1610
  %v1612 = vpop.f32.mrf.mxu0
  %v1613 = vadd.f32 0.0, %v1612
  %1614 = vmatmul.bf16.gmra.mxu0 %v1415
  %v1615 = vpop.f32.mrf.mxu0
  %v1616 = vadd.f32 0.0, %v1615
  %v1617 = vpop.f32.mrf.mxu0
  %v1618 = vadd.f32 0.0, %v1617
  %1619 = vmatmul.bf16.gmra.mxu0 %v1418
  %v1620 = vpop.f32.mrf.mxu0
  %v1621 = vadd.f32 0.0, %v1620
  %v1622 = vpop.f32.mrf.mxu0
  %v1623 = vadd.f32 0.0, %v1622
  %1624 = vmatmul.bf16.gmra.mxu0 %v1421
  %v1625 = vpop.f32.mrf.mxu0
  %v1626 = vadd.f32 0.0, %v1625
  %v1627 = vpop.f32.mrf.mxu0
  %v1628 = vadd.f32 0.0, %v1627
  %1629 = vmatmul.bf16.gmra.mxu0 %v1424
  %v1630 = vpop.f32.mrf.mxu0
  %v1631 = vadd.f32 0.0, %v1630
  %v1632 = vpop.f32.mrf.mxu0
  %v1633 = vadd.f32 0.0, %v1632
  %1634 = vmatmul.bf16.gmra.mxu0 %v1427
  %v1635 = vpop.f32.mrf.mxu0
  %v1636 = vadd.f32 0.0, %v1635
  %v1637 = vpop.f32.mrf.mxu0
  %v1638 = vadd.f32 0.0, %v1637
  %1639 = vmatmul.bf16.gmra.mxu0 %v1430
  %v1640 = vpop.f32.mrf.mxu0
  %v1641 = vadd.f32 0.0, %v1640
  %v1642 = vpop.f32.mrf.mxu0
  %v1643 = vadd.f32 0.0, %v1642
  %1644 = vmatmul.bf16.gmra.mxu0 %v1433
  %v1645 = vpop.f32.mrf.mxu0
  %v1646 = vadd.f32 0.0, %v1645
  %v1647 = vpop.f32.mrf.mxu0
  %v1648 = vadd.f32 0.0, %v1647
  %1649 = vmatmul.bf16.gmra.mxu0 %v1436
  %v1650 = vpop.f32.mrf.mxu0
  %v1651 = vadd.f32 0.0, %v1650
  %v1652 = vpop.f32.mrf.mxu0
  %v1653 = vadd.f32 0.0, %v1652
  %1654 = vmatmul.bf16.gmra.mxu0 %v1439
  %v1655 = vpop.f32.mrf.mxu0
  %v1656 = vadd.f32 0.0, %v1655
  %v1657 = vpop.f32.mrf.mxu0
  %v1658 = vadd.f32 0.0, %v1657
  %1659 = vmatmul.bf16.gmra.mxu0 %v1442
  %v1660 = vpop.f32.mrf.mxu0
  %v1661 = vadd.f32 0.0, %v1660
  %v1662 = vpop.f32.mrf.mxu0
  %v1663 = vadd.f32 0.0, %v1662
  %1664 = vmatmul.bf16.gmra.mxu0 %v1445
  %v1665 = vpop.f32.mrf.mxu0
  %v1666 = vadd.f32 0.0, %v1665
  %v1667 = vpop.f32.mrf.mxu0
  %v1668 = vadd.f32 0.0, %v1667
  %1669 = vmatmul.bf16.gmra.mxu0 %v1448
  %v1670 = vpop.f32.mrf.mxu0
  %v1671 = vadd.f32 0.0, %v1670
  %v1672 = vpop.f32.mrf.mxu0
  %v1673 = vadd.f32 0.0, %v1672
  %1674 = vmatmul.bf16.gmra.mxu0 %v1451
  %v1675 = vpop.f32.mrf.mxu0
  %v1676 = vadd.f32 0.0, %v1675
  %v1677 = vpop.f32.mrf.mxu0
  %v1678 = vadd.f32 0.0, %v1677
  %1679 = vmatmul.bf16.gmra.mxu0 %v1454
  %v1680 = vpop.f32.mrf.mxu0
  %v1681 = vadd.f32 0.0, %v1680
  %v1682 = vpop.f32.mrf.mxu0
  %v1683 = vadd.f32 0.0, %v1682
  %1684 = vmatmul.bf16.gmra.mxu0 %v1457
  %v1685 = vpop.f32.mrf.mxu0
  %v1686 = vadd.f32 0.0, %v1685
  %v1687 = vpop.f32.mrf.mxu0
  %v1688 = vadd.f32 0.0, %v1687
  %1689 = vmatmul.bf16.gmra.mxu0 %v1460
  %v1690 = vpop.f32.mrf.mxu0
  %v1691 = vadd.f32 0.0, %v1690
  %v1692 = vpop.f32.mrf.mxu0
  %v1693 = vadd.f32 0.0, %v1692
  %1694 = vmatmul.bf16.gmra.mxu0 %v1463
  %v1695 = vpop.f32.mrf.mxu0
  %v1696 = vadd.f32 0.0, %v1695
  %v1697 = vpop.f32.mrf.mxu0
  %v1698 = vadd.f32 0.0, %v1697
  %1699 = vmatmul.bf16.gmra.mxu0 %v1466
  %v1700 = vpop.f32.mrf.mxu0
  %v1701 = vadd.f32 0.0, %v1700
  %v1702 = vpop.f32.mrf.mxu0
  %v1703 = vadd.f32 0.0, %v1702
  %1704 = vmatmul.bf16.gmra.mxu0 %v1469
  %v1705 = vpop.f32.mrf.mxu0
  %v1706 = vadd.f32 0.0, %v1705
  %v1707 = vpop.f32.mrf.mxu0
  %v1708 = vadd.f32 0.0, %v1707
  %1709 = vmatmul.bf16.gmra.mxu0 %v1472
  %v1710 = vpop.f32.mrf.mxu0
  %v1711 = vadd.f32 0.0, %v1710
  %v1712 = vpop.f32.mrf.mxu0
  %v1713 = vadd.f32 0.0, %v1712
  %1714 = vmatmul.bf16.gmra.mxu0 %v1475
  %v1715 = vpop.f32.mrf.mxu0
  %v1716 = vadd.f32 0.0, %v1715
  %v1717 = vpop.f32.mrf.mxu0
  %v1718 = vadd.f32 0.0, %v1717
  %1719 = vmatmul.bf16.gmra.mxu0 %v1478
  %v1720 = vpop.f32.mrf.mxu0
  %v1721 = vadd.f32 0.0, %v1720
  %v1722 = vpop.f32.mrf.mxu0
  %v1723 = vadd.f32 0.0, %v1722
  %1724 = vmatmul.bf16.gmra.mxu0 %v1481
  %v1725 = vpop.f32.mrf.mxu0
  %v1726 = vadd.f32 0.0, %v1725
  %v1727 = vpop.f32.mrf.mxu0
  %v1728 = vadd.f32 0.0, %v1727
  %1729 = vmatmul.bf16.gmra.mxu0 %v1484
  %v1730 = vpop.f32.mrf.mxu0
  %v1731 = vadd.f32 0.0, %v1730
  %v1732 = vpop.f32.mrf.mxu0
  %v1733 = vadd.f32 0.0, %v1732
  %1734 = vmatmul.bf16.gmra.mxu0 %v1487
  %v1735 = vpop.f32.mrf.mxu0
  %v1736 = vadd.f32 0.0, %v1735
  %v1737 = vpop.f32.mrf.mxu0
  %v1738 = vadd.f32 0.0, %v1737
  %1739 = vmatmul.bf16.gmra.mxu0 %v1490
  %v1740 = vpop.f32.mrf.mxu0
  %v1741 = vadd.f32 0.0, %v1740
  %v1742 = vpop.f32.mrf.mxu0
  %v1743 = vadd.f32 0.0, %v1742
  %1744 = vmatmul.bf16.gmra.mxu0 %v1493
  %v1745 = vpop.f32.mrf.mxu0
  %v1746 = vadd.f32 0.0, %v1745
  %v1747 = vpop.f32.mrf.mxu0
  %v1748 = vadd.f32 0.0, %v1747
  %1749 = vmatmul.bf16.gmra.mxu0 %v1496
  %v1750 = vpop.f32.mrf.mxu0
  %v1751 = vadd.f32 0.0, %v1750
  %v1752 = vpop.f32.mrf.mxu0
  %v1753 = vadd.f32 0.0, %v1752
  %1754 = vmatmul.bf16.gmra.mxu0 %v1499
  %v1755 = vpop.f32.mrf.mxu0
  %v1756 = vadd.f32 0.0, %v1755
  %v1757 = vpop.f32.mrf.mxu0
  %v1758 = vadd.f32 0.0, %v1757
  %1759 = vdwg.mxu0
  %v1760 = vmax.f32 %v1511, %v1573
  %v1761 = vmax.f32 %v1513, %v1576
  %v1762 = vmax.f32 %v1516, %v1578
  %v1763 = vmax.f32 %v1518, %v1581
  %v1764 = vmax.f32 %v1521, %v1583
  %v1765 = vmax.f32 %v1523, %v1586
  %v1766 = vmax.f32 %v1526, %v1588
  %v1767 = vmax.f32 %v1528, %v1591
  %v1768 = vmax.f32 %v1531, %v1593
  %v1769 = vmax.f32 %v1533, %v1596
  %v1770 = vmax.f32 %v1536, %v1598
  %v1771 = vmax.f32 %v1538, %v1601
  %v1772 = vmax.f32 %v1541, %v1603
  %v1773 = vmax.f32 %v1543, %v1606
  %v1774 = vmax.f32 %v1546, %v1608
  %v1775 = vmax.f32 %v1548, %v1611
  %v1776 = vmax.f32 %v1551, %v1613
  %v1777 = vmax.f32 %v1553, %v1616
  %v1778 = vmax.f32 %v1556, %v1618
  %v1779 = vmax.f32 %v1558, %v1621
  %v1780 = vmax.f32 %v1561, %v1623
  %v1781 = vmax.f32 %v1563, %v1626
  %v1782 = vmax.f32 %v1566, %v1628
  %v1783 = vmax.f32 %v1568, %v1631
  %v1784 = vmax.f32 %v1571, %v1633
  %v1785 = vmax.f32 %v1636, %v1698
  %v1786 = vmax.f32 %v1638, %v1701
  %v1787 = vmax.f32 %v1641, %v1703
  %v1788 = vmax.f32 %v1643, %v1706
  %v1789 = vmax.f32 %v1646, %v1708
  %v1790 = vmax.f32 %v1648, %v1711
  %v1791 = vmax.f32 %v1651, %v1713
  %v1792 = vmax.f32 %v1653, %v1716
  %v1793 = vmax.f32 %v1656, %v1718
  %v1794 = vmax.f32 %v1658, %v1721
  %v1795 = vmax.f32 %v1661, %v1723
  %v1796 = vmax.f32 %v1663, %v1726
  %v1797 = vmax.f32 %v1666, %v1728
  %v1798 = vmax.f32 %v1668, %v1731
  %v1799 = vmax.f32 %v1671, %v1733
  %v1800 = vmax.f32 %v1673, %v1736
  %v1801 = vmax.f32 %v1676, %v1738
  %v1802 = vmax.f32 %v1678, %v1741
  %v1803 = vmax.f32 %v1681, %v1743
  %v1804 = vmax.f32 %v1683, %v1746
  %v1805 = vmax.f32 %v1686, %v1748
  %v1806 = vmax.f32 %v1688, %v1751
  %v1807 = vmax.f32 %v1691, %v1753
  %v1808 = vmax.f32 %v1693, %v1756
  %v1809 = vmax.f32 %v1696, %v1758
  %v1810 = vmax.f32 %v1760, %v1785
  %v1811 = vmax.f32 %v1761, %v1786
  %v1812 = vmax.f32 %v1762, %v1787
  %v1813 = vmax.f32 %v1763, %v1788
  %v1814 = vmax.f32 %v1764, %v1789
  %v1815 = vmax.f32 %v1765, %v1790
  %v1816 = vmax.f32 %v1766, %v1791
  %v1817 = vmax.f32 %v1767, %v1792
  %v1818 = vmax.f32 %v1768, %v1793
  %v1819 = vmax.f32 %v1769, %v1794
  %v1820 = vmax.f32 %v1770, %v1795
  %v1821 = vmax.f32 %v1771, %v1796
  %v1822 = vmax.f32 %v1772, %v1797
  %v1823 = vmax.f32 %v1773, %v1798
  %v1824 = vmax.f32 %v1774, %v1799
  %v1825 = vmax.f32 %v1775, %v1800
  %v1826 = vmax.f32 %v1776, %v1801
  %v1827 = vmax.f32 %v1777, %v1802
  %v1828 = vmax.f32 %v1778, %v1803
  %v1829 = vmax.f32 %v1779, %v1804
  %v1830 = vmax.f32 %v1780, %v1805
  %v1831 = vmax.f32 %v1781, %v1806
  %v1832 = vmax.f32 %v1782, %v1807
  %v1833 = vmax.f32 %v1783, %v1808
  %v1834 = vmax.f32 %v1784, %v1809
  %v1835 = vadd.f32 %v1810, %v27
  %v1836 = vadd.f32 %v1811, %v27
  %v1837 = vadd.f32 %v1812, %v27
  %v1838 = vadd.f32 %v1813, %v27
  %v1839 = vadd.f32 %v1814, %v27
  %v1840 = vadd.f32 %v1815, %v27
  %v1841 = vadd.f32 %v1816, %v27
  %v1842 = vadd.f32 %v1817, %v27
  %v1843 = vadd.f32 %v1818, %v27
  %v1844 = vadd.f32 %v1819, %v27
  %v1845 = vadd.f32 %v1820, %v27
  %v1846 = vadd.f32 %v1821, %v27
  %v1847 = vadd.f32 %v1822, %v27
  %v1848 = vadd.f32 %v1823, %v27
  %v1849 = vadd.f32 %v1824, %v27
  %v1850 = vadd.f32 %v1825, %v27
  %v1851 = vadd.f32 %v1826, %v27
  %v1852 = vadd.f32 %v1827, %v27
  %v1853 = vadd.f32 %v1828, %v27
  %v1854 = vadd.f32 %v1829, %v27
  %v1855 = vadd.f32 %v1830, %v27
  %v1856 = vadd.f32 %v1831, %v27
  %v1857 = vadd.f32 %v1832, %v27
  %v1858 = vadd.f32 %v1833, %v27
  %v1859 = vadd.f32 %v1834, %v27
  %v1860 = vmax.f32 %v1835, 0.0
  %v1861 = vmax.f32 %v1836, 0.0
  %v1862 = vmax.f32 %v1837, 0.0
  %v1863 = vmax.f32 %v1838, 0.0
  %v1864 = vmax.f32 %v1839, 0.0
  %v1865 = vmax.f32 %v1840, 0.0
  %v1866 = vmax.f32 %v1841, 0.0
  %v1867 = vmax.f32 %v1842, 0.0
  %v1868 = vmax.f32 %v1843, 0.0
  %v1869 = vmax.f32 %v1844, 0.0
  %v1870 = vmax.f32 %v1845, 0.0
  %v1871 = vmax.f32 %v1846, 0.0
  %v1872 = vmax.f32 %v1847, 0.0
  %v1873 = vmax.f32 %v1848, 0.0
  %v1874 = vmax.f32 %v1849, 0.0
  %v1875 = vmax.f32 %v1850, 0.0
  %v1876 = vmax.f32 %v1851, 0.0
  %v1877 = vmax.f32 %v1852, 0.0
  %v1878 = vmax.f32 %v1853, 0.0
  %v1879 = vmax.f32 %v1854, 0.0
  %v1880 = vmax.f32 %v1855, 0.0
  %v1881 = vmax.f32 %v1856, 0.0
  %v1882 = vmax.f32 %v1857, 0.0
  %v1883 = vmax.f32 %v1858, 0.0
  %v1884 = vmax.f32 %v1859, 0.0
  %v1885 = vpack.c.bf16 %v1860, %v1860
  %v1886 = vpack.c.bf16 %v1861, %v1861
  %v1887 = vpack.c.bf16 %v1862, %v1862
  %v1888 = vpack.c.bf16 %v1863, %v1863
  %v1889 = vpack.c.bf16 %v1864, %v1864
  %v1890 = vpack.c.bf16 %v1865, %v1865
  %v1891 = vpack.c.bf16 %v1866, %v1866
  %v1892 = vpack.c.bf16 %v1867, %v1867
  %v1893 = vpack.c.bf16 %v1868, %v1868
  %v1894 = vpack.c.bf16 %v1869, %v1869
  %v1895 = vpack.c.bf16 %v1870, %v1870
  %v1896 = vpack.c.bf16 %v1871, %v1871
  %v1897 = vpack.c.bf16 %v1872, %v1872
  %v1898 = vpack.c.bf16 %v1873, %v1873
  %v1899 = vpack.c.bf16 %v1874, %v1874
  %v1900 = vpack.c.bf16 %v1875, %v1875
  %v1901 = vpack.c.bf16 %v1876, %v1876
  %v1902 = vpack.c.bf16 %v1877, %v1877
  %v1903 = vpack.c.bf16 %v1878, %v1878
  %v1904 = vpack.c.bf16 %v1879, %v1879
  %v1905 = vpack.c.bf16 %v1880, %v1880
  %v1906 = vpack.c.bf16 %v1881, %v1881
  %v1907 = vpack.c.bf16 %v1882, %v1882
  %v1908 = vpack.c.bf16 %v1883, %v1883
  %v1909 = vpack.c.bf16 %v1884, %v1884
  %1910 = vst.msk [vmem:[%s3 + $0x64] sm:$0xf] %vm975, %v1885
  %1911 = vst.msk [vmem:[%s3 + $0x68] sm:$0xf] %vm975, %v1886
  %1912 = vst.msk [vmem:[%s3 + $0x6c] sm:$0xf] %vm975, %v1887
  %1913 = vst.msk [vmem:[%s3 + $0x70] sm:$0xf] %vm975, %v1888
  %1914 = vst.msk [vmem:[%s3 + $0x74] sm:$0xf] %vm975, %v1889
  %1915 = vst.msk [vmem:[%s3 + $0x78] sm:$0xf] %vm975, %v1890
  %1916 = vst.msk [vmem:[%s3 + $0x7c] sm:$0xf] %vm975, %v1891
  %1917 = vst.msk [vmem:[%s3 + $0x80] sm:$0xf] %vm975, %v1892
  %1918 = vst.msk [vmem:[%s3 + $0x84] sm:$0xf] %vm975, %v1893
  %1919 = vst.msk [vmem:[%s3 + $0x88] sm:$0xf] %vm975, %v1894
  %1920 = vst.msk [vmem:[%s3 + $0x8c] sm:$0xf] %vm975, %v1895
  %1921 = vst.msk [vmem:[%s3 + $0x90] sm:$0xf] %vm975, %v1896
  %1922 = vst.msk [vmem:[%s3 + $0x94] sm:$0xf] %vm975, %v1897
  %1923 = vst.msk [vmem:[%s3 + $0x98] sm:$0xf] %vm975, %v1898
  %1924 = vst.msk [vmem:[%s3 + $0x9c] sm:$0xf] %vm975, %v1899
  %1925 = vst.msk [vmem:[%s3 + $0xa0] sm:$0xf] %vm975, %v1900
  %1926 = vst.msk [vmem:[%s3 + $0xa4] sm:$0xf] %vm975, %v1901
  %1927 = vst.msk [vmem:[%s3 + $0xa8] sm:$0xf] %vm975, %v1902
  %1928 = vst.msk [vmem:[%s3 + $0xac] sm:$0xf] %vm975, %v1903
  %1929 = vst.msk [vmem:[%s3 + $0xb0] sm:$0xf] %vm975, %v1904
  %1930 = vst.msk [vmem:[%s3 + $0xb4] sm:$0xf] %vm975, %v1905
  %1931 = vst.msk [vmem:[%s3 + $0xb8] sm:$0xf] %vm975, %v1906
  %1932 = vst.msk [vmem:[%s3 + $0xbc] sm:$0xf] %vm975, %v1907
  %1933 = vst.msk [vmem:[%s3 + $0xc0] sm:$0xf] %vm975, %v1908
  %1934 = vst.msk [vmem:[%s3 + $0xc4] sm:$0xf] %vm975, %v1909
  %v1935 = vld [vmem:[%s0 + $0x320] sm:$0xf]
  %v1936 = vld [vmem:[%s0 + $0x324] sm:$0xf]
  %v1937 = vld [vmem:[%s0 + $0x328] sm:$0xf]
  %v1938 = vld [vmem:[%s0 + $0x32c] sm:$0xf]
  %v1939 = vld [vmem:[%s0 + $0x330] sm:$0xf]
  %v1940 = vld [vmem:[%s0 + $0x334] sm:$0xf]
  %v1941 = vld [vmem:[%s0 + $0x338] sm:$0xf]
  %v1942 = vld [vmem:[%s0 + $0x33c] sm:$0xf]
  %v1943 = vld [vmem:[%s0 + $0x340] sm:$0xf]
  %v1944 = vld [vmem:[%s0 + $0x344] sm:$0xf]
  %v1945 = vld [vmem:[%s0 + $0x348] sm:$0xf]
  %v1946 = vld [vmem:[%s0 + $0x34c] sm:$0xf]
  %v1947 = vld [vmem:[%s0 + $0x350] sm:$0xf]
  %v1948 = vld [vmem:[%s0 + $0x354] sm:$0xf]
  %v1949 = vld [vmem:[%s0 + $0x358] sm:$0xf]
  %v1950 = vld [vmem:[%s0 + $0x35c] sm:$0xf]
  %v1951 = vld [vmem:[%s0 + $0x360] sm:$0xf]
  %v1952 = vld [vmem:[%s0 + $0x364] sm:$0xf]
  %v1953 = vld [vmem:[%s0 + $0x368] sm:$0xf]
  %v1954 = vld [vmem:[%s0 + $0x36c] sm:$0xf]
  %v1955 = vld [vmem:[%s0 + $0x370] sm:$0xf]
  %v1956 = vld [vmem:[%s0 + $0x374] sm:$0xf]
  %v1957 = vld [vmem:[%s0 + $0x378] sm:$0xf]
  %v1958 = vld [vmem:[%s0 + $0x37c] sm:$0xf]
  %v1959 = vld [vmem:[%s0 + $0x380] sm:$0xf]
  %v1960 = vld [vmem:[%s0 + $0x384] sm:$0xf]
  %v1961 = vld [vmem:[%s0 + $0x388] sm:$0xf]
  %v1962 = vld [vmem:[%s0 + $0x38c] sm:$0xf]
  %v1963 = vld [vmem:[%s0 + $0x390] sm:$0xf]
  %v1964 = vld [vmem:[%s0 + $0x394] sm:$0xf]
  %v1965 = vld [vmem:[%s0 + $0x398] sm:$0xf]
  %v1966 = vld [vmem:[%s0 + $0x39c] sm:$0xf]
  %v1967 = vld [vmem:[%s0 + $0x3a0] sm:$0xf]
  %v1968 = vld [vmem:[%s0 + $0x3a4] sm:$0xf]
  %v1969 = vld [vmem:[%s0 + $0x3a8] sm:$0xf]
  %v1970 = vld [vmem:[%s0 + $0x3ac] sm:$0xf]
  %v1971 = vld [vmem:[%s0 + $0x3b0] sm:$0xf]
  %v1972 = vld [vmem:[%s0 + $0x3b4] sm:$0xf]
  %v1973 = vld [vmem:[%s0 + $0x3b8] sm:$0xf]
  %v1974 = vld [vmem:[%s0 + $0x3bc] sm:$0xf]
  %v1975 = vld [vmem:[%s0 + $0x3c0] sm:$0xf]
  %v1976 = vld [vmem:[%s0 + $0x3c4] sm:$0xf]
  %v1977 = vld [vmem:[%s0 + $0x3c8] sm:$0xf]
  %v1978 = vld [vmem:[%s0 + $0x3cc] sm:$0xf]
  %v1979 = vld [vmem:[%s0 + $0x3d0] sm:$0xf]
  %v1980 = vld [vmem:[%s0 + $0x3d4] sm:$0xf]
  %v1981 = vld [vmem:[%s0 + $0x3d8] sm:$0xf]
  %v1982 = vld [vmem:[%s0 + $0x3dc] sm:$0xf]
  %v1983 = vld [vmem:[%s0 + $0x3e0] sm:$0xf]
  %v1984 = vld [vmem:[%s0 + $0x3e4] sm:$0xf]
  %v1985 = vld [vmem:[%s0 + $0x3e8] sm:$0xf]
  %v1986 = vld [vmem:[%s0 + $0x3ec] sm:$0xf]
  %v1987 = vld [vmem:[%s0 + $0x3f0] sm:$0xf]
  %v1988 = vld [vmem:[%s0 + $0x3f4] sm:$0xf]
  %v1989 = vld [vmem:[%s0 + $0x3f8] sm:$0xf]
  %v1990 = vld [vmem:[%s0 + $0x3fc] sm:$0xf]
  %v1991 = vld [vmem:[%s0 + $0x400] sm:$0xf]
  %v1992 = vld [vmem:[%s0 + $0x404] sm:$0xf]
  %v1993 = vld [vmem:[%s0 + $0x408] sm:$0xf]
  %v1994 = vld [vmem:[%s0 + $0x40c] sm:$0xf]
  %v1995 = vld [vmem:[%s0 + $0x410] sm:$0xf]
  %v1996 = vld [vmem:[%s0 + $0x414] sm:$0xf]
  %v1997 = vld [vmem:[%s0 + $0x418] sm:$0xf]
  %v1998 = vld [vmem:[%s0 + $0x41c] sm:$0xf]
  %v1999 = vld [vmem:[%s0 + $0x420] sm:$0xf]
  %v2000 = vld [vmem:[%s0 + $0x424] sm:$0xf]
  %v2001 = vld [vmem:[%s0 + $0x428] sm:$0xf]
  %v2002 = vld [vmem:[%s0 + $0x42c] sm:$0xf]
  %v2003 = vld [vmem:[%s0 + $0x430] sm:$0xf]
  %v2004 = vld [vmem:[%s0 + $0x434] sm:$0xf]
  %v2005 = vld [vmem:[%s0 + $0x438] sm:$0xf]
  %v2006 = vld [vmem:[%s0 + $0x43c] sm:$0xf]
  %v2007 = vld [vmem:[%s0 + $0x440] sm:$0xf]
  %v2008 = vld [vmem:[%s0 + $0x444] sm:$0xf]
  %v2009 = vld [vmem:[%s0 + $0x448] sm:$0xf]
  %v2010 = vld [vmem:[%s0 + $0x44c] sm:$0xf]
  %v2011 = vld [vmem:[%s0 + $0x450] sm:$0xf]
  %v2012 = vld [vmem:[%s0 + $0x454] sm:$0xf]
  %v2013 = vld [vmem:[%s0 + $0x458] sm:$0xf]
  %v2014 = vld [vmem:[%s0 + $0x45c] sm:$0xf]
  %v2015 = vld [vmem:[%s0 + $0x460] sm:$0xf]
  %v2016 = vld [vmem:[%s0 + $0x464] sm:$0xf]
  %v2017 = vld [vmem:[%s0 + $0x468] sm:$0xf]
  %v2018 = vld [vmem:[%s0 + $0x46c] sm:$0xf]
  %v2019 = vld [vmem:[%s0 + $0x470] sm:$0xf]
  %v2020 = vld [vmem:[%s0 + $0x474] sm:$0xf]
  %v2021 = vld [vmem:[%s0 + $0x478] sm:$0xf]
  %v2022 = vld [vmem:[%s0 + $0x47c] sm:$0xf]
  %v2023 = vld [vmem:[%s0 + $0x480] sm:$0xf]
  %v2024 = vld [vmem:[%s0 + $0x484] sm:$0xf]
  %v2025 = vld [vmem:[%s0 + $0x488] sm:$0xf]
  %v2026 = vld [vmem:[%s0 + $0x48c] sm:$0xf]
  %v2027 = vld [vmem:[%s0 + $0x490] sm:$0xf]
  %v2028 = vld [vmem:[%s0 + $0x494] sm:$0xf]
  %v2029 = vld [vmem:[%s0 + $0x498] sm:$0xf]
  %v2030 = vld [vmem:[%s0 + $0x49c] sm:$0xf]
  %v2031 = vld [vmem:[%s0 + $0x4a0] sm:$0xf]
  %v2032 = vld [vmem:[%s0 + $0x4a4] sm:$0xf]
  %v2033 = vld [vmem:[%s0 + $0x4a8] sm:$0xf]
  %v2034 = vld [vmem:[%s0 + $0x4ac] sm:$0xf]
  %v2135 = vunpack.c.l.b16 %v1935
  %v2136 = vunpack.c.l.b16 %v1936
  %v2137 = vunpack.c.l.b16 %v1937
  %v2138 = vunpack.c.l.b16 %v1938
  %v2139 = vunpack.c.l.b16 %v1939
  %v2140 = vunpack.c.l.b16 %v1940
  %v2141 = vunpack.c.l.b16 %v1941
  %v2142 = vunpack.c.l.b16 %v1942
  %v2143 = vunpack.c.l.b16 %v1943
  %v2144 = vunpack.c.l.b16 %v1944
  %v2145 = vunpack.c.l.b16 %v1945
  %v2146 = vunpack.c.l.b16 %v1946
  %v2147 = vunpack.c.l.b16 %v1947
  %v2148 = vunpack.c.l.b16 %v1948
  %v2149 = vunpack.c.l.b16 %v1949
  %v2150 = vunpack.c.l.b16 %v1950
  %v2151 = vunpack.c.l.b16 %v1951
  %v2152 = vunpack.c.l.b16 %v1952
  %v2153 = vunpack.c.l.b16 %v1953
  %v2154 = vunpack.c.l.b16 %v1954
  %v2155 = vunpack.c.l.b16 %v1955
  %v2156 = vunpack.c.l.b16 %v1956
  %v2157 = vunpack.c.l.b16 %v1957
  %v2158 = vunpack.c.l.b16 %v1958
  %v2159 = vunpack.c.l.b16 %v1959
  %v2160 = vunpack.c.l.b16 %v1960
  %v2161 = vunpack.c.l.b16 %v1961
  %v2162 = vunpack.c.l.b16 %v1962
  %v2163 = vunpack.c.l.b16 %v1963
  %v2164 = vunpack.c.l.b16 %v1964
  %v2165 = vunpack.c.l.b16 %v1965
  %v2166 = vunpack.c.l.b16 %v1966
  %v2167 = vunpack.c.l.b16 %v1967
  %v2168 = vunpack.c.l.b16 %v1968
  %v2169 = vunpack.c.l.b16 %v1969
  %v2170 = vunpack.c.l.b16 %v1970
  %v2171 = vunpack.c.l.b16 %v1971
  %v2172 = vunpack.c.l.b16 %v1972
  %v2173 = vunpack.c.l.b16 %v1973
  %v2174 = vunpack.c.l.b16 %v1974
  %v2175 = vunpack.c.l.b16 %v1975
  %v2176 = vunpack.c.l.b16 %v1976
  %v2177 = vunpack.c.l.b16 %v1977
  %v2178 = vunpack.c.l.b16 %v1978
  %v2179 = vunpack.c.l.b16 %v1979
  %v2180 = vunpack.c.l.b16 %v1980
  %v2181 = vunpack.c.l.b16 %v1981
  %v2182 = vunpack.c.l.b16 %v1982
  %v2183 = vunpack.c.l.b16 %v1983
  %v2184 = vunpack.c.l.b16 %v1984
  %v2185 = vunpack.c.l.b16 %v1985
  %v2186 = vunpack.c.l.b16 %v1986
  %v2187 = vunpack.c.l.b16 %v1987
  %v2188 = vunpack.c.l.b16 %v1988
  %v2189 = vunpack.c.l.b16 %v1989
  %v2190 = vunpack.c.l.b16 %v1990
  %v2191 = vunpack.c.l.b16 %v1991
  %v2192 = vunpack.c.l.b16 %v1992
  %v2193 = vunpack.c.l.b16 %v1993
  %v2194 = vunpack.c.l.b16 %v1994
  %v2195 = vunpack.c.l.b16 %v1995
  %v2196 = vunpack.c.l.b16 %v1996
  %v2197 = vunpack.c.l.b16 %v1997
  %v2198 = vunpack.c.l.b16 %v1998
  %v2199 = vunpack.c.l.b16 %v1999
  %v2200 = vunpack.c.l.b16 %v2000
  %v2201 = vunpack.c.l.b16 %v2001
  %v2202 = vunpack.c.l.b16 %v2002
  %v2203 = vunpack.c.l.b16 %v2003
  %v2204 = vunpack.c.l.b16 %v2004
  %v2205 = vunpack.c.l.b16 %v2005
  %v2206 = vunpack.c.l.b16 %v2006
  %v2207 = vunpack.c.l.b16 %v2007
  %v2208 = vunpack.c.l.b16 %v2008
  %v2209 = vunpack.c.l.b16 %v2009
  %v2210 = vunpack.c.l.b16 %v2010
  %v2211 = vunpack.c.l.b16 %v2011
  %v2212 = vunpack.c.l.b16 %v2012
  %v2213 = vunpack.c.l.b16 %v2013
  %v2214 = vunpack.c.l.b16 %v2014
  %v2215 = vunpack.c.l.b16 %v2015
  %v2216 = vunpack.c.l.b16 %v2016
  %v2217 = vunpack.c.l.b16 %v2017
  %v2218 = vunpack.c.l.b16 %v2018
  %v2219 = vunpack.c.l.b16 %v2019
  %v2220 = vunpack.c.l.b16 %v2020
  %v2221 = vunpack.c.l.b16 %v2021
  %v2222 = vunpack.c.l.b16 %v2022
  %v2223 = vunpack.c.l.b16 %v2023
  %v2224 = vunpack.c.l.b16 %v2024
  %v2225 = vunpack.c.l.b16 %v2025
  %v2226 = vunpack.c.l.b16 %v2026
  %v2227 = vunpack.c.l.b16 %v2027
  %v2228 = vunpack.c.l.b16 %v2028
  %v2229 = vunpack.c.l.b16 %v2029
  %v2230 = vunpack.c.l.b16 %v2030
  %v2231 = vunpack.c.l.b16 %v2031
  %v2232 = vunpack.c.l.b16 %v2032
  %v2233 = vunpack.c.l.b16 %v2033
  %v2234 = vunpack.c.l.b16 %v2034
  %v2235 = vpack.c.b16 %v2136, %v2135
  %v2236 = vpack.c.b16 %v2138, %v2137
  %v2237 = vpack.c.b16 %v2140, %v2139
  %v2238 = vpack.c.b16 %v2142, %v2141
  %v2239 = vpack.c.b16 %v2144, %v2143
  %v2240 = vpack.c.b16 %v2146, %v2145
  %v2241 = vpack.c.b16 %v2148, %v2147
  %v2242 = vpack.c.b16 %v2150, %v2149
  %v2243 = vpack.c.b16 %v2152, %v2151
  %v2244 = vpack.c.b16 %v2154, %v2153
  %v2245 = vpack.c.b16 %v2156, %v2155
  %v2246 = vpack.c.b16 %v2158, %v2157
  %v2247 = vpack.c.b16 %v2160, %v2159
  %v2248 = vpack.c.b16 %v2162, %v2161
  %v2249 = vpack.c.b16 %v2164, %v2163
  %v2250 = vpack.c.b16 %v2166, %v2165
  %v2251 = vpack.c.b16 %v2168, %v2167
  %v2252 = vpack.c.b16 %v2170, %v2169
  %v2253 = vpack.c.b16 %v2172, %v2171
  %v2254 = vpack.c.b16 %v2174, %v2173
  %v2255 = vpack.c.b16 %v2176, %v2175
  %v2256 = vpack.c.b16 %v2178, %v2177
  %v2257 = vpack.c.b16 %v2180, %v2179
  %v2258 = vpack.c.b16 %v2182, %v2181
  %v2259 = vpack.c.b16 %v2184, %v2183
  %v2260 = vpack.c.b16 %v2186, %v2185
  %v2261 = vpack.c.b16 %v2188, %v2187
  %v2262 = vpack.c.b16 %v2190, %v2189
  %v2263 = vpack.c.b16 %v2192, %v2191
  %v2264 = vpack.c.b16 %v2194, %v2193
  %v2265 = vpack.c.b16 %v2196, %v2195
  %v2266 = vpack.c.b16 %v2198, %v2197
  %v2267 = vpack.c.b16 %v2200, %v2199
  %v2268 = vpack.c.b16 %v2202, %v2201
  %v2269 = vpack.c.b16 %v2204, %v2203
  %v2270 = vpack.c.b16 %v2206, %v2205
  %v2271 = vpack.c.b16 %v2208, %v2207
  %v2272 = vpack.c.b16 %v2210, %v2209
  %v2273 = vpack.c.b16 %v2212, %v2211
  %v2274 = vpack.c.b16 %v2214, %v2213
  %v2275 = vpack.c.b16 %v2216, %v2215
  %v2276 = vpack.c.b16 %v2218, %v2217
  %v2277 = vpack.c.b16 %v2220, %v2219
  %v2278 = vpack.c.b16 %v2222, %v2221
  %v2279 = vpack.c.b16 %v2224, %v2223
  %v2280 = vpack.c.b16 %v2226, %v2225
  %v2281 = vpack.c.b16 %v2228, %v2227
  %v2282 = vpack.c.b16 %v2230, %v2229
  %v2283 = vpack.c.b16 %v2232, %v2231
  %v2284 = vpack.c.b16 %v2234, %v2233
  %v2286 = vsel %vm408, %v2235, 0
  %v2289 = vsel %vm408, %v2236, 0
  %v2292 = vsel %vm408, %v2237, 0
  %v2295 = vsel %vm408, %v2238, 0
  %v2298 = vsel %vm408, %v2239, 0
  %v2301 = vsel %vm408, %v2240, 0
  %v2304 = vsel %vm408, %v2241, 0
  %v2307 = vsel %vm408, %v2242, 0
  %v2310 = vsel %vm408, %v2243, 0
  %v2313 = vsel %vm408, %v2244, 0
  %v2316 = vsel %vm408, %v2245, 0
  %v2319 = vsel %vm408, %v2246, 0
  %v2322 = vsel %vm408, %v2247, 0
  %v2325 = vsel %vm408, %v2248, 0
  %v2328 = vsel %vm408, %v2249, 0
  %v2331 = vsel %vm408, %v2250, 0
  %v2334 = vsel %vm408, %v2251, 0
  %v2337 = vsel %vm408, %v2252, 0
  %v2340 = vsel %vm408, %v2253, 0
  %v2343 = vsel %vm408, %v2254, 0
  %v2346 = vsel %vm408, %v2255, 0
  %v2349 = vsel %vm408, %v2256, 0
  %v2352 = vsel %vm408, %v2257, 0
  %v2355 = vsel %vm408, %v2258, 0
  %v2358 = vsel %vm408, %v2259, 0
  %v2361 = vsel %vm408, %v2260, 0
  %v2364 = vsel %vm408, %v2261, 0
  %v2367 = vsel %vm408, %v2262, 0
  %v2370 = vsel %vm408, %v2263, 0
  %v2373 = vsel %vm408, %v2264, 0
  %v2376 = vsel %vm408, %v2265, 0
  %v2379 = vsel %vm408, %v2266, 0
  %v2382 = vsel %vm408, %v2267, 0
  %v2385 = vsel %vm408, %v2268, 0
  %v2388 = vsel %vm408, %v2269, 0
  %v2391 = vsel %vm408, %v2270, 0
  %v2394 = vsel %vm408, %v2271, 0
  %v2397 = vsel %vm408, %v2272, 0
  %v2400 = vsel %vm408, %v2273, 0
  %v2403 = vsel %vm408, %v2274, 0
  %v2406 = vsel %vm408, %v2275, 0
  %v2409 = vsel %vm408, %v2276, 0
  %v2412 = vsel %vm408, %v2277, 0
  %v2415 = vsel %vm408, %v2278, 0
  %v2418 = vsel %vm408, %v2279, 0
  %v2421 = vsel %vm408, %v2280, 0
  %v2424 = vsel %vm408, %v2281, 0
  %v2427 = vsel %vm408, %v2282, 0
  %v2430 = vsel %vm408, %v2283, 0
  %v2433 = vsel %vm408, %v2284, 0
  %2435 = vmatpush.bf16.msra.mxu0 0
  %2436 = vmatpush.bf16.msra.mxu0 0
  %2437 = vmatpush.bf16.msra.mxu0 0
  %2438 = vmatpush.bf16.msra.mxu0 %v564
  %2439 = vmatpush.bf16.msra.mxu0 %v402
  %2440 = vmatpush.bf16.msra.mxu0 %v401
  %2441 = vmatpush.bf16.msra.mxu0 %v400
  %2442 = vmatpush.bf16.msra.mxu0 %v399
  %2443 = vmatmul.bf16.gmra.mxu0 %v2286
  %v2444 = vpop.f32.mrf.mxu0
  %v2445 = vadd.f32 0.0, %v2444
  %v2446 = vpop.f32.mrf.mxu0
  %v2447 = vadd.f32 0.0, %v2446
  %2448 = vmatmul.bf16.gmra.mxu0 %v2289
  %v2449 = vpop.f32.mrf.mxu0
  %v2450 = vadd.f32 0.0, %v2449
  %v2451 = vpop.f32.mrf.mxu0
  %v2452 = vadd.f32 0.0, %v2451
  %2453 = vmatmul.bf16.gmra.mxu0 %v2292
  %v2454 = vpop.f32.mrf.mxu0
  %v2455 = vadd.f32 0.0, %v2454
  %v2456 = vpop.f32.mrf.mxu0
  %v2457 = vadd.f32 0.0, %v2456
  %2458 = vmatmul.bf16.gmra.mxu0 %v2295
  %v2459 = vpop.f32.mrf.mxu0
  %v2460 = vadd.f32 0.0, %v2459
  %v2461 = vpop.f32.mrf.mxu0
  %v2462 = vadd.f32 0.0, %v2461
  %2463 = vmatmul.bf16.gmra.mxu0 %v2298
  %v2464 = vpop.f32.mrf.mxu0
  %v2465 = vadd.f32 0.0, %v2464
  %v2466 = vpop.f32.mrf.mxu0
  %v2467 = vadd.f32 0.0, %v2466
  %2468 = vmatmul.bf16.gmra.mxu0 %v2301
  %v2469 = vpop.f32.mrf.mxu0
  %v2470 = vadd.f32 0.0, %v2469
  %v2471 = vpop.f32.mrf.mxu0
  %v2472 = vadd.f32 0.0, %v2471
  %2473 = vmatmul.bf16.gmra.mxu0 %v2304
  %v2474 = vpop.f32.mrf.mxu0
  %v2475 = vadd.f32 0.0, %v2474
  %v2476 = vpop.f32.mrf.mxu0
  %v2477 = vadd.f32 0.0, %v2476
  %2478 = vmatmul.bf16.gmra.mxu0 %v2307
  %v2479 = vpop.f32.mrf.mxu0
  %v2480 = vadd.f32 0.0, %v2479
  %v2481 = vpop.f32.mrf.mxu0
  %v2482 = vadd.f32 0.0, %v2481
  %2483 = vmatmul.bf16.gmra.mxu0 %v2310
  %v2484 = vpop.f32.mrf.mxu0
  %v2485 = vadd.f32 0.0, %v2484
  %v2486 = vpop.f32.mrf.mxu0
  %v2487 = vadd.f32 0.0, %v2486
  %2488 = vmatmul.bf16.gmra.mxu0 %v2313
  %v2489 = vpop.f32.mrf.mxu0
  %v2490 = vadd.f32 0.0, %v2489
  %v2491 = vpop.f32.mrf.mxu0
  %v2492 = vadd.f32 0.0, %v2491
  %2493 = vmatmul.bf16.gmra.mxu0 %v2316
  %v2494 = vpop.f32.mrf.mxu0
  %v2495 = vadd.f32 0.0, %v2494
  %v2496 = vpop.f32.mrf.mxu0
  %v2497 = vadd.f32 0.0, %v2496
  %2498 = vmatmul.bf16.gmra.mxu0 %v2319
  %v2499 = vpop.f32.mrf.mxu0
  %v2500 = vadd.f32 0.0, %v2499
  %v2501 = vpop.f32.mrf.mxu0
  %v2502 = vadd.f32 0.0, %v2501
  %2503 = vmatmul.bf16.gmra.mxu0 %v2322
  %v2504 = vpop.f32.mrf.mxu0
  %v2505 = vadd.f32 0.0, %v2504
  %v2506 = vpop.f32.mrf.mxu0
  %v2507 = vadd.f32 0.0, %v2506
  %2508 = vmatmul.bf16.gmra.mxu0 %v2325
  %v2509 = vpop.f32.mrf.mxu0
  %v2510 = vadd.f32 0.0, %v2509
  %v2511 = vpop.f32.mrf.mxu0
  %v2512 = vadd.f32 0.0, %v2511
  %2513 = vmatmul.bf16.gmra.mxu0 %v2328
  %v2514 = vpop.f32.mrf.mxu0
  %v2515 = vadd.f32 0.0, %v2514
  %v2516 = vpop.f32.mrf.mxu0
  %v2517 = vadd.f32 0.0, %v2516
  %2518 = vmatmul.bf16.gmra.mxu0 %v2331
  %v2519 = vpop.f32.mrf.mxu0
  %v2520 = vadd.f32 0.0, %v2519
  %v2521 = vpop.f32.mrf.mxu0
  %v2522 = vadd.f32 0.0, %v2521
  %2523 = vmatmul.bf16.gmra.mxu0 %v2334
  %v2524 = vpop.f32.mrf.mxu0
  %v2525 = vadd.f32 0.0, %v2524
  %v2526 = vpop.f32.mrf.mxu0
  %v2527 = vadd.f32 0.0, %v2526
  %2528 = vmatmul.bf16.gmra.mxu0 %v2337
  %v2529 = vpop.f32.mrf.mxu0
  %v2530 = vadd.f32 0.0, %v2529
  %v2531 = vpop.f32.mrf.mxu0
  %v2532 = vadd.f32 0.0, %v2531
  %2533 = vmatmul.bf16.gmra.mxu0 %v2340
  %v2534 = vpop.f32.mrf.mxu0
  %v2535 = vadd.f32 0.0, %v2534
  %v2536 = vpop.f32.mrf.mxu0
  %v2537 = vadd.f32 0.0, %v2536
  %2538 = vmatmul.bf16.gmra.mxu0 %v2343
  %v2539 = vpop.f32.mrf.mxu0
  %v2540 = vadd.f32 0.0, %v2539
  %v2541 = vpop.f32.mrf.mxu0
  %v2542 = vadd.f32 0.0, %v2541
  %2543 = vmatmul.bf16.gmra.mxu0 %v2346
  %v2544 = vpop.f32.mrf.mxu0
  %v2545 = vadd.f32 0.0, %v2544
  %v2546 = vpop.f32.mrf.mxu0
  %v2547 = vadd.f32 0.0, %v2546
  %2548 = vmatmul.bf16.gmra.mxu0 %v2349
  %v2549 = vpop.f32.mrf.mxu0
  %v2550 = vadd.f32 0.0, %v2549
  %v2551 = vpop.f32.mrf.mxu0
  %v2552 = vadd.f32 0.0, %v2551
  %2553 = vmatmul.bf16.gmra.mxu0 %v2352
  %v2554 = vpop.f32.mrf.mxu0
  %v2555 = vadd.f32 0.0, %v2554
  %v2556 = vpop.f32.mrf.mxu0
  %v2557 = vadd.f32 0.0, %v2556
  %2558 = vmatmul.bf16.gmra.mxu0 %v2355
  %v2559 = vpop.f32.mrf.mxu0
  %v2560 = vadd.f32 0.0, %v2559
  %v2561 = vpop.f32.mrf.mxu0
  %v2562 = vadd.f32 0.0, %v2561
  %2563 = vmatmul.bf16.gmra.mxu0 %v2358
  %v2564 = vpop.f32.mrf.mxu0
  %v2565 = vadd.f32 0.0, %v2564
  %v2566 = vpop.f32.mrf.mxu0
  %v2567 = vadd.f32 0.0, %v2566
  %2568 = vmatmul.bf16.gmra.mxu0 %v2361
  %v2569 = vpop.f32.mrf.mxu0
  %v2570 = vadd.f32 0.0, %v2569
  %v2571 = vpop.f32.mrf.mxu0
  %v2572 = vadd.f32 0.0, %v2571
  %2573 = vmatmul.bf16.gmra.mxu0 %v2364
  %v2574 = vpop.f32.mrf.mxu0
  %v2575 = vadd.f32 0.0, %v2574
  %v2576 = vpop.f32.mrf.mxu0
  %v2577 = vadd.f32 0.0, %v2576
  %2578 = vmatmul.bf16.gmra.mxu0 %v2367
  %v2579 = vpop.f32.mrf.mxu0
  %v2580 = vadd.f32 0.0, %v2579
  %v2581 = vpop.f32.mrf.mxu0
  %v2582 = vadd.f32 0.0, %v2581
  %2583 = vmatmul.bf16.gmra.mxu0 %v2370
  %v2584 = vpop.f32.mrf.mxu0
  %v2585 = vadd.f32 0.0, %v2584
  %v2586 = vpop.f32.mrf.mxu0
  %v2587 = vadd.f32 0.0, %v2586
  %2588 = vmatmul.bf16.gmra.mxu0 %v2373
  %v2589 = vpop.f32.mrf.mxu0
  %v2590 = vadd.f32 0.0, %v2589
  %v2591 = vpop.f32.mrf.mxu0
  %v2592 = vadd.f32 0.0, %v2591
  %2593 = vmatmul.bf16.gmra.mxu0 %v2376
  %v2594 = vpop.f32.mrf.mxu0
  %v2595 = vadd.f32 0.0, %v2594
  %v2596 = vpop.f32.mrf.mxu0
  %v2597 = vadd.f32 0.0, %v2596
  %2598 = vmatmul.bf16.gmra.mxu0 %v2379
  %v2599 = vpop.f32.mrf.mxu0
  %v2600 = vadd.f32 0.0, %v2599
  %v2601 = vpop.f32.mrf.mxu0
  %v2602 = vadd.f32 0.0, %v2601
  %2603 = vmatmul.bf16.gmra.mxu0 %v2382
  %v2604 = vpop.f32.mrf.mxu0
  %v2605 = vadd.f32 0.0, %v2604
  %v2606 = vpop.f32.mrf.mxu0
  %v2607 = vadd.f32 0.0, %v2606
  %2608 = vmatmul.bf16.gmra.mxu0 %v2385
  %v2609 = vpop.f32.mrf.mxu0
  %v2610 = vadd.f32 0.0, %v2609
  %v2611 = vpop.f32.mrf.mxu0
  %v2612 = vadd.f32 0.0, %v2611
  %2613 = vmatmul.bf16.gmra.mxu0 %v2388
  %v2614 = vpop.f32.mrf.mxu0
  %v2615 = vadd.f32 0.0, %v2614
  %v2616 = vpop.f32.mrf.mxu0
  %v2617 = vadd.f32 0.0, %v2616
  %2618 = vmatmul.bf16.gmra.mxu0 %v2391
  %v2619 = vpop.f32.mrf.mxu0
  %v2620 = vadd.f32 0.0, %v2619
  %v2621 = vpop.f32.mrf.mxu0
  %v2622 = vadd.f32 0.0, %v2621
  %2623 = vmatmul.bf16.gmra.mxu0 %v2394
  %v2624 = vpop.f32.mrf.mxu0
  %v2625 = vadd.f32 0.0, %v2624
  %v2626 = vpop.f32.mrf.mxu0
  %v2627 = vadd.f32 0.0, %v2626
  %2628 = vmatmul.bf16.gmra.mxu0 %v2397
  %v2629 = vpop.f32.mrf.mxu0
  %v2630 = vadd.f32 0.0, %v2629
  %v2631 = vpop.f32.mrf.mxu0
  %v2632 = vadd.f32 0.0, %v2631
  %2633 = vmatmul.bf16.gmra.mxu0 %v2400
  %v2634 = vpop.f32.mrf.mxu0
  %v2635 = vadd.f32 0.0, %v2634
  %v2636 = vpop.f32.mrf.mxu0
  %v2637 = vadd.f32 0.0, %v2636
  %2638 = vmatmul.bf16.gmra.mxu0 %v2403
  %v2639 = vpop.f32.mrf.mxu0
  %v2640 = vadd.f32 0.0, %v2639
  %v2641 = vpop.f32.mrf.mxu0
  %v2642 = vadd.f32 0.0, %v2641
  %2643 = vmatmul.bf16.gmra.mxu0 %v2406
  %v2644 = vpop.f32.mrf.mxu0
  %v2645 = vadd.f32 0.0, %v2644
  %v2646 = vpop.f32.mrf.mxu0
  %v2647 = vadd.f32 0.0, %v2646
  %2648 = vmatmul.bf16.gmra.mxu0 %v2409
  %v2649 = vpop.f32.mrf.mxu0
  %v2650 = vadd.f32 0.0, %v2649
  %v2651 = vpop.f32.mrf.mxu0
  %v2652 = vadd.f32 0.0, %v2651
  %2653 = vmatmul.bf16.gmra.mxu0 %v2412
  %v2654 = vpop.f32.mrf.mxu0
  %v2655 = vadd.f32 0.0, %v2654
  %v2656 = vpop.f32.mrf.mxu0
  %v2657 = vadd.f32 0.0, %v2656
  %2658 = vmatmul.bf16.gmra.mxu0 %v2415
  %v2659 = vpop.f32.mrf.mxu0
  %v2660 = vadd.f32 0.0, %v2659
  %v2661 = vpop.f32.mrf.mxu0
  %v2662 = vadd.f32 0.0, %v2661
  %2663 = vmatmul.bf16.gmra.mxu0 %v2418
  %v2664 = vpop.f32.mrf.mxu0
  %v2665 = vadd.f32 0.0, %v2664
  %v2666 = vpop.f32.mrf.mxu0
  %v2667 = vadd.f32 0.0, %v2666
  %2668 = vmatmul.bf16.gmra.mxu0 %v2421
  %v2669 = vpop.f32.mrf.mxu0
  %v2670 = vadd.f32 0.0, %v2669
  %v2671 = vpop.f32.mrf.mxu0
  %v2672 = vadd.f32 0.0, %v2671
  %2673 = vmatmul.bf16.gmra.mxu0 %v2424
  %v2674 = vpop.f32.mrf.mxu0
  %v2675 = vadd.f32 0.0, %v2674
  %v2676 = vpop.f32.mrf.mxu0
  %v2677 = vadd.f32 0.0, %v2676
  %2678 = vmatmul.bf16.gmra.mxu0 %v2427
  %v2679 = vpop.f32.mrf.mxu0
  %v2680 = vadd.f32 0.0, %v2679
  %v2681 = vpop.f32.mrf.mxu0
  %v2682 = vadd.f32 0.0, %v2681
  %2683 = vmatmul.bf16.gmra.mxu0 %v2430
  %v2684 = vpop.f32.mrf.mxu0
  %v2685 = vadd.f32 0.0, %v2684
  %v2686 = vpop.f32.mrf.mxu0
  %v2687 = vadd.f32 0.0, %v2686
  %2688 = vmatmul.bf16.gmra.mxu0 %v2433
  %v2689 = vpop.f32.mrf.mxu0
  %v2690 = vadd.f32 0.0, %v2689
  %v2691 = vpop.f32.mrf.mxu0
  %v2692 = vadd.f32 0.0, %v2691
  %2693 = vdwg.mxu0
  %v2694 = vmax.f32 %v2445, %v2507
  %v2695 = vmax.f32 %v2447, %v2510
  %v2696 = vmax.f32 %v2450, %v2512
  %v2697 = vmax.f32 %v2452, %v2515
  %v2698 = vmax.f32 %v2455, %v2517
  %v2699 = vmax.f32 %v2457, %v2520
  %v2700 = vmax.f32 %v2460, %v2522
  %v2701 = vmax.f32 %v2462, %v2525
  %v2702 = vmax.f32 %v2465, %v2527
  %v2703 = vmax.f32 %v2467, %v2530
  %v2704 = vmax.f32 %v2470, %v2532
  %v2705 = vmax.f32 %v2472, %v2535
  %v2706 = vmax.f32 %v2475, %v2537
  %v2707 = vmax.f32 %v2477, %v2540
  %v2708 = vmax.f32 %v2480, %v2542
  %v2709 = vmax.f32 %v2482, %v2545
  %v2710 = vmax.f32 %v2485, %v2547
  %v2711 = vmax.f32 %v2487, %v2550
  %v2712 = vmax.f32 %v2490, %v2552
  %v2713 = vmax.f32 %v2492, %v2555
  %v2714 = vmax.f32 %v2495, %v2557
  %v2715 = vmax.f32 %v2497, %v2560
  %v2716 = vmax.f32 %v2500, %v2562
  %v2717 = vmax.f32 %v2502, %v2565
  %v2718 = vmax.f32 %v2505, %v2567
  %v2719 = vmax.f32 %v2570, %v2632
  %v2720 = vmax.f32 %v2572, %v2635
  %v2721 = vmax.f32 %v2575, %v2637
  %v2722 = vmax.f32 %v2577, %v2640
  %v2723 = vmax.f32 %v2580, %v2642
  %v2724 = vmax.f32 %v2582, %v2645
  %v2725 = vmax.f32 %v2585, %v2647
  %v2726 = vmax.f32 %v2587, %v2650
  %v2727 = vmax.f32 %v2590, %v2652
  %v2728 = vmax.f32 %v2592, %v2655
  %v2729 = vmax.f32 %v2595, %v2657
  %v2730 = vmax.f32 %v2597, %v2660
  %v2731 = vmax.f32 %v2600, %v2662
  %v2732 = vmax.f32 %v2602, %v2665
  %v2733 = vmax.f32 %v2605, %v2667
  %v2734 = vmax.f32 %v2607, %v2670
  %v2735 = vmax.f32 %v2610, %v2672
  %v2736 = vmax.f32 %v2612, %v2675
  %v2737 = vmax.f32 %v2615, %v2677
  %v2738 = vmax.f32 %v2617, %v2680
  %v2739 = vmax.f32 %v2620, %v2682
  %v2740 = vmax.f32 %v2622, %v2685
  %v2741 = vmax.f32 %v2625, %v2687
  %v2742 = vmax.f32 %v2627, %v2690
  %v2743 = vmax.f32 %v2630, %v2692
  %v2744 = vmax.f32 %v2694, %v2719
  %v2745 = vmax.f32 %v2695, %v2720
  %v2746 = vmax.f32 %v2696, %v2721
  %v2747 = vmax.f32 %v2697, %v2722
  %v2748 = vmax.f32 %v2698, %v2723
  %v2749 = vmax.f32 %v2699, %v2724
  %v2750 = vmax.f32 %v2700, %v2725
  %v2751 = vmax.f32 %v2701, %v2726
  %v2752 = vmax.f32 %v2702, %v2727
  %v2753 = vmax.f32 %v2703, %v2728
  %v2754 = vmax.f32 %v2704, %v2729
  %v2755 = vmax.f32 %v2705, %v2730
  %v2756 = vmax.f32 %v2706, %v2731
  %v2757 = vmax.f32 %v2707, %v2732
  %v2758 = vmax.f32 %v2708, %v2733
  %v2759 = vmax.f32 %v2709, %v2734
  %v2760 = vmax.f32 %v2710, %v2735
  %v2761 = vmax.f32 %v2711, %v2736
  %v2762 = vmax.f32 %v2712, %v2737
  %v2763 = vmax.f32 %v2713, %v2738
  %v2764 = vmax.f32 %v2714, %v2739
  %v2765 = vmax.f32 %v2715, %v2740
  %v2766 = vmax.f32 %v2716, %v2741
  %v2767 = vmax.f32 %v2717, %v2742
  %v2768 = vmax.f32 %v2718, %v2743
  %v2769 = vadd.f32 %v2744, %v27
  %v2770 = vadd.f32 %v2745, %v27
  %v2771 = vadd.f32 %v2746, %v27
  %v2772 = vadd.f32 %v2747, %v27
  %v2773 = vadd.f32 %v2748, %v27
  %v2774 = vadd.f32 %v2749, %v27
  %v2775 = vadd.f32 %v2750, %v27
  %v2776 = vadd.f32 %v2751, %v27
  %v2777 = vadd.f32 %v2752, %v27
  %v2778 = vadd.f32 %v2753, %v27
  %v2779 = vadd.f32 %v2754, %v27
  %v2780 = vadd.f32 %v2755, %v27
  %v2781 = vadd.f32 %v2756, %v27
  %v2782 = vadd.f32 %v2757, %v27
  %v2783 = vadd.f32 %v2758, %v27
  %v2784 = vadd.f32 %v2759, %v27
  %v2785 = vadd.f32 %v2760, %v27
  %v2786 = vadd.f32 %v2761, %v27
  %v2787 = vadd.f32 %v2762, %v27
  %v2788 = vadd.f32 %v2763, %v27
  %v2789 = vadd.f32 %v2764, %v27
  %v2790 = vadd.f32 %v2765, %v27
  %v2791 = vadd.f32 %v2766, %v27
  %v2792 = vadd.f32 %v2767, %v27
  %v2793 = vadd.f32 %v2768, %v27
  %v2794 = vmax.f32 %v2769, 0.0
  %v2795 = vmax.f32 %v2770, 0.0
  %v2796 = vmax.f32 %v2771, 0.0
  %v2797 = vmax.f32 %v2772, 0.0
  %v2798 = vmax.f32 %v2773, 0.0
  %v2799 = vmax.f32 %v2774, 0.0
  %v2800 = vmax.f32 %v2775, 0.0
  %v2801 = vmax.f32 %v2776, 0.0
  %v2802 = vmax.f32 %v2777, 0.0
  %v2803 = vmax.f32 %v2778, 0.0
  %v2804 = vmax.f32 %v2779, 0.0
  %v2805 = vmax.f32 %v2780, 0.0
  %v2806 = vmax.f32 %v2781, 0.0
  %v2807 = vmax.f32 %v2782, 0.0
  %v2808 = vmax.f32 %v2783, 0.0
  %v2809 = vmax.f32 %v2784, 0.0
  %v2810 = vmax.f32 %v2785, 0.0
  %v2811 = vmax.f32 %v2786, 0.0
  %v2812 = vmax.f32 %v2787, 0.0
  %v2813 = vmax.f32 %v2788, 0.0
  %v2814 = vmax.f32 %v2789, 0.0
  %v2815 = vmax.f32 %v2790, 0.0
  %v2816 = vmax.f32 %v2791, 0.0
  %v2817 = vmax.f32 %v2792, 0.0
  %v2818 = vmax.f32 %v2793, 0.0
  %v2819 = vpack.c.bf16 %v2794, %v2794
  %v2820 = vpack.c.bf16 %v2795, %v2795
  %v2821 = vpack.c.bf16 %v2796, %v2796
  %v2822 = vpack.c.bf16 %v2797, %v2797
  %v2823 = vpack.c.bf16 %v2798, %v2798
  %v2824 = vpack.c.bf16 %v2799, %v2799
  %v2825 = vpack.c.bf16 %v2800, %v2800
  %v2826 = vpack.c.bf16 %v2801, %v2801
  %v2827 = vpack.c.bf16 %v2802, %v2802
  %v2828 = vpack.c.bf16 %v2803, %v2803
  %v2829 = vpack.c.bf16 %v2804, %v2804
  %v2830 = vpack.c.bf16 %v2805, %v2805
  %v2831 = vpack.c.bf16 %v2806, %v2806
  %v2832 = vpack.c.bf16 %v2807, %v2807
  %v2833 = vpack.c.bf16 %v2808, %v2808
  %v2834 = vpack.c.bf16 %v2809, %v2809
  %v2835 = vpack.c.bf16 %v2810, %v2810
  %v2836 = vpack.c.bf16 %v2811, %v2811
  %v2837 = vpack.c.bf16 %v2812, %v2812
  %v2838 = vpack.c.bf16 %v2813, %v2813
  %v2839 = vpack.c.bf16 %v2814, %v2814
  %v2840 = vpack.c.bf16 %v2815, %v2815
  %v2841 = vpack.c.bf16 %v2816, %v2816
  %v2842 = vpack.c.bf16 %v2817, %v2817
  %v2843 = vpack.c.bf16 %v2818, %v2818
  %2844 = vst.msk [vmem:[%s3 + $0xc8] sm:$0xf] %vm975, %v2819
  %2845 = vst.msk [vmem:[%s3 + $0xcc] sm:$0xf] %vm975, %v2820
  %2846 = vst.msk [vmem:[%s3 + $0xd0] sm:$0xf] %vm975, %v2821
  %2847 = vst.msk [vmem:[%s3 + $0xd4] sm:$0xf] %vm975, %v2822
  %2848 = vst.msk [vmem:[%s3 + $0xd8] sm:$0xf] %vm975, %v2823
  %2849 = vst.msk [vmem:[%s3 + $0xdc] sm:$0xf] %vm975, %v2824
  %2850 = vst.msk [vmem:[%s3 + $0xe0] sm:$0xf] %vm975, %v2825
  %2851 = vst.msk [vmem:[%s3 + $0xe4] sm:$0xf] %vm975, %v2826
  %2852 = vst.msk [vmem:[%s3 + $0xe8] sm:$0xf] %vm975, %v2827
  %2853 = vst.msk [vmem:[%s3 + $0xec] sm:$0xf] %vm975, %v2828
  %2854 = vst.msk [vmem:[%s3 + $0xf0] sm:$0xf] %vm975, %v2829
  %2855 = vst.msk [vmem:[%s3 + $0xf4] sm:$0xf] %vm975, %v2830
  %2856 = vst.msk [vmem:[%s3 + $0xf8] sm:$0xf] %vm975, %v2831
  %2857 = vst.msk [vmem:[%s3 + $0xfc] sm:$0xf] %vm975, %v2832
  %2858 = vst.msk [vmem:[%s3 + $0x100] sm:$0xf] %vm975, %v2833
  %2859 = vst.msk [vmem:[%s3 + $0x104] sm:$0xf] %vm975, %v2834
  %2860 = vst.msk [vmem:[%s3 + $0x108] sm:$0xf] %vm975, %v2835
  %2861 = vst.msk [vmem:[%s3 + $0x10c] sm:$0xf] %vm975, %v2836
  %2862 = vst.msk [vmem:[%s3 + $0x110] sm:$0xf] %vm975, %v2837
  %2863 = vst.msk [vmem:[%s3 + $0x114] sm:$0xf] %vm975, %v2838
  %2864 = vst.msk [vmem:[%s3 + $0x118] sm:$0xf] %vm975, %v2839
  %2865 = vst.msk [vmem:[%s3 + $0x11c] sm:$0xf] %vm975, %v2840
  %2866 = vst.msk [vmem:[%s3 + $0x120] sm:$0xf] %vm975, %v2841
  %2867 = vst.msk [vmem:[%s3 + $0x124] sm:$0xf] %vm975, %v2842
  %2868 = vst.msk [vmem:[%s3 + $0x128] sm:$0xf] %vm975, %v2843
  %v2869 = vld [vmem:[%s0 + $0x4b0] sm:$0xf]
  %v2870 = vld [vmem:[%s0 + $0x4b4] sm:$0xf]
  %v2871 = vld [vmem:[%s0 + $0x4b8] sm:$0xf]
  %v2872 = vld [vmem:[%s0 + $0x4bc] sm:$0xf]
  %v2873 = vld [vmem:[%s0 + $0x4c0] sm:$0xf]
  %v2874 = vld [vmem:[%s0 + $0x4c4] sm:$0xf]
  %v2875 = vld [vmem:[%s0 + $0x4c8] sm:$0xf]
  %v2876 = vld [vmem:[%s0 + $0x4cc] sm:$0xf]
  %v2877 = vld [vmem:[%s0 + $0x4d0] sm:$0xf]
  %v2878 = vld [vmem:[%s0 + $0x4d4] sm:$0xf]
  %v2879 = vld [vmem:[%s0 + $0x4d8] sm:$0xf]
  %v2880 = vld [vmem:[%s0 + $0x4dc] sm:$0xf]
  %v2881 = vld [vmem:[%s0 + $0x4e0] sm:$0xf]
  %v2882 = vld [vmem:[%s0 + $0x4e4] sm:$0xf]
  %v2883 = vld [vmem:[%s0 + $0x4e8] sm:$0xf]
  %v2884 = vld [vmem:[%s0 + $0x4ec] sm:$0xf]
  %v2885 = vld [vmem:[%s0 + $0x4f0] sm:$0xf]
  %v2886 = vld [vmem:[%s0 + $0x4f4] sm:$0xf]
  %v2887 = vld [vmem:[%s0 + $0x4f8] sm:$0xf]
  %v2888 = vld [vmem:[%s0 + $0x4fc] sm:$0xf]
  %v2889 = vld [vmem:[%s0 + $0x500] sm:$0xf]
  %v2890 = vld [vmem:[%s0 + $0x504] sm:$0xf]
  %v2891 = vld [vmem:[%s0 + $0x508] sm:$0xf]
  %v2892 = vld [vmem:[%s0 + $0x50c] sm:$0xf]
  %v2893 = vld [vmem:[%s0 + $0x510] sm:$0xf]
  %v2894 = vld [vmem:[%s0 + $0x514] sm:$0xf]
  %v2895 = vld [vmem:[%s0 + $0x518] sm:$0xf]
  %v2896 = vld [vmem:[%s0 + $0x51c] sm:$0xf]
  %v2897 = vld [vmem:[%s0 + $0x520] sm:$0xf]
  %v2898 = vld [vmem:[%s0 + $0x524] sm:$0xf]
  %v2899 = vld [vmem:[%s0 + $0x528] sm:$0xf]
  %v2900 = vld [vmem:[%s0 + $0x52c] sm:$0xf]
  %v2901 = vld [vmem:[%s0 + $0x530] sm:$0xf]
  %v2902 = vld [vmem:[%s0 + $0x534] sm:$0xf]
  %v2903 = vld [vmem:[%s0 + $0x538] sm:$0xf]
  %v2904 = vld [vmem:[%s0 + $0x53c] sm:$0xf]
  %v2905 = vld [vmem:[%s0 + $0x540] sm:$0xf]
  %v2906 = vld [vmem:[%s0 + $0x544] sm:$0xf]
  %v2907 = vld [vmem:[%s0 + $0x548] sm:$0xf]
  %v2908 = vld [vmem:[%s0 + $0x54c] sm:$0xf]
  %v2909 = vld [vmem:[%s0 + $0x550] sm:$0xf]
  %v2910 = vld [vmem:[%s0 + $0x554] sm:$0xf]
  %v2911 = vld [vmem:[%s0 + $0x558] sm:$0xf]
  %v2912 = vld [vmem:[%s0 + $0x55c] sm:$0xf]
  %v2913 = vld [vmem:[%s0 + $0x560] sm:$0xf]
  %v2914 = vld [vmem:[%s0 + $0x564] sm:$0xf]
  %v2915 = vld [vmem:[%s0 + $0x568] sm:$0xf]
  %v2916 = vld [vmem:[%s0 + $0x56c] sm:$0xf]
  %v2917 = vld [vmem:[%s0 + $0x570] sm:$0xf]
  %v2918 = vld [vmem:[%s0 + $0x574] sm:$0xf]
  %v2919 = vld [vmem:[%s0 + $0x578] sm:$0xf]
  %v2920 = vld [vmem:[%s0 + $0x57c] sm:$0xf]
  %v2921 = vld [vmem:[%s0 + $0x580] sm:$0xf]
  %v2922 = vld [vmem:[%s0 + $0x584] sm:$0xf]
  %v2923 = vld [vmem:[%s0 + $0x588] sm:$0xf]
  %v2924 = vld [vmem:[%s0 + $0x58c] sm:$0xf]
  %v2925 = vld [vmem:[%s0 + $0x590] sm:$0xf]
  %v2926 = vld [vmem:[%s0 + $0x594] sm:$0xf]
  %v2927 = vld [vmem:[%s0 + $0x598] sm:$0xf]
  %v2928 = vld [vmem:[%s0 + $0x59c] sm:$0xf]
  %v2929 = vld [vmem:[%s0 + $0x5a0] sm:$0xf]
  %v2930 = vld [vmem:[%s0 + $0x5a4] sm:$0xf]
  %v2931 = vld [vmem:[%s0 + $0x5a8] sm:$0xf]
  %v2932 = vld [vmem:[%s0 + $0x5ac] sm:$0xf]
  %v2933 = vld [vmem:[%s0 + $0x5b0] sm:$0xf]
  %v2934 = vld [vmem:[%s0 + $0x5b4] sm:$0xf]
  %v2935 = vld [vmem:[%s0 + $0x5b8] sm:$0xf]
  %v2936 = vld [vmem:[%s0 + $0x5bc] sm:$0xf]
  %v2937 = vld [vmem:[%s0 + $0x5c0] sm:$0xf]
  %v2938 = vld [vmem:[%s0 + $0x5c4] sm:$0xf]
  %v2939 = vld [vmem:[%s0 + $0x5c8] sm:$0xf]
  %v2940 = vld [vmem:[%s0 + $0x5cc] sm:$0xf]
  %v2941 = vld [vmem:[%s0 + $0x5d0] sm:$0xf]
  %v2942 = vld [vmem:[%s0 + $0x5d4] sm:$0xf]
  %v2943 = vld [vmem:[%s0 + $0x5d8] sm:$0xf]
  %v2944 = vld [vmem:[%s0 + $0x5dc] sm:$0xf]
  %v2945 = vld [vmem:[%s0 + $0x5e0] sm:$0xf]
  %v2946 = vld [vmem:[%s0 + $0x5e4] sm:$0xf]
  %v2947 = vld [vmem:[%s0 + $0x5e8] sm:$0xf]
  %v2948 = vld [vmem:[%s0 + $0x5ec] sm:$0xf]
  %v2949 = vld [vmem:[%s0 + $0x5f0] sm:$0xf]
  %v2950 = vld [vmem:[%s0 + $0x5f4] sm:$0xf]
  %v2951 = vld [vmem:[%s0 + $0x5f8] sm:$0xf]
  %v2952 = vld [vmem:[%s0 + $0x5fc] sm:$0xf]
  %v2953 = vld [vmem:[%s0 + $0x600] sm:$0xf]
  %v2954 = vld [vmem:[%s0 + $0x604] sm:$0xf]
  %v2955 = vld [vmem:[%s0 + $0x608] sm:$0xf]
  %v2956 = vld [vmem:[%s0 + $0x60c] sm:$0xf]
  %v2957 = vld [vmem:[%s0 + $0x610] sm:$0xf]
  %v2958 = vld [vmem:[%s0 + $0x614] sm:$0xf]
  %v2959 = vld [vmem:[%s0 + $0x618] sm:$0xf]
  %v2960 = vld [vmem:[%s0 + $0x61c] sm:$0xf]
  %v2961 = vld [vmem:[%s0 + $0x620] sm:$0xf]
  %v2962 = vld [vmem:[%s0 + $0x624] sm:$0xf]
  %v2963 = vld [vmem:[%s0 + $0x628] sm:$0xf]
  %v2964 = vld [vmem:[%s0 + $0x62c] sm:$0xf]
  %v2965 = vld [vmem:[%s0 + $0x630] sm:$0xf]
  %v2966 = vld [vmem:[%s0 + $0x634] sm:$0xf]
  %v2967 = vld [vmem:[%s0 + $0x638] sm:$0xf]
  %v2968 = vld [vmem:[%s0 + $0x63c] sm:$0xf]
  %v3069 = vunpack.c.l.b16 %v2869
  %v3070 = vunpack.c.l.b16 %v2870
  %v3071 = vunpack.c.l.b16 %v2871
  %v3072 = vunpack.c.l.b16 %v2872
  %v3073 = vunpack.c.l.b16 %v2873
  %v3074 = vunpack.c.l.b16 %v2874
  %v3075 = vunpack.c.l.b16 %v2875
  %v3076 = vunpack.c.l.b16 %v2876
  %v3077 = vunpack.c.l.b16 %v2877
  %v3078 = vunpack.c.l.b16 %v2878
  %v3079 = vunpack.c.l.b16 %v2879
  %v3080 = vunpack.c.l.b16 %v2880
  %v3081 = vunpack.c.l.b16 %v2881
  %v3082 = vunpack.c.l.b16 %v2882
  %v3083 = vunpack.c.l.b16 %v2883
  %v3084 = vunpack.c.l.b16 %v2884
  %v3085 = vunpack.c.l.b16 %v2885
  %v3086 = vunpack.c.l.b16 %v2886
  %v3087 = vunpack.c.l.b16 %v2887
  %v3088 = vunpack.c.l.b16 %v2888
  %v3089 = vunpack.c.l.b16 %v2889
  %v3090 = vunpack.c.l.b16 %v2890
  %v3091 = vunpack.c.l.b16 %v2891
  %v3092 = vunpack.c.l.b16 %v2892
  %v3093 = vunpack.c.l.b16 %v2893
  %v3094 = vunpack.c.l.b16 %v2894
  %v3095 = vunpack.c.l.b16 %v2895
  %v3096 = vunpack.c.l.b16 %v2896
  %v3097 = vunpack.c.l.b16 %v2897
  %v3098 = vunpack.c.l.b16 %v2898
  %v3099 = vunpack.c.l.b16 %v2899
  %v3100 = vunpack.c.l.b16 %v2900
  %v3101 = vunpack.c.l.b16 %v2901
  %v3102 = vunpack.c.l.b16 %v2902
  %v3103 = vunpack.c.l.b16 %v2903
  %v3104 = vunpack.c.l.b16 %v2904
  %v3105 = vunpack.c.l.b16 %v2905
  %v3106 = vunpack.c.l.b16 %v2906
  %v3107 = vunpack.c.l.b16 %v2907
  %v3108 = vunpack.c.l.b16 %v2908
  %v3109 = vunpack.c.l.b16 %v2909
  %v3110 = vunpack.c.l.b16 %v2910
  %v3111 = vunpack.c.l.b16 %v2911
  %v3112 = vunpack.c.l.b16 %v2912
  %v3113 = vunpack.c.l.b16 %v2913
  %v3114 = vunpack.c.l.b16 %v2914
  %v3115 = vunpack.c.l.b16 %v2915
  %v3116 = vunpack.c.l.b16 %v2916
  %v3117 = vunpack.c.l.b16 %v2917
  %v3118 = vunpack.c.l.b16 %v2918
  %v3119 = vunpack.c.l.b16 %v2919
  %v3120 = vunpack.c.l.b16 %v2920
  %v3121 = vunpack.c.l.b16 %v2921
  %v3122 = vunpack.c.l.b16 %v2922
  %v3123 = vunpack.c.l.b16 %v2923
  %v3124 = vunpack.c.l.b16 %v2924
  %v3125 = vunpack.c.l.b16 %v2925
  %v3126 = vunpack.c.l.b16 %v2926
  %v3127 = vunpack.c.l.b16 %v2927
  %v3128 = vunpack.c.l.b16 %v2928
  %v3129 = vunpack.c.l.b16 %v2929
  %v3130 = vunpack.c.l.b16 %v2930
  %v3131 = vunpack.c.l.b16 %v2931
  %v3132 = vunpack.c.l.b16 %v2932
  %v3133 = vunpack.c.l.b16 %v2933
  %v3134 = vunpack.c.l.b16 %v2934
  %v3135 = vunpack.c.l.b16 %v2935
  %v3136 = vunpack.c.l.b16 %v2936
  %v3137 = vunpack.c.l.b16 %v2937
  %v3138 = vunpack.c.l.b16 %v2938
  %v3139 = vunpack.c.l.b16 %v2939
  %v3140 = vunpack.c.l.b16 %v2940
  %v3141 = vunpack.c.l.b16 %v2941
  %v3142 = vunpack.c.l.b16 %v2942
  %v3143 = vunpack.c.l.b16 %v2943
  %v3144 = vunpack.c.l.b16 %v2944
  %v3145 = vunpack.c.l.b16 %v2945
  %v3146 = vunpack.c.l.b16 %v2946
  %v3147 = vunpack.c.l.b16 %v2947
  %v3148 = vunpack.c.l.b16 %v2948
  %v3149 = vunpack.c.l.b16 %v2949
  %v3150 = vunpack.c.l.b16 %v2950
  %v3151 = vunpack.c.l.b16 %v2951
  %v3152 = vunpack.c.l.b16 %v2952
  %v3153 = vunpack.c.l.b16 %v2953
  %v3154 = vunpack.c.l.b16 %v2954
  %v3155 = vunpack.c.l.b16 %v2955
  %v3156 = vunpack.c.l.b16 %v2956
  %v3157 = vunpack.c.l.b16 %v2957
  %v3158 = vunpack.c.l.b16 %v2958
  %v3159 = vunpack.c.l.b16 %v2959
  %v3160 = vunpack.c.l.b16 %v2960
  %v3161 = vunpack.c.l.b16 %v2961
  %v3162 = vunpack.c.l.b16 %v2962
  %v3163 = vunpack.c.l.b16 %v2963
  %v3164 = vunpack.c.l.b16 %v2964
  %v3165 = vunpack.c.l.b16 %v2965
  %v3166 = vunpack.c.l.b16 %v2966
  %v3167 = vunpack.c.l.b16 %v2967
  %v3168 = vunpack.c.l.b16 %v2968
  %v3169 = vpack.c.b16 %v3070, %v3069
  %v3170 = vpack.c.b16 %v3072, %v3071
  %v3171 = vpack.c.b16 %v3074, %v3073
  %v3172 = vpack.c.b16 %v3076, %v3075
  %v3173 = vpack.c.b16 %v3078, %v3077
  %v3174 = vpack.c.b16 %v3080, %v3079
  %v3175 = vpack.c.b16 %v3082, %v3081
  %v3176 = vpack.c.b16 %v3084, %v3083
  %v3177 = vpack.c.b16 %v3086, %v3085
  %v3178 = vpack.c.b16 %v3088, %v3087
  %v3179 = vpack.c.b16 %v3090, %v3089
  %v3180 = vpack.c.b16 %v3092, %v3091
  %v3181 = vpack.c.b16 %v3094, %v3093
  %v3182 = vpack.c.b16 %v3096, %v3095
  %v3183 = vpack.c.b16 %v3098, %v3097
  %v3184 = vpack.c.b16 %v3100, %v3099
  %v3185 = vpack.c.b16 %v3102, %v3101
  %v3186 = vpack.c.b16 %v3104, %v3103
  %v3187 = vpack.c.b16 %v3106, %v3105
  %v3188 = vpack.c.b16 %v3108, %v3107
  %v3189 = vpack.c.b16 %v3110, %v3109
  %v3190 = vpack.c.b16 %v3112, %v3111
  %v3191 = vpack.c.b16 %v3114, %v3113
  %v3192 = vpack.c.b16 %v3116, %v3115
  %v3193 = vpack.c.b16 %v3118, %v3117
  %v3194 = vpack.c.b16 %v3120, %v3119
  %v3195 = vpack.c.b16 %v3122, %v3121
  %v3196 = vpack.c.b16 %v3124, %v3123
  %v3197 = vpack.c.b16 %v3126, %v3125
  %v3198 = vpack.c.b16 %v3128, %v3127
  %v3199 = vpack.c.b16 %v3130, %v3129
  %v3200 = vpack.c.b16 %v3132, %v3131
  %v3201 = vpack.c.b16 %v3134, %v3133
  %v3202 = vpack.c.b16 %v3136, %v3135
  %v3203 = vpack.c.b16 %v3138, %v3137
  %v3204 = vpack.c.b16 %v3140, %v3139
  %v3205 = vpack.c.b16 %v3142, %v3141
  %v3206 = vpack.c.b16 %v3144, %v3143
  %v3207 = vpack.c.b16 %v3146, %v3145
  %v3208 = vpack.c.b16 %v3148, %v3147
  %v3209 = vpack.c.b16 %v3150, %v3149
  %v3210 = vpack.c.b16 %v3152, %v3151
  %v3211 = vpack.c.b16 %v3154, %v3153
  %v3212 = vpack.c.b16 %v3156, %v3155
  %v3213 = vpack.c.b16 %v3158, %v3157
  %v3214 = vpack.c.b16 %v3160, %v3159
  %v3215 = vpack.c.b16 %v3162, %v3161
  %v3216 = vpack.c.b16 %v3164, %v3163
  %v3217 = vpack.c.b16 %v3166, %v3165
  %v3218 = vpack.c.b16 %v3168, %v3167
  %v3220 = vsel %vm408, %v3169, 0
  %v3223 = vsel %vm408, %v3170, 0
  %v3226 = vsel %vm408, %v3171, 0
  %v3229 = vsel %vm408, %v3172, 0
  %v3232 = vsel %vm408, %v3173, 0
  %v3235 = vsel %vm408, %v3174, 0
  %v3238 = vsel %vm408, %v3175, 0
  %v3241 = vsel %vm408, %v3176, 0
  %v3244 = vsel %vm408, %v3177, 0
  %v3247 = vsel %vm408, %v3178, 0
  %v3250 = vsel %vm408, %v3179, 0
  %v3253 = vsel %vm408, %v3180, 0
  %v3256 = vsel %vm408, %v3181, 0
  %v3259 = vsel %vm408, %v3182, 0
  %v3262 = vsel %vm408, %v3183, 0
  %v3265 = vsel %vm408, %v3184, 0
  %v3268 = vsel %vm408, %v3185, 0
  %v3271 = vsel %vm408, %v3186, 0
  %v3274 = vsel %vm408, %v3187, 0
  %v3277 = vsel %vm408, %v3188, 0
  %v3280 = vsel %vm408, %v3189, 0
  %v3283 = vsel %vm408, %v3190, 0
  %v3286 = vsel %vm408, %v3191, 0
  %v3289 = vsel %vm408, %v3192, 0
  %v3292 = vsel %vm408, %v3193, 0
  %v3295 = vsel %vm408, %v3194, 0
  %v3298 = vsel %vm408, %v3195, 0
  %v3301 = vsel %vm408, %v3196, 0
  %v3304 = vsel %vm408, %v3197, 0
  %v3307 = vsel %vm408, %v3198, 0
  %v3310 = vsel %vm408, %v3199, 0
  %v3313 = vsel %vm408, %v3200, 0
  %v3316 = vsel %vm408, %v3201, 0
  %v3319 = vsel %vm408, %v3202, 0
  %v3322 = vsel %vm408, %v3203, 0
  %v3325 = vsel %vm408, %v3204, 0
  %v3328 = vsel %vm408, %v3205, 0
  %v3331 = vsel %vm408, %v3206, 0
  %v3334 = vsel %vm408, %v3207, 0
  %v3337 = vsel %vm408, %v3208, 0
  %v3340 = vsel %vm408, %v3209, 0
  %v3343 = vsel %vm408, %v3210, 0
  %v3346 = vsel %vm408, %v3211, 0
  %v3349 = vsel %vm408, %v3212, 0
  %v3352 = vsel %vm408, %v3213, 0
  %v3355 = vsel %vm408, %v3214, 0
  %v3358 = vsel %vm408, %v3215, 0
  %v3361 = vsel %vm408, %v3216, 0
  %v3364 = vsel %vm408, %v3217, 0
  %v3367 = vsel %vm408, %v3218, 0
  %3369 = vmatpush.bf16.msra.mxu0 0
  %3370 = vmatpush.bf16.msra.mxu0 0
  %3371 = vmatpush.bf16.msra.mxu0 0
  %3372 = vmatpush.bf16.msra.mxu0 %v564
  %3373 = vmatpush.bf16.msra.mxu0 %v402
  %3374 = vmatpush.bf16.msra.mxu0 %v401
  %3375 = vmatpush.bf16.msra.mxu0 %v400
  %3376 = vmatpush.bf16.msra.mxu0 %v399
  %3377 = vmatmul.bf16.gmra.mxu0 %v3220
  %v3378 = vpop.f32.mrf.mxu0
  %v3379 = vadd.f32 0.0, %v3378
  %v3380 = vpop.f32.mrf.mxu0
  %v3381 = vadd.f32 0.0, %v3380
  %3382 = vmatmul.bf16.gmra.mxu0 %v3223
  %v3383 = vpop.f32.mrf.mxu0
  %v3384 = vadd.f32 0.0, %v3383
  %v3385 = vpop.f32.mrf.mxu0
  %v3386 = vadd.f32 0.0, %v3385
  %3387 = vmatmul.bf16.gmra.mxu0 %v3226
  %v3388 = vpop.f32.mrf.mxu0
  %v3389 = vadd.f32 0.0, %v3388
  %v3390 = vpop.f32.mrf.mxu0
  %v3391 = vadd.f32 0.0, %v3390
  %3392 = vmatmul.bf16.gmra.mxu0 %v3229
  %v3393 = vpop.f32.mrf.mxu0
  %v3394 = vadd.f32 0.0, %v3393
  %v3395 = vpop.f32.mrf.mxu0
  %v3396 = vadd.f32 0.0, %v3395
  %3397 = vmatmul.bf16.gmra.mxu0 %v3232
  %v3398 = vpop.f32.mrf.mxu0
  %v3399 = vadd.f32 0.0, %v3398
  %v3400 = vpop.f32.mrf.mxu0
  %v3401 = vadd.f32 0.0, %v3400
  %3402 = vmatmul.bf16.gmra.mxu0 %v3235
  %v3403 = vpop.f32.mrf.mxu0
  %v3404 = vadd.f32 0.0, %v3403
  %v3405 = vpop.f32.mrf.mxu0
  %v3406 = vadd.f32 0.0, %v3405
  %3407 = vmatmul.bf16.gmra.mxu0 %v3238
  %v3408 = vpop.f32.mrf.mxu0
  %v3409 = vadd.f32 0.0, %v3408
  %v3410 = vpop.f32.mrf.mxu0
  %v3411 = vadd.f32 0.0, %v3410
  %3412 = vmatmul.bf16.gmra.mxu0 %v3241
  %v3413 = vpop.f32.mrf.mxu0
  %v3414 = vadd.f32 0.0, %v3413
  %v3415 = vpop.f32.mrf.mxu0
  %v3416 = vadd.f32 0.0, %v3415
  %3417 = vmatmul.bf16.gmra.mxu0 %v3244
  %v3418 = vpop.f32.mrf.mxu0
  %v3419 = vadd.f32 0.0, %v3418
  %v3420 = vpop.f32.mrf.mxu0
  %v3421 = vadd.f32 0.0, %v3420
  %3422 = vmatmul.bf16.gmra.mxu0 %v3247
  %v3423 = vpop.f32.mrf.mxu0
  %v3424 = vadd.f32 0.0, %v3423
  %v3425 = vpop.f32.mrf.mxu0
  %v3426 = vadd.f32 0.0, %v3425
  %3427 = vmatmul.bf16.gmra.mxu0 %v3250
  %v3428 = vpop.f32.mrf.mxu0
  %v3429 = vadd.f32 0.0, %v3428
  %v3430 = vpop.f32.mrf.mxu0
  %v3431 = vadd.f32 0.0, %v3430
  %3432 = vmatmul.bf16.gmra.mxu0 %v3253
  %v3433 = vpop.f32.mrf.mxu0
  %v3434 = vadd.f32 0.0, %v3433
  %v3435 = vpop.f32.mrf.mxu0
  %v3436 = vadd.f32 0.0, %v3435
  %3437 = vmatmul.bf16.gmra.mxu0 %v3256
  %v3438 = vpop.f32.mrf.mxu0
  %v3439 = vadd.f32 0.0, %v3438
  %v3440 = vpop.f32.mrf.mxu0
  %v3441 = vadd.f32 0.0, %v3440
  %3442 = vmatmul.bf16.gmra.mxu0 %v3259
  %v3443 = vpop.f32.mrf.mxu0
  %v3444 = vadd.f32 0.0, %v3443
  %v3445 = vpop.f32.mrf.mxu0
  %v3446 = vadd.f32 0.0, %v3445
  %3447 = vmatmul.bf16.gmra.mxu0 %v3262
  %v3448 = vpop.f32.mrf.mxu0
  %v3449 = vadd.f32 0.0, %v3448
  %v3450 = vpop.f32.mrf.mxu0
  %v3451 = vadd.f32 0.0, %v3450
  %3452 = vmatmul.bf16.gmra.mxu0 %v3265
  %v3453 = vpop.f32.mrf.mxu0
  %v3454 = vadd.f32 0.0, %v3453
  %v3455 = vpop.f32.mrf.mxu0
  %v3456 = vadd.f32 0.0, %v3455
  %3457 = vmatmul.bf16.gmra.mxu0 %v3268
  %v3458 = vpop.f32.mrf.mxu0
  %v3459 = vadd.f32 0.0, %v3458
  %v3460 = vpop.f32.mrf.mxu0
  %v3461 = vadd.f32 0.0, %v3460
  %3462 = vmatmul.bf16.gmra.mxu0 %v3271
  %v3463 = vpop.f32.mrf.mxu0
  %v3464 = vadd.f32 0.0, %v3463
  %v3465 = vpop.f32.mrf.mxu0
  %v3466 = vadd.f32 0.0, %v3465
  %3467 = vmatmul.bf16.gmra.mxu0 %v3274
  %v3468 = vpop.f32.mrf.mxu0
  %v3469 = vadd.f32 0.0, %v3468
  %v3470 = vpop.f32.mrf.mxu0
  %v3471 = vadd.f32 0.0, %v3470
  %3472 = vmatmul.bf16.gmra.mxu0 %v3277
  %v3473 = vpop.f32.mrf.mxu0
  %v3474 = vadd.f32 0.0, %v3473
  %v3475 = vpop.f32.mrf.mxu0
  %v3476 = vadd.f32 0.0, %v3475
  %3477 = vmatmul.bf16.gmra.mxu0 %v3280
  %v3478 = vpop.f32.mrf.mxu0
  %v3479 = vadd.f32 0.0, %v3478
  %v3480 = vpop.f32.mrf.mxu0
  %v3481 = vadd.f32 0.0, %v3480
  %3482 = vmatmul.bf16.gmra.mxu0 %v3283
  %v3483 = vpop.f32.mrf.mxu0
  %v3484 = vadd.f32 0.0, %v3483
  %v3485 = vpop.f32.mrf.mxu0
  %v3486 = vadd.f32 0.0, %v3485
  %3487 = vmatmul.bf16.gmra.mxu0 %v3286
  %v3488 = vpop.f32.mrf.mxu0
  %v3489 = vadd.f32 0.0, %v3488
  %v3490 = vpop.f32.mrf.mxu0
  %v3491 = vadd.f32 0.0, %v3490
  %3492 = vmatmul.bf16.gmra.mxu0 %v3289
  %v3493 = vpop.f32.mrf.mxu0
  %v3494 = vadd.f32 0.0, %v3493
  %v3495 = vpop.f32.mrf.mxu0
  %v3496 = vadd.f32 0.0, %v3495
  %3497 = vmatmul.bf16.gmra.mxu0 %v3292
  %v3498 = vpop.f32.mrf.mxu0
  %v3499 = vadd.f32 0.0, %v3498
  %v3500 = vpop.f32.mrf.mxu0
  %v3501 = vadd.f32 0.0, %v3500
  %3502 = vmatmul.bf16.gmra.mxu0 %v3295
  %v3503 = vpop.f32.mrf.mxu0
  %v3504 = vadd.f32 0.0, %v3503
  %v3505 = vpop.f32.mrf.mxu0
  %v3506 = vadd.f32 0.0, %v3505
  %3507 = vmatmul.bf16.gmra.mxu0 %v3298
  %v3508 = vpop.f32.mrf.mxu0
  %v3509 = vadd.f32 0.0, %v3508
  %v3510 = vpop.f32.mrf.mxu0
  %v3511 = vadd.f32 0.0, %v3510
  %3512 = vmatmul.bf16.gmra.mxu0 %v3301
  %v3513 = vpop.f32.mrf.mxu0
  %v3514 = vadd.f32 0.0, %v3513
  %v3515 = vpop.f32.mrf.mxu0
  %v3516 = vadd.f32 0.0, %v3515
  %3517 = vmatmul.bf16.gmra.mxu0 %v3304
  %v3518 = vpop.f32.mrf.mxu0
  %v3519 = vadd.f32 0.0, %v3518
  %v3520 = vpop.f32.mrf.mxu0
  %v3521 = vadd.f32 0.0, %v3520
  %3522 = vmatmul.bf16.gmra.mxu0 %v3307
  %v3523 = vpop.f32.mrf.mxu0
  %v3524 = vadd.f32 0.0, %v3523
  %v3525 = vpop.f32.mrf.mxu0
  %v3526 = vadd.f32 0.0, %v3525
  %3527 = vmatmul.bf16.gmra.mxu0 %v3310
  %v3528 = vpop.f32.mrf.mxu0
  %v3529 = vadd.f32 0.0, %v3528
  %v3530 = vpop.f32.mrf.mxu0
  %v3531 = vadd.f32 0.0, %v3530
  %3532 = vmatmul.bf16.gmra.mxu0 %v3313
  %v3533 = vpop.f32.mrf.mxu0
  %v3534 = vadd.f32 0.0, %v3533
  %v3535 = vpop.f32.mrf.mxu0
  %v3536 = vadd.f32 0.0, %v3535
  %3537 = vmatmul.bf16.gmra.mxu0 %v3316
  %v3538 = vpop.f32.mrf.mxu0
  %v3539 = vadd.f32 0.0, %v3538
  %v3540 = vpop.f32.mrf.mxu0
  %v3541 = vadd.f32 0.0, %v3540
  %3542 = vmatmul.bf16.gmra.mxu0 %v3319
  %v3543 = vpop.f32.mrf.mxu0
  %v3544 = vadd.f32 0.0, %v3543
  %v3545 = vpop.f32.mrf.mxu0
  %v3546 = vadd.f32 0.0, %v3545
  %3547 = vmatmul.bf16.gmra.mxu0 %v3322
  %v3548 = vpop.f32.mrf.mxu0
  %v3549 = vadd.f32 0.0, %v3548
  %v3550 = vpop.f32.mrf.mxu0
  %v3551 = vadd.f32 0.0, %v3550
  %3552 = vmatmul.bf16.gmra.mxu0 %v3325
  %v3553 = vpop.f32.mrf.mxu0
  %v3554 = vadd.f32 0.0, %v3553
  %v3555 = vpop.f32.mrf.mxu0
  %v3556 = vadd.f32 0.0, %v3555
  %3557 = vmatmul.bf16.gmra.mxu0 %v3328
  %v3558 = vpop.f32.mrf.mxu0
  %v3559 = vadd.f32 0.0, %v3558
  %v3560 = vpop.f32.mrf.mxu0
  %v3561 = vadd.f32 0.0, %v3560
  %3562 = vmatmul.bf16.gmra.mxu0 %v3331
  %v3563 = vpop.f32.mrf.mxu0
  %v3564 = vadd.f32 0.0, %v3563
  %v3565 = vpop.f32.mrf.mxu0
  %v3566 = vadd.f32 0.0, %v3565
  %3567 = vmatmul.bf16.gmra.mxu0 %v3334
  %v3568 = vpop.f32.mrf.mxu0
  %v3569 = vadd.f32 0.0, %v3568
  %v3570 = vpop.f32.mrf.mxu0
  %v3571 = vadd.f32 0.0, %v3570
  %3572 = vmatmul.bf16.gmra.mxu0 %v3337
  %v3573 = vpop.f32.mrf.mxu0
  %v3574 = vadd.f32 0.0, %v3573
  %v3575 = vpop.f32.mrf.mxu0
  %v3576 = vadd.f32 0.0, %v3575
  %3577 = vmatmul.bf16.gmra.mxu0 %v3340
  %v3578 = vpop.f32.mrf.mxu0
  %v3579 = vadd.f32 0.0, %v3578
  %v3580 = vpop.f32.mrf.mxu0
  %v3581 = vadd.f32 0.0, %v3580
  %3582 = vmatmul.bf16.gmra.mxu0 %v3343
  %v3583 = vpop.f32.mrf.mxu0
  %v3584 = vadd.f32 0.0, %v3583
  %v3585 = vpop.f32.mrf.mxu0
  %v3586 = vadd.f32 0.0, %v3585
  %3587 = vmatmul.bf16.gmra.mxu0 %v3346
  %v3588 = vpop.f32.mrf.mxu0
  %v3589 = vadd.f32 0.0, %v3588
  %v3590 = vpop.f32.mrf.mxu0
  %v3591 = vadd.f32 0.0, %v3590
  %3592 = vmatmul.bf16.gmra.mxu0 %v3349
  %v3593 = vpop.f32.mrf.mxu0
  %v3594 = vadd.f32 0.0, %v3593
  %v3595 = vpop.f32.mrf.mxu0
  %v3596 = vadd.f32 0.0, %v3595
  %3597 = vmatmul.bf16.gmra.mxu0 %v3352
  %v3598 = vpop.f32.mrf.mxu0
  %v3599 = vadd.f32 0.0, %v3598
  %v3600 = vpop.f32.mrf.mxu0
  %v3601 = vadd.f32 0.0, %v3600
  %3602 = vmatmul.bf16.gmra.mxu0 %v3355
  %v3603 = vpop.f32.mrf.mxu0
  %v3604 = vadd.f32 0.0, %v3603
  %v3605 = vpop.f32.mrf.mxu0
  %v3606 = vadd.f32 0.0, %v3605
  %3607 = vmatmul.bf16.gmra.mxu0 %v3358
  %v3608 = vpop.f32.mrf.mxu0
  %v3609 = vadd.f32 0.0, %v3608
  %v3610 = vpop.f32.mrf.mxu0
  %v3611 = vadd.f32 0.0, %v3610
  %3612 = vmatmul.bf16.gmra.mxu0 %v3361
  %v3613 = vpop.f32.mrf.mxu0
  %v3614 = vadd.f32 0.0, %v3613
  %v3615 = vpop.f32.mrf.mxu0
  %v3616 = vadd.f32 0.0, %v3615
  %3617 = vmatmul.bf16.gmra.mxu0 %v3364
  %v3618 = vpop.f32.mrf.mxu0
  %v3619 = vadd.f32 0.0, %v3618
  %v3620 = vpop.f32.mrf.mxu0
  %v3621 = vadd.f32 0.0, %v3620
  %3622 = vmatmul.bf16.gmra.mxu0 %v3367
  %v3623 = vpop.f32.mrf.mxu0
  %v3624 = vadd.f32 0.0, %v3623
  %v3625 = vpop.f32.mrf.mxu0
  %v3626 = vadd.f32 0.0, %v3625
  %3627 = vdwg.mxu0
  %v3628 = vmax.f32 %v3379, %v3441
  %v3629 = vmax.f32 %v3381, %v3444
  %v3630 = vmax.f32 %v3384, %v3446
  %v3631 = vmax.f32 %v3386, %v3449
  %v3632 = vmax.f32 %v3389, %v3451
  %v3633 = vmax.f32 %v3391, %v3454
  %v3634 = vmax.f32 %v3394, %v3456
  %v3635 = vmax.f32 %v3396, %v3459
  %v3636 = vmax.f32 %v3399, %v3461
  %v3637 = vmax.f32 %v3401, %v3464
  %v3638 = vmax.f32 %v3404, %v3466
  %v3639 = vmax.f32 %v3406, %v3469
  %v3640 = vmax.f32 %v3409, %v3471
  %v3641 = vmax.f32 %v3411, %v3474
  %v3642 = vmax.f32 %v3414, %v3476
  %v3643 = vmax.f32 %v3416, %v3479
  %v3644 = vmax.f32 %v3419, %v3481
  %v3645 = vmax.f32 %v3421, %v3484
  %v3646 = vmax.f32 %v3424, %v3486
  %v3647 = vmax.f32 %v3426, %v3489
  %v3648 = vmax.f32 %v3429, %v3491
  %v3649 = vmax.f32 %v3431, %v3494
  %v3650 = vmax.f32 %v3434, %v3496
  %v3651 = vmax.f32 %v3436, %v3499
  %v3652 = vmax.f32 %v3439, %v3501
  %v3653 = vmax.f32 %v3504, %v3566
  %v3654 = vmax.f32 %v3506, %v3569
  %v3655 = vmax.f32 %v3509, %v3571
  %v3656 = vmax.f32 %v3511, %v3574
  %v3657 = vmax.f32 %v3514, %v3576
  %v3658 = vmax.f32 %v3516, %v3579
  %v3659 = vmax.f32 %v3519, %v3581
  %v3660 = vmax.f32 %v3521, %v3584
  %v3661 = vmax.f32 %v3524, %v3586
  %v3662 = vmax.f32 %v3526, %v3589
  %v3663 = vmax.f32 %v3529, %v3591
  %v3664 = vmax.f32 %v3531, %v3594
  %v3665 = vmax.f32 %v3534, %v3596
  %v3666 = vmax.f32 %v3536, %v3599
  %v3667 = vmax.f32 %v3539, %v3601
  %v3668 = vmax.f32 %v3541, %v3604
  %v3669 = vmax.f32 %v3544, %v3606
  %v3670 = vmax.f32 %v3546, %v3609
  %v3671 = vmax.f32 %v3549, %v3611
  %v3672 = vmax.f32 %v3551, %v3614
  %v3673 = vmax.f32 %v3554, %v3616
  %v3674 = vmax.f32 %v3556, %v3619
  %v3675 = vmax.f32 %v3559, %v3621
  %v3676 = vmax.f32 %v3561, %v3624
  %v3677 = vmax.f32 %v3564, %v3626
  %v3678 = vmax.f32 %v3628, %v3653
  %v3679 = vmax.f32 %v3629, %v3654
  %v3680 = vmax.f32 %v3630, %v3655
  %v3681 = vmax.f32 %v3631, %v3656
  %v3682 = vmax.f32 %v3632, %v3657
  %v3683 = vmax.f32 %v3633, %v3658
  %v3684 = vmax.f32 %v3634, %v3659
  %v3685 = vmax.f32 %v3635, %v3660
  %v3686 = vmax.f32 %v3636, %v3661
  %v3687 = vmax.f32 %v3637, %v3662
  %v3688 = vmax.f32 %v3638, %v3663
  %v3689 = vmax.f32 %v3639, %v3664
  %v3690 = vmax.f32 %v3640, %v3665
  %v3691 = vmax.f32 %v3641, %v3666
  %v3692 = vmax.f32 %v3642, %v3667
  %v3693 = vmax.f32 %v3643, %v3668
  %v3694 = vmax.f32 %v3644, %v3669
  %v3695 = vmax.f32 %v3645, %v3670
  %v3696 = vmax.f32 %v3646, %v3671
  %v3697 = vmax.f32 %v3647, %v3672
  %v3698 = vmax.f32 %v3648, %v3673
  %v3699 = vmax.f32 %v3649, %v3674
  %v3700 = vmax.f32 %v3650, %v3675
  %v3701 = vmax.f32 %v3651, %v3676
  %v3702 = vmax.f32 %v3652, %v3677
  %v3703 = vadd.f32 %v3678, %v27
  %v3704 = vadd.f32 %v3679, %v27
  %v3705 = vadd.f32 %v3680, %v27
  %v3706 = vadd.f32 %v3681, %v27
  %v3707 = vadd.f32 %v3682, %v27
  %v3708 = vadd.f32 %v3683, %v27
  %v3709 = vadd.f32 %v3684, %v27
  %v3710 = vadd.f32 %v3685, %v27
  %v3711 = vadd.f32 %v3686, %v27
  %v3712 = vadd.f32 %v3687, %v27
  %v3713 = vadd.f32 %v3688, %v27
  %v3714 = vadd.f32 %v3689, %v27
  %v3715 = vadd.f32 %v3690, %v27
  %v3716 = vadd.f32 %v3691, %v27
  %v3717 = vadd.f32 %v3692, %v27
  %v3718 = vadd.f32 %v3693, %v27
  %v3719 = vadd.f32 %v3694, %v27
  %v3720 = vadd.f32 %v3695, %v27
  %v3721 = vadd.f32 %v3696, %v27
  %v3722 = vadd.f32 %v3697, %v27
  %v3723 = vadd.f32 %v3698, %v27
  %v3724 = vadd.f32 %v3699, %v27
  %v3725 = vadd.f32 %v3700, %v27
  %v3726 = vadd.f32 %v3701, %v27
  %v3727 = vadd.f32 %v3702, %v27
  %v3728 = vmax.f32 %v3703, 0.0
  %v3729 = vmax.f32 %v3704, 0.0
  %v3730 = vmax.f32 %v3705, 0.0
  %v3731 = vmax.f32 %v3706, 0.0
  %v3732 = vmax.f32 %v3707, 0.0
  %v3733 = vmax.f32 %v3708, 0.0
  %v3734 = vmax.f32 %v3709, 0.0
  %v3735 = vmax.f32 %v3710, 0.0
  %v3736 = vmax.f32 %v3711, 0.0
  %v3737 = vmax.f32 %v3712, 0.0
  %v3738 = vmax.f32 %v3713, 0.0
  %v3739 = vmax.f32 %v3714, 0.0
  %v3740 = vmax.f32 %v3715, 0.0
  %v3741 = vmax.f32 %v3716, 0.0
  %v3742 = vmax.f32 %v3717, 0.0
  %v3743 = vmax.f32 %v3718, 0.0
  %v3744 = vmax.f32 %v3719, 0.0
  %v3745 = vmax.f32 %v3720, 0.0
  %v3746 = vmax.f32 %v3721, 0.0
  %v3747 = vmax.f32 %v3722, 0.0
  %v3748 = vmax.f32 %v3723, 0.0
  %v3749 = vmax.f32 %v3724, 0.0
  %v3750 = vmax.f32 %v3725, 0.0
  %v3751 = vmax.f32 %v3726, 0.0
  %v3752 = vmax.f32 %v3727, 0.0
  %v3753 = vpack.c.bf16 %v3728, %v3728
  %v3754 = vpack.c.bf16 %v3729, %v3729
  %v3755 = vpack.c.bf16 %v3730, %v3730
  %v3756 = vpack.c.bf16 %v3731, %v3731
  %v3757 = vpack.c.bf16 %v3732, %v3732
  %v3758 = vpack.c.bf16 %v3733, %v3733
  %v3759 = vpack.c.bf16 %v3734, %v3734
  %v3760 = vpack.c.bf16 %v3735, %v3735
  %v3761 = vpack.c.bf16 %v3736, %v3736
  %v3762 = vpack.c.bf16 %v3737, %v3737
  %v3763 = vpack.c.bf16 %v3738, %v3738
  %v3764 = vpack.c.bf16 %v3739, %v3739
  %v3765 = vpack.c.bf16 %v3740, %v3740
  %v3766 = vpack.c.bf16 %v3741, %v3741
  %v3767 = vpack.c.bf16 %v3742, %v3742
  %v3768 = vpack.c.bf16 %v3743, %v3743
  %v3769 = vpack.c.bf16 %v3744, %v3744
  %v3770 = vpack.c.bf16 %v3745, %v3745
  %v3771 = vpack.c.bf16 %v3746, %v3746
  %v3772 = vpack.c.bf16 %v3747, %v3747
  %v3773 = vpack.c.bf16 %v3748, %v3748
  %v3774 = vpack.c.bf16 %v3749, %v3749
  %v3775 = vpack.c.bf16 %v3750, %v3750
  %v3776 = vpack.c.bf16 %v3751, %v3751
  %v3777 = vpack.c.bf16 %v3752, %v3752
  %3778 = vst.msk [vmem:[%s3 + $0x12c] sm:$0xf] %vm975, %v3753
  %3779 = vst.msk [vmem:[%s3 + $0x130] sm:$0xf] %vm975, %v3754
  %3780 = vst.msk [vmem:[%s3 + $0x134] sm:$0xf] %vm975, %v3755
  %3781 = vst.msk [vmem:[%s3 + $0x138] sm:$0xf] %vm975, %v3756
  %3782 = vst.msk [vmem:[%s3 + $0x13c] sm:$0xf] %vm975, %v3757
  %3783 = vst.msk [vmem:[%s3 + $0x140] sm:$0xf] %vm975, %v3758
  %3784 = vst.msk [vmem:[%s3 + $0x144] sm:$0xf] %vm975, %v3759
  %3785 = vst.msk [vmem:[%s3 + $0x148] sm:$0xf] %vm975, %v3760
  %3786 = vst.msk [vmem:[%s3 + $0x14c] sm:$0xf] %vm975, %v3761
  %3787 = vst.msk [vmem:[%s3 + $0x150] sm:$0xf] %vm975, %v3762
  %3788 = vst.msk [vmem:[%s3 + $0x154] sm:$0xf] %vm975, %v3763
  %3789 = vst.msk [vmem:[%s3 + $0x158] sm:$0xf] %vm975, %v3764
  %3790 = vst.msk [vmem:[%s3 + $0x15c] sm:$0xf] %vm975, %v3765
  %3791 = vst.msk [vmem:[%s3 + $0x160] sm:$0xf] %vm975, %v3766
  %3792 = vst.msk [vmem:[%s3 + $0x164] sm:$0xf] %vm975, %v3767
  %3793 = vst.msk [vmem:[%s3 + $0x168] sm:$0xf] %vm975, %v3768
  %3794 = vst.msk [vmem:[%s3 + $0x16c] sm:$0xf] %vm975, %v3769
  %3795 = vst.msk [vmem:[%s3 + $0x170] sm:$0xf] %vm975, %v3770
  %3796 = vst.msk [vmem:[%s3 + $0x174] sm:$0xf] %vm975, %v3771
  %3797 = vst.msk [vmem:[%s3 + $0x178] sm:$0xf] %vm975, %v3772
  %3798 = vst.msk [vmem:[%s3 + $0x17c] sm:$0xf] %vm975, %v3773
  %3799 = vst.msk [vmem:[%s3 + $0x180] sm:$0xf] %vm975, %v3774
  %3800 = vst.msk [vmem:[%s3 + $0x184] sm:$0xf] %vm975, %v3775
  %3801 = vst.msk [vmem:[%s3 + $0x188] sm:$0xf] %vm975, %v3776
  %3802 = vst.msk [vmem:[%s3 + $0x18c] sm:$0xf] %vm975, %v3777
  %v3803 = vld [vmem:[%s0 + $0x640] sm:$0xf]
  %v3804 = vld [vmem:[%s0 + $0x644] sm:$0xf]
  %v3805 = vld [vmem:[%s0 + $0x648] sm:$0xf]
  %v3806 = vld [vmem:[%s0 + $0x64c] sm:$0xf]
  %v3807 = vld [vmem:[%s0 + $0x650] sm:$0xf]
  %v3808 = vld [vmem:[%s0 + $0x654] sm:$0xf]
  %v3809 = vld [vmem:[%s0 + $0x658] sm:$0xf]
  %v3810 = vld [vmem:[%s0 + $0x65c] sm:$0xf]
  %v3811 = vld [vmem:[%s0 + $0x660] sm:$0xf]
  %v3812 = vld [vmem:[%s0 + $0x664] sm:$0xf]
  %v3813 = vld [vmem:[%s0 + $0x668] sm:$0xf]
  %v3814 = vld [vmem:[%s0 + $0x66c] sm:$0xf]
  %v3815 = vld [vmem:[%s0 + $0x670] sm:$0xf]
  %v3816 = vld [vmem:[%s0 + $0x674] sm:$0xf]
  %v3817 = vld [vmem:[%s0 + $0x678] sm:$0xf]
  %v3818 = vld [vmem:[%s0 + $0x67c] sm:$0xf]
  %v3819 = vld [vmem:[%s0 + $0x680] sm:$0xf]
  %v3820 = vld [vmem:[%s0 + $0x684] sm:$0xf]
  %v3821 = vld [vmem:[%s0 + $0x688] sm:$0xf]
  %v3822 = vld [vmem:[%s0 + $0x68c] sm:$0xf]
  %v3823 = vld [vmem:[%s0 + $0x690] sm:$0xf]
  %v3824 = vld [vmem:[%s0 + $0x694] sm:$0xf]
  %v3825 = vld [vmem:[%s0 + $0x698] sm:$0xf]
  %v3826 = vld [vmem:[%s0 + $0x69c] sm:$0xf]
  %v3827 = vld [vmem:[%s0 + $0x6a0] sm:$0xf]
  %v3828 = vld [vmem:[%s0 + $0x6a4] sm:$0xf]
  %v3829 = vld [vmem:[%s0 + $0x6a8] sm:$0xf]
  %v3830 = vld [vmem:[%s0 + $0x6ac] sm:$0xf]
  %v3831 = vld [vmem:[%s0 + $0x6b0] sm:$0xf]
  %v3832 = vld [vmem:[%s0 + $0x6b4] sm:$0xf]
  %v3833 = vld [vmem:[%s0 + $0x6b8] sm:$0xf]
  %v3834 = vld [vmem:[%s0 + $0x6bc] sm:$0xf]
  %v3835 = vld [vmem:[%s0 + $0x6c0] sm:$0xf]
  %v3836 = vld [vmem:[%s0 + $0x6c4] sm:$0xf]
  %v3837 = vld [vmem:[%s0 + $0x6c8] sm:$0xf]
  %v3838 = vld [vmem:[%s0 + $0x6cc] sm:$0xf]
  %v3839 = vld [vmem:[%s0 + $0x6d0] sm:$0xf]
  %v3840 = vld [vmem:[%s0 + $0x6d4] sm:$0xf]
  %v3841 = vld [vmem:[%s0 + $0x6d8] sm:$0xf]
  %v3842 = vld [vmem:[%s0 + $0x6dc] sm:$0xf]
  %v3843 = vld [vmem:[%s0 + $0x6e0] sm:$0xf]
  %v3844 = vld [vmem:[%s0 + $0x6e4] sm:$0xf]
  %v3845 = vld [vmem:[%s0 + $0x6e8] sm:$0xf]
  %v3846 = vld [vmem:[%s0 + $0x6ec] sm:$0xf]
  %v3847 = vld [vmem:[%s0 + $0x6f0] sm:$0xf]
  %v3848 = vld [vmem:[%s0 + $0x6f4] sm:$0xf]
  %v3849 = vld [vmem:[%s0 + $0x6f8] sm:$0xf]
  %v3850 = vld [vmem:[%s0 + $0x6fc] sm:$0xf]
  %v3851 = vld [vmem:[%s0 + $0x700] sm:$0xf]
  %v3852 = vld [vmem:[%s0 + $0x704] sm:$0xf]
  %v3853 = vld [vmem:[%s0 + $0x708] sm:$0xf]
  %v3854 = vld [vmem:[%s0 + $0x70c] sm:$0xf]
  %v3855 = vld [vmem:[%s0 + $0x710] sm:$0xf]
  %v3856 = vld [vmem:[%s0 + $0x714] sm:$0xf]
  %v3857 = vld [vmem:[%s0 + $0x718] sm:$0xf]
  %v3858 = vld [vmem:[%s0 + $0x71c] sm:$0xf]
  %v3859 = vld [vmem:[%s0 + $0x720] sm:$0xf]
  %v3860 = vld [vmem:[%s0 + $0x724] sm:$0xf]
  %v3861 = vld [vmem:[%s0 + $0x728] sm:$0xf]
  %v3862 = vld [vmem:[%s0 + $0x72c] sm:$0xf]
  %v3863 = vld [vmem:[%s0 + $0x730] sm:$0xf]
  %v3864 = vld [vmem:[%s0 + $0x734] sm:$0xf]
  %v3865 = vld [vmem:[%s0 + $0x738] sm:$0xf]
  %v3866 = vld [vmem:[%s0 + $0x73c] sm:$0xf]
  %v3867 = vld [vmem:[%s0 + $0x740] sm:$0xf]
  %v3868 = vld [vmem:[%s0 + $0x744] sm:$0xf]
  %v3869 = vld [vmem:[%s0 + $0x748] sm:$0xf]
  %v3870 = vld [vmem:[%s0 + $0x74c] sm:$0xf]
  %v3871 = vld [vmem:[%s0 + $0x750] sm:$0xf]
  %v3872 = vld [vmem:[%s0 + $0x754] sm:$0xf]
  %v3873 = vld [vmem:[%s0 + $0x758] sm:$0xf]
  %v3874 = vld [vmem:[%s0 + $0x75c] sm:$0xf]
  %v3875 = vld [vmem:[%s0 + $0x760] sm:$0xf]
  %v3876 = vld [vmem:[%s0 + $0x764] sm:$0xf]
  %v3877 = vld [vmem:[%s0 + $0x768] sm:$0xf]
  %v3878 = vld [vmem:[%s0 + $0x76c] sm:$0xf]
  %v3879 = vld [vmem:[%s0 + $0x770] sm:$0xf]
  %v3880 = vld [vmem:[%s0 + $0x774] sm:$0xf]
  %v3881 = vld [vmem:[%s0 + $0x778] sm:$0xf]
  %v3882 = vld [vmem:[%s0 + $0x77c] sm:$0xf]
  %v3883 = vld [vmem:[%s0 + $0x780] sm:$0xf]
  %v3884 = vld [vmem:[%s0 + $0x784] sm:$0xf]
  %v3885 = vld [vmem:[%s0 + $0x788] sm:$0xf]
  %v3886 = vld [vmem:[%s0 + $0x78c] sm:$0xf]
  %v3887 = vld [vmem:[%s0 + $0x790] sm:$0xf]
  %v3888 = vld [vmem:[%s0 + $0x794] sm:$0xf]
  %v3889 = vld [vmem:[%s0 + $0x798] sm:$0xf]
  %v3890 = vld [vmem:[%s0 + $0x79c] sm:$0xf]
  %v3891 = vld [vmem:[%s0 + $0x7a0] sm:$0xf]
  %v3892 = vld [vmem:[%s0 + $0x7a4] sm:$0xf]
  %v3893 = vld [vmem:[%s0 + $0x7a8] sm:$0xf]
  %v3894 = vld [vmem:[%s0 + $0x7ac] sm:$0xf]
  %v3895 = vld [vmem:[%s0 + $0x7b0] sm:$0xf]
  %v3896 = vld [vmem:[%s0 + $0x7b4] sm:$0xf]
  %v3897 = vld [vmem:[%s0 + $0x7b8] sm:$0xf]
  %v3898 = vld [vmem:[%s0 + $0x7bc] sm:$0xf]
  %v3899 = vld [vmem:[%s0 + $0x7c0] sm:$0xf]
  %v3900 = vld [vmem:[%s0 + $0x7c4] sm:$0xf]
  %v3901 = vld [vmem:[%s0 + $0x7c8] sm:$0xf]
  %v3902 = vld [vmem:[%s0 + $0x7cc] sm:$0xf]
  %v4003 = vunpack.c.l.b16 %v3803
  %v4004 = vunpack.c.l.b16 %v3804
  %v4005 = vunpack.c.l.b16 %v3805
  %v4006 = vunpack.c.l.b16 %v3806
  %v4007 = vunpack.c.l.b16 %v3807
  %v4008 = vunpack.c.l.b16 %v3808
  %v4009 = vunpack.c.l.b16 %v3809
  %v4010 = vunpack.c.l.b16 %v3810
  %v4011 = vunpack.c.l.b16 %v3811
  %v4012 = vunpack.c.l.b16 %v3812
  %v4013 = vunpack.c.l.b16 %v3813
  %v4014 = vunpack.c.l.b16 %v3814
  %v4015 = vunpack.c.l.b16 %v3815
  %v4016 = vunpack.c.l.b16 %v3816
  %v4017 = vunpack.c.l.b16 %v3817
  %v4018 = vunpack.c.l.b16 %v3818
  %v4019 = vunpack.c.l.b16 %v3819
  %v4020 = vunpack.c.l.b16 %v3820
  %v4021 = vunpack.c.l.b16 %v3821
  %v4022 = vunpack.c.l.b16 %v3822
  %v4023 = vunpack.c.l.b16 %v3823
  %v4024 = vunpack.c.l.b16 %v3824
  %v4025 = vunpack.c.l.b16 %v3825
  %v4026 = vunpack.c.l.b16 %v3826
  %v4027 = vunpack.c.l.b16 %v3827
  %v4028 = vunpack.c.l.b16 %v3828
  %v4029 = vunpack.c.l.b16 %v3829
  %v4030 = vunpack.c.l.b16 %v3830
  %v4031 = vunpack.c.l.b16 %v3831
  %v4032 = vunpack.c.l.b16 %v3832
  %v4033 = vunpack.c.l.b16 %v3833
  %v4034 = vunpack.c.l.b16 %v3834
  %v4035 = vunpack.c.l.b16 %v3835
  %v4036 = vunpack.c.l.b16 %v3836
  %v4037 = vunpack.c.l.b16 %v3837
  %v4038 = vunpack.c.l.b16 %v3838
  %v4039 = vunpack.c.l.b16 %v3839
  %v4040 = vunpack.c.l.b16 %v3840
  %v4041 = vunpack.c.l.b16 %v3841
  %v4042 = vunpack.c.l.b16 %v3842
  %v4043 = vunpack.c.l.b16 %v3843
  %v4044 = vunpack.c.l.b16 %v3844
  %v4045 = vunpack.c.l.b16 %v3845
  %v4046 = vunpack.c.l.b16 %v3846
  %v4047 = vunpack.c.l.b16 %v3847
  %v4048 = vunpack.c.l.b16 %v3848
  %v4049 = vunpack.c.l.b16 %v3849
  %v4050 = vunpack.c.l.b16 %v3850
  %v4051 = vunpack.c.l.b16 %v3851
  %v4052 = vunpack.c.l.b16 %v3852
  %v4053 = vunpack.c.l.b16 %v3853
  %v4054 = vunpack.c.l.b16 %v3854
  %v4055 = vunpack.c.l.b16 %v3855
  %v4056 = vunpack.c.l.b16 %v3856
  %v4057 = vunpack.c.l.b16 %v3857
  %v4058 = vunpack.c.l.b16 %v3858
  %v4059 = vunpack.c.l.b16 %v3859
  %v4060 = vunpack.c.l.b16 %v3860
  %v4061 = vunpack.c.l.b16 %v3861
  %v4062 = vunpack.c.l.b16 %v3862
  %v4063 = vunpack.c.l.b16 %v3863
  %v4064 = vunpack.c.l.b16 %v3864
  %v4065 = vunpack.c.l.b16 %v3865
  %v4066 = vunpack.c.l.b16 %v3866
  %v4067 = vunpack.c.l.b16 %v3867
  %v4068 = vunpack.c.l.b16 %v3868
  %v4069 = vunpack.c.l.b16 %v3869
  %v4070 = vunpack.c.l.b16 %v3870
  %v4071 = vunpack.c.l.b16 %v3871
  %v4072 = vunpack.c.l.b16 %v3872
  %v4073 = vunpack.c.l.b16 %v3873
  %v4074 = vunpack.c.l.b16 %v3874
  %v4075 = vunpack.c.l.b16 %v3875
  %v4076 = vunpack.c.l.b16 %v3876
  %v4077 = vunpack.c.l.b16 %v3877
  %v4078 = vunpack.c.l.b16 %v3878
  %v4079 = vunpack.c.l.b16 %v3879
  %v4080 = vunpack.c.l.b16 %v3880
  %v4081 = vunpack.c.l.b16 %v3881
  %v4082 = vunpack.c.l.b16 %v3882
  %v4083 = vunpack.c.l.b16 %v3883
  %v4084 = vunpack.c.l.b16 %v3884
  %v4085 = vunpack.c.l.b16 %v3885
  %v4086 = vunpack.c.l.b16 %v3886
  %v4087 = vunpack.c.l.b16 %v3887
  %v4088 = vunpack.c.l.b16 %v3888
  %v4089 = vunpack.c.l.b16 %v3889
  %v4090 = vunpack.c.l.b16 %v3890
  %v4091 = vunpack.c.l.b16 %v3891
  %v4092 = vunpack.c.l.b16 %v3892
  %v4093 = vunpack.c.l.b16 %v3893
  %v4094 = vunpack.c.l.b16 %v3894
  %v4095 = vunpack.c.l.b16 %v3895
  %v4096 = vunpack.c.l.b16 %v3896
  %v4097 = vunpack.c.l.b16 %v3897
  %v4098 = vunpack.c.l.b16 %v3898
  %v4099 = vunpack.c.l.b16 %v3899
  %v4100 = vunpack.c.l.b16 %v3900
  %v4101 = vunpack.c.l.b16 %v3901
  %v4102 = vunpack.c.l.b16 %v3902
  %v4103 = vpack.c.b16 %v4004, %v4003
  %v4104 = vpack.c.b16 %v4006, %v4005
  %v4105 = vpack.c.b16 %v4008, %v4007
  %v4106 = vpack.c.b16 %v4010, %v4009
  %v4107 = vpack.c.b16 %v4012, %v4011
  %v4108 = vpack.c.b16 %v4014, %v4013
  %v4109 = vpack.c.b16 %v4016, %v4015
  %v4110 = vpack.c.b16 %v4018, %v4017
  %v4111 = vpack.c.b16 %v4020, %v4019
  %v4112 = vpack.c.b16 %v4022, %v4021
  %v4113 = vpack.c.b16 %v4024, %v4023
  %v4114 = vpack.c.b16 %v4026, %v4025
  %v4115 = vpack.c.b16 %v4028, %v4027
  %v4116 = vpack.c.b16 %v4030, %v4029
  %v4117 = vpack.c.b16 %v4032, %v4031
  %v4118 = vpack.c.b16 %v4034, %v4033
  %v4119 = vpack.c.b16 %v4036, %v4035
  %v4120 = vpack.c.b16 %v4038, %v4037
  %v4121 = vpack.c.b16 %v4040, %v4039
  %v4122 = vpack.c.b16 %v4042, %v4041
  %v4123 = vpack.c.b16 %v4044, %v4043
  %v4124 = vpack.c.b16 %v4046, %v4045
  %v4125 = vpack.c.b16 %v4048, %v4047
  %v4126 = vpack.c.b16 %v4050, %v4049
  %v4127 = vpack.c.b16 %v4052, %v4051
  %v4128 = vpack.c.b16 %v4054, %v4053
  %v4129 = vpack.c.b16 %v4056, %v4055
  %v4130 = vpack.c.b16 %v4058, %v4057
  %v4131 = vpack.c.b16 %v4060, %v4059
  %v4132 = vpack.c.b16 %v4062, %v4061
  %v4133 = vpack.c.b16 %v4064, %v4063
  %v4134 = vpack.c.b16 %v4066, %v4065
  %v4135 = vpack.c.b16 %v4068, %v4067
  %v4136 = vpack.c.b16 %v4070, %v4069
  %v4137 = vpack.c.b16 %v4072, %v4071
  %v4138 = vpack.c.b16 %v4074, %v4073
  %v4139 = vpack.c.b16 %v4076, %v4075
  %v4140 = vpack.c.b16 %v4078, %v4077
  %v4141 = vpack.c.b16 %v4080, %v4079
  %v4142 = vpack.c.b16 %v4082, %v4081
  %v4143 = vpack.c.b16 %v4084, %v4083
  %v4144 = vpack.c.b16 %v4086, %v4085
  %v4145 = vpack.c.b16 %v4088, %v4087
  %v4146 = vpack.c.b16 %v4090, %v4089
  %v4147 = vpack.c.b16 %v4092, %v4091
  %v4148 = vpack.c.b16 %v4094, %v4093
  %v4149 = vpack.c.b16 %v4096, %v4095
  %v4150 = vpack.c.b16 %v4098, %v4097
  %v4151 = vpack.c.b16 %v4100, %v4099
  %v4152 = vpack.c.b16 %v4102, %v4101
  %v4154 = vsel %vm408, %v4103, 0
  %v4157 = vsel %vm408, %v4104, 0
  %v4160 = vsel %vm408, %v4105, 0
  %v4163 = vsel %vm408, %v4106, 0
  %v4166 = vsel %vm408, %v4107, 0
  %v4169 = vsel %vm408, %v4108, 0
  %v4172 = vsel %vm408, %v4109, 0
  %v4175 = vsel %vm408, %v4110, 0
  %v4178 = vsel %vm408, %v4111, 0
  %v4181 = vsel %vm408, %v4112, 0
  %v4184 = vsel %vm408, %v4113, 0
  %v4187 = vsel %vm408, %v4114, 0
  %v4190 = vsel %vm408, %v4115, 0
  %v4193 = vsel %vm408, %v4116, 0
  %v4196 = vsel %vm408, %v4117, 0
  %v4199 = vsel %vm408, %v4118, 0
  %v4202 = vsel %vm408, %v4119, 0
  %v4205 = vsel %vm408, %v4120, 0
  %v4208 = vsel %vm408, %v4121, 0
  %v4211 = vsel %vm408, %v4122, 0
  %v4214 = vsel %vm408, %v4123, 0
  %v4217 = vsel %vm408, %v4124, 0
  %v4220 = vsel %vm408, %v4125, 0
  %v4223 = vsel %vm408, %v4126, 0
  %v4226 = vsel %vm408, %v4127, 0
  %v4229 = vsel %vm408, %v4128, 0
  %v4232 = vsel %vm408, %v4129, 0
  %v4235 = vsel %vm408, %v4130, 0
  %v4238 = vsel %vm408, %v4131, 0
  %v4241 = vsel %vm408, %v4132, 0
  %v4244 = vsel %vm408, %v4133, 0
  %v4247 = vsel %vm408, %v4134, 0
  %v4250 = vsel %vm408, %v4135, 0
  %v4253 = vsel %vm408, %v4136, 0
  %v4256 = vsel %vm408, %v4137, 0
  %v4259 = vsel %vm408, %v4138, 0
  %v4262 = vsel %vm408, %v4139, 0
  %v4265 = vsel %vm408, %v4140, 0
  %v4268 = vsel %vm408, %v4141, 0
  %v4271 = vsel %vm408, %v4142, 0
  %v4274 = vsel %vm408, %v4143, 0
  %v4277 = vsel %vm408, %v4144, 0
  %v4280 = vsel %vm408, %v4145, 0
  %v4283 = vsel %vm408, %v4146, 0
  %v4286 = vsel %vm408, %v4147, 0
  %v4289 = vsel %vm408, %v4148, 0
  %v4292 = vsel %vm408, %v4149, 0
  %v4295 = vsel %vm408, %v4150, 0
  %v4298 = vsel %vm408, %v4151, 0
  %v4301 = vsel %vm408, %v4152, 0
  %4303 = vmatpush.bf16.msra.mxu0 0
  %4304 = vmatpush.bf16.msra.mxu0 0
  %4305 = vmatpush.bf16.msra.mxu0 0
  %4306 = vmatpush.bf16.msra.mxu0 %v564
  %4307 = vmatpush.bf16.msra.mxu0 %v402
  %4308 = vmatpush.bf16.msra.mxu0 %v401
  %4309 = vmatpush.bf16.msra.mxu0 %v400
  %4310 = vmatpush.bf16.msra.mxu0 %v399
  %4311 = vmatmul.bf16.gmra.mxu0 %v4154
  %v4312 = vpop.f32.mrf.mxu0
  %v4313 = vadd.f32 0.0, %v4312
  %v4314 = vpop.f32.mrf.mxu0
  %v4315 = vadd.f32 0.0, %v4314
  %4316 = vmatmul.bf16.gmra.mxu0 %v4157
  %v4317 = vpop.f32.mrf.mxu0
  %v4318 = vadd.f32 0.0, %v4317
  %v4319 = vpop.f32.mrf.mxu0
  %v4320 = vadd.f32 0.0, %v4319
  %4321 = vmatmul.bf16.gmra.mxu0 %v4160
  %v4322 = vpop.f32.mrf.mxu0
  %v4323 = vadd.f32 0.0, %v4322
  %v4324 = vpop.f32.mrf.mxu0
  %v4325 = vadd.f32 0.0, %v4324
  %4326 = vmatmul.bf16.gmra.mxu0 %v4163
  %v4327 = vpop.f32.mrf.mxu0
  %v4328 = vadd.f32 0.0, %v4327
  %v4329 = vpop.f32.mrf.mxu0
  %v4330 = vadd.f32 0.0, %v4329
  %4331 = vmatmul.bf16.gmra.mxu0 %v4166
  %v4332 = vpop.f32.mrf.mxu0
  %v4333 = vadd.f32 0.0, %v4332
  %v4334 = vpop.f32.mrf.mxu0
  %v4335 = vadd.f32 0.0, %v4334
  %4336 = vmatmul.bf16.gmra.mxu0 %v4169
  %v4337 = vpop.f32.mrf.mxu0
  %v4338 = vadd.f32 0.0, %v4337
  %v4339 = vpop.f32.mrf.mxu0
  %v4340 = vadd.f32 0.0, %v4339
  %4341 = vmatmul.bf16.gmra.mxu0 %v4172
  %v4342 = vpop.f32.mrf.mxu0
  %v4343 = vadd.f32 0.0, %v4342
  %v4344 = vpop.f32.mrf.mxu0
  %v4345 = vadd.f32 0.0, %v4344
  %4346 = vmatmul.bf16.gmra.mxu0 %v4175
  %v4347 = vpop.f32.mrf.mxu0
  %v4348 = vadd.f32 0.0, %v4347
  %v4349 = vpop.f32.mrf.mxu0
  %v4350 = vadd.f32 0.0, %v4349
  %4351 = vmatmul.bf16.gmra.mxu0 %v4178
  %v4352 = vpop.f32.mrf.mxu0
  %v4353 = vadd.f32 0.0, %v4352
  %v4354 = vpop.f32.mrf.mxu0
  %v4355 = vadd.f32 0.0, %v4354
  %4356 = vmatmul.bf16.gmra.mxu0 %v4181
  %v4357 = vpop.f32.mrf.mxu0
  %v4358 = vadd.f32 0.0, %v4357
  %v4359 = vpop.f32.mrf.mxu0
  %v4360 = vadd.f32 0.0, %v4359
  %4361 = vmatmul.bf16.gmra.mxu0 %v4184
  %v4362 = vpop.f32.mrf.mxu0
  %v4363 = vadd.f32 0.0, %v4362
  %v4364 = vpop.f32.mrf.mxu0
  %v4365 = vadd.f32 0.0, %v4364
  %4366 = vmatmul.bf16.gmra.mxu0 %v4187
  %v4367 = vpop.f32.mrf.mxu0
  %v4368 = vadd.f32 0.0, %v4367
  %v4369 = vpop.f32.mrf.mxu0
  %v4370 = vadd.f32 0.0, %v4369
  %4371 = vmatmul.bf16.gmra.mxu0 %v4190
  %v4372 = vpop.f32.mrf.mxu0
  %v4373 = vadd.f32 0.0, %v4372
  %v4374 = vpop.f32.mrf.mxu0
  %v4375 = vadd.f32 0.0, %v4374
  %4376 = vmatmul.bf16.gmra.mxu0 %v4193
  %v4377 = vpop.f32.mrf.mxu0
  %v4378 = vadd.f32 0.0, %v4377
  %v4379 = vpop.f32.mrf.mxu0
  %v4380 = vadd.f32 0.0, %v4379
  %4381 = vmatmul.bf16.gmra.mxu0 %v4196
  %v4382 = vpop.f32.mrf.mxu0
  %v4383 = vadd.f32 0.0, %v4382
  %v4384 = vpop.f32.mrf.mxu0
  %v4385 = vadd.f32 0.0, %v4384
  %4386 = vmatmul.bf16.gmra.mxu0 %v4199
  %v4387 = vpop.f32.mrf.mxu0
  %v4388 = vadd.f32 0.0, %v4387
  %v4389 = vpop.f32.mrf.mxu0
  %v4390 = vadd.f32 0.0, %v4389
  %4391 = vmatmul.bf16.gmra.mxu0 %v4202
  %v4392 = vpop.f32.mrf.mxu0
  %v4393 = vadd.f32 0.0, %v4392
  %v4394 = vpop.f32.mrf.mxu0
  %v4395 = vadd.f32 0.0, %v4394
  %4396 = vmatmul.bf16.gmra.mxu0 %v4205
  %v4397 = vpop.f32.mrf.mxu0
  %v4398 = vadd.f32 0.0, %v4397
  %v4399 = vpop.f32.mrf.mxu0
  %v4400 = vadd.f32 0.0, %v4399
  %4401 = vmatmul.bf16.gmra.mxu0 %v4208
  %v4402 = vpop.f32.mrf.mxu0
  %v4403 = vadd.f32 0.0, %v4402
  %v4404 = vpop.f32.mrf.mxu0
  %v4405 = vadd.f32 0.0, %v4404
  %4406 = vmatmul.bf16.gmra.mxu0 %v4211
  %v4407 = vpop.f32.mrf.mxu0
  %v4408 = vadd.f32 0.0, %v4407
  %v4409 = vpop.f32.mrf.mxu0
  %v4410 = vadd.f32 0.0, %v4409
  %4411 = vmatmul.bf16.gmra.mxu0 %v4214
  %v4412 = vpop.f32.mrf.mxu0
  %v4413 = vadd.f32 0.0, %v4412
  %v4414 = vpop.f32.mrf.mxu0
  %v4415 = vadd.f32 0.0, %v4414
  %4416 = vmatmul.bf16.gmra.mxu0 %v4217
  %v4417 = vpop.f32.mrf.mxu0
  %v4418 = vadd.f32 0.0, %v4417
  %v4419 = vpop.f32.mrf.mxu0
  %v4420 = vadd.f32 0.0, %v4419
  %4421 = vmatmul.bf16.gmra.mxu0 %v4220
  %v4422 = vpop.f32.mrf.mxu0
  %v4423 = vadd.f32 0.0, %v4422
  %v4424 = vpop.f32.mrf.mxu0
  %v4425 = vadd.f32 0.0, %v4424
  %4426 = vmatmul.bf16.gmra.mxu0 %v4223
  %v4427 = vpop.f32.mrf.mxu0
  %v4428 = vadd.f32 0.0, %v4427
  %v4429 = vpop.f32.mrf.mxu0
  %v4430 = vadd.f32 0.0, %v4429
  %4431 = vmatmul.bf16.gmra.mxu0 %v4226
  %v4432 = vpop.f32.mrf.mxu0
  %v4433 = vadd.f32 0.0, %v4432
  %v4434 = vpop.f32.mrf.mxu0
  %v4435 = vadd.f32 0.0, %v4434
  %4436 = vmatmul.bf16.gmra.mxu0 %v4229
  %v4437 = vpop.f32.mrf.mxu0
  %v4438 = vadd.f32 0.0, %v4437
  %v4439 = vpop.f32.mrf.mxu0
  %v4440 = vadd.f32 0.0, %v4439
  %4441 = vmatmul.bf16.gmra.mxu0 %v4232
  %v4442 = vpop.f32.mrf.mxu0
  %v4443 = vadd.f32 0.0, %v4442
  %v4444 = vpop.f32.mrf.mxu0
  %v4445 = vadd.f32 0.0, %v4444
  %4446 = vmatmul.bf16.gmra.mxu0 %v4235
  %v4447 = vpop.f32.mrf.mxu0
  %v4448 = vadd.f32 0.0, %v4447
  %v4449 = vpop.f32.mrf.mxu0
  %v4450 = vadd.f32 0.0, %v4449
  %4451 = vmatmul.bf16.gmra.mxu0 %v4238
  %v4452 = vpop.f32.mrf.mxu0
  %v4453 = vadd.f32 0.0, %v4452
  %v4454 = vpop.f32.mrf.mxu0
  %v4455 = vadd.f32 0.0, %v4454
  %4456 = vmatmul.bf16.gmra.mxu0 %v4241
  %v4457 = vpop.f32.mrf.mxu0
  %v4458 = vadd.f32 0.0, %v4457
  %v4459 = vpop.f32.mrf.mxu0
  %v4460 = vadd.f32 0.0, %v4459
  %4461 = vmatmul.bf16.gmra.mxu0 %v4244
  %v4462 = vpop.f32.mrf.mxu0
  %v4463 = vadd.f32 0.0, %v4462
  %v4464 = vpop.f32.mrf.mxu0
  %v4465 = vadd.f32 0.0, %v4464
  %4466 = vmatmul.bf16.gmra.mxu0 %v4247
  %v4467 = vpop.f32.mrf.mxu0
  %v4468 = vadd.f32 0.0, %v4467
  %v4469 = vpop.f32.mrf.mxu0
  %v4470 = vadd.f32 0.0, %v4469
  %4471 = vmatmul.bf16.gmra.mxu0 %v4250
  %v4472 = vpop.f32.mrf.mxu0
  %v4473 = vadd.f32 0.0, %v4472
  %v4474 = vpop.f32.mrf.mxu0
  %v4475 = vadd.f32 0.0, %v4474
  %4476 = vmatmul.bf16.gmra.mxu0 %v4253
  %v4477 = vpop.f32.mrf.mxu0
  %v4478 = vadd.f32 0.0, %v4477
  %v4479 = vpop.f32.mrf.mxu0
  %v4480 = vadd.f32 0.0, %v4479
  %4481 = vmatmul.bf16.gmra.mxu0 %v4256
  %v4482 = vpop.f32.mrf.mxu0
  %v4483 = vadd.f32 0.0, %v4482
  %v4484 = vpop.f32.mrf.mxu0
  %v4485 = vadd.f32 0.0, %v4484
  %4486 = vmatmul.bf16.gmra.mxu0 %v4259
  %v4487 = vpop.f32.mrf.mxu0
  %v4488 = vadd.f32 0.0, %v4487
  %v4489 = vpop.f32.mrf.mxu0
  %v4490 = vadd.f32 0.0, %v4489
  %4491 = vmatmul.bf16.gmra.mxu0 %v4262
  %v4492 = vpop.f32.mrf.mxu0
  %v4493 = vadd.f32 0.0, %v4492
  %v4494 = vpop.f32.mrf.mxu0
  %v4495 = vadd.f32 0.0, %v4494
  %4496 = vmatmul.bf16.gmra.mxu0 %v4265
  %v4497 = vpop.f32.mrf.mxu0
  %v4498 = vadd.f32 0.0, %v4497
  %v4499 = vpop.f32.mrf.mxu0
  %v4500 = vadd.f32 0.0, %v4499
  %4501 = vmatmul.bf16.gmra.mxu0 %v4268
  %v4502 = vpop.f32.mrf.mxu0
  %v4503 = vadd.f32 0.0, %v4502
  %v4504 = vpop.f32.mrf.mxu0
  %v4505 = vadd.f32 0.0, %v4504
  %4506 = vmatmul.bf16.gmra.mxu0 %v4271
  %v4507 = vpop.f32.mrf.mxu0
  %v4508 = vadd.f32 0.0, %v4507
  %v4509 = vpop.f32.mrf.mxu0
  %v4510 = vadd.f32 0.0, %v4509
  %4511 = vmatmul.bf16.gmra.mxu0 %v4274
  %v4512 = vpop.f32.mrf.mxu0
  %v4513 = vadd.f32 0.0, %v4512
  %v4514 = vpop.f32.mrf.mxu0
  %v4515 = vadd.f32 0.0, %v4514
  %4516 = vmatmul.bf16.gmra.mxu0 %v4277
  %v4517 = vpop.f32.mrf.mxu0
  %v4518 = vadd.f32 0.0, %v4517
  %v4519 = vpop.f32.mrf.mxu0
  %v4520 = vadd.f32 0.0, %v4519
  %4521 = vmatmul.bf16.gmra.mxu0 %v4280
  %v4522 = vpop.f32.mrf.mxu0
  %v4523 = vadd.f32 0.0, %v4522
  %v4524 = vpop.f32.mrf.mxu0
  %v4525 = vadd.f32 0.0, %v4524
  %4526 = vmatmul.bf16.gmra.mxu0 %v4283
  %v4527 = vpop.f32.mrf.mxu0
  %v4528 = vadd.f32 0.0, %v4527
  %v4529 = vpop.f32.mrf.mxu0
  %v4530 = vadd.f32 0.0, %v4529
  %4531 = vmatmul.bf16.gmra.mxu0 %v4286
  %v4532 = vpop.f32.mrf.mxu0
  %v4533 = vadd.f32 0.0, %v4532
  %v4534 = vpop.f32.mrf.mxu0
  %v4535 = vadd.f32 0.0, %v4534
  %4536 = vmatmul.bf16.gmra.mxu0 %v4289
  %v4537 = vpop.f32.mrf.mxu0
  %v4538 = vadd.f32 0.0, %v4537
  %v4539 = vpop.f32.mrf.mxu0
  %v4540 = vadd.f32 0.0, %v4539
  %4541 = vmatmul.bf16.gmra.mxu0 %v4292
  %v4542 = vpop.f32.mrf.mxu0
  %v4543 = vadd.f32 0.0, %v4542
  %v4544 = vpop.f32.mrf.mxu0
  %v4545 = vadd.f32 0.0, %v4544
  %4546 = vmatmul.bf16.gmra.mxu0 %v4295
  %v4547 = vpop.f32.mrf.mxu0
  %v4548 = vadd.f32 0.0, %v4547
  %v4549 = vpop.f32.mrf.mxu0
  %v4550 = vadd.f32 0.0, %v4549
  %4551 = vmatmul.bf16.gmra.mxu0 %v4298
  %v4552 = vpop.f32.mrf.mxu0
  %v4553 = vadd.f32 0.0, %v4552
  %v4554 = vpop.f32.mrf.mxu0
  %v4555 = vadd.f32 0.0, %v4554
  %4556 = vmatmul.bf16.gmra.mxu0 %v4301
  %v4557 = vpop.f32.mrf.mxu0
  %v4558 = vadd.f32 0.0, %v4557
  %v4559 = vpop.f32.mrf.mxu0
  %v4560 = vadd.f32 0.0, %v4559
  %4561 = vdwg.mxu0
  %v4562 = vmax.f32 %v4313, %v4375
  %v4563 = vmax.f32 %v4315, %v4378
  %v4564 = vmax.f32 %v4318, %v4380
  %v4565 = vmax.f32 %v4320, %v4383
  %v4566 = vmax.f32 %v4323, %v4385
  %v4567 = vmax.f32 %v4325, %v4388
  %v4568 = vmax.f32 %v4328, %v4390
  %v4569 = vmax.f32 %v4330, %v4393
  %v4570 = vmax.f32 %v4333, %v4395
  %v4571 = vmax.f32 %v4335, %v4398
  %v4572 = vmax.f32 %v4338, %v4400
  %v4573 = vmax.f32 %v4340, %v4403
  %v4574 = vmax.f32 %v4343, %v4405
  %v4575 = vmax.f32 %v4345, %v4408
  %v4576 = vmax.f32 %v4348, %v4410
  %v4577 = vmax.f32 %v4350, %v4413
  %v4578 = vmax.f32 %v4353, %v4415
  %v4579 = vmax.f32 %v4355, %v4418
  %v4580 = vmax.f32 %v4358, %v4420
  %v4581 = vmax.f32 %v4360, %v4423
  %v4582 = vmax.f32 %v4363, %v4425
  %v4583 = vmax.f32 %v4365, %v4428
  %v4584 = vmax.f32 %v4368, %v4430
  %v4585 = vmax.f32 %v4370, %v4433
  %v4586 = vmax.f32 %v4373, %v4435
  %v4587 = vmax.f32 %v4438, %v4500
  %v4588 = vmax.f32 %v4440, %v4503
  %v4589 = vmax.f32 %v4443, %v4505
  %v4590 = vmax.f32 %v4445, %v4508
  %v4591 = vmax.f32 %v4448, %v4510
  %v4592 = vmax.f32 %v4450, %v4513
  %v4593 = vmax.f32 %v4453, %v4515
  %v4594 = vmax.f32 %v4455, %v4518
  %v4595 = vmax.f32 %v4458, %v4520
  %v4596 = vmax.f32 %v4460, %v4523
  %v4597 = vmax.f32 %v4463, %v4525
  %v4598 = vmax.f32 %v4465, %v4528
  %v4599 = vmax.f32 %v4468, %v4530
  %v4600 = vmax.f32 %v4470, %v4533
  %v4601 = vmax.f32 %v4473, %v4535
  %v4602 = vmax.f32 %v4475, %v4538
  %v4603 = vmax.f32 %v4478, %v4540
  %v4604 = vmax.f32 %v4480, %v4543
  %v4605 = vmax.f32 %v4483, %v4545
  %v4606 = vmax.f32 %v4485, %v4548
  %v4607 = vmax.f32 %v4488, %v4550
  %v4608 = vmax.f32 %v4490, %v4553
  %v4609 = vmax.f32 %v4493, %v4555
  %v4610 = vmax.f32 %v4495, %v4558
  %v4611 = vmax.f32 %v4498, %v4560
  %v4612 = vmax.f32 %v4562, %v4587
  %v4613 = vmax.f32 %v4563, %v4588
  %v4614 = vmax.f32 %v4564, %v4589
  %v4615 = vmax.f32 %v4565, %v4590
  %v4616 = vmax.f32 %v4566, %v4591
  %v4617 = vmax.f32 %v4567, %v4592
  %v4618 = vmax.f32 %v4568, %v4593
  %v4619 = vmax.f32 %v4569, %v4594
  %v4620 = vmax.f32 %v4570, %v4595
  %v4621 = vmax.f32 %v4571, %v4596
  %v4622 = vmax.f32 %v4572, %v4597
  %v4623 = vmax.f32 %v4573, %v4598
  %v4624 = vmax.f32 %v4574, %v4599
  %v4625 = vmax.f32 %v4575, %v4600
  %v4626 = vmax.f32 %v4576, %v4601
  %v4627 = vmax.f32 %v4577, %v4602
  %v4628 = vmax.f32 %v4578, %v4603
  %v4629 = vmax.f32 %v4579, %v4604
  %v4630 = vmax.f32 %v4580, %v4605
  %v4631 = vmax.f32 %v4581, %v4606
  %v4632 = vmax.f32 %v4582, %v4607
  %v4633 = vmax.f32 %v4583, %v4608
  %v4634 = vmax.f32 %v4584, %v4609
  %v4635 = vmax.f32 %v4585, %v4610
  %v4636 = vmax.f32 %v4586, %v4611
  %v4637 = vadd.f32 %v4612, %v27
  %v4638 = vadd.f32 %v4613, %v27
  %v4639 = vadd.f32 %v4614, %v27
  %v4640 = vadd.f32 %v4615, %v27
  %v4641 = vadd.f32 %v4616, %v27
  %v4642 = vadd.f32 %v4617, %v27
  %v4643 = vadd.f32 %v4618, %v27
  %v4644 = vadd.f32 %v4619, %v27
  %v4645 = vadd.f32 %v4620, %v27
  %v4646 = vadd.f32 %v4621, %v27
  %v4647 = vadd.f32 %v4622, %v27
  %v4648 = vadd.f32 %v4623, %v27
  %v4649 = vadd.f32 %v4624, %v27
  %v4650 = vadd.f32 %v4625, %v27
  %v4651 = vadd.f32 %v4626, %v27
  %v4652 = vadd.f32 %v4627, %v27
  %v4653 = vadd.f32 %v4628, %v27
  %v4654 = vadd.f32 %v4629, %v27
  %v4655 = vadd.f32 %v4630, %v27
  %v4656 = vadd.f32 %v4631, %v27
  %v4657 = vadd.f32 %v4632, %v27
  %v4658 = vadd.f32 %v4633, %v27
  %v4659 = vadd.f32 %v4634, %v27
  %v4660 = vadd.f32 %v4635, %v27
  %v4661 = vadd.f32 %v4636, %v27
  %v4662 = vmax.f32 %v4637, 0.0
  %v4663 = vmax.f32 %v4638, 0.0
  %v4664 = vmax.f32 %v4639, 0.0
  %v4665 = vmax.f32 %v4640, 0.0
  %v4666 = vmax.f32 %v4641, 0.0
  %v4667 = vmax.f32 %v4642, 0.0
  %v4668 = vmax.f32 %v4643, 0.0
  %v4669 = vmax.f32 %v4644, 0.0
  %v4670 = vmax.f32 %v4645, 0.0
  %v4671 = vmax.f32 %v4646, 0.0
  %v4672 = vmax.f32 %v4647, 0.0
  %v4673 = vmax.f32 %v4648, 0.0
  %v4674 = vmax.f32 %v4649, 0.0
  %v4675 = vmax.f32 %v4650, 0.0
  %v4676 = vmax.f32 %v4651, 0.0
  %v4677 = vmax.f32 %v4652, 0.0
  %v4678 = vmax.f32 %v4653, 0.0
  %v4679 = vmax.f32 %v4654, 0.0
  %v4680 = vmax.f32 %v4655, 0.0
  %v4681 = vmax.f32 %v4656, 0.0
  %v4682 = vmax.f32 %v4657, 0.0
  %v4683 = vmax.f32 %v4658, 0.0
  %v4684 = vmax.f32 %v4659, 0.0
  %v4685 = vmax.f32 %v4660, 0.0
  %v4686 = vmax.f32 %v4661, 0.0
  %v4687 = vpack.c.bf16 %v4662, %v4662
  %v4688 = vpack.c.bf16 %v4663, %v4663
  %v4689 = vpack.c.bf16 %v4664, %v4664
  %v4690 = vpack.c.bf16 %v4665, %v4665
  %v4691 = vpack.c.bf16 %v4666, %v4666
  %v4692 = vpack.c.bf16 %v4667, %v4667
  %v4693 = vpack.c.bf16 %v4668, %v4668
  %v4694 = vpack.c.bf16 %v4669, %v4669
  %v4695 = vpack.c.bf16 %v4670, %v4670
  %v4696 = vpack.c.bf16 %v4671, %v4671
  %v4697 = vpack.c.bf16 %v4672, %v4672
  %v4698 = vpack.c.bf16 %v4673, %v4673
  %v4699 = vpack.c.bf16 %v4674, %v4674
  %v4700 = vpack.c.bf16 %v4675, %v4675
  %v4701 = vpack.c.bf16 %v4676, %v4676
  %v4702 = vpack.c.bf16 %v4677, %v4677
  %v4703 = vpack.c.bf16 %v4678, %v4678
  %v4704 = vpack.c.bf16 %v4679, %v4679
  %v4705 = vpack.c.bf16 %v4680, %v4680
  %v4706 = vpack.c.bf16 %v4681, %v4681
  %v4707 = vpack.c.bf16 %v4682, %v4682
  %v4708 = vpack.c.bf16 %v4683, %v4683
  %v4709 = vpack.c.bf16 %v4684, %v4684
  %v4710 = vpack.c.bf16 %v4685, %v4685
  %v4711 = vpack.c.bf16 %v4686, %v4686
  %4712 = vst.msk [vmem:[%s3 + $0x190] sm:$0xf] %vm975, %v4687
  %4713 = vst.msk [vmem:[%s3 + $0x194] sm:$0xf] %vm975, %v4688
  %4714 = vst.msk [vmem:[%s3 + $0x198] sm:$0xf] %vm975, %v4689
  %4715 = vst.msk [vmem:[%s3 + $0x19c] sm:$0xf] %vm975, %v4690
  %4716 = vst.msk [vmem:[%s3 + $0x1a0] sm:$0xf] %vm975, %v4691
  %4717 = vst.msk [vmem:[%s3 + $0x1a4] sm:$0xf] %vm975, %v4692
  %4718 = vst.msk [vmem:[%s3 + $0x1a8] sm:$0xf] %vm975, %v4693
  %4719 = vst.msk [vmem:[%s3 + $0x1ac] sm:$0xf] %vm975, %v4694
  %4720 = vst.msk [vmem:[%s3 + $0x1b0] sm:$0xf] %vm975, %v4695
  %4721 = vst.msk [vmem:[%s3 + $0x1b4] sm:$0xf] %vm975, %v4696
  %4722 = vst.msk [vmem:[%s3 + $0x1b8] sm:$0xf] %vm975, %v4697
  %4723 = vst.msk [vmem:[%s3 + $0x1bc] sm:$0xf] %vm975, %v4698
  %4724 = vst.msk [vmem:[%s3 + $0x1c0] sm:$0xf] %vm975, %v4699
  %4725 = vst.msk [vmem:[%s3 + $0x1c4] sm:$0xf] %vm975, %v4700
  %4726 = vst.msk [vmem:[%s3 + $0x1c8] sm:$0xf] %vm975, %v4701
  %4727 = vst.msk [vmem:[%s3 + $0x1cc] sm:$0xf] %vm975, %v4702
  %4728 = vst.msk [vmem:[%s3 + $0x1d0] sm:$0xf] %vm975, %v4703
  %4729 = vst.msk [vmem:[%s3 + $0x1d4] sm:$0xf] %vm975, %v4704
  %4730 = vst.msk [vmem:[%s3 + $0x1d8] sm:$0xf] %vm975, %v4705
  %4731 = vst.msk [vmem:[%s3 + $0x1dc] sm:$0xf] %vm975, %v4706
  %4732 = vst.msk [vmem:[%s3 + $0x1e0] sm:$0xf] %vm975, %v4707
  %4733 = vst.msk [vmem:[%s3 + $0x1e4] sm:$0xf] %vm975, %v4708
  %4734 = vst.msk [vmem:[%s3 + $0x1e8] sm:$0xf] %vm975, %v4709
  %4735 = vst.msk [vmem:[%s3 + $0x1ec] sm:$0xf] %vm975, %v4710
  %4736 = vst.msk [vmem:[%s3 + $0x1f0] sm:$0xf] %vm975, %v4711
  %v4737 = vld [vmem:[%s0 + $0x7d0] sm:$0xf]
  %v4738 = vld [vmem:[%s0 + $0x7d4] sm:$0xf]
  %v4739 = vld [vmem:[%s0 + $0x7d8] sm:$0xf]
  %v4740 = vld [vmem:[%s0 + $0x7dc] sm:$0xf]
  %v4741 = vld [vmem:[%s0 + $0x7e0] sm:$0xf]
  %v4742 = vld [vmem:[%s0 + $0x7e4] sm:$0xf]
  %v4743 = vld [vmem:[%s0 + $0x7e8] sm:$0xf]
  %v4744 = vld [vmem:[%s0 + $0x7ec] sm:$0xf]
  %v4745 = vld [vmem:[%s0 + $0x7f0] sm:$0xf]
  %v4746 = vld [vmem:[%s0 + $0x7f4] sm:$0xf]
  %v4747 = vld [vmem:[%s0 + $0x7f8] sm:$0xf]
  %v4748 = vld [vmem:[%s0 + $0x7fc] sm:$0xf]
  %v4749 = vld [vmem:[%s0 + $0x800] sm:$0xf]
  %v4750 = vld [vmem:[%s0 + $0x804] sm:$0xf]
  %v4751 = vld [vmem:[%s0 + $0x808] sm:$0xf]
  %v4752 = vld [vmem:[%s0 + $0x80c] sm:$0xf]
  %v4753 = vld [vmem:[%s0 + $0x810] sm:$0xf]
  %v4754 = vld [vmem:[%s0 + $0x814] sm:$0xf]
  %v4755 = vld [vmem:[%s0 + $0x818] sm:$0xf]
  %v4756 = vld [vmem:[%s0 + $0x81c] sm:$0xf]
  %v4757 = vld [vmem:[%s0 + $0x820] sm:$0xf]
  %v4758 = vld [vmem:[%s0 + $0x824] sm:$0xf]
  %v4759 = vld [vmem:[%s0 + $0x828] sm:$0xf]
  %v4760 = vld [vmem:[%s0 + $0x82c] sm:$0xf]
  %v4761 = vld [vmem:[%s0 + $0x830] sm:$0xf]
  %v4762 = vld [vmem:[%s0 + $0x834] sm:$0xf]
  %v4763 = vld [vmem:[%s0 + $0x838] sm:$0xf]
  %v4764 = vld [vmem:[%s0 + $0x83c] sm:$0xf]
  %v4765 = vld [vmem:[%s0 + $0x840] sm:$0xf]
  %v4766 = vld [vmem:[%s0 + $0x844] sm:$0xf]
  %v4767 = vld [vmem:[%s0 + $0x848] sm:$0xf]
  %v4768 = vld [vmem:[%s0 + $0x84c] sm:$0xf]
  %v4769 = vld [vmem:[%s0 + $0x850] sm:$0xf]
  %v4770 = vld [vmem:[%s0 + $0x854] sm:$0xf]
  %v4771 = vld [vmem:[%s0 + $0x858] sm:$0xf]
  %v4772 = vld [vmem:[%s0 + $0x85c] sm:$0xf]
  %v4773 = vld [vmem:[%s0 + $0x860] sm:$0xf]
  %v4774 = vld [vmem:[%s0 + $0x864] sm:$0xf]
  %v4775 = vld [vmem:[%s0 + $0x868] sm:$0xf]
  %v4776 = vld [vmem:[%s0 + $0x86c] sm:$0xf]
  %v4777 = vld [vmem:[%s0 + $0x870] sm:$0xf]
  %v4778 = vld [vmem:[%s0 + $0x874] sm:$0xf]
  %v4779 = vld [vmem:[%s0 + $0x878] sm:$0xf]
  %v4780 = vld [vmem:[%s0 + $0x87c] sm:$0xf]
  %v4781 = vld [vmem:[%s0 + $0x880] sm:$0xf]
  %v4782 = vld [vmem:[%s0 + $0x884] sm:$0xf]
  %v4783 = vld [vmem:[%s0 + $0x888] sm:$0xf]
  %v4784 = vld [vmem:[%s0 + $0x88c] sm:$0xf]
  %v4785 = vld [vmem:[%s0 + $0x890] sm:$0xf]
  %v4786 = vld [vmem:[%s0 + $0x894] sm:$0xf]
  %v4787 = vld [vmem:[%s0 + $0x898] sm:$0xf]
  %v4788 = vld [vmem:[%s0 + $0x89c] sm:$0xf]
  %v4789 = vld [vmem:[%s0 + $0x8a0] sm:$0xf]
  %v4790 = vld [vmem:[%s0 + $0x8a4] sm:$0xf]
  %v4791 = vld [vmem:[%s0 + $0x8a8] sm:$0xf]
  %v4792 = vld [vmem:[%s0 + $0x8ac] sm:$0xf]
  %v4793 = vld [vmem:[%s0 + $0x8b0] sm:$0xf]
  %v4794 = vld [vmem:[%s0 + $0x8b4] sm:$0xf]
  %v4795 = vld [vmem:[%s0 + $0x8b8] sm:$0xf]
  %v4796 = vld [vmem:[%s0 + $0x8bc] sm:$0xf]
  %v4797 = vld [vmem:[%s0 + $0x8c0] sm:$0xf]
  %v4798 = vld [vmem:[%s0 + $0x8c4] sm:$0xf]
  %v4799 = vld [vmem:[%s0 + $0x8c8] sm:$0xf]
  %v4800 = vld [vmem:[%s0 + $0x8cc] sm:$0xf]
  %v4801 = vld [vmem:[%s0 + $0x8d0] sm:$0xf]
  %v4802 = vld [vmem:[%s0 + $0x8d4] sm:$0xf]
  %v4803 = vld [vmem:[%s0 + $0x8d8] sm:$0xf]
  %v4804 = vld [vmem:[%s0 + $0x8dc] sm:$0xf]
  %v4805 = vld [vmem:[%s0 + $0x8e0] sm:$0xf]
  %v4806 = vld [vmem:[%s0 + $0x8e4] sm:$0xf]
  %v4807 = vld [vmem:[%s0 + $0x8e8] sm:$0xf]
  %v4808 = vld [vmem:[%s0 + $0x8ec] sm:$0xf]
  %v4809 = vld [vmem:[%s0 + $0x8f0] sm:$0xf]
  %v4810 = vld [vmem:[%s0 + $0x8f4] sm:$0xf]
  %v4811 = vld [vmem:[%s0 + $0x8f8] sm:$0xf]
  %v4812 = vld [vmem:[%s0 + $0x8fc] sm:$0xf]
  %v4813 = vld [vmem:[%s0 + $0x900] sm:$0xf]
  %v4814 = vld [vmem:[%s0 + $0x904] sm:$0xf]
  %v4815 = vld [vmem:[%s0 + $0x908] sm:$0xf]
  %v4816 = vld [vmem:[%s0 + $0x90c] sm:$0xf]
  %v4817 = vld [vmem:[%s0 + $0x910] sm:$0xf]
  %v4818 = vld [vmem:[%s0 + $0x914] sm:$0xf]
  %v4819 = vld [vmem:[%s0 + $0x918] sm:$0xf]
  %v4820 = vld [vmem:[%s0 + $0x91c] sm:$0xf]
  %v4821 = vld [vmem:[%s0 + $0x920] sm:$0xf]
  %v4822 = vld [vmem:[%s0 + $0x924] sm:$0xf]
  %v4823 = vld [vmem:[%s0 + $0x928] sm:$0xf]
  %v4824 = vld [vmem:[%s0 + $0x92c] sm:$0xf]
  %v4825 = vld [vmem:[%s0 + $0x930] sm:$0xf]
  %v4826 = vld [vmem:[%s0 + $0x934] sm:$0xf]
  %v4827 = vld [vmem:[%s0 + $0x938] sm:$0xf]
  %v4828 = vld [vmem:[%s0 + $0x93c] sm:$0xf]
  %v4829 = vld [vmem:[%s0 + $0x940] sm:$0xf]
  %v4830 = vld [vmem:[%s0 + $0x944] sm:$0xf]
  %v4831 = vld [vmem:[%s0 + $0x948] sm:$0xf]
  %v4832 = vld [vmem:[%s0 + $0x94c] sm:$0xf]
  %v4833 = vld [vmem:[%s0 + $0x950] sm:$0xf]
  %v4834 = vld [vmem:[%s0 + $0x954] sm:$0xf]
  %v4835 = vld [vmem:[%s0 + $0x958] sm:$0xf]
  %v4836 = vld [vmem:[%s0 + $0x95c] sm:$0xf]
  %v4937 = vunpack.c.l.b16 %v4737
  %v4938 = vunpack.c.l.b16 %v4738
  %v4939 = vunpack.c.l.b16 %v4739
  %v4940 = vunpack.c.l.b16 %v4740
  %v4941 = vunpack.c.l.b16 %v4741
  %v4942 = vunpack.c.l.b16 %v4742
  %v4943 = vunpack.c.l.b16 %v4743
  %v4944 = vunpack.c.l.b16 %v4744
  %v4945 = vunpack.c.l.b16 %v4745
  %v4946 = vunpack.c.l.b16 %v4746
  %v4947 = vunpack.c.l.b16 %v4747
  %v4948 = vunpack.c.l.b16 %v4748
  %v4949 = vunpack.c.l.b16 %v4749
  %v4950 = vunpack.c.l.b16 %v4750
  %v4951 = vunpack.c.l.b16 %v4751
  %v4952 = vunpack.c.l.b16 %v4752
  %v4953 = vunpack.c.l.b16 %v4753
  %v4954 = vunpack.c.l.b16 %v4754
  %v4955 = vunpack.c.l.b16 %v4755
  %v4956 = vunpack.c.l.b16 %v4756
  %v4957 = vunpack.c.l.b16 %v4757
  %v4958 = vunpack.c.l.b16 %v4758
  %v4959 = vunpack.c.l.b16 %v4759
  %v4960 = vunpack.c.l.b16 %v4760
  %v4961 = vunpack.c.l.b16 %v4761
  %v4962 = vunpack.c.l.b16 %v4762
  %v4963 = vunpack.c.l.b16 %v4763
  %v4964 = vunpack.c.l.b16 %v4764
  %v4965 = vunpack.c.l.b16 %v4765
  %v4966 = vunpack.c.l.b16 %v4766
  %v4967 = vunpack.c.l.b16 %v4767
  %v4968 = vunpack.c.l.b16 %v4768
  %v4969 = vunpack.c.l.b16 %v4769
  %v4970 = vunpack.c.l.b16 %v4770
  %v4971 = vunpack.c.l.b16 %v4771
  %v4972 = vunpack.c.l.b16 %v4772
  %v4973 = vunpack.c.l.b16 %v4773
  %v4974 = vunpack.c.l.b16 %v4774
  %v4975 = vunpack.c.l.b16 %v4775
  %v4976 = vunpack.c.l.b16 %v4776
  %v4977 = vunpack.c.l.b16 %v4777
  %v4978 = vunpack.c.l.b16 %v4778
  %v4979 = vunpack.c.l.b16 %v4779
  %v4980 = vunpack.c.l.b16 %v4780
  %v4981 = vunpack.c.l.b16 %v4781
  %v4982 = vunpack.c.l.b16 %v4782
  %v4983 = vunpack.c.l.b16 %v4783
  %v4984 = vunpack.c.l.b16 %v4784
  %v4985 = vunpack.c.l.b16 %v4785
  %v4986 = vunpack.c.l.b16 %v4786
  %v4987 = vunpack.c.l.b16 %v4787
  %v4988 = vunpack.c.l.b16 %v4788
  %v4989 = vunpack.c.l.b16 %v4789
  %v4990 = vunpack.c.l.b16 %v4790
  %v4991 = vunpack.c.l.b16 %v4791
  %v4992 = vunpack.c.l.b16 %v4792
  %v4993 = vunpack.c.l.b16 %v4793
  %v4994 = vunpack.c.l.b16 %v4794
  %v4995 = vunpack.c.l.b16 %v4795
  %v4996 = vunpack.c.l.b16 %v4796
  %v4997 = vunpack.c.l.b16 %v4797
  %v4998 = vunpack.c.l.b16 %v4798
  %v4999 = vunpack.c.l.b16 %v4799
  %v5000 = vunpack.c.l.b16 %v4800
  %v5001 = vunpack.c.l.b16 %v4801
  %v5002 = vunpack.c.l.b16 %v4802
  %v5003 = vunpack.c.l.b16 %v4803
  %v5004 = vunpack.c.l.b16 %v4804
  %v5005 = vunpack.c.l.b16 %v4805
  %v5006 = vunpack.c.l.b16 %v4806
  %v5007 = vunpack.c.l.b16 %v4807
  %v5008 = vunpack.c.l.b16 %v4808
  %v5009 = vunpack.c.l.b16 %v4809
  %v5010 = vunpack.c.l.b16 %v4810
  %v5011 = vunpack.c.l.b16 %v4811
  %v5012 = vunpack.c.l.b16 %v4812
  %v5013 = vunpack.c.l.b16 %v4813
  %v5014 = vunpack.c.l.b16 %v4814
  %v5015 = vunpack.c.l.b16 %v4815
  %v5016 = vunpack.c.l.b16 %v4816
  %v5017 = vunpack.c.l.b16 %v4817
  %v5018 = vunpack.c.l.b16 %v4818
  %v5019 = vunpack.c.l.b16 %v4819
  %v5020 = vunpack.c.l.b16 %v4820
  %v5021 = vunpack.c.l.b16 %v4821
  %v5022 = vunpack.c.l.b16 %v4822
  %v5023 = vunpack.c.l.b16 %v4823
  %v5024 = vunpack.c.l.b16 %v4824
  %v5025 = vunpack.c.l.b16 %v4825
  %v5026 = vunpack.c.l.b16 %v4826
  %v5027 = vunpack.c.l.b16 %v4827
  %v5028 = vunpack.c.l.b16 %v4828
  %v5029 = vunpack.c.l.b16 %v4829
  %v5030 = vunpack.c.l.b16 %v4830
  %v5031 = vunpack.c.l.b16 %v4831
  %v5032 = vunpack.c.l.b16 %v4832
  %v5033 = vunpack.c.l.b16 %v4833
  %v5034 = vunpack.c.l.b16 %v4834
  %v5035 = vunpack.c.l.b16 %v4835
  %v5036 = vunpack.c.l.b16 %v4836
  %v5037 = vpack.c.b16 %v4938, %v4937
  %v5038 = vpack.c.b16 %v4940, %v4939
  %v5039 = vpack.c.b16 %v4942, %v4941
  %v5040 = vpack.c.b16 %v4944, %v4943
  %v5041 = vpack.c.b16 %v4946, %v4945
  %v5042 = vpack.c.b16 %v4948, %v4947
  %v5043 = vpack.c.b16 %v4950, %v4949
  %v5044 = vpack.c.b16 %v4952, %v4951
  %v5045 = vpack.c.b16 %v4954, %v4953
  %v5046 = vpack.c.b16 %v4956, %v4955
  %v5047 = vpack.c.b16 %v4958, %v4957
  %v5048 = vpack.c.b16 %v4960, %v4959
  %v5049 = vpack.c.b16 %v4962, %v4961
  %v5050 = vpack.c.b16 %v4964, %v4963
  %v5051 = vpack.c.b16 %v4966, %v4965
  %v5052 = vpack.c.b16 %v4968, %v4967
  %v5053 = vpack.c.b16 %v4970, %v4969
  %v5054 = vpack.c.b16 %v4972, %v4971
  %v5055 = vpack.c.b16 %v4974, %v4973
  %v5056 = vpack.c.b16 %v4976, %v4975
  %v5057 = vpack.c.b16 %v4978, %v4977
  %v5058 = vpack.c.b16 %v4980, %v4979
  %v5059 = vpack.c.b16 %v4982, %v4981
  %v5060 = vpack.c.b16 %v4984, %v4983
  %v5061 = vpack.c.b16 %v4986, %v4985
  %v5062 = vpack.c.b16 %v4988, %v4987
  %v5063 = vpack.c.b16 %v4990, %v4989
  %v5064 = vpack.c.b16 %v4992, %v4991
  %v5065 = vpack.c.b16 %v4994, %v4993
  %v5066 = vpack.c.b16 %v4996, %v4995
  %v5067 = vpack.c.b16 %v4998, %v4997
  %v5068 = vpack.c.b16 %v5000, %v4999
  %v5069 = vpack.c.b16 %v5002, %v5001
  %v5070 = vpack.c.b16 %v5004, %v5003
  %v5071 = vpack.c.b16 %v5006, %v5005
  %v5072 = vpack.c.b16 %v5008, %v5007
  %v5073 = vpack.c.b16 %v5010, %v5009
  %v5074 = vpack.c.b16 %v5012, %v5011
  %v5075 = vpack.c.b16 %v5014, %v5013
  %v5076 = vpack.c.b16 %v5016, %v5015
  %v5077 = vpack.c.b16 %v5018, %v5017
  %v5078 = vpack.c.b16 %v5020, %v5019
  %v5079 = vpack.c.b16 %v5022, %v5021
  %v5080 = vpack.c.b16 %v5024, %v5023
  %v5081 = vpack.c.b16 %v5026, %v5025
  %v5082 = vpack.c.b16 %v5028, %v5027
  %v5083 = vpack.c.b16 %v5030, %v5029
  %v5084 = vpack.c.b16 %v5032, %v5031
  %v5085 = vpack.c.b16 %v5034, %v5033
  %v5086 = vpack.c.b16 %v5036, %v5035
  %v5088 = vsel %vm408, %v5037, 0
  %v5091 = vsel %vm408, %v5038, 0
  %v5094 = vsel %vm408, %v5039, 0
  %v5097 = vsel %vm408, %v5040, 0
  %v5100 = vsel %vm408, %v5041, 0
  %v5103 = vsel %vm408, %v5042, 0
  %v5106 = vsel %vm408, %v5043, 0
  %v5109 = vsel %vm408, %v5044, 0
  %v5112 = vsel %vm408, %v5045, 0
  %v5115 = vsel %vm408, %v5046, 0
  %v5118 = vsel %vm408, %v5047, 0
  %v5121 = vsel %vm408, %v5048, 0
  %v5124 = vsel %vm408, %v5049, 0
  %v5127 = vsel %vm408, %v5050, 0
  %v5130 = vsel %vm408, %v5051, 0
  %v5133 = vsel %vm408, %v5052, 0
  %v5136 = vsel %vm408, %v5053, 0
  %v5139 = vsel %vm408, %v5054, 0
  %v5142 = vsel %vm408, %v5055, 0
  %v5145 = vsel %vm408, %v5056, 0
  %v5148 = vsel %vm408, %v5057, 0
  %v5151 = vsel %vm408, %v5058, 0
  %v5154 = vsel %vm408, %v5059, 0
  %v5157 = vsel %vm408, %v5060, 0
  %v5160 = vsel %vm408, %v5061, 0
  %v5163 = vsel %vm408, %v5062, 0
  %v5166 = vsel %vm408, %v5063, 0
  %v5169 = vsel %vm408, %v5064, 0
  %v5172 = vsel %vm408, %v5065, 0
  %v5175 = vsel %vm408, %v5066, 0
  %v5178 = vsel %vm408, %v5067, 0
  %v5181 = vsel %vm408, %v5068, 0
  %v5184 = vsel %vm408, %v5069, 0
  %v5187 = vsel %vm408, %v5070, 0
  %v5190 = vsel %vm408, %v5071, 0
  %v5193 = vsel %vm408, %v5072, 0
  %v5196 = vsel %vm408, %v5073, 0
  %v5199 = vsel %vm408, %v5074, 0
  %v5202 = vsel %vm408, %v5075, 0
  %v5205 = vsel %vm408, %v5076, 0
  %v5208 = vsel %vm408, %v5077, 0
  %v5211 = vsel %vm408, %v5078, 0
  %v5214 = vsel %vm408, %v5079, 0
  %v5217 = vsel %vm408, %v5080, 0
  %v5220 = vsel %vm408, %v5081, 0
  %v5223 = vsel %vm408, %v5082, 0
  %v5226 = vsel %vm408, %v5083, 0
  %v5229 = vsel %vm408, %v5084, 0
  %v5232 = vsel %vm408, %v5085, 0
  %v5235 = vsel %vm408, %v5086, 0
  %5237 = vmatpush.bf16.msra.mxu0 0
  %5238 = vmatpush.bf16.msra.mxu0 0
  %5239 = vmatpush.bf16.msra.mxu0 0
  %5240 = vmatpush.bf16.msra.mxu0 %v564
  %5241 = vmatpush.bf16.msra.mxu0 %v402
  %5242 = vmatpush.bf16.msra.mxu0 %v401
  %5243 = vmatpush.bf16.msra.mxu0 %v400
  %5244 = vmatpush.bf16.msra.mxu0 %v399
  %5245 = vmatmul.bf16.gmra.mxu0 %v5088
  %v5246 = vpop.f32.mrf.mxu0
  %v5247 = vadd.f32 0.0, %v5246
  %v5248 = vpop.f32.mrf.mxu0
  %v5249 = vadd.f32 0.0, %v5248
  %5250 = vmatmul.bf16.gmra.mxu0 %v5091
  %v5251 = vpop.f32.mrf.mxu0
  %v5252 = vadd.f32 0.0, %v5251
  %v5253 = vpop.f32.mrf.mxu0
  %v5254 = vadd.f32 0.0, %v5253
  %5255 = vmatmul.bf16.gmra.mxu0 %v5094
  %v5256 = vpop.f32.mrf.mxu0
  %v5257 = vadd.f32 0.0, %v5256
  %v5258 = vpop.f32.mrf.mxu0
  %v5259 = vadd.f32 0.0, %v5258
  %5260 = vmatmul.bf16.gmra.mxu0 %v5097
  %v5261 = vpop.f32.mrf.mxu0
  %v5262 = vadd.f32 0.0, %v5261
  %v5263 = vpop.f32.mrf.mxu0
  %v5264 = vadd.f32 0.0, %v5263
  %5265 = vmatmul.bf16.gmra.mxu0 %v5100
  %v5266 = vpop.f32.mrf.mxu0
  %v5267 = vadd.f32 0.0, %v5266
  %v5268 = vpop.f32.mrf.mxu0
  %v5269 = vadd.f32 0.0, %v5268
  %5270 = vmatmul.bf16.gmra.mxu0 %v5103
  %v5271 = vpop.f32.mrf.mxu0
  %v5272 = vadd.f32 0.0, %v5271
  %v5273 = vpop.f32.mrf.mxu0
  %v5274 = vadd.f32 0.0, %v5273
  %5275 = vmatmul.bf16.gmra.mxu0 %v5106
  %v5276 = vpop.f32.mrf.mxu0
  %v5277 = vadd.f32 0.0, %v5276
  %v5278 = vpop.f32.mrf.mxu0
  %v5279 = vadd.f32 0.0, %v5278
  %5280 = vmatmul.bf16.gmra.mxu0 %v5109
  %v5281 = vpop.f32.mrf.mxu0
  %v5282 = vadd.f32 0.0, %v5281
  %v5283 = vpop.f32.mrf.mxu0
  %v5284 = vadd.f32 0.0, %v5283
  %5285 = vmatmul.bf16.gmra.mxu0 %v5112
  %v5286 = vpop.f32.mrf.mxu0
  %v5287 = vadd.f32 0.0, %v5286
  %v5288 = vpop.f32.mrf.mxu0
  %v5289 = vadd.f32 0.0, %v5288
  %5290 = vmatmul.bf16.gmra.mxu0 %v5115
  %v5291 = vpop.f32.mrf.mxu0
  %v5292 = vadd.f32 0.0, %v5291
  %v5293 = vpop.f32.mrf.mxu0
  %v5294 = vadd.f32 0.0, %v5293
  %5295 = vmatmul.bf16.gmra.mxu0 %v5118
  %v5296 = vpop.f32.mrf.mxu0
  %v5297 = vadd.f32 0.0, %v5296
  %v5298 = vpop.f32.mrf.mxu0
  %v5299 = vadd.f32 0.0, %v5298
  %5300 = vmatmul.bf16.gmra.mxu0 %v5121
  %v5301 = vpop.f32.mrf.mxu0
  %v5302 = vadd.f32 0.0, %v5301
  %v5303 = vpop.f32.mrf.mxu0
  %v5304 = vadd.f32 0.0, %v5303
  %5305 = vmatmul.bf16.gmra.mxu0 %v5124
  %v5306 = vpop.f32.mrf.mxu0
  %v5307 = vadd.f32 0.0, %v5306
  %v5308 = vpop.f32.mrf.mxu0
  %v5309 = vadd.f32 0.0, %v5308
  %5310 = vmatmul.bf16.gmra.mxu0 %v5127
  %v5311 = vpop.f32.mrf.mxu0
  %v5312 = vadd.f32 0.0, %v5311
  %v5313 = vpop.f32.mrf.mxu0
  %v5314 = vadd.f32 0.0, %v5313
  %5315 = vmatmul.bf16.gmra.mxu0 %v5130
  %v5316 = vpop.f32.mrf.mxu0
  %v5317 = vadd.f32 0.0, %v5316
  %v5318 = vpop.f32.mrf.mxu0
  %v5319 = vadd.f32 0.0, %v5318
  %5320 = vmatmul.bf16.gmra.mxu0 %v5133
  %v5321 = vpop.f32.mrf.mxu0
  %v5322 = vadd.f32 0.0, %v5321
  %v5323 = vpop.f32.mrf.mxu0
  %v5324 = vadd.f32 0.0, %v5323
  %5325 = vmatmul.bf16.gmra.mxu0 %v5136
  %v5326 = vpop.f32.mrf.mxu0
  %v5327 = vadd.f32 0.0, %v5326
  %v5328 = vpop.f32.mrf.mxu0
  %v5329 = vadd.f32 0.0, %v5328
  %5330 = vmatmul.bf16.gmra.mxu0 %v5139
  %v5331 = vpop.f32.mrf.mxu0
  %v5332 = vadd.f32 0.0, %v5331
  %v5333 = vpop.f32.mrf.mxu0
  %v5334 = vadd.f32 0.0, %v5333
  %5335 = vmatmul.bf16.gmra.mxu0 %v5142
  %v5336 = vpop.f32.mrf.mxu0
  %v5337 = vadd.f32 0.0, %v5336
  %v5338 = vpop.f32.mrf.mxu0
  %v5339 = vadd.f32 0.0, %v5338
  %5340 = vmatmul.bf16.gmra.mxu0 %v5145
  %v5341 = vpop.f32.mrf.mxu0
  %v5342 = vadd.f32 0.0, %v5341
  %v5343 = vpop.f32.mrf.mxu0
  %v5344 = vadd.f32 0.0, %v5343
  %5345 = vmatmul.bf16.gmra.mxu0 %v5148
  %v5346 = vpop.f32.mrf.mxu0
  %v5347 = vadd.f32 0.0, %v5346
  %v5348 = vpop.f32.mrf.mxu0
  %v5349 = vadd.f32 0.0, %v5348
  %5350 = vmatmul.bf16.gmra.mxu0 %v5151
  %v5351 = vpop.f32.mrf.mxu0
  %v5352 = vadd.f32 0.0, %v5351
  %v5353 = vpop.f32.mrf.mxu0
  %v5354 = vadd.f32 0.0, %v5353
  %5355 = vmatmul.bf16.gmra.mxu0 %v5154
  %v5356 = vpop.f32.mrf.mxu0
  %v5357 = vadd.f32 0.0, %v5356
  %v5358 = vpop.f32.mrf.mxu0
  %v5359 = vadd.f32 0.0, %v5358
  %5360 = vmatmul.bf16.gmra.mxu0 %v5157
  %v5361 = vpop.f32.mrf.mxu0
  %v5362 = vadd.f32 0.0, %v5361
  %v5363 = vpop.f32.mrf.mxu0
  %v5364 = vadd.f32 0.0, %v5363
  %5365 = vmatmul.bf16.gmra.mxu0 %v5160
  %v5366 = vpop.f32.mrf.mxu0
  %v5367 = vadd.f32 0.0, %v5366
  %v5368 = vpop.f32.mrf.mxu0
  %v5369 = vadd.f32 0.0, %v5368
  %5370 = vmatmul.bf16.gmra.mxu0 %v5163
  %v5371 = vpop.f32.mrf.mxu0
  %v5372 = vadd.f32 0.0, %v5371
  %v5373 = vpop.f32.mrf.mxu0
  %v5374 = vadd.f32 0.0, %v5373
  %5375 = vmatmul.bf16.gmra.mxu0 %v5166
  %v5376 = vpop.f32.mrf.mxu0
  %v5377 = vadd.f32 0.0, %v5376
  %v5378 = vpop.f32.mrf.mxu0
  %v5379 = vadd.f32 0.0, %v5378
  %5380 = vmatmul.bf16.gmra.mxu0 %v5169
  %v5381 = vpop.f32.mrf.mxu0
  %v5382 = vadd.f32 0.0, %v5381
  %v5383 = vpop.f32.mrf.mxu0
  %v5384 = vadd.f32 0.0, %v5383
  %5385 = vmatmul.bf16.gmra.mxu0 %v5172
  %v5386 = vpop.f32.mrf.mxu0
  %v5387 = vadd.f32 0.0, %v5386
  %v5388 = vpop.f32.mrf.mxu0
  %v5389 = vadd.f32 0.0, %v5388
  %5390 = vmatmul.bf16.gmra.mxu0 %v5175
  %v5391 = vpop.f32.mrf.mxu0
  %v5392 = vadd.f32 0.0, %v5391
  %v5393 = vpop.f32.mrf.mxu0
  %v5394 = vadd.f32 0.0, %v5393
  %5395 = vmatmul.bf16.gmra.mxu0 %v5178
  %v5396 = vpop.f32.mrf.mxu0
  %v5397 = vadd.f32 0.0, %v5396
  %v5398 = vpop.f32.mrf.mxu0
  %v5399 = vadd.f32 0.0, %v5398
  %5400 = vmatmul.bf16.gmra.mxu0 %v5181
  %v5401 = vpop.f32.mrf.mxu0
  %v5402 = vadd.f32 0.0, %v5401
  %v5403 = vpop.f32.mrf.mxu0
  %v5404 = vadd.f32 0.0, %v5403
  %5405 = vmatmul.bf16.gmra.mxu0 %v5184
  %v5406 = vpop.f32.mrf.mxu0
  %v5407 = vadd.f32 0.0, %v5406
  %v5408 = vpop.f32.mrf.mxu0
  %v5409 = vadd.f32 0.0, %v5408
  %5410 = vmatmul.bf16.gmra.mxu0 %v5187
  %v5411 = vpop.f32.mrf.mxu0
  %v5412 = vadd.f32 0.0, %v5411
  %v5413 = vpop.f32.mrf.mxu0
  %v5414 = vadd.f32 0.0, %v5413
  %5415 = vmatmul.bf16.gmra.mxu0 %v5190
  %v5416 = vpop.f32.mrf.mxu0
  %v5417 = vadd.f32 0.0, %v5416
  %v5418 = vpop.f32.mrf.mxu0
  %v5419 = vadd.f32 0.0, %v5418
  %5420 = vmatmul.bf16.gmra.mxu0 %v5193
  %v5421 = vpop.f32.mrf.mxu0
  %v5422 = vadd.f32 0.0, %v5421
  %v5423 = vpop.f32.mrf.mxu0
  %v5424 = vadd.f32 0.0, %v5423
  %5425 = vmatmul.bf16.gmra.mxu0 %v5196
  %v5426 = vpop.f32.mrf.mxu0
  %v5427 = vadd.f32 0.0, %v5426
  %v5428 = vpop.f32.mrf.mxu0
  %v5429 = vadd.f32 0.0, %v5428
  %5430 = vmatmul.bf16.gmra.mxu0 %v5199
  %v5431 = vpop.f32.mrf.mxu0
  %v5432 = vadd.f32 0.0, %v5431
  %v5433 = vpop.f32.mrf.mxu0
  %v5434 = vadd.f32 0.0, %v5433
  %5435 = vmatmul.bf16.gmra.mxu0 %v5202
  %v5436 = vpop.f32.mrf.mxu0
  %v5437 = vadd.f32 0.0, %v5436
  %v5438 = vpop.f32.mrf.mxu0
  %v5439 = vadd.f32 0.0, %v5438
  %5440 = vmatmul.bf16.gmra.mxu0 %v5205
  %v5441 = vpop.f32.mrf.mxu0
  %v5442 = vadd.f32 0.0, %v5441
  %v5443 = vpop.f32.mrf.mxu0
  %v5444 = vadd.f32 0.0, %v5443
  %5445 = vmatmul.bf16.gmra.mxu0 %v5208
  %v5446 = vpop.f32.mrf.mxu0
  %v5447 = vadd.f32 0.0, %v5446
  %v5448 = vpop.f32.mrf.mxu0
  %v5449 = vadd.f32 0.0, %v5448
  %5450 = vmatmul.bf16.gmra.mxu0 %v5211
  %v5451 = vpop.f32.mrf.mxu0
  %v5452 = vadd.f32 0.0, %v5451
  %v5453 = vpop.f32.mrf.mxu0
  %v5454 = vadd.f32 0.0, %v5453
  %5455 = vmatmul.bf16.gmra.mxu0 %v5214
  %v5456 = vpop.f32.mrf.mxu0
  %v5457 = vadd.f32 0.0, %v5456
  %v5458 = vpop.f32.mrf.mxu0
  %v5459 = vadd.f32 0.0, %v5458
  %5460 = vmatmul.bf16.gmra.mxu0 %v5217
  %v5461 = vpop.f32.mrf.mxu0
  %v5462 = vadd.f32 0.0, %v5461
  %v5463 = vpop.f32.mrf.mxu0
  %v5464 = vadd.f32 0.0, %v5463
  %5465 = vmatmul.bf16.gmra.mxu0 %v5220
  %v5466 = vpop.f32.mrf.mxu0
  %v5467 = vadd.f32 0.0, %v5466
  %v5468 = vpop.f32.mrf.mxu0
  %v5469 = vadd.f32 0.0, %v5468
  %5470 = vmatmul.bf16.gmra.mxu0 %v5223
  %v5471 = vpop.f32.mrf.mxu0
  %v5472 = vadd.f32 0.0, %v5471
  %v5473 = vpop.f32.mrf.mxu0
  %v5474 = vadd.f32 0.0, %v5473
  %5475 = vmatmul.bf16.gmra.mxu0 %v5226
  %v5476 = vpop.f32.mrf.mxu0
  %v5477 = vadd.f32 0.0, %v5476
  %v5478 = vpop.f32.mrf.mxu0
  %v5479 = vadd.f32 0.0, %v5478
  %5480 = vmatmul.bf16.gmra.mxu0 %v5229
  %v5481 = vpop.f32.mrf.mxu0
  %v5482 = vadd.f32 0.0, %v5481
  %v5483 = vpop.f32.mrf.mxu0
  %v5484 = vadd.f32 0.0, %v5483
  %5485 = vmatmul.bf16.gmra.mxu0 %v5232
  %v5486 = vpop.f32.mrf.mxu0
  %v5487 = vadd.f32 0.0, %v5486
  %v5488 = vpop.f32.mrf.mxu0
  %v5489 = vadd.f32 0.0, %v5488
  %5490 = vmatmul.bf16.gmra.mxu0 %v5235
  %v5491 = vpop.f32.mrf.mxu0
  %v5492 = vadd.f32 0.0, %v5491
  %v5493 = vpop.f32.mrf.mxu0
  %v5494 = vadd.f32 0.0, %v5493
  %5495 = vdwg.mxu0
  %v5496 = vmax.f32 %v5247, %v5309
  %v5497 = vmax.f32 %v5249, %v5312
  %v5498 = vmax.f32 %v5252, %v5314
  %v5499 = vmax.f32 %v5254, %v5317
  %v5500 = vmax.f32 %v5257, %v5319
  %v5501 = vmax.f32 %v5259, %v5322
  %v5502 = vmax.f32 %v5262, %v5324
  %v5503 = vmax.f32 %v5264, %v5327
  %v5504 = vmax.f32 %v5267, %v5329
  %v5505 = vmax.f32 %v5269, %v5332
  %v5506 = vmax.f32 %v5272, %v5334
  %v5507 = vmax.f32 %v5274, %v5337
  %v5508 = vmax.f32 %v5277, %v5339
  %v5509 = vmax.f32 %v5279, %v5342
  %v5510 = vmax.f32 %v5282, %v5344
  %v5511 = vmax.f32 %v5284, %v5347
  %v5512 = vmax.f32 %v5287, %v5349
  %v5513 = vmax.f32 %v5289, %v5352
  %v5514 = vmax.f32 %v5292, %v5354
  %v5515 = vmax.f32 %v5294, %v5357
  %v5516 = vmax.f32 %v5297, %v5359
  %v5517 = vmax.f32 %v5299, %v5362
  %v5518 = vmax.f32 %v5302, %v5364
  %v5519 = vmax.f32 %v5304, %v5367
  %v5520 = vmax.f32 %v5307, %v5369
  %v5521 = vmax.f32 %v5372, %v5434
  %v5522 = vmax.f32 %v5374, %v5437
  %v5523 = vmax.f32 %v5377, %v5439
  %v5524 = vmax.f32 %v5379, %v5442
  %v5525 = vmax.f32 %v5382, %v5444
  %v5526 = vmax.f32 %v5384, %v5447
  %v5527 = vmax.f32 %v5387, %v5449
  %v5528 = vmax.f32 %v5389, %v5452
  %v5529 = vmax.f32 %v5392, %v5454
  %v5530 = vmax.f32 %v5394, %v5457
  %v5531 = vmax.f32 %v5397, %v5459
  %v5532 = vmax.f32 %v5399, %v5462
  %v5533 = vmax.f32 %v5402, %v5464
  %v5534 = vmax.f32 %v5404, %v5467
  %v5535 = vmax.f32 %v5407, %v5469
  %v5536 = vmax.f32 %v5409, %v5472
  %v5537 = vmax.f32 %v5412, %v5474
  %v5538 = vmax.f32 %v5414, %v5477
  %v5539 = vmax.f32 %v5417, %v5479
  %v5540 = vmax.f32 %v5419, %v5482
  %v5541 = vmax.f32 %v5422, %v5484
  %v5542 = vmax.f32 %v5424, %v5487
  %v5543 = vmax.f32 %v5427, %v5489
  %v5544 = vmax.f32 %v5429, %v5492
  %v5545 = vmax.f32 %v5432, %v5494
  %v5546 = vmax.f32 %v5496, %v5521
  %v5547 = vmax.f32 %v5497, %v5522
  %v5548 = vmax.f32 %v5498, %v5523
  %v5549 = vmax.f32 %v5499, %v5524
  %v5550 = vmax.f32 %v5500, %v5525
  %v5551 = vmax.f32 %v5501, %v5526
  %v5552 = vmax.f32 %v5502, %v5527
  %v5553 = vmax.f32 %v5503, %v5528
  %v5554 = vmax.f32 %v5504, %v5529
  %v5555 = vmax.f32 %v5505, %v5530
  %v5556 = vmax.f32 %v5506, %v5531
  %v5557 = vmax.f32 %v5507, %v5532
  %v5558 = vmax.f32 %v5508, %v5533
  %v5559 = vmax.f32 %v5509, %v5534
  %v5560 = vmax.f32 %v5510, %v5535
  %v5561 = vmax.f32 %v5511, %v5536
  %v5562 = vmax.f32 %v5512, %v5537
  %v5563 = vmax.f32 %v5513, %v5538
  %v5564 = vmax.f32 %v5514, %v5539
  %v5565 = vmax.f32 %v5515, %v5540
  %v5566 = vmax.f32 %v5516, %v5541
  %v5567 = vmax.f32 %v5517, %v5542
  %v5568 = vmax.f32 %v5518, %v5543
  %v5569 = vmax.f32 %v5519, %v5544
  %v5570 = vmax.f32 %v5520, %v5545
  %v5571 = vadd.f32 %v5546, %v27
  %v5572 = vadd.f32 %v5547, %v27
  %v5573 = vadd.f32 %v5548, %v27
  %v5574 = vadd.f32 %v5549, %v27
  %v5575 = vadd.f32 %v5550, %v27
  %v5576 = vadd.f32 %v5551, %v27
  %v5577 = vadd.f32 %v5552, %v27
  %v5578 = vadd.f32 %v5553, %v27
  %v5579 = vadd.f32 %v5554, %v27
  %v5580 = vadd.f32 %v5555, %v27
  %v5581 = vadd.f32 %v5556, %v27
  %v5582 = vadd.f32 %v5557, %v27
  %v5583 = vadd.f32 %v5558, %v27
  %v5584 = vadd.f32 %v5559, %v27
  %v5585 = vadd.f32 %v5560, %v27
  %v5586 = vadd.f32 %v5561, %v27
  %v5587 = vadd.f32 %v5562, %v27
  %v5588 = vadd.f32 %v5563, %v27
  %v5589 = vadd.f32 %v5564, %v27
  %v5590 = vadd.f32 %v5565, %v27
  %v5591 = vadd.f32 %v5566, %v27
  %v5592 = vadd.f32 %v5567, %v27
  %v5593 = vadd.f32 %v5568, %v27
  %v5594 = vadd.f32 %v5569, %v27
  %v5595 = vadd.f32 %v5570, %v27
  %v5596 = vmax.f32 %v5571, 0.0
  %v5597 = vmax.f32 %v5572, 0.0
  %v5598 = vmax.f32 %v5573, 0.0
  %v5599 = vmax.f32 %v5574, 0.0
  %v5600 = vmax.f32 %v5575, 0.0
  %v5601 = vmax.f32 %v5576, 0.0
  %v5602 = vmax.f32 %v5577, 0.0
  %v5603 = vmax.f32 %v5578, 0.0
  %v5604 = vmax.f32 %v5579, 0.0
  %v5605 = vmax.f32 %v5580, 0.0
  %v5606 = vmax.f32 %v5581, 0.0
  %v5607 = vmax.f32 %v5582, 0.0
  %v5608 = vmax.f32 %v5583, 0.0
  %v5609 = vmax.f32 %v5584, 0.0
  %v5610 = vmax.f32 %v5585, 0.0
  %v5611 = vmax.f32 %v5586, 0.0
  %v5612 = vmax.f32 %v5587, 0.0
  %v5613 = vmax.f32 %v5588, 0.0
  %v5614 = vmax.f32 %v5589, 0.0
  %v5615 = vmax.f32 %v5590, 0.0
  %v5616 = vmax.f32 %v5591, 0.0
  %v5617 = vmax.f32 %v5592, 0.0
  %v5618 = vmax.f32 %v5593, 0.0
  %v5619 = vmax.f32 %v5594, 0.0
  %v5620 = vmax.f32 %v5595, 0.0
  %v5621 = vpack.c.bf16 %v5596, %v5596
  %v5622 = vpack.c.bf16 %v5597, %v5597
  %v5623 = vpack.c.bf16 %v5598, %v5598
  %v5624 = vpack.c.bf16 %v5599, %v5599
  %v5625 = vpack.c.bf16 %v5600, %v5600
  %v5626 = vpack.c.bf16 %v5601, %v5601
  %v5627 = vpack.c.bf16 %v5602, %v5602
  %v5628 = vpack.c.bf16 %v5603, %v5603
  %v5629 = vpack.c.bf16 %v5604, %v5604
  %v5630 = vpack.c.bf16 %v5605, %v5605
  %v5631 = vpack.c.bf16 %v5606, %v5606
  %v5632 = vpack.c.bf16 %v5607, %v5607
  %v5633 = vpack.c.bf16 %v5608, %v5608
  %v5634 = vpack.c.bf16 %v5609, %v5609
  %v5635 = vpack.c.bf16 %v5610, %v5610
  %v5636 = vpack.c.bf16 %v5611, %v5611
  %v5637 = vpack.c.bf16 %v5612, %v5612
  %v5638 = vpack.c.bf16 %v5613, %v5613
  %v5639 = vpack.c.bf16 %v5614, %v5614
  %v5640 = vpack.c.bf16 %v5615, %v5615
  %v5641 = vpack.c.bf16 %v5616, %v5616
  %v5642 = vpack.c.bf16 %v5617, %v5617
  %v5643 = vpack.c.bf16 %v5618, %v5618
  %v5644 = vpack.c.bf16 %v5619, %v5619
  %v5645 = vpack.c.bf16 %v5620, %v5620
  %5646 = vst.msk [vmem:[%s3 + $0x1f4] sm:$0xf] %vm975, %v5621
  %5647 = vst.msk [vmem:[%s3 + $0x1f8] sm:$0xf] %vm975, %v5622
  %5648 = vst.msk [vmem:[%s3 + $0x1fc] sm:$0xf] %vm975, %v5623
  %5649 = vst.msk [vmem:[%s3 + $0x200] sm:$0xf] %vm975, %v5624
  %5650 = vst.msk [vmem:[%s3 + $0x204] sm:$0xf] %vm975, %v5625
  %5651 = vst.msk [vmem:[%s3 + $0x208] sm:$0xf] %vm975, %v5626
  %5652 = vst.msk [vmem:[%s3 + $0x20c] sm:$0xf] %vm975, %v5627
  %5653 = vst.msk [vmem:[%s3 + $0x210] sm:$0xf] %vm975, %v5628
  %5654 = vst.msk [vmem:[%s3 + $0x214] sm:$0xf] %vm975, %v5629
  %5655 = vst.msk [vmem:[%s3 + $0x218] sm:$0xf] %vm975, %v5630
  %5656 = vst.msk [vmem:[%s3 + $0x21c] sm:$0xf] %vm975, %v5631
  %5657 = vst.msk [vmem:[%s3 + $0x220] sm:$0xf] %vm975, %v5632
  %5658 = vst.msk [vmem:[%s3 + $0x224] sm:$0xf] %vm975, %v5633
  %5659 = vst.msk [vmem:[%s3 + $0x228] sm:$0xf] %vm975, %v5634
  %5660 = vst.msk [vmem:[%s3 + $0x22c] sm:$0xf] %vm975, %v5635
  %5661 = vst.msk [vmem:[%s3 + $0x230] sm:$0xf] %vm975, %v5636
  %5662 = vst.msk [vmem:[%s3 + $0x234] sm:$0xf] %vm975, %v5637
  %5663 = vst.msk [vmem:[%s3 + $0x238] sm:$0xf] %vm975, %v5638
  %5664 = vst.msk [vmem:[%s3 + $0x23c] sm:$0xf] %vm975, %v5639
  %5665 = vst.msk [vmem:[%s3 + $0x240] sm:$0xf] %vm975, %v5640
  %5666 = vst.msk [vmem:[%s3 + $0x244] sm:$0xf] %vm975, %v5641
  %5667 = vst.msk [vmem:[%s3 + $0x248] sm:$0xf] %vm975, %v5642
  %5668 = vst.msk [vmem:[%s3 + $0x24c] sm:$0xf] %vm975, %v5643
  %5669 = vst.msk [vmem:[%s3 + $0x250] sm:$0xf] %vm975, %v5644
  %5670 = vst.msk [vmem:[%s3 + $0x254] sm:$0xf] %vm975, %v5645
  %v5671 = vld [vmem:[%s0 + $0x960] sm:$0xf]
  %v5672 = vld [vmem:[%s0 + $0x964] sm:$0xf]
  %v5673 = vld [vmem:[%s0 + $0x968] sm:$0xf]
  %v5674 = vld [vmem:[%s0 + $0x96c] sm:$0xf]
  %v5675 = vld [vmem:[%s0 + $0x970] sm:$0xf]
  %v5676 = vld [vmem:[%s0 + $0x974] sm:$0xf]
  %v5677 = vld [vmem:[%s0 + $0x978] sm:$0xf]
  %v5678 = vld [vmem:[%s0 + $0x97c] sm:$0xf]
  %v5679 = vld [vmem:[%s0 + $0x980] sm:$0xf]
  %v5680 = vld [vmem:[%s0 + $0x984] sm:$0xf]
  %v5681 = vld [vmem:[%s0 + $0x988] sm:$0xf]
  %v5682 = vld [vmem:[%s0 + $0x98c] sm:$0xf]
  %v5683 = vld [vmem:[%s0 + $0x990] sm:$0xf]
  %v5684 = vld [vmem:[%s0 + $0x994] sm:$0xf]
  %v5685 = vld [vmem:[%s0 + $0x998] sm:$0xf]
  %v5686 = vld [vmem:[%s0 + $0x99c] sm:$0xf]
  %v5687 = vld [vmem:[%s0 + $0x9a0] sm:$0xf]
  %v5688 = vld [vmem:[%s0 + $0x9a4] sm:$0xf]
  %v5689 = vld [vmem:[%s0 + $0x9a8] sm:$0xf]
  %v5690 = vld [vmem:[%s0 + $0x9ac] sm:$0xf]
  %v5691 = vld [vmem:[%s0 + $0x9b0] sm:$0xf]
  %v5692 = vld [vmem:[%s0 + $0x9b4] sm:$0xf]
  %v5693 = vld [vmem:[%s0 + $0x9b8] sm:$0xf]
  %v5694 = vld [vmem:[%s0 + $0x9bc] sm:$0xf]
  %v5695 = vld [vmem:[%s0 + $0x9c0] sm:$0xf]
  %v5696 = vld [vmem:[%s0 + $0x9c4] sm:$0xf]
  %v5697 = vld [vmem:[%s0 + $0x9c8] sm:$0xf]
  %v5698 = vld [vmem:[%s0 + $0x9cc] sm:$0xf]
  %v5699 = vld [vmem:[%s0 + $0x9d0] sm:$0xf]
  %v5700 = vld [vmem:[%s0 + $0x9d4] sm:$0xf]
  %v5701 = vld [vmem:[%s0 + $0x9d8] sm:$0xf]
  %v5702 = vld [vmem:[%s0 + $0x9dc] sm:$0xf]
  %v5703 = vld [vmem:[%s0 + $0x9e0] sm:$0xf]
  %v5704 = vld [vmem:[%s0 + $0x9e4] sm:$0xf]
  %v5705 = vld [vmem:[%s0 + $0x9e8] sm:$0xf]
  %v5706 = vld [vmem:[%s0 + $0x9ec] sm:$0xf]
  %v5707 = vld [vmem:[%s0 + $0x9f0] sm:$0xf]
  %v5708 = vld [vmem:[%s0 + $0x9f4] sm:$0xf]
  %v5709 = vld [vmem:[%s0 + $0x9f8] sm:$0xf]
  %v5710 = vld [vmem:[%s0 + $0x9fc] sm:$0xf]
  %v5711 = vld [vmem:[%s0 + $0xa00] sm:$0xf]
  %v5712 = vld [vmem:[%s0 + $0xa04] sm:$0xf]
  %v5713 = vld [vmem:[%s0 + $0xa08] sm:$0xf]
  %v5714 = vld [vmem:[%s0 + $0xa0c] sm:$0xf]
  %v5715 = vld [vmem:[%s0 + $0xa10] sm:$0xf]
  %v5716 = vld [vmem:[%s0 + $0xa14] sm:$0xf]
  %v5717 = vld [vmem:[%s0 + $0xa18] sm:$0xf]
  %v5718 = vld [vmem:[%s0 + $0xa1c] sm:$0xf]
  %v5719 = vld [vmem:[%s0 + $0xa20] sm:$0xf]
  %v5720 = vld [vmem:[%s0 + $0xa24] sm:$0xf]
  %v5721 = vld [vmem:[%s0 + $0xa28] sm:$0xf]
  %v5722 = vld [vmem:[%s0 + $0xa2c] sm:$0xf]
  %v5723 = vld [vmem:[%s0 + $0xa30] sm:$0xf]
  %v5724 = vld [vmem:[%s0 + $0xa34] sm:$0xf]
  %v5725 = vld [vmem:[%s0 + $0xa38] sm:$0xf]
  %v5726 = vld [vmem:[%s0 + $0xa3c] sm:$0xf]
  %v5727 = vld [vmem:[%s0 + $0xa40] sm:$0xf]
  %v5728 = vld [vmem:[%s0 + $0xa44] sm:$0xf]
  %v5729 = vld [vmem:[%s0 + $0xa48] sm:$0xf]
  %v5730 = vld [vmem:[%s0 + $0xa4c] sm:$0xf]
  %v5731 = vld [vmem:[%s0 + $0xa50] sm:$0xf]
  %v5732 = vld [vmem:[%s0 + $0xa54] sm:$0xf]
  %v5733 = vld [vmem:[%s0 + $0xa58] sm:$0xf]
  %v5734 = vld [vmem:[%s0 + $0xa5c] sm:$0xf]
  %v5735 = vld [vmem:[%s0 + $0xa60] sm:$0xf]
  %v5736 = vld [vmem:[%s0 + $0xa64] sm:$0xf]
  %v5737 = vld [vmem:[%s0 + $0xa68] sm:$0xf]
  %v5738 = vld [vmem:[%s0 + $0xa6c] sm:$0xf]
  %v5739 = vld [vmem:[%s0 + $0xa70] sm:$0xf]
  %v5740 = vld [vmem:[%s0 + $0xa74] sm:$0xf]
  %v5741 = vld [vmem:[%s0 + $0xa78] sm:$0xf]
  %v5742 = vld [vmem:[%s0 + $0xa7c] sm:$0xf]
  %v5743 = vld [vmem:[%s0 + $0xa80] sm:$0xf]
  %v5744 = vld [vmem:[%s0 + $0xa84] sm:$0xf]
  %v5745 = vld [vmem:[%s0 + $0xa88] sm:$0xf]
  %v5746 = vld [vmem:[%s0 + $0xa8c] sm:$0xf]
  %v5747 = vld [vmem:[%s0 + $0xa90] sm:$0xf]
  %v5748 = vld [vmem:[%s0 + $0xa94] sm:$0xf]
  %v5749 = vld [vmem:[%s0 + $0xa98] sm:$0xf]
  %v5750 = vld [vmem:[%s0 + $0xa9c] sm:$0xf]
  %v5751 = vld [vmem:[%s0 + $0xaa0] sm:$0xf]
  %v5752 = vld [vmem:[%s0 + $0xaa4] sm:$0xf]
  %v5753 = vld [vmem:[%s0 + $0xaa8] sm:$0xf]
  %v5754 = vld [vmem:[%s0 + $0xaac] sm:$0xf]
  %v5755 = vld [vmem:[%s0 + $0xab0] sm:$0xf]
  %v5756 = vld [vmem:[%s0 + $0xab4] sm:$0xf]
  %v5757 = vld [vmem:[%s0 + $0xab8] sm:$0xf]
  %v5758 = vld [vmem:[%s0 + $0xabc] sm:$0xf]
  %v5759 = vld [vmem:[%s0 + $0xac0] sm:$0xf]
  %v5760 = vld [vmem:[%s0 + $0xac4] sm:$0xf]
  %v5761 = vld [vmem:[%s0 + $0xac8] sm:$0xf]
  %v5762 = vld [vmem:[%s0 + $0xacc] sm:$0xf]
  %v5763 = vld [vmem:[%s0 + $0xad0] sm:$0xf]
  %v5764 = vld [vmem:[%s0 + $0xad4] sm:$0xf]
  %v5765 = vld [vmem:[%s0 + $0xad8] sm:$0xf]
  %v5766 = vld [vmem:[%s0 + $0xadc] sm:$0xf]
  %v5767 = vld [vmem:[%s0 + $0xae0] sm:$0xf]
  %v5768 = vld [vmem:[%s0 + $0xae4] sm:$0xf]
  %v5769 = vld [vmem:[%s0 + $0xae8] sm:$0xf]
  %v5770 = vld [vmem:[%s0 + $0xaec] sm:$0xf]
  %v5871 = vunpack.c.l.b16 %v5671
  %v5872 = vunpack.c.l.b16 %v5672
  %v5873 = vunpack.c.l.b16 %v5673
  %v5874 = vunpack.c.l.b16 %v5674
  %v5875 = vunpack.c.l.b16 %v5675
  %v5876 = vunpack.c.l.b16 %v5676
  %v5877 = vunpack.c.l.b16 %v5677
  %v5878 = vunpack.c.l.b16 %v5678
  %v5879 = vunpack.c.l.b16 %v5679
  %v5880 = vunpack.c.l.b16 %v5680
  %v5881 = vunpack.c.l.b16 %v5681
  %v5882 = vunpack.c.l.b16 %v5682
  %v5883 = vunpack.c.l.b16 %v5683
  %v5884 = vunpack.c.l.b16 %v5684
  %v5885 = vunpack.c.l.b16 %v5685
  %v5886 = vunpack.c.l.b16 %v5686
  %v5887 = vunpack.c.l.b16 %v5687
  %v5888 = vunpack.c.l.b16 %v5688
  %v5889 = vunpack.c.l.b16 %v5689
  %v5890 = vunpack.c.l.b16 %v5690
  %v5891 = vunpack.c.l.b16 %v5691
  %v5892 = vunpack.c.l.b16 %v5692
  %v5893 = vunpack.c.l.b16 %v5693
  %v5894 = vunpack.c.l.b16 %v5694
  %v5895 = vunpack.c.l.b16 %v5695
  %v5896 = vunpack.c.l.b16 %v5696
  %v5897 = vunpack.c.l.b16 %v5697
  %v5898 = vunpack.c.l.b16 %v5698
  %v5899 = vunpack.c.l.b16 %v5699
  %v5900 = vunpack.c.l.b16 %v5700
  %v5901 = vunpack.c.l.b16 %v5701
  %v5902 = vunpack.c.l.b16 %v5702
  %v5903 = vunpack.c.l.b16 %v5703
  %v5904 = vunpack.c.l.b16 %v5704
  %v5905 = vunpack.c.l.b16 %v5705
  %v5906 = vunpack.c.l.b16 %v5706
  %v5907 = vunpack.c.l.b16 %v5707
  %v5908 = vunpack.c.l.b16 %v5708
  %v5909 = vunpack.c.l.b16 %v5709
  %v5910 = vunpack.c.l.b16 %v5710
  %v5911 = vunpack.c.l.b16 %v5711
  %v5912 = vunpack.c.l.b16 %v5712
  %v5913 = vunpack.c.l.b16 %v5713
  %v5914 = vunpack.c.l.b16 %v5714
  %v5915 = vunpack.c.l.b16 %v5715
  %v5916 = vunpack.c.l.b16 %v5716
  %v5917 = vunpack.c.l.b16 %v5717
  %v5918 = vunpack.c.l.b16 %v5718
  %v5919 = vunpack.c.l.b16 %v5719
  %v5920 = vunpack.c.l.b16 %v5720
  %v5921 = vunpack.c.l.b16 %v5721
  %v5922 = vunpack.c.l.b16 %v5722
  %v5923 = vunpack.c.l.b16 %v5723
  %v5924 = vunpack.c.l.b16 %v5724
  %v5925 = vunpack.c.l.b16 %v5725
  %v5926 = vunpack.c.l.b16 %v5726
  %v5927 = vunpack.c.l.b16 %v5727
  %v5928 = vunpack.c.l.b16 %v5728
  %v5929 = vunpack.c.l.b16 %v5729
  %v5930 = vunpack.c.l.b16 %v5730
  %v5931 = vunpack.c.l.b16 %v5731
  %v5932 = vunpack.c.l.b16 %v5732
  %v5933 = vunpack.c.l.b16 %v5733
  %v5934 = vunpack.c.l.b16 %v5734
  %v5935 = vunpack.c.l.b16 %v5735
  %v5936 = vunpack.c.l.b16 %v5736
  %v5937 = vunpack.c.l.b16 %v5737
  %v5938 = vunpack.c.l.b16 %v5738
  %v5939 = vunpack.c.l.b16 %v5739
  %v5940 = vunpack.c.l.b16 %v5740
  %v5941 = vunpack.c.l.b16 %v5741
  %v5942 = vunpack.c.l.b16 %v5742
  %v5943 = vunpack.c.l.b16 %v5743
  %v5944 = vunpack.c.l.b16 %v5744
  %v5945 = vunpack.c.l.b16 %v5745
  %v5946 = vunpack.c.l.b16 %v5746
  %v5947 = vunpack.c.l.b16 %v5747
  %v5948 = vunpack.c.l.b16 %v5748
  %v5949 = vunpack.c.l.b16 %v5749
  %v5950 = vunpack.c.l.b16 %v5750
  %v5951 = vunpack.c.l.b16 %v5751
  %v5952 = vunpack.c.l.b16 %v5752
  %v5953 = vunpack.c.l.b16 %v5753
  %v5954 = vunpack.c.l.b16 %v5754
  %v5955 = vunpack.c.l.b16 %v5755
  %v5956 = vunpack.c.l.b16 %v5756
  %v5957 = vunpack.c.l.b16 %v5757
  %v5958 = vunpack.c.l.b16 %v5758
  %v5959 = vunpack.c.l.b16 %v5759
  %v5960 = vunpack.c.l.b16 %v5760
  %v5961 = vunpack.c.l.b16 %v5761
  %v5962 = vunpack.c.l.b16 %v5762
  %v5963 = vunpack.c.l.b16 %v5763
  %v5964 = vunpack.c.l.b16 %v5764
  %v5965 = vunpack.c.l.b16 %v5765
  %v5966 = vunpack.c.l.b16 %v5766
  %v5967 = vunpack.c.l.b16 %v5767
  %v5968 = vunpack.c.l.b16 %v5768
  %v5969 = vunpack.c.l.b16 %v5769
  %v5970 = vunpack.c.l.b16 %v5770
  %v5971 = vpack.c.b16 %v5872, %v5871
  %v5972 = vpack.c.b16 %v5874, %v5873
  %v5973 = vpack.c.b16 %v5876, %v5875
  %v5974 = vpack.c.b16 %v5878, %v5877
  %v5975 = vpack.c.b16 %v5880, %v5879
  %v5976 = vpack.c.b16 %v5882, %v5881
  %v5977 = vpack.c.b16 %v5884, %v5883
  %v5978 = vpack.c.b16 %v5886, %v5885
  %v5979 = vpack.c.b16 %v5888, %v5887
  %v5980 = vpack.c.b16 %v5890, %v5889
  %v5981 = vpack.c.b16 %v5892, %v5891
  %v5982 = vpack.c.b16 %v5894, %v5893
  %v5983 = vpack.c.b16 %v5896, %v5895
  %v5984 = vpack.c.b16 %v5898, %v5897
  %v5985 = vpack.c.b16 %v5900, %v5899
  %v5986 = vpack.c.b16 %v5902, %v5901
  %v5987 = vpack.c.b16 %v5904, %v5903
  %v5988 = vpack.c.b16 %v5906, %v5905
  %v5989 = vpack.c.b16 %v5908, %v5907
  %v5990 = vpack.c.b16 %v5910, %v5909
  %v5991 = vpack.c.b16 %v5912, %v5911
  %v5992 = vpack.c.b16 %v5914, %v5913
  %v5993 = vpack.c.b16 %v5916, %v5915
  %v5994 = vpack.c.b16 %v5918, %v5917
  %v5995 = vpack.c.b16 %v5920, %v5919
  %v5996 = vpack.c.b16 %v5922, %v5921
  %v5997 = vpack.c.b16 %v5924, %v5923
  %v5998 = vpack.c.b16 %v5926, %v5925
  %v5999 = vpack.c.b16 %v5928, %v5927
  %v6000 = vpack.c.b16 %v5930, %v5929
  %v6001 = vpack.c.b16 %v5932, %v5931
  %v6002 = vpack.c.b16 %v5934, %v5933
  %v6003 = vpack.c.b16 %v5936, %v5935
  %v6004 = vpack.c.b16 %v5938, %v5937
  %v6005 = vpack.c.b16 %v5940, %v5939
  %v6006 = vpack.c.b16 %v5942, %v5941
  %v6007 = vpack.c.b16 %v5944, %v5943
  %v6008 = vpack.c.b16 %v5946, %v5945
  %v6009 = vpack.c.b16 %v5948, %v5947
  %v6010 = vpack.c.b16 %v5950, %v5949
  %v6011 = vpack.c.b16 %v5952, %v5951
  %v6012 = vpack.c.b16 %v5954, %v5953
  %v6013 = vpack.c.b16 %v5956, %v5955
  %v6014 = vpack.c.b16 %v5958, %v5957
  %v6015 = vpack.c.b16 %v5960, %v5959
  %v6016 = vpack.c.b16 %v5962, %v5961
  %v6017 = vpack.c.b16 %v5964, %v5963
  %v6018 = vpack.c.b16 %v5966, %v5965
  %v6019 = vpack.c.b16 %v5968, %v5967
  %v6020 = vpack.c.b16 %v5970, %v5969
  %v6022 = vsel %vm408, %v5971, 0
  %v6025 = vsel %vm408, %v5972, 0
  %v6028 = vsel %vm408, %v5973, 0
  %v6031 = vsel %vm408, %v5974, 0
  %v6034 = vsel %vm408, %v5975, 0
  %v6037 = vsel %vm408, %v5976, 0
  %v6040 = vsel %vm408, %v5977, 0
  %v6043 = vsel %vm408, %v5978, 0
  %v6046 = vsel %vm408, %v5979, 0
  %v6049 = vsel %vm408, %v5980, 0
  %v6052 = vsel %vm408, %v5981, 0
  %v6055 = vsel %vm408, %v5982, 0
  %v6058 = vsel %vm408, %v5983, 0
  %v6061 = vsel %vm408, %v5984, 0
  %v6064 = vsel %vm408, %v5985, 0
  %v6067 = vsel %vm408, %v5986, 0
  %v6070 = vsel %vm408, %v5987, 0
  %v6073 = vsel %vm408, %v5988, 0
  %v6076 = vsel %vm408, %v5989, 0
  %v6079 = vsel %vm408, %v5990, 0
  %v6082 = vsel %vm408, %v5991, 0
  %v6085 = vsel %vm408, %v5992, 0
  %v6088 = vsel %vm408, %v5993, 0
  %v6091 = vsel %vm408, %v5994, 0
  %v6094 = vsel %vm408, %v5995, 0
  %v6097 = vsel %vm408, %v5996, 0
  %v6100 = vsel %vm408, %v5997, 0
  %v6103 = vsel %vm408, %v5998, 0
  %v6106 = vsel %vm408, %v5999, 0
  %v6109 = vsel %vm408, %v6000, 0
  %v6112 = vsel %vm408, %v6001, 0
  %v6115 = vsel %vm408, %v6002, 0
  %v6118 = vsel %vm408, %v6003, 0
  %v6121 = vsel %vm408, %v6004, 0
  %v6124 = vsel %vm408, %v6005, 0
  %v6127 = vsel %vm408, %v6006, 0
  %v6130 = vsel %vm408, %v6007, 0
  %v6133 = vsel %vm408, %v6008, 0
  %v6136 = vsel %vm408, %v6009, 0
  %v6139 = vsel %vm408, %v6010, 0
  %v6142 = vsel %vm408, %v6011, 0
  %v6145 = vsel %vm408, %v6012, 0
  %v6148 = vsel %vm408, %v6013, 0
  %v6151 = vsel %vm408, %v6014, 0
  %v6154 = vsel %vm408, %v6015, 0
  %v6157 = vsel %vm408, %v6016, 0
  %v6160 = vsel %vm408, %v6017, 0
  %v6163 = vsel %vm408, %v6018, 0
  %v6166 = vsel %vm408, %v6019, 0
  %v6169 = vsel %vm408, %v6020, 0
  %6171 = vmatpush.bf16.msra.mxu0 0
  %6172 = vmatpush.bf16.msra.mxu0 0
  %6173 = vmatpush.bf16.msra.mxu0 0
  %6174 = vmatpush.bf16.msra.mxu0 %v564
  %6175 = vmatpush.bf16.msra.mxu0 %v402
  %6176 = vmatpush.bf16.msra.mxu0 %v401
  %6177 = vmatpush.bf16.msra.mxu0 %v400
  %6178 = vmatpush.bf16.msra.mxu0 %v399
  %6179 = vmatmul.bf16.gmra.mxu0 %v6022
  %v6180 = vpop.f32.mrf.mxu0
  %v6181 = vadd.f32 0.0, %v6180
  %v6182 = vpop.f32.mrf.mxu0
  %v6183 = vadd.f32 0.0, %v6182
  %6184 = vmatmul.bf16.gmra.mxu0 %v6025
  %v6185 = vpop.f32.mrf.mxu0
  %v6186 = vadd.f32 0.0, %v6185
  %v6187 = vpop.f32.mrf.mxu0
  %v6188 = vadd.f32 0.0, %v6187
  %6189 = vmatmul.bf16.gmra.mxu0 %v6028
  %v6190 = vpop.f32.mrf.mxu0
  %v6191 = vadd.f32 0.0, %v6190
  %v6192 = vpop.f32.mrf.mxu0
  %v6193 = vadd.f32 0.0, %v6192
  %6194 = vmatmul.bf16.gmra.mxu0 %v6031
  %v6195 = vpop.f32.mrf.mxu0
  %v6196 = vadd.f32 0.0, %v6195
  %v6197 = vpop.f32.mrf.mxu0
  %v6198 = vadd.f32 0.0, %v6197
  %6199 = vmatmul.bf16.gmra.mxu0 %v6034
  %v6200 = vpop.f32.mrf.mxu0
  %v6201 = vadd.f32 0.0, %v6200
  %v6202 = vpop.f32.mrf.mxu0
  %v6203 = vadd.f32 0.0, %v6202
  %6204 = vmatmul.bf16.gmra.mxu0 %v6037
  %v6205 = vpop.f32.mrf.mxu0
  %v6206 = vadd.f32 0.0, %v6205
  %v6207 = vpop.f32.mrf.mxu0
  %v6208 = vadd.f32 0.0, %v6207
  %6209 = vmatmul.bf16.gmra.mxu0 %v6040
  %v6210 = vpop.f32.mrf.mxu0
  %v6211 = vadd.f32 0.0, %v6210
  %v6212 = vpop.f32.mrf.mxu0
  %v6213 = vadd.f32 0.0, %v6212
  %6214 = vmatmul.bf16.gmra.mxu0 %v6043
  %v6215 = vpop.f32.mrf.mxu0
  %v6216 = vadd.f32 0.0, %v6215
  %v6217 = vpop.f32.mrf.mxu0
  %v6218 = vadd.f32 0.0, %v6217
  %6219 = vmatmul.bf16.gmra.mxu0 %v6046
  %v6220 = vpop.f32.mrf.mxu0
  %v6221 = vadd.f32 0.0, %v6220
  %v6222 = vpop.f32.mrf.mxu0
  %v6223 = vadd.f32 0.0, %v6222
  %6224 = vmatmul.bf16.gmra.mxu0 %v6049
  %v6225 = vpop.f32.mrf.mxu0
  %v6226 = vadd.f32 0.0, %v6225
  %v6227 = vpop.f32.mrf.mxu0
  %v6228 = vadd.f32 0.0, %v6227
  %6229 = vmatmul.bf16.gmra.mxu0 %v6052
  %v6230 = vpop.f32.mrf.mxu0
  %v6231 = vadd.f32 0.0, %v6230
  %v6232 = vpop.f32.mrf.mxu0
  %v6233 = vadd.f32 0.0, %v6232
  %6234 = vmatmul.bf16.gmra.mxu0 %v6055
  %v6235 = vpop.f32.mrf.mxu0
  %v6236 = vadd.f32 0.0, %v6235
  %v6237 = vpop.f32.mrf.mxu0
  %v6238 = vadd.f32 0.0, %v6237
  %6239 = vmatmul.bf16.gmra.mxu0 %v6058
  %v6240 = vpop.f32.mrf.mxu0
  %v6241 = vadd.f32 0.0, %v6240
  %v6242 = vpop.f32.mrf.mxu0
  %v6243 = vadd.f32 0.0, %v6242
  %6244 = vmatmul.bf16.gmra.mxu0 %v6061
  %v6245 = vpop.f32.mrf.mxu0
  %v6246 = vadd.f32 0.0, %v6245
  %v6247 = vpop.f32.mrf.mxu0
  %v6248 = vadd.f32 0.0, %v6247
  %6249 = vmatmul.bf16.gmra.mxu0 %v6064
  %v6250 = vpop.f32.mrf.mxu0
  %v6251 = vadd.f32 0.0, %v6250
  %v6252 = vpop.f32.mrf.mxu0
  %v6253 = vadd.f32 0.0, %v6252
  %6254 = vmatmul.bf16.gmra.mxu0 %v6067
  %v6255 = vpop.f32.mrf.mxu0
  %v6256 = vadd.f32 0.0, %v6255
  %v6257 = vpop.f32.mrf.mxu0
  %v6258 = vadd.f32 0.0, %v6257
  %6259 = vmatmul.bf16.gmra.mxu0 %v6070
  %v6260 = vpop.f32.mrf.mxu0
  %v6261 = vadd.f32 0.0, %v6260
  %v6262 = vpop.f32.mrf.mxu0
  %v6263 = vadd.f32 0.0, %v6262
  %6264 = vmatmul.bf16.gmra.mxu0 %v6073
  %v6265 = vpop.f32.mrf.mxu0
  %v6266 = vadd.f32 0.0, %v6265
  %v6267 = vpop.f32.mrf.mxu0
  %v6268 = vadd.f32 0.0, %v6267
  %6269 = vmatmul.bf16.gmra.mxu0 %v6076
  %v6270 = vpop.f32.mrf.mxu0
  %v6271 = vadd.f32 0.0, %v6270
  %v6272 = vpop.f32.mrf.mxu0
  %v6273 = vadd.f32 0.0, %v6272
  %6274 = vmatmul.bf16.gmra.mxu0 %v6079
  %v6275 = vpop.f32.mrf.mxu0
  %v6276 = vadd.f32 0.0, %v6275
  %v6277 = vpop.f32.mrf.mxu0
  %v6278 = vadd.f32 0.0, %v6277
  %6279 = vmatmul.bf16.gmra.mxu0 %v6082
  %v6280 = vpop.f32.mrf.mxu0
  %v6281 = vadd.f32 0.0, %v6280
  %v6282 = vpop.f32.mrf.mxu0
  %v6283 = vadd.f32 0.0, %v6282
  %6284 = vmatmul.bf16.gmra.mxu0 %v6085
  %v6285 = vpop.f32.mrf.mxu0
  %v6286 = vadd.f32 0.0, %v6285
  %v6287 = vpop.f32.mrf.mxu0
  %v6288 = vadd.f32 0.0, %v6287
  %6289 = vmatmul.bf16.gmra.mxu0 %v6088
  %v6290 = vpop.f32.mrf.mxu0
  %v6291 = vadd.f32 0.0, %v6290
  %v6292 = vpop.f32.mrf.mxu0
  %v6293 = vadd.f32 0.0, %v6292
  %6294 = vmatmul.bf16.gmra.mxu0 %v6091
  %v6295 = vpop.f32.mrf.mxu0
  %v6296 = vadd.f32 0.0, %v6295
  %v6297 = vpop.f32.mrf.mxu0
  %v6298 = vadd.f32 0.0, %v6297
  %6299 = vmatmul.bf16.gmra.mxu0 %v6094
  %v6300 = vpop.f32.mrf.mxu0
  %v6301 = vadd.f32 0.0, %v6300
  %v6302 = vpop.f32.mrf.mxu0
  %v6303 = vadd.f32 0.0, %v6302
  %6304 = vmatmul.bf16.gmra.mxu0 %v6097
  %v6305 = vpop.f32.mrf.mxu0
  %v6306 = vadd.f32 0.0, %v6305
  %v6307 = vpop.f32.mrf.mxu0
  %v6308 = vadd.f32 0.0, %v6307
  %6309 = vmatmul.bf16.gmra.mxu0 %v6100
  %v6310 = vpop.f32.mrf.mxu0
  %v6311 = vadd.f32 0.0, %v6310
  %v6312 = vpop.f32.mrf.mxu0
  %v6313 = vadd.f32 0.0, %v6312
  %6314 = vmatmul.bf16.gmra.mxu0 %v6103
  %v6315 = vpop.f32.mrf.mxu0
  %v6316 = vadd.f32 0.0, %v6315
  %v6317 = vpop.f32.mrf.mxu0
  %v6318 = vadd.f32 0.0, %v6317
  %6319 = vmatmul.bf16.gmra.mxu0 %v6106
  %v6320 = vpop.f32.mrf.mxu0
  %v6321 = vadd.f32 0.0, %v6320
  %v6322 = vpop.f32.mrf.mxu0
  %v6323 = vadd.f32 0.0, %v6322
  %6324 = vmatmul.bf16.gmra.mxu0 %v6109
  %v6325 = vpop.f32.mrf.mxu0
  %v6326 = vadd.f32 0.0, %v6325
  %v6327 = vpop.f32.mrf.mxu0
  %v6328 = vadd.f32 0.0, %v6327
  %6329 = vmatmul.bf16.gmra.mxu0 %v6112
  %v6330 = vpop.f32.mrf.mxu0
  %v6331 = vadd.f32 0.0, %v6330
  %v6332 = vpop.f32.mrf.mxu0
  %v6333 = vadd.f32 0.0, %v6332
  %6334 = vmatmul.bf16.gmra.mxu0 %v6115
  %v6335 = vpop.f32.mrf.mxu0
  %v6336 = vadd.f32 0.0, %v6335
  %v6337 = vpop.f32.mrf.mxu0
  %v6338 = vadd.f32 0.0, %v6337
  %6339 = vmatmul.bf16.gmra.mxu0 %v6118
  %v6340 = vpop.f32.mrf.mxu0
  %v6341 = vadd.f32 0.0, %v6340
  %v6342 = vpop.f32.mrf.mxu0
  %v6343 = vadd.f32 0.0, %v6342
  %6344 = vmatmul.bf16.gmra.mxu0 %v6121
  %v6345 = vpop.f32.mrf.mxu0
  %v6346 = vadd.f32 0.0, %v6345
  %v6347 = vpop.f32.mrf.mxu0
  %v6348 = vadd.f32 0.0, %v6347
  %6349 = vmatmul.bf16.gmra.mxu0 %v6124
  %v6350 = vpop.f32.mrf.mxu0
  %v6351 = vadd.f32 0.0, %v6350
  %v6352 = vpop.f32.mrf.mxu0
  %v6353 = vadd.f32 0.0, %v6352
  %6354 = vmatmul.bf16.gmra.mxu0 %v6127
  %v6355 = vpop.f32.mrf.mxu0
  %v6356 = vadd.f32 0.0, %v6355
  %v6357 = vpop.f32.mrf.mxu0
  %v6358 = vadd.f32 0.0, %v6357
  %6359 = vmatmul.bf16.gmra.mxu0 %v6130
  %v6360 = vpop.f32.mrf.mxu0
  %v6361 = vadd.f32 0.0, %v6360
  %v6362 = vpop.f32.mrf.mxu0
  %v6363 = vadd.f32 0.0, %v6362
  %6364 = vmatmul.bf16.gmra.mxu0 %v6133
  %v6365 = vpop.f32.mrf.mxu0
  %v6366 = vadd.f32 0.0, %v6365
  %v6367 = vpop.f32.mrf.mxu0
  %v6368 = vadd.f32 0.0, %v6367
  %6369 = vmatmul.bf16.gmra.mxu0 %v6136
  %v6370 = vpop.f32.mrf.mxu0
  %v6371 = vadd.f32 0.0, %v6370
  %v6372 = vpop.f32.mrf.mxu0
  %v6373 = vadd.f32 0.0, %v6372
  %6374 = vmatmul.bf16.gmra.mxu0 %v6139
  %v6375 = vpop.f32.mrf.mxu0
  %v6376 = vadd.f32 0.0, %v6375
  %v6377 = vpop.f32.mrf.mxu0
  %v6378 = vadd.f32 0.0, %v6377
  %6379 = vmatmul.bf16.gmra.mxu0 %v6142
  %v6380 = vpop.f32.mrf.mxu0
  %v6381 = vadd.f32 0.0, %v6380
  %v6382 = vpop.f32.mrf.mxu0
  %v6383 = vadd.f32 0.0, %v6382
  %6384 = vmatmul.bf16.gmra.mxu0 %v6145
  %v6385 = vpop.f32.mrf.mxu0
  %v6386 = vadd.f32 0.0, %v6385
  %v6387 = vpop.f32.mrf.mxu0
  %v6388 = vadd.f32 0.0, %v6387
  %6389 = vmatmul.bf16.gmra.mxu0 %v6148
  %v6390 = vpop.f32.mrf.mxu0
  %v6391 = vadd.f32 0.0, %v6390
  %v6392 = vpop.f32.mrf.mxu0
  %v6393 = vadd.f32 0.0, %v6392
  %6394 = vmatmul.bf16.gmra.mxu0 %v6151
  %v6395 = vpop.f32.mrf.mxu0
  %v6396 = vadd.f32 0.0, %v6395
  %v6397 = vpop.f32.mrf.mxu0
  %v6398 = vadd.f32 0.0, %v6397
  %6399 = vmatmul.bf16.gmra.mxu0 %v6154
  %v6400 = vpop.f32.mrf.mxu0
  %v6401 = vadd.f32 0.0, %v6400
  %v6402 = vpop.f32.mrf.mxu0
  %v6403 = vadd.f32 0.0, %v6402
  %6404 = vmatmul.bf16.gmra.mxu0 %v6157
  %v6405 = vpop.f32.mrf.mxu0
  %v6406 = vadd.f32 0.0, %v6405
  %v6407 = vpop.f32.mrf.mxu0
  %v6408 = vadd.f32 0.0, %v6407
  %6409 = vmatmul.bf16.gmra.mxu0 %v6160
  %v6410 = vpop.f32.mrf.mxu0
  %v6411 = vadd.f32 0.0, %v6410
  %v6412 = vpop.f32.mrf.mxu0
  %v6413 = vadd.f32 0.0, %v6412
  %6414 = vmatmul.bf16.gmra.mxu0 %v6163
  %v6415 = vpop.f32.mrf.mxu0
  %v6416 = vadd.f32 0.0, %v6415
  %v6417 = vpop.f32.mrf.mxu0
  %v6418 = vadd.f32 0.0, %v6417
  %6419 = vmatmul.bf16.gmra.mxu0 %v6166
  %v6420 = vpop.f32.mrf.mxu0
  %v6421 = vadd.f32 0.0, %v6420
  %v6422 = vpop.f32.mrf.mxu0
  %v6423 = vadd.f32 0.0, %v6422
  %6424 = vmatmul.bf16.gmra.mxu0 %v6169
  %v6425 = vpop.f32.mrf.mxu0
  %v6426 = vadd.f32 0.0, %v6425
  %v6427 = vpop.f32.mrf.mxu0
  %v6428 = vadd.f32 0.0, %v6427
  %6429 = vdwg.mxu0
  %v6430 = vmax.f32 %v6181, %v6243
  %v6431 = vmax.f32 %v6183, %v6246
  %v6432 = vmax.f32 %v6186, %v6248
  %v6433 = vmax.f32 %v6188, %v6251
  %v6434 = vmax.f32 %v6191, %v6253
  %v6435 = vmax.f32 %v6193, %v6256
  %v6436 = vmax.f32 %v6196, %v6258
  %v6437 = vmax.f32 %v6198, %v6261
  %v6438 = vmax.f32 %v6201, %v6263
  %v6439 = vmax.f32 %v6203, %v6266
  %v6440 = vmax.f32 %v6206, %v6268
  %v6441 = vmax.f32 %v6208, %v6271
  %v6442 = vmax.f32 %v6211, %v6273
  %v6443 = vmax.f32 %v6213, %v6276
  %v6444 = vmax.f32 %v6216, %v6278
  %v6445 = vmax.f32 %v6218, %v6281
  %v6446 = vmax.f32 %v6221, %v6283
  %v6447 = vmax.f32 %v6223, %v6286
  %v6448 = vmax.f32 %v6226, %v6288
  %v6449 = vmax.f32 %v6228, %v6291
  %v6450 = vmax.f32 %v6231, %v6293
  %v6451 = vmax.f32 %v6233, %v6296
  %v6452 = vmax.f32 %v6236, %v6298
  %v6453 = vmax.f32 %v6238, %v6301
  %v6454 = vmax.f32 %v6241, %v6303
  %v6455 = vmax.f32 %v6306, %v6368
  %v6456 = vmax.f32 %v6308, %v6371
  %v6457 = vmax.f32 %v6311, %v6373
  %v6458 = vmax.f32 %v6313, %v6376
  %v6459 = vmax.f32 %v6316, %v6378
  %v6460 = vmax.f32 %v6318, %v6381
  %v6461 = vmax.f32 %v6321, %v6383
  %v6462 = vmax.f32 %v6323, %v6386
  %v6463 = vmax.f32 %v6326, %v6388
  %v6464 = vmax.f32 %v6328, %v6391
  %v6465 = vmax.f32 %v6331, %v6393
  %v6466 = vmax.f32 %v6333, %v6396
  %v6467 = vmax.f32 %v6336, %v6398
  %v6468 = vmax.f32 %v6338, %v6401
  %v6469 = vmax.f32 %v6341, %v6403
  %v6470 = vmax.f32 %v6343, %v6406
  %v6471 = vmax.f32 %v6346, %v6408
  %v6472 = vmax.f32 %v6348, %v6411
  %v6473 = vmax.f32 %v6351, %v6413
  %v6474 = vmax.f32 %v6353, %v6416
  %v6475 = vmax.f32 %v6356, %v6418
  %v6476 = vmax.f32 %v6358, %v6421
  %v6477 = vmax.f32 %v6361, %v6423
  %v6478 = vmax.f32 %v6363, %v6426
  %v6479 = vmax.f32 %v6366, %v6428
  %v6480 = vmax.f32 %v6430, %v6455
  %v6481 = vmax.f32 %v6431, %v6456
  %v6482 = vmax.f32 %v6432, %v6457
  %v6483 = vmax.f32 %v6433, %v6458
  %v6484 = vmax.f32 %v6434, %v6459
  %v6485 = vmax.f32 %v6435, %v6460
  %v6486 = vmax.f32 %v6436, %v6461
  %v6487 = vmax.f32 %v6437, %v6462
  %v6488 = vmax.f32 %v6438, %v6463
  %v6489 = vmax.f32 %v6439, %v6464
  %v6490 = vmax.f32 %v6440, %v6465
  %v6491 = vmax.f32 %v6441, %v6466
  %v6492 = vmax.f32 %v6442, %v6467
  %v6493 = vmax.f32 %v6443, %v6468
  %v6494 = vmax.f32 %v6444, %v6469
  %v6495 = vmax.f32 %v6445, %v6470
  %v6496 = vmax.f32 %v6446, %v6471
  %v6497 = vmax.f32 %v6447, %v6472
  %v6498 = vmax.f32 %v6448, %v6473
  %v6499 = vmax.f32 %v6449, %v6474
  %v6500 = vmax.f32 %v6450, %v6475
  %v6501 = vmax.f32 %v6451, %v6476
  %v6502 = vmax.f32 %v6452, %v6477
  %v6503 = vmax.f32 %v6453, %v6478
  %v6504 = vmax.f32 %v6454, %v6479
  %v6505 = vadd.f32 %v6480, %v27
  %v6506 = vadd.f32 %v6481, %v27
  %v6507 = vadd.f32 %v6482, %v27
  %v6508 = vadd.f32 %v6483, %v27
  %v6509 = vadd.f32 %v6484, %v27
  %v6510 = vadd.f32 %v6485, %v27
  %v6511 = vadd.f32 %v6486, %v27
  %v6512 = vadd.f32 %v6487, %v27
  %v6513 = vadd.f32 %v6488, %v27
  %v6514 = vadd.f32 %v6489, %v27
  %v6515 = vadd.f32 %v6490, %v27
  %v6516 = vadd.f32 %v6491, %v27
  %v6517 = vadd.f32 %v6492, %v27
  %v6518 = vadd.f32 %v6493, %v27
  %v6519 = vadd.f32 %v6494, %v27
  %v6520 = vadd.f32 %v6495, %v27
  %v6521 = vadd.f32 %v6496, %v27
  %v6522 = vadd.f32 %v6497, %v27
  %v6523 = vadd.f32 %v6498, %v27
  %v6524 = vadd.f32 %v6499, %v27
  %v6525 = vadd.f32 %v6500, %v27
  %v6526 = vadd.f32 %v6501, %v27
  %v6527 = vadd.f32 %v6502, %v27
  %v6528 = vadd.f32 %v6503, %v27
  %v6529 = vadd.f32 %v6504, %v27
  %v6530 = vmax.f32 %v6505, 0.0
  %v6531 = vmax.f32 %v6506, 0.0
  %v6532 = vmax.f32 %v6507, 0.0
  %v6533 = vmax.f32 %v6508, 0.0
  %v6534 = vmax.f32 %v6509, 0.0
  %v6535 = vmax.f32 %v6510, 0.0
  %v6536 = vmax.f32 %v6511, 0.0
  %v6537 = vmax.f32 %v6512, 0.0
  %v6538 = vmax.f32 %v6513, 0.0
  %v6539 = vmax.f32 %v6514, 0.0
  %v6540 = vmax.f32 %v6515, 0.0
  %v6541 = vmax.f32 %v6516, 0.0
  %v6542 = vmax.f32 %v6517, 0.0
  %v6543 = vmax.f32 %v6518, 0.0
  %v6544 = vmax.f32 %v6519, 0.0
  %v6545 = vmax.f32 %v6520, 0.0
  %v6546 = vmax.f32 %v6521, 0.0
  %v6547 = vmax.f32 %v6522, 0.0
  %v6548 = vmax.f32 %v6523, 0.0
  %v6549 = vmax.f32 %v6524, 0.0
  %v6550 = vmax.f32 %v6525, 0.0
  %v6551 = vmax.f32 %v6526, 0.0
  %v6552 = vmax.f32 %v6527, 0.0
  %v6553 = vmax.f32 %v6528, 0.0
  %v6554 = vmax.f32 %v6529, 0.0
  %v6555 = vpack.c.bf16 %v6530, %v6530
  %v6556 = vpack.c.bf16 %v6531, %v6531
  %v6557 = vpack.c.bf16 %v6532, %v6532
  %v6558 = vpack.c.bf16 %v6533, %v6533
  %v6559 = vpack.c.bf16 %v6534, %v6534
  %v6560 = vpack.c.bf16 %v6535, %v6535
  %v6561 = vpack.c.bf16 %v6536, %v6536
  %v6562 = vpack.c.bf16 %v6537, %v6537
  %v6563 = vpack.c.bf16 %v6538, %v6538
  %v6564 = vpack.c.bf16 %v6539, %v6539
  %v6565 = vpack.c.bf16 %v6540, %v6540
  %v6566 = vpack.c.bf16 %v6541, %v6541
  %v6567 = vpack.c.bf16 %v6542, %v6542
  %v6568 = vpack.c.bf16 %v6543, %v6543
  %v6569 = vpack.c.bf16 %v6544, %v6544
  %v6570 = vpack.c.bf16 %v6545, %v6545
  %v6571 = vpack.c.bf16 %v6546, %v6546
  %v6572 = vpack.c.bf16 %v6547, %v6547
  %v6573 = vpack.c.bf16 %v6548, %v6548
  %v6574 = vpack.c.bf16 %v6549, %v6549
  %v6575 = vpack.c.bf16 %v6550, %v6550
  %v6576 = vpack.c.bf16 %v6551, %v6551
  %v6577 = vpack.c.bf16 %v6552, %v6552
  %v6578 = vpack.c.bf16 %v6553, %v6553
  %v6579 = vpack.c.bf16 %v6554, %v6554
  %6580 = vst.msk [vmem:[%s3 + $0x258] sm:$0xf] %vm975, %v6555
  %6581 = vst.msk [vmem:[%s3 + $0x25c] sm:$0xf] %vm975, %v6556
  %6582 = vst.msk [vmem:[%s3 + $0x260] sm:$0xf] %vm975, %v6557
  %6583 = vst.msk [vmem:[%s3 + $0x264] sm:$0xf] %vm975, %v6558
  %6584 = vst.msk [vmem:[%s3 + $0x268] sm:$0xf] %vm975, %v6559
  %6585 = vst.msk [vmem:[%s3 + $0x26c] sm:$0xf] %vm975, %v6560
  %6586 = vst.msk [vmem:[%s3 + $0x270] sm:$0xf] %vm975, %v6561
  %6587 = vst.msk [vmem:[%s3 + $0x274] sm:$0xf] %vm975, %v6562
  %6588 = vst.msk [vmem:[%s3 + $0x278] sm:$0xf] %vm975, %v6563
  %6589 = vst.msk [vmem:[%s3 + $0x27c] sm:$0xf] %vm975, %v6564
  %6590 = vst.msk [vmem:[%s3 + $0x280] sm:$0xf] %vm975, %v6565
  %6591 = vst.msk [vmem:[%s3 + $0x284] sm:$0xf] %vm975, %v6566
  %6592 = vst.msk [vmem:[%s3 + $0x288] sm:$0xf] %vm975, %v6567
  %6593 = vst.msk [vmem:[%s3 + $0x28c] sm:$0xf] %vm975, %v6568
  %6594 = vst.msk [vmem:[%s3 + $0x290] sm:$0xf] %vm975, %v6569
  %6595 = vst.msk [vmem:[%s3 + $0x294] sm:$0xf] %vm975, %v6570
  %6596 = vst.msk [vmem:[%s3 + $0x298] sm:$0xf] %vm975, %v6571
  %6597 = vst.msk [vmem:[%s3 + $0x29c] sm:$0xf] %vm975, %v6572
  %6598 = vst.msk [vmem:[%s3 + $0x2a0] sm:$0xf] %vm975, %v6573
  %6599 = vst.msk [vmem:[%s3 + $0x2a4] sm:$0xf] %vm975, %v6574
  %6600 = vst.msk [vmem:[%s3 + $0x2a8] sm:$0xf] %vm975, %v6575
  %6601 = vst.msk [vmem:[%s3 + $0x2ac] sm:$0xf] %vm975, %v6576
  %6602 = vst.msk [vmem:[%s3 + $0x2b0] sm:$0xf] %vm975, %v6577
  %6603 = vst.msk [vmem:[%s3 + $0x2b4] sm:$0xf] %vm975, %v6578
  %6604 = vst.msk [vmem:[%s3 + $0x2b8] sm:$0xf] %vm975, %v6579
  %v6605 = vld [vmem:[%s0 + $0xaf0] sm:$0xf]
  %v6606 = vld [vmem:[%s0 + $0xaf4] sm:$0xf]
  %v6607 = vld [vmem:[%s0 + $0xaf8] sm:$0xf]
  %v6608 = vld [vmem:[%s0 + $0xafc] sm:$0xf]
  %v6609 = vld [vmem:[%s0 + $0xb00] sm:$0xf]
  %v6610 = vld [vmem:[%s0 + $0xb04] sm:$0xf]
  %v6611 = vld [vmem:[%s0 + $0xb08] sm:$0xf]
  %v6612 = vld [vmem:[%s0 + $0xb0c] sm:$0xf]
  %v6613 = vld [vmem:[%s0 + $0xb10] sm:$0xf]
  %v6614 = vld [vmem:[%s0 + $0xb14] sm:$0xf]
  %v6615 = vld [vmem:[%s0 + $0xb18] sm:$0xf]
  %v6616 = vld [vmem:[%s0 + $0xb1c] sm:$0xf]
  %v6617 = vld [vmem:[%s0 + $0xb20] sm:$0xf]
  %v6618 = vld [vmem:[%s0 + $0xb24] sm:$0xf]
  %v6619 = vld [vmem:[%s0 + $0xb28] sm:$0xf]
  %v6620 = vld [vmem:[%s0 + $0xb2c] sm:$0xf]
  %v6621 = vld [vmem:[%s0 + $0xb30] sm:$0xf]
  %v6622 = vld [vmem:[%s0 + $0xb34] sm:$0xf]
  %v6623 = vld [vmem:[%s0 + $0xb38] sm:$0xf]
  %v6624 = vld [vmem:[%s0 + $0xb3c] sm:$0xf]
  %v6625 = vld [vmem:[%s0 + $0xb40] sm:$0xf]
  %v6626 = vld [vmem:[%s0 + $0xb44] sm:$0xf]
  %v6627 = vld [vmem:[%s0 + $0xb48] sm:$0xf]
  %v6628 = vld [vmem:[%s0 + $0xb4c] sm:$0xf]
  %v6629 = vld [vmem:[%s0 + $0xb50] sm:$0xf]
  %v6630 = vld [vmem:[%s0 + $0xb54] sm:$0xf]
  %v6631 = vld [vmem:[%s0 + $0xb58] sm:$0xf]
  %v6632 = vld [vmem:[%s0 + $0xb5c] sm:$0xf]
  %v6633 = vld [vmem:[%s0 + $0xb60] sm:$0xf]
  %v6634 = vld [vmem:[%s0 + $0xb64] sm:$0xf]
  %v6635 = vld [vmem:[%s0 + $0xb68] sm:$0xf]
  %v6636 = vld [vmem:[%s0 + $0xb6c] sm:$0xf]
  %v6637 = vld [vmem:[%s0 + $0xb70] sm:$0xf]
  %v6638 = vld [vmem:[%s0 + $0xb74] sm:$0xf]
  %v6639 = vld [vmem:[%s0 + $0xb78] sm:$0xf]
  %v6640 = vld [vmem:[%s0 + $0xb7c] sm:$0xf]
  %v6641 = vld [vmem:[%s0 + $0xb80] sm:$0xf]
  %v6642 = vld [vmem:[%s0 + $0xb84] sm:$0xf]
  %v6643 = vld [vmem:[%s0 + $0xb88] sm:$0xf]
  %v6644 = vld [vmem:[%s0 + $0xb8c] sm:$0xf]
  %v6645 = vld [vmem:[%s0 + $0xb90] sm:$0xf]
  %v6646 = vld [vmem:[%s0 + $0xb94] sm:$0xf]
  %v6647 = vld [vmem:[%s0 + $0xb98] sm:$0xf]
  %v6648 = vld [vmem:[%s0 + $0xb9c] sm:$0xf]
  %v6649 = vld [vmem:[%s0 + $0xba0] sm:$0xf]
  %v6650 = vld [vmem:[%s0 + $0xba4] sm:$0xf]
  %v6651 = vld [vmem:[%s0 + $0xba8] sm:$0xf]
  %v6652 = vld [vmem:[%s0 + $0xbac] sm:$0xf]
  %v6653 = vld [vmem:[%s0 + $0xbb0] sm:$0xf]
  %v6654 = vld [vmem:[%s0 + $0xbb4] sm:$0xf]
  %v6655 = vld [vmem:[%s0 + $0xbb8] sm:$0xf]
  %v6656 = vld [vmem:[%s0 + $0xbbc] sm:$0xf]
  %v6657 = vld [vmem:[%s0 + $0xbc0] sm:$0xf]
  %v6658 = vld [vmem:[%s0 + $0xbc4] sm:$0xf]
  %v6659 = vld [vmem:[%s0 + $0xbc8] sm:$0xf]
  %v6660 = vld [vmem:[%s0 + $0xbcc] sm:$0xf]
  %v6661 = vld [vmem:[%s0 + $0xbd0] sm:$0xf]
  %v6662 = vld [vmem:[%s0 + $0xbd4] sm:$0xf]
  %v6663 = vld [vmem:[%s0 + $0xbd8] sm:$0xf]
  %v6664 = vld [vmem:[%s0 + $0xbdc] sm:$0xf]
  %v6665 = vld [vmem:[%s0 + $0xbe0] sm:$0xf]
  %v6666 = vld [vmem:[%s0 + $0xbe4] sm:$0xf]
  %v6667 = vld [vmem:[%s0 + $0xbe8] sm:$0xf]
  %v6668 = vld [vmem:[%s0 + $0xbec] sm:$0xf]
  %v6669 = vld [vmem:[%s0 + $0xbf0] sm:$0xf]
  %v6670 = vld [vmem:[%s0 + $0xbf4] sm:$0xf]
  %v6671 = vld [vmem:[%s0 + $0xbf8] sm:$0xf]
  %v6672 = vld [vmem:[%s0 + $0xbfc] sm:$0xf]
  %v6673 = vld [vmem:[%s0 + $0xc00] sm:$0xf]
  %v6674 = vld [vmem:[%s0 + $0xc04] sm:$0xf]
  %v6675 = vld [vmem:[%s0 + $0xc08] sm:$0xf]
  %v6676 = vld [vmem:[%s0 + $0xc0c] sm:$0xf]
  %v6677 = vld [vmem:[%s0 + $0xc10] sm:$0xf]
  %v6678 = vld [vmem:[%s0 + $0xc14] sm:$0xf]
  %v6679 = vld [vmem:[%s0 + $0xc18] sm:$0xf]
  %v6680 = vld [vmem:[%s0 + $0xc1c] sm:$0xf]
  %v6681 = vld [vmem:[%s0 + $0xc20] sm:$0xf]
  %v6682 = vld [vmem:[%s0 + $0xc24] sm:$0xf]
  %v6683 = vld [vmem:[%s0 + $0xc28] sm:$0xf]
  %v6684 = vld [vmem:[%s0 + $0xc2c] sm:$0xf]
  %v6685 = vld [vmem:[%s0 + $0xc30] sm:$0xf]
  %v6686 = vld [vmem:[%s0 + $0xc34] sm:$0xf]
  %v6687 = vld [vmem:[%s0 + $0xc38] sm:$0xf]
  %v6688 = vld [vmem:[%s0 + $0xc3c] sm:$0xf]
  %v6689 = vld [vmem:[%s0 + $0xc40] sm:$0xf]
  %v6690 = vld [vmem:[%s0 + $0xc44] sm:$0xf]
  %v6691 = vld [vmem:[%s0 + $0xc48] sm:$0xf]
  %v6692 = vld [vmem:[%s0 + $0xc4c] sm:$0xf]
  %v6693 = vld [vmem:[%s0 + $0xc50] sm:$0xf]
  %v6694 = vld [vmem:[%s0 + $0xc54] sm:$0xf]
  %v6695 = vld [vmem:[%s0 + $0xc58] sm:$0xf]
  %v6696 = vld [vmem:[%s0 + $0xc5c] sm:$0xf]
  %v6697 = vld [vmem:[%s0 + $0xc60] sm:$0xf]
  %v6698 = vld [vmem:[%s0 + $0xc64] sm:$0xf]
  %v6699 = vld [vmem:[%s0 + $0xc68] sm:$0xf]
  %v6700 = vld [vmem:[%s0 + $0xc6c] sm:$0xf]
  %v6701 = vld [vmem:[%s0 + $0xc70] sm:$0xf]
  %v6702 = vld [vmem:[%s0 + $0xc74] sm:$0xf]
  %v6703 = vld [vmem:[%s0 + $0xc78] sm:$0xf]
  %v6704 = vld [vmem:[%s0 + $0xc7c] sm:$0xf]
  %v6805 = vunpack.c.l.b16 %v6605
  %v6806 = vunpack.c.l.b16 %v6606
  %v6807 = vunpack.c.l.b16 %v6607
  %v6808 = vunpack.c.l.b16 %v6608
  %v6809 = vunpack.c.l.b16 %v6609
  %v6810 = vunpack.c.l.b16 %v6610
  %v6811 = vunpack.c.l.b16 %v6611
  %v6812 = vunpack.c.l.b16 %v6612
  %v6813 = vunpack.c.l.b16 %v6613
  %v6814 = vunpack.c.l.b16 %v6614
  %v6815 = vunpack.c.l.b16 %v6615
  %v6816 = vunpack.c.l.b16 %v6616
  %v6817 = vunpack.c.l.b16 %v6617
  %v6818 = vunpack.c.l.b16 %v6618
  %v6819 = vunpack.c.l.b16 %v6619
  %v6820 = vunpack.c.l.b16 %v6620
  %v6821 = vunpack.c.l.b16 %v6621
  %v6822 = vunpack.c.l.b16 %v6622
  %v6823 = vunpack.c.l.b16 %v6623
  %v6824 = vunpack.c.l.b16 %v6624
  %v6825 = vunpack.c.l.b16 %v6625
  %v6826 = vunpack.c.l.b16 %v6626
  %v6827 = vunpack.c.l.b16 %v6627
  %v6828 = vunpack.c.l.b16 %v6628
  %v6829 = vunpack.c.l.b16 %v6629
  %v6830 = vunpack.c.l.b16 %v6630
  %v6831 = vunpack.c.l.b16 %v6631
  %v6832 = vunpack.c.l.b16 %v6632
  %v6833 = vunpack.c.l.b16 %v6633
  %v6834 = vunpack.c.l.b16 %v6634
  %v6835 = vunpack.c.l.b16 %v6635
  %v6836 = vunpack.c.l.b16 %v6636
  %v6837 = vunpack.c.l.b16 %v6637
  %v6838 = vunpack.c.l.b16 %v6638
  %v6839 = vunpack.c.l.b16 %v6639
  %v6840 = vunpack.c.l.b16 %v6640
  %v6841 = vunpack.c.l.b16 %v6641
  %v6842 = vunpack.c.l.b16 %v6642
  %v6843 = vunpack.c.l.b16 %v6643
  %v6844 = vunpack.c.l.b16 %v6644
  %v6845 = vunpack.c.l.b16 %v6645
  %v6846 = vunpack.c.l.b16 %v6646
  %v6847 = vunpack.c.l.b16 %v6647
  %v6848 = vunpack.c.l.b16 %v6648
  %v6849 = vunpack.c.l.b16 %v6649
  %v6850 = vunpack.c.l.b16 %v6650
  %v6851 = vunpack.c.l.b16 %v6651
  %v6852 = vunpack.c.l.b16 %v6652
  %v6853 = vunpack.c.l.b16 %v6653
  %v6854 = vunpack.c.l.b16 %v6654
  %v6855 = vunpack.c.l.b16 %v6655
  %v6856 = vunpack.c.l.b16 %v6656
  %v6857 = vunpack.c.l.b16 %v6657
  %v6858 = vunpack.c.l.b16 %v6658
  %v6859 = vunpack.c.l.b16 %v6659
  %v6860 = vunpack.c.l.b16 %v6660
  %v6861 = vunpack.c.l.b16 %v6661
  %v6862 = vunpack.c.l.b16 %v6662
  %v6863 = vunpack.c.l.b16 %v6663
  %v6864 = vunpack.c.l.b16 %v6664
  %v6865 = vunpack.c.l.b16 %v6665
  %v6866 = vunpack.c.l.b16 %v6666
  %v6867 = vunpack.c.l.b16 %v6667
  %v6868 = vunpack.c.l.b16 %v6668
  %v6869 = vunpack.c.l.b16 %v6669
  %v6870 = vunpack.c.l.b16 %v6670
  %v6871 = vunpack.c.l.b16 %v6671
  %v6872 = vunpack.c.l.b16 %v6672
  %v6873 = vunpack.c.l.b16 %v6673
  %v6874 = vunpack.c.l.b16 %v6674
  %v6875 = vunpack.c.l.b16 %v6675
  %v6876 = vunpack.c.l.b16 %v6676
  %v6877 = vunpack.c.l.b16 %v6677
  %v6878 = vunpack.c.l.b16 %v6678
  %v6879 = vunpack.c.l.b16 %v6679
  %v6880 = vunpack.c.l.b16 %v6680
  %v6881 = vunpack.c.l.b16 %v6681
  %v6882 = vunpack.c.l.b16 %v6682
  %v6883 = vunpack.c.l.b16 %v6683
  %v6884 = vunpack.c.l.b16 %v6684
  %v6885 = vunpack.c.l.b16 %v6685
  %v6886 = vunpack.c.l.b16 %v6686
  %v6887 = vunpack.c.l.b16 %v6687
  %v6888 = vunpack.c.l.b16 %v6688
  %v6889 = vunpack.c.l.b16 %v6689
  %v6890 = vunpack.c.l.b16 %v6690
  %v6891 = vunpack.c.l.b16 %v6691
  %v6892 = vunpack.c.l.b16 %v6692
  %v6893 = vunpack.c.l.b16 %v6693
  %v6894 = vunpack.c.l.b16 %v6694
  %v6895 = vunpack.c.l.b16 %v6695
  %v6896 = vunpack.c.l.b16 %v6696
  %v6897 = vunpack.c.l.b16 %v6697
  %v6898 = vunpack.c.l.b16 %v6698
  %v6899 = vunpack.c.l.b16 %v6699
  %v6900 = vunpack.c.l.b16 %v6700
  %v6901 = vunpack.c.l.b16 %v6701
  %v6902 = vunpack.c.l.b16 %v6702
  %v6903 = vunpack.c.l.b16 %v6703
  %v6904 = vunpack.c.l.b16 %v6704
  %v6905 = vpack.c.b16 %v6806, %v6805
  %v6906 = vpack.c.b16 %v6808, %v6807
  %v6907 = vpack.c.b16 %v6810, %v6809
  %v6908 = vpack.c.b16 %v6812, %v6811
  %v6909 = vpack.c.b16 %v6814, %v6813
  %v6910 = vpack.c.b16 %v6816, %v6815
  %v6911 = vpack.c.b16 %v6818, %v6817
  %v6912 = vpack.c.b16 %v6820, %v6819
  %v6913 = vpack.c.b16 %v6822, %v6821
  %v6914 = vpack.c.b16 %v6824, %v6823
  %v6915 = vpack.c.b16 %v6826, %v6825
  %v6916 = vpack.c.b16 %v6828, %v6827
  %v6917 = vpack.c.b16 %v6830, %v6829
  %v6918 = vpack.c.b16 %v6832, %v6831
  %v6919 = vpack.c.b16 %v6834, %v6833
  %v6920 = vpack.c.b16 %v6836, %v6835
  %v6921 = vpack.c.b16 %v6838, %v6837
  %v6922 = vpack.c.b16 %v6840, %v6839
  %v6923 = vpack.c.b16 %v6842, %v6841
  %v6924 = vpack.c.b16 %v6844, %v6843
  %v6925 = vpack.c.b16 %v6846, %v6845
  %v6926 = vpack.c.b16 %v6848, %v6847
  %v6927 = vpack.c.b16 %v6850, %v6849
  %v6928 = vpack.c.b16 %v6852, %v6851
  %v6929 = vpack.c.b16 %v6854, %v6853
  %v6930 = vpack.c.b16 %v6856, %v6855
  %v6931 = vpack.c.b16 %v6858, %v6857
  %v6932 = vpack.c.b16 %v6860, %v6859
  %v6933 = vpack.c.b16 %v6862, %v6861
  %v6934 = vpack.c.b16 %v6864, %v6863
  %v6935 = vpack.c.b16 %v6866, %v6865
  %v6936 = vpack.c.b16 %v6868, %v6867
  %v6937 = vpack.c.b16 %v6870, %v6869
  %v6938 = vpack.c.b16 %v6872, %v6871
  %v6939 = vpack.c.b16 %v6874, %v6873
  %v6940 = vpack.c.b16 %v6876, %v6875
  %v6941 = vpack.c.b16 %v6878, %v6877
  %v6942 = vpack.c.b16 %v6880, %v6879
  %v6943 = vpack.c.b16 %v6882, %v6881
  %v6944 = vpack.c.b16 %v6884, %v6883
  %v6945 = vpack.c.b16 %v6886, %v6885
  %v6946 = vpack.c.b16 %v6888, %v6887
  %v6947 = vpack.c.b16 %v6890, %v6889
  %v6948 = vpack.c.b16 %v6892, %v6891
  %v6949 = vpack.c.b16 %v6894, %v6893
  %v6950 = vpack.c.b16 %v6896, %v6895
  %v6951 = vpack.c.b16 %v6898, %v6897
  %v6952 = vpack.c.b16 %v6900, %v6899
  %v6953 = vpack.c.b16 %v6902, %v6901
  %v6954 = vpack.c.b16 %v6904, %v6903
  %v6956 = vsel %vm408, %v6905, 0
  %v6959 = vsel %vm408, %v6906, 0
  %v6962 = vsel %vm408, %v6907, 0
  %v6965 = vsel %vm408, %v6908, 0
  %v6968 = vsel %vm408, %v6909, 0
  %v6971 = vsel %vm408, %v6910, 0
  %v6974 = vsel %vm408, %v6911, 0
  %v6977 = vsel %vm408, %v6912, 0
  %v6980 = vsel %vm408, %v6913, 0
  %v6983 = vsel %vm408, %v6914, 0
  %v6986 = vsel %vm408, %v6915, 0
  %v6989 = vsel %vm408, %v6916, 0
  %v6992 = vsel %vm408, %v6917, 0
  %v6995 = vsel %vm408, %v6918, 0
  %v6998 = vsel %vm408, %v6919, 0
  %v7001 = vsel %vm408, %v6920, 0
  %v7004 = vsel %vm408, %v6921, 0
  %v7007 = vsel %vm408, %v6922, 0
  %v7010 = vsel %vm408, %v6923, 0
  %v7013 = vsel %vm408, %v6924, 0
  %v7016 = vsel %vm408, %v6925, 0
  %v7019 = vsel %vm408, %v6926, 0
  %v7022 = vsel %vm408, %v6927, 0
  %v7025 = vsel %vm408, %v6928, 0
  %v7028 = vsel %vm408, %v6929, 0
  %v7031 = vsel %vm408, %v6930, 0
  %v7034 = vsel %vm408, %v6931, 0
  %v7037 = vsel %vm408, %v6932, 0
  %v7040 = vsel %vm408, %v6933, 0
  %v7043 = vsel %vm408, %v6934, 0
  %v7046 = vsel %vm408, %v6935, 0
  %v7049 = vsel %vm408, %v6936, 0
  %v7052 = vsel %vm408, %v6937, 0
  %v7055 = vsel %vm408, %v6938, 0
  %v7058 = vsel %vm408, %v6939, 0
  %v7061 = vsel %vm408, %v6940, 0
  %v7064 = vsel %vm408, %v6941, 0
  %v7067 = vsel %vm408, %v6942, 0
  %v7070 = vsel %vm408, %v6943, 0
  %v7073 = vsel %vm408, %v6944, 0
  %v7076 = vsel %vm408, %v6945, 0
  %v7079 = vsel %vm408, %v6946, 0
  %v7082 = vsel %vm408, %v6947, 0
  %v7085 = vsel %vm408, %v6948, 0
  %v7088 = vsel %vm408, %v6949, 0
  %v7091 = vsel %vm408, %v6950, 0
  %v7094 = vsel %vm408, %v6951, 0
  %v7097 = vsel %vm408, %v6952, 0
  %v7100 = vsel %vm408, %v6953, 0
  %v7103 = vsel %vm408, %v6954, 0
  %7105 = vmatpush.bf16.msra.mxu0 0
  %7106 = vmatpush.bf16.msra.mxu0 0
  %7107 = vmatpush.bf16.msra.mxu0 0
  %7108 = vmatpush.bf16.msra.mxu0 %v564
  %7109 = vmatpush.bf16.msra.mxu0 %v402
  %7110 = vmatpush.bf16.msra.mxu0 %v401
  %7111 = vmatpush.bf16.msra.mxu0 %v400
  %7112 = vmatpush.bf16.msra.mxu0 %v399
  %7113 = vmatmul.bf16.gmra.mxu0 %v6956
  %v7114 = vpop.f32.mrf.mxu0
  %v7115 = vadd.f32 0.0, %v7114
  %v7116 = vpop.f32.mrf.mxu0
  %v7117 = vadd.f32 0.0, %v7116
  %7118 = vmatmul.bf16.gmra.mxu0 %v6959
  %v7119 = vpop.f32.mrf.mxu0
  %v7120 = vadd.f32 0.0, %v7119
  %v7121 = vpop.f32.mrf.mxu0
  %v7122 = vadd.f32 0.0, %v7121
  %7123 = vmatmul.bf16.gmra.mxu0 %v6962
  %v7124 = vpop.f32.mrf.mxu0
  %v7125 = vadd.f32 0.0, %v7124
  %v7126 = vpop.f32.mrf.mxu0
  %v7127 = vadd.f32 0.0, %v7126
  %7128 = vmatmul.bf16.gmra.mxu0 %v6965
  %v7129 = vpop.f32.mrf.mxu0
  %v7130 = vadd.f32 0.0, %v7129
  %v7131 = vpop.f32.mrf.mxu0
  %v7132 = vadd.f32 0.0, %v7131
  %7133 = vmatmul.bf16.gmra.mxu0 %v6968
  %v7134 = vpop.f32.mrf.mxu0
  %v7135 = vadd.f32 0.0, %v7134
  %v7136 = vpop.f32.mrf.mxu0
  %v7137 = vadd.f32 0.0, %v7136
  %7138 = vmatmul.bf16.gmra.mxu0 %v6971
  %v7139 = vpop.f32.mrf.mxu0
  %v7140 = vadd.f32 0.0, %v7139
  %v7141 = vpop.f32.mrf.mxu0
  %v7142 = vadd.f32 0.0, %v7141
  %7143 = vmatmul.bf16.gmra.mxu0 %v6974
  %v7144 = vpop.f32.mrf.mxu0
  %v7145 = vadd.f32 0.0, %v7144
  %v7146 = vpop.f32.mrf.mxu0
  %v7147 = vadd.f32 0.0, %v7146
  %7148 = vmatmul.bf16.gmra.mxu0 %v6977
  %v7149 = vpop.f32.mrf.mxu0
  %v7150 = vadd.f32 0.0, %v7149
  %v7151 = vpop.f32.mrf.mxu0
  %v7152 = vadd.f32 0.0, %v7151
  %7153 = vmatmul.bf16.gmra.mxu0 %v6980
  %v7154 = vpop.f32.mrf.mxu0
  %v7155 = vadd.f32 0.0, %v7154
  %v7156 = vpop.f32.mrf.mxu0
  %v7157 = vadd.f32 0.0, %v7156
  %7158 = vmatmul.bf16.gmra.mxu0 %v6983
  %v7159 = vpop.f32.mrf.mxu0
  %v7160 = vadd.f32 0.0, %v7159
  %v7161 = vpop.f32.mrf.mxu0
  %v7162 = vadd.f32 0.0, %v7161
  %7163 = vmatmul.bf16.gmra.mxu0 %v6986
  %v7164 = vpop.f32.mrf.mxu0
  %v7165 = vadd.f32 0.0, %v7164
  %v7166 = vpop.f32.mrf.mxu0
  %v7167 = vadd.f32 0.0, %v7166
  %7168 = vmatmul.bf16.gmra.mxu0 %v6989
  %v7169 = vpop.f32.mrf.mxu0
  %v7170 = vadd.f32 0.0, %v7169
  %v7171 = vpop.f32.mrf.mxu0
  %v7172 = vadd.f32 0.0, %v7171
  %7173 = vmatmul.bf16.gmra.mxu0 %v6992
  %v7174 = vpop.f32.mrf.mxu0
  %v7175 = vadd.f32 0.0, %v7174
  %v7176 = vpop.f32.mrf.mxu0
  %v7177 = vadd.f32 0.0, %v7176
  %7178 = vmatmul.bf16.gmra.mxu0 %v6995
  %v7179 = vpop.f32.mrf.mxu0
  %v7180 = vadd.f32 0.0, %v7179
  %v7181 = vpop.f32.mrf.mxu0
  %v7182 = vadd.f32 0.0, %v7181
  %7183 = vmatmul.bf16.gmra.mxu0 %v6998
  %v7184 = vpop.f32.mrf.mxu0
  %v7185 = vadd.f32 0.0, %v7184
  %v7186 = vpop.f32.mrf.mxu0
  %v7187 = vadd.f32 0.0, %v7186
  %7188 = vmatmul.bf16.gmra.mxu0 %v7001
  %v7189 = vpop.f32.mrf.mxu0
  %v7190 = vadd.f32 0.0, %v7189
  %v7191 = vpop.f32.mrf.mxu0
  %v7192 = vadd.f32 0.0, %v7191
  %7193 = vmatmul.bf16.gmra.mxu0 %v7004
  %v7194 = vpop.f32.mrf.mxu0
  %v7195 = vadd.f32 0.0, %v7194
  %v7196 = vpop.f32.mrf.mxu0
  %v7197 = vadd.f32 0.0, %v7196
  %7198 = vmatmul.bf16.gmra.mxu0 %v7007
  %v7199 = vpop.f32.mrf.mxu0
  %v7200 = vadd.f32 0.0, %v7199
  %v7201 = vpop.f32.mrf.mxu0
  %v7202 = vadd.f32 0.0, %v7201
  %7203 = vmatmul.bf16.gmra.mxu0 %v7010
  %v7204 = vpop.f32.mrf.mxu0
  %v7205 = vadd.f32 0.0, %v7204
  %v7206 = vpop.f32.mrf.mxu0
  %v7207 = vadd.f32 0.0, %v7206
  %7208 = vmatmul.bf16.gmra.mxu0 %v7013
  %v7209 = vpop.f32.mrf.mxu0
  %v7210 = vadd.f32 0.0, %v7209
  %v7211 = vpop.f32.mrf.mxu0
  %v7212 = vadd.f32 0.0, %v7211
  %7213 = vmatmul.bf16.gmra.mxu0 %v7016
  %v7214 = vpop.f32.mrf.mxu0
  %v7215 = vadd.f32 0.0, %v7214
  %v7216 = vpop.f32.mrf.mxu0
  %v7217 = vadd.f32 0.0, %v7216
  %7218 = vmatmul.bf16.gmra.mxu0 %v7019
  %v7219 = vpop.f32.mrf.mxu0
  %v7220 = vadd.f32 0.0, %v7219
  %v7221 = vpop.f32.mrf.mxu0
  %v7222 = vadd.f32 0.0, %v7221
  %7223 = vmatmul.bf16.gmra.mxu0 %v7022
  %v7224 = vpop.f32.mrf.mxu0
  %v7225 = vadd.f32 0.0, %v7224
  %v7226 = vpop.f32.mrf.mxu0
  %v7227 = vadd.f32 0.0, %v7226
  %7228 = vmatmul.bf16.gmra.mxu0 %v7025
  %v7229 = vpop.f32.mrf.mxu0
  %v7230 = vadd.f32 0.0, %v7229
  %v7231 = vpop.f32.mrf.mxu0
  %v7232 = vadd.f32 0.0, %v7231
  %7233 = vmatmul.bf16.gmra.mxu0 %v7028
  %v7234 = vpop.f32.mrf.mxu0
  %v7235 = vadd.f32 0.0, %v7234
  %v7236 = vpop.f32.mrf.mxu0
  %v7237 = vadd.f32 0.0, %v7236
  %7238 = vmatmul.bf16.gmra.mxu0 %v7031
  %v7239 = vpop.f32.mrf.mxu0
  %v7240 = vadd.f32 0.0, %v7239
  %v7241 = vpop.f32.mrf.mxu0
  %v7242 = vadd.f32 0.0, %v7241
  %7243 = vmatmul.bf16.gmra.mxu0 %v7034
  %v7244 = vpop.f32.mrf.mxu0
  %v7245 = vadd.f32 0.0, %v7244
  %v7246 = vpop.f32.mrf.mxu0
  %v7247 = vadd.f32 0.0, %v7246
  %7248 = vmatmul.bf16.gmra.mxu0 %v7037
  %v7249 = vpop.f32.mrf.mxu0
  %v7250 = vadd.f32 0.0, %v7249
  %v7251 = vpop.f32.mrf.mxu0
  %v7252 = vadd.f32 0.0, %v7251
  %7253 = vmatmul.bf16.gmra.mxu0 %v7040
  %v7254 = vpop.f32.mrf.mxu0
  %v7255 = vadd.f32 0.0, %v7254
  %v7256 = vpop.f32.mrf.mxu0
  %v7257 = vadd.f32 0.0, %v7256
  %7258 = vmatmul.bf16.gmra.mxu0 %v7043
  %v7259 = vpop.f32.mrf.mxu0
  %v7260 = vadd.f32 0.0, %v7259
  %v7261 = vpop.f32.mrf.mxu0
  %v7262 = vadd.f32 0.0, %v7261
  %7263 = vmatmul.bf16.gmra.mxu0 %v7046
  %v7264 = vpop.f32.mrf.mxu0
  %v7265 = vadd.f32 0.0, %v7264
  %v7266 = vpop.f32.mrf.mxu0
  %v7267 = vadd.f32 0.0, %v7266
  %7268 = vmatmul.bf16.gmra.mxu0 %v7049
  %v7269 = vpop.f32.mrf.mxu0
  %v7270 = vadd.f32 0.0, %v7269
  %v7271 = vpop.f32.mrf.mxu0
  %v7272 = vadd.f32 0.0, %v7271
  %7273 = vmatmul.bf16.gmra.mxu0 %v7052
  %v7274 = vpop.f32.mrf.mxu0
  %v7275 = vadd.f32 0.0, %v7274
  %v7276 = vpop.f32.mrf.mxu0
  %v7277 = vadd.f32 0.0, %v7276
  %7278 = vmatmul.bf16.gmra.mxu0 %v7055
  %v7279 = vpop.f32.mrf.mxu0
  %v7280 = vadd.f32 0.0, %v7279
  %v7281 = vpop.f32.mrf.mxu0
  %v7282 = vadd.f32 0.0, %v7281
  %7283 = vmatmul.bf16.gmra.mxu0 %v7058
  %v7284 = vpop.f32.mrf.mxu0
  %v7285 = vadd.f32 0.0, %v7284
  %v7286 = vpop.f32.mrf.mxu0
  %v7287 = vadd.f32 0.0, %v7286
  %7288 = vmatmul.bf16.gmra.mxu0 %v7061
  %v7289 = vpop.f32.mrf.mxu0
  %v7290 = vadd.f32 0.0, %v7289
  %v7291 = vpop.f32.mrf.mxu0
  %v7292 = vadd.f32 0.0, %v7291
  %7293 = vmatmul.bf16.gmra.mxu0 %v7064
  %v7294 = vpop.f32.mrf.mxu0
  %v7295 = vadd.f32 0.0, %v7294
  %v7296 = vpop.f32.mrf.mxu0
  %v7297 = vadd.f32 0.0, %v7296
  %7298 = vmatmul.bf16.gmra.mxu0 %v7067
  %v7299 = vpop.f32.mrf.mxu0
  %v7300 = vadd.f32 0.0, %v7299
  %v7301 = vpop.f32.mrf.mxu0
  %v7302 = vadd.f32 0.0, %v7301
  %7303 = vmatmul.bf16.gmra.mxu0 %v7070
  %v7304 = vpop.f32.mrf.mxu0
  %v7305 = vadd.f32 0.0, %v7304
  %v7306 = vpop.f32.mrf.mxu0
  %v7307 = vadd.f32 0.0, %v7306
  %7308 = vmatmul.bf16.gmra.mxu0 %v7073
  %v7309 = vpop.f32.mrf.mxu0
  %v7310 = vadd.f32 0.0, %v7309
  %v7311 = vpop.f32.mrf.mxu0
  %v7312 = vadd.f32 0.0, %v7311
  %7313 = vmatmul.bf16.gmra.mxu0 %v7076
  %v7314 = vpop.f32.mrf.mxu0
  %v7315 = vadd.f32 0.0, %v7314
  %v7316 = vpop.f32.mrf.mxu0
  %v7317 = vadd.f32 0.0, %v7316
  %7318 = vmatmul.bf16.gmra.mxu0 %v7079
  %v7319 = vpop.f32.mrf.mxu0
  %v7320 = vadd.f32 0.0, %v7319
  %v7321 = vpop.f32.mrf.mxu0
  %v7322 = vadd.f32 0.0, %v7321
  %7323 = vmatmul.bf16.gmra.mxu0 %v7082
  %v7324 = vpop.f32.mrf.mxu0
  %v7325 = vadd.f32 0.0, %v7324
  %v7326 = vpop.f32.mrf.mxu0
  %v7327 = vadd.f32 0.0, %v7326
  %7328 = vmatmul.bf16.gmra.mxu0 %v7085
  %v7329 = vpop.f32.mrf.mxu0
  %v7330 = vadd.f32 0.0, %v7329
  %v7331 = vpop.f32.mrf.mxu0
  %v7332 = vadd.f32 0.0, %v7331
  %7333 = vmatmul.bf16.gmra.mxu0 %v7088
  %v7334 = vpop.f32.mrf.mxu0
  %v7335 = vadd.f32 0.0, %v7334
  %v7336 = vpop.f32.mrf.mxu0
  %v7337 = vadd.f32 0.0, %v7336
  %7338 = vmatmul.bf16.gmra.mxu0 %v7091
  %v7339 = vpop.f32.mrf.mxu0
  %v7340 = vadd.f32 0.0, %v7339
  %v7341 = vpop.f32.mrf.mxu0
  %v7342 = vadd.f32 0.0, %v7341
  %7343 = vmatmul.bf16.gmra.mxu0 %v7094
  %v7344 = vpop.f32.mrf.mxu0
  %v7345 = vadd.f32 0.0, %v7344
  %v7346 = vpop.f32.mrf.mxu0
  %v7347 = vadd.f32 0.0, %v7346
  %7348 = vmatmul.bf16.gmra.mxu0 %v7097
  %v7349 = vpop.f32.mrf.mxu0
  %v7350 = vadd.f32 0.0, %v7349
  %v7351 = vpop.f32.mrf.mxu0
  %v7352 = vadd.f32 0.0, %v7351
  %7353 = vmatmul.bf16.gmra.mxu0 %v7100
  %v7354 = vpop.f32.mrf.mxu0
  %v7355 = vadd.f32 0.0, %v7354
  %v7356 = vpop.f32.mrf.mxu0
  %v7357 = vadd.f32 0.0, %v7356
  %7358 = vmatmul.bf16.gmra.mxu0 %v7103
  %v7359 = vpop.f32.mrf.mxu0
  %v7360 = vadd.f32 0.0, %v7359
  %v7361 = vpop.f32.mrf.mxu0
  %v7362 = vadd.f32 0.0, %v7361
  %7363 = vdwg.mxu0
  %v7364 = vmax.f32 %v7115, %v7177
  %v7365 = vmax.f32 %v7117, %v7180
  %v7366 = vmax.f32 %v7120, %v7182
  %v7367 = vmax.f32 %v7122, %v7185
  %v7368 = vmax.f32 %v7125, %v7187
  %v7369 = vmax.f32 %v7127, %v7190
  %v7370 = vmax.f32 %v7130, %v7192
  %v7371 = vmax.f32 %v7132, %v7195
  %v7372 = vmax.f32 %v7135, %v7197
  %v7373 = vmax.f32 %v7137, %v7200
  %v7374 = vmax.f32 %v7140, %v7202
  %v7375 = vmax.f32 %v7142, %v7205
  %v7376 = vmax.f32 %v7145, %v7207
  %v7377 = vmax.f32 %v7147, %v7210
  %v7378 = vmax.f32 %v7150, %v7212
  %v7379 = vmax.f32 %v7152, %v7215
  %v7380 = vmax.f32 %v7155, %v7217
  %v7381 = vmax.f32 %v7157, %v7220
  %v7382 = vmax.f32 %v7160, %v7222
  %v7383 = vmax.f32 %v7162, %v7225
  %v7384 = vmax.f32 %v7165, %v7227
  %v7385 = vmax.f32 %v7167, %v7230
  %v7386 = vmax.f32 %v7170, %v7232
  %v7387 = vmax.f32 %v7172, %v7235
  %v7388 = vmax.f32 %v7175, %v7237
  %v7389 = vmax.f32 %v7240, %v7302
  %v7390 = vmax.f32 %v7242, %v7305
  %v7391 = vmax.f32 %v7245, %v7307
  %v7392 = vmax.f32 %v7247, %v7310
  %v7393 = vmax.f32 %v7250, %v7312
  %v7394 = vmax.f32 %v7252, %v7315
  %v7395 = vmax.f32 %v7255, %v7317
  %v7396 = vmax.f32 %v7257, %v7320
  %v7397 = vmax.f32 %v7260, %v7322
  %v7398 = vmax.f32 %v7262, %v7325
  %v7399 = vmax.f32 %v7265, %v7327
  %v7400 = vmax.f32 %v7267, %v7330
  %v7401 = vmax.f32 %v7270, %v7332
  %v7402 = vmax.f32 %v7272, %v7335
  %v7403 = vmax.f32 %v7275, %v7337
  %v7404 = vmax.f32 %v7277, %v7340
  %v7405 = vmax.f32 %v7280, %v7342
  %v7406 = vmax.f32 %v7282, %v7345
  %v7407 = vmax.f32 %v7285, %v7347
  %v7408 = vmax.f32 %v7287, %v7350
  %v7409 = vmax.f32 %v7290, %v7352
  %v7410 = vmax.f32 %v7292, %v7355
  %v7411 = vmax.f32 %v7295, %v7357
  %v7412 = vmax.f32 %v7297, %v7360
  %v7413 = vmax.f32 %v7300, %v7362
  %v7414 = vmax.f32 %v7364, %v7389
  %v7415 = vmax.f32 %v7365, %v7390
  %v7416 = vmax.f32 %v7366, %v7391
  %v7417 = vmax.f32 %v7367, %v7392
  %v7418 = vmax.f32 %v7368, %v7393
  %v7419 = vmax.f32 %v7369, %v7394
  %v7420 = vmax.f32 %v7370, %v7395
  %v7421 = vmax.f32 %v7371, %v7396
  %v7422 = vmax.f32 %v7372, %v7397
  %v7423 = vmax.f32 %v7373, %v7398
  %v7424 = vmax.f32 %v7374, %v7399
  %v7425 = vmax.f32 %v7375, %v7400
  %v7426 = vmax.f32 %v7376, %v7401
  %v7427 = vmax.f32 %v7377, %v7402
  %v7428 = vmax.f32 %v7378, %v7403
  %v7429 = vmax.f32 %v7379, %v7404
  %v7430 = vmax.f32 %v7380, %v7405
  %v7431 = vmax.f32 %v7381, %v7406
  %v7432 = vmax.f32 %v7382, %v7407
  %v7433 = vmax.f32 %v7383, %v7408
  %v7434 = vmax.f32 %v7384, %v7409
  %v7435 = vmax.f32 %v7385, %v7410
  %v7436 = vmax.f32 %v7386, %v7411
  %v7437 = vmax.f32 %v7387, %v7412
  %v7438 = vmax.f32 %v7388, %v7413
  %v7439 = vadd.f32 %v7414, %v27
  %v7440 = vadd.f32 %v7415, %v27
  %v7441 = vadd.f32 %v7416, %v27
  %v7442 = vadd.f32 %v7417, %v27
  %v7443 = vadd.f32 %v7418, %v27
  %v7444 = vadd.f32 %v7419, %v27
  %v7445 = vadd.f32 %v7420, %v27
  %v7446 = vadd.f32 %v7421, %v27
  %v7447 = vadd.f32 %v7422, %v27
  %v7448 = vadd.f32 %v7423, %v27
  %v7449 = vadd.f32 %v7424, %v27
  %v7450 = vadd.f32 %v7425, %v27
  %v7451 = vadd.f32 %v7426, %v27
  %v7452 = vadd.f32 %v7427, %v27
  %v7453 = vadd.f32 %v7428, %v27
  %v7454 = vadd.f32 %v7429, %v27
  %v7455 = vadd.f32 %v7430, %v27
  %v7456 = vadd.f32 %v7431, %v27
  %v7457 = vadd.f32 %v7432, %v27
  %v7458 = vadd.f32 %v7433, %v27
  %v7459 = vadd.f32 %v7434, %v27
  %v7460 = vadd.f32 %v7435, %v27
  %v7461 = vadd.f32 %v7436, %v27
  %v7462 = vadd.f32 %v7437, %v27
  %v7463 = vadd.f32 %v7438, %v27
  %v7464 = vmax.f32 %v7439, 0.0
  %v7465 = vmax.f32 %v7440, 0.0
  %v7466 = vmax.f32 %v7441, 0.0
  %v7467 = vmax.f32 %v7442, 0.0
  %v7468 = vmax.f32 %v7443, 0.0
  %v7469 = vmax.f32 %v7444, 0.0
  %v7470 = vmax.f32 %v7445, 0.0
  %v7471 = vmax.f32 %v7446, 0.0
  %v7472 = vmax.f32 %v7447, 0.0
  %v7473 = vmax.f32 %v7448, 0.0
  %v7474 = vmax.f32 %v7449, 0.0
  %v7475 = vmax.f32 %v7450, 0.0
  %v7476 = vmax.f32 %v7451, 0.0
  %v7477 = vmax.f32 %v7452, 0.0
  %v7478 = vmax.f32 %v7453, 0.0
  %v7479 = vmax.f32 %v7454, 0.0
  %v7480 = vmax.f32 %v7455, 0.0
  %v7481 = vmax.f32 %v7456, 0.0
  %v7482 = vmax.f32 %v7457, 0.0
  %v7483 = vmax.f32 %v7458, 0.0
  %v7484 = vmax.f32 %v7459, 0.0
  %v7485 = vmax.f32 %v7460, 0.0
  %v7486 = vmax.f32 %v7461, 0.0
  %v7487 = vmax.f32 %v7462, 0.0
  %v7488 = vmax.f32 %v7463, 0.0
  %v7489 = vpack.c.bf16 %v7464, %v7464
  %v7490 = vpack.c.bf16 %v7465, %v7465
  %v7491 = vpack.c.bf16 %v7466, %v7466
  %v7492 = vpack.c.bf16 %v7467, %v7467
  %v7493 = vpack.c.bf16 %v7468, %v7468
  %v7494 = vpack.c.bf16 %v7469, %v7469
  %v7495 = vpack.c.bf16 %v7470, %v7470
  %v7496 = vpack.c.bf16 %v7471, %v7471
  %v7497 = vpack.c.bf16 %v7472, %v7472
  %v7498 = vpack.c.bf16 %v7473, %v7473
  %v7499 = vpack.c.bf16 %v7474, %v7474
  %v7500 = vpack.c.bf16 %v7475, %v7475
  %v7501 = vpack.c.bf16 %v7476, %v7476
  %v7502 = vpack.c.bf16 %v7477, %v7477
  %v7503 = vpack.c.bf16 %v7478, %v7478
  %v7504 = vpack.c.bf16 %v7479, %v7479
  %v7505 = vpack.c.bf16 %v7480, %v7480
  %v7506 = vpack.c.bf16 %v7481, %v7481
  %v7507 = vpack.c.bf16 %v7482, %v7482
  %v7508 = vpack.c.bf16 %v7483, %v7483
  %v7509 = vpack.c.bf16 %v7484, %v7484
  %v7510 = vpack.c.bf16 %v7485, %v7485
  %v7511 = vpack.c.bf16 %v7486, %v7486
  %v7512 = vpack.c.bf16 %v7487, %v7487
  %v7513 = vpack.c.bf16 %v7488, %v7488
  %7514 = vst.msk [vmem:[%s3 + $0x2bc] sm:$0xf] %vm975, %v7489
  %7515 = vst.msk [vmem:[%s3 + $0x2c0] sm:$0xf] %vm975, %v7490
  %7516 = vst.msk [vmem:[%s3 + $0x2c4] sm:$0xf] %vm975, %v7491
  %7517 = vst.msk [vmem:[%s3 + $0x2c8] sm:$0xf] %vm975, %v7492
  %7518 = vst.msk [vmem:[%s3 + $0x2cc] sm:$0xf] %vm975, %v7493
  %7519 = vst.msk [vmem:[%s3 + $0x2d0] sm:$0xf] %vm975, %v7494
  %7520 = vst.msk [vmem:[%s3 + $0x2d4] sm:$0xf] %vm975, %v7495
  %7521 = vst.msk [vmem:[%s3 + $0x2d8] sm:$0xf] %vm975, %v7496
  %7522 = vst.msk [vmem:[%s3 + $0x2dc] sm:$0xf] %vm975, %v7497
  %7523 = vst.msk [vmem:[%s3 + $0x2e0] sm:$0xf] %vm975, %v7498
  %7524 = vst.msk [vmem:[%s3 + $0x2e4] sm:$0xf] %vm975, %v7499
  %7525 = vst.msk [vmem:[%s3 + $0x2e8] sm:$0xf] %vm975, %v7500
  %7526 = vst.msk [vmem:[%s3 + $0x2ec] sm:$0xf] %vm975, %v7501
  %7527 = vst.msk [vmem:[%s3 + $0x2f0] sm:$0xf] %vm975, %v7502
  %7528 = vst.msk [vmem:[%s3 + $0x2f4] sm:$0xf] %vm975, %v7503
  %7529 = vst.msk [vmem:[%s3 + $0x2f8] sm:$0xf] %vm975, %v7504
  %7530 = vst.msk [vmem:[%s3 + $0x2fc] sm:$0xf] %vm975, %v7505
  %7531 = vst.msk [vmem:[%s3 + $0x300] sm:$0xf] %vm975, %v7506
  %7532 = vst.msk [vmem:[%s3 + $0x304] sm:$0xf] %vm975, %v7507
  %7533 = vst.msk [vmem:[%s3 + $0x308] sm:$0xf] %vm975, %v7508
  %7534 = vst.msk [vmem:[%s3 + $0x30c] sm:$0xf] %vm975, %v7509
  %7535 = vst.msk [vmem:[%s3 + $0x310] sm:$0xf] %vm975, %v7510
  %7536 = vst.msk [vmem:[%s3 + $0x314] sm:$0xf] %vm975, %v7511
  %7537 = vst.msk [vmem:[%s3 + $0x318] sm:$0xf] %vm975, %v7512
  %7538 = vst.msk [vmem:[%s3 + $0x31c] sm:$0xf] %vm975, %v7513
  // Predicated region
  $region14: #{net_forward_pallas.2} parent=0 // pred_check
    _
  $region15: #{net_forward_pallas.2} parent=0 // pred_check_branch
    %7540 = sbr.rel (0) target = $region17
  $region16: #{net_forward_pallas.2} parent=0 // pred_region
    _
  $region17: #{net_forward_pallas.2} parent=0 // pred_fallthru
    _
  // Predicated region
  $region18: #{net_forward_pallas.2} parent=0 // pred_check
    _
  $region19: #{net_forward_pallas.2} parent=0 // pred_check_branch
    %7542 = sbr.rel (0) target = $region21
  $region20: #{net_forward_pallas.2} parent=0 // pred_region
    _
  $region21: #{net_forward_pallas.2} parent=0 // pred_fallthru
    _

// kernel: net_forward_pallas.3
$region0: #{net_forward_pallas.3}
  #allocation0 [shape = 'u32[]', space=smem, size = 0x4, offset = 0x4, fixed_abs, tag = 'smem constant byte address 0x4 - core index']
  #allocation1 [shape = 'u32[72,128]{1,0:T(1,128)}', space=vmem, size = 0x9000, scoped, tag = 'internal scratch']
  %s0 = inlined_call_operand.vmem [shape: bf16[1024,150], index: 0, kind: input, shape index: {}]
  %s1 = inlined_call_operand.vmem [shape: bf16[150,16], index: 1, kind: input, shape index: {}]
  %s2 = inlined_call_operand.vmem [shape: f32[1,16], index: 2, kind: input, shape index: {}]
  %s3 = inlined_call_operand.vmem [shape: bf16[400,128], index: 3, kind: input, shape index: {}]
  %s4 = inlined_call_operand.vmem [shape: f32[1,128], index: 4, kind: input, shape index: {}]
  %s5 = inlined_call_operand.vmem [shape: bf16[128,128], index: 5, kind: input, shape index: {}]
  %s6 = inlined_call_operand.vmem [shape: f32[1,128], index: 6, kind: input, shape index: {}]
  %s7 = inlined_call_operand.vmem [shape: bf16[128,128], index: 7, kind: input, shape index: {}]
  %s8 = inlined_call_operand.vmem [shape: f32[1,128], index: 8, kind: input, shape index: {}]
  %s9 = inlined_call_operand.vmem [shape: f32[8,128], index: 9, kind: output, shape index: {}]
  %s10 = sld [smem:[#allocation0]]
  $region46: #{net_forward_pallas.3} parent=0
    _
  %s12 = ssub.s32 1, %s10
  %s13 = scalar_select 0, %s12, %s10
  // Predicated region
  $region2: #{net_forward_pallas.3} parent=0 // pred_check
    _
  $region3: #{net_forward_pallas.3} parent=0 // pred_check_branch
    %15 = sbr.rel (0) target = $region5
  $region4: #{net_forward_pallas.3} parent=0 // pred_region
    _
  $region5: #{net_forward_pallas.3} parent=0 // pred_fallthru
    _
  // Predicated region
  $region6: #{net_forward_pallas.3} parent=0 // pred_check
    _
  $region7: #{net_forward_pallas.3} parent=0 // pred_check_branch
    %17 = sbr.rel (0) target = $region9
  $region8: #{net_forward_pallas.3} parent=0 // pred_region
    _
  $region9: #{net_forward_pallas.3} parent=0 // pred_fallthru
    _
  // Predicated region
  $region10: #{net_forward_pallas.3} parent=0 // pred_check
    _
  $region11: #{net_forward_pallas.3} parent=0 // pred_check_branch
    %19 = sbr.rel (0) target = $region13
  $region12: #{net_forward_pallas.3} parent=0 // pred_region
    _
  $region13: #{net_forward_pallas.3} parent=0 // pred_fallthru
    _
  // Predicated region
  $region14: #{net_forward_pallas.3} parent=0 // pred_check
    _
  $region15: #{net_forward_pallas.3} parent=0 // pred_check_branch
    %21 = sbr.rel (0) target = $region17
  $region16: #{net_forward_pallas.3} parent=0 // pred_region
    _
  $region17: #{net_forward_pallas.3} parent=0 // pred_fallthru
    _
  // Predicated region
  $region18: #{net_forward_pallas.3} parent=0 // pred_check
    _
  $region19: #{net_forward_pallas.3} parent=0 // pred_check_branch
    %23 = sbr.rel (0) target = $region21
  $region20: #{net_forward_pallas.3} parent=0 // pred_region
    _
  $region21: #{net_forward_pallas.3} parent=0 // pred_fallthru
    _
  // Predicated region
  $region22: #{net_forward_pallas.3} parent=0 // pred_check
    _
  $region23: #{net_forward_pallas.3} parent=0 // pred_check_branch
    %25 = sbr.rel (0) target = $region25
  $region24: #{net_forward_pallas.3} parent=0 // pred_region
    _
  $region25: #{net_forward_pallas.3} parent=0 // pred_fallthru
    _
  // Predicated region
  $region26: #{net_forward_pallas.3} parent=0 // pred_check
    _
  $region27: #{net_forward_pallas.3} parent=0 // pred_check_branch
    %27 = sbr.rel (0) target = $region29
  $region28: #{net_forward_pallas.3} parent=0 // pred_region
    _
  $region29: #{net_forward_pallas.3} parent=0 // pred_fallthru
    _
  // Predicated region
  $region30: #{net_forward_pallas.3} parent=0 // pred_check
    _
  $region31: #{net_forward_pallas.3} parent=0 // pred_check_branch
    %29 = sbr.rel (0) target = $region33
  $region32: #{net_forward_pallas.3} parent=0 // pred_region
    _
  $region33: #{net_forward_pallas.3} parent=0 // pred_fallthru
    _
  // Predicated region
  $region34: #{net_forward_pallas.3} parent=0 // pred_check
    _
  $region35: #{net_forward_pallas.3} parent=0 // pred_check_branch
    %31 = sbr.rel (0) target = $region37
  $region36: #{net_forward_pallas.3} parent=0 // pred_region
    _
  $region37: #{net_forward_pallas.3} parent=0 // pred_fallthru
    _
  %v33 = vld [vmem:[%s0] sm:$0xff]
  %v34 = vld [vmem:[%s0 + $0x8] sm:$0xff]
  %v35 = vld [vmem:[%s0 + $0x10] sm:$0xff]
  %v36 = vld [vmem:[%s0 + $0x18] sm:$0xff]
  %v37 = vld [vmem:[%s0 + $0x20] sm:$0xff]
  %v38 = vld [vmem:[%s0 + $0x28] sm:$0xff]
  %v39 = vld [vmem:[%s0 + $0x30] sm:$0xff]
  %v40 = vld [vmem:[%s0 + $0x38] sm:$0xff]
  %v41 = vld [vmem:[%s0 + $0x40] sm:$0xff]
  %v42 = vld [vmem:[%s0 + $0x48] sm:$0xff]
  %v43 = vld [vmem:[%s0 + $0x50] sm:$0xff]
  %v44 = vld [vmem:[%s0 + $0x58] sm:$0xff]
  %v45 = vld [vmem:[%s0 + $0x60] sm:$0xff]
  %v46 = vld [vmem:[%s0 + $0x68] sm:$0xff]
  %v47 = vld [vmem:[%s0 + $0x70] sm:$0xff]
  %v48 = vld [vmem:[%s0 + $0x78] sm:$0xff]
  %v49 = vld [vmem:[%s0 + $0x80] sm:$0xff]
  %v50 = vld [vmem:[%s0 + $0x88] sm:$0xff]
  %v51 = vld [vmem:[%s0 + $0x90] sm:$0xff]
  %v52 = vld [vmem:[%s0 + $0x98] sm:$0xff]
  %v53 = vld [vmem:[%s0 + $0xa0] sm:$0xff]
  %v54 = vld [vmem:[%s0 + $0xa8] sm:$0xff]
  %v55 = vld [vmem:[%s0 + $0xb0] sm:$0xff]
  %v56 = vld [vmem:[%s0 + $0xb8] sm:$0xff]
  %v57 = vld [vmem:[%s0 + $0xc0] sm:$0xff]
  %v58 = vld [vmem:[%s0 + $0xc8] sm:$0xff]
  %v59 = vld [vmem:[%s0 + $0xd0] sm:$0xff]
  %v60 = vld [vmem:[%s0 + $0xd8] sm:$0xff]
  %v61 = vld [vmem:[%s0 + $0xe0] sm:$0xff]
  %v62 = vld [vmem:[%s0 + $0xe8] sm:$0xff]
  %v63 = vld [vmem:[%s0 + $0xf0] sm:$0xff]
  %v64 = vld [vmem:[%s0 + $0xf8] sm:$0xff]
  %v65 = vld [vmem:[%s0 + $0x100] sm:$0xff]
  %v66 = vld [vmem:[%s0 + $0x108] sm:$0xff]
  %v67 = vld [vmem:[%s0 + $0x110] sm:$0xff]
  %v68 = vld [vmem:[%s0 + $0x118] sm:$0xff]
  %v69 = vld [vmem:[%s0 + $0x120] sm:$0xff]
  %v70 = vld [vmem:[%s0 + $0x128] sm:$0xff]
  %v71 = vld [vmem:[%s0 + $0x130] sm:$0xff]
  %v72 = vld [vmem:[%s0 + $0x138] sm:$0xff]
  %v73 = vld [vmem:[%s0 + $0x140] sm:$0xff]
  %v74 = vld [vmem:[%s0 + $0x148] sm:$0xff]
  %v75 = vld [vmem:[%s0 + $0x150] sm:$0xff]
  %v76 = vld [vmem:[%s0 + $0x158] sm:$0xff]
  %v77 = vld [vmem:[%s0 + $0x160] sm:$0xff]
  %v78 = vld [vmem:[%s0 + $0x168] sm:$0xff]
  %v79 = vld [vmem:[%s0 + $0x170] sm:$0xff]
  %v80 = vld [vmem:[%s0 + $0x178] sm:$0xff]
  %v81 = vld [vmem:[%s0 + $0x180] sm:$0xff]
  %v82 = vld [vmem:[%s0 + $0x188] sm:$0xff]
  %v83 = vld [vmem:[%s0 + $0x190] sm:$0xff]
  %v84 = vld [vmem:[%s0 + $0x198] sm:$0xff]
  %v85 = vld [vmem:[%s0 + $0x1a0] sm:$0xff]
  %v86 = vld [vmem:[%s0 + $0x1a8] sm:$0xff]
  %v87 = vld [vmem:[%s0 + $0x1b0] sm:$0xff]
  %v88 = vld [vmem:[%s0 + $0x1b8] sm:$0xff]
  %v89 = vld [vmem:[%s0 + $0x1c0] sm:$0xff]
  %v90 = vld [vmem:[%s0 + $0x1c8] sm:$0xff]
  %v91 = vld [vmem:[%s0 + $0x1d0] sm:$0xff]
  %v92 = vld [vmem:[%s0 + $0x1d8] sm:$0xff]
  %v93 = vld [vmem:[%s0 + $0x1e0] sm:$0xff]
  %v94 = vld [vmem:[%s0 + $0x1e8] sm:$0xff]
  %v95 = vld [vmem:[%s0 + $0x1f0] sm:$0xff]
  %v96 = vld [vmem:[%s0 + $0x1f8] sm:$0xff]
  %v97 = vld [vmem:[%s0 + $0x200] sm:$0xff]
  %v98 = vld [vmem:[%s0 + $0x208] sm:$0xff]
  %v99 = vld [vmem:[%s0 + $0x210] sm:$0xff]
  %v100 = vld [vmem:[%s0 + $0x218] sm:$0xff]
  %v101 = vld [vmem:[%s0 + $0x220] sm:$0xff]
  %v102 = vld [vmem:[%s0 + $0x228] sm:$0xff]
  %v103 = vld [vmem:[%s0 + $0x230] sm:$0xff]
  %v104 = vld [vmem:[%s0 + $0x238] sm:$0xff]
  %v105 = vld [vmem:[%s0 + $0x240] sm:$0xff]
  %v106 = vld [vmem:[%s0 + $0x248] sm:$0xff]
  %v107 = vld [vmem:[%s0 + $0x250] sm:$0xff]
  %v108 = vld [vmem:[%s0 + $0x258] sm:$0xff]
  %v109 = vld [vmem:[%s0 + $0x260] sm:$0xff]
  %v110 = vld [vmem:[%s0 + $0x268] sm:$0xff]
  %v111 = vld [vmem:[%s0 + $0x270] sm:$0xff]
  %v112 = vld [vmem:[%s0 + $0x278] sm:$0xff]
  %v113 = vld [vmem:[%s0 + $0x280] sm:$0xff]
  %v114 = vld [vmem:[%s0 + $0x288] sm:$0xff]
  %v115 = vld [vmem:[%s0 + $0x290] sm:$0xff]
  %v116 = vld [vmem:[%s0 + $0x298] sm:$0xff]
  %v117 = vld [vmem:[%s0 + $0x2a0] sm:$0xff]
  %v118 = vld [vmem:[%s0 + $0x2a8] sm:$0xff]
  %v119 = vld [vmem:[%s0 + $0x2b0] sm:$0xff]
  %v120 = vld [vmem:[%s0 + $0x2b8] sm:$0xff]
  %v121 = vld [vmem:[%s0 + $0x2c0] sm:$0xff]
  %v122 = vld [vmem:[%s0 + $0x2c8] sm:$0xff]
  %v123 = vld [vmem:[%s0 + $0x2d0] sm:$0xff]
  %v124 = vld [vmem:[%s0 + $0x2d8] sm:$0xff]
  %v125 = vld [vmem:[%s0 + $0x2e0] sm:$0xff]
  %v126 = vld [vmem:[%s0 + $0x2e8] sm:$0xff]
  %v127 = vld [vmem:[%s0 + $0x2f0] sm:$0xff]
  %v128 = vld [vmem:[%s0 + $0x2f8] sm:$0xff]
  %v129 = vld [vmem:[%s0 + $0x300] sm:$0xff]
  %v130 = vld [vmem:[%s0 + $0x308] sm:$0xff]
  %v131 = vld [vmem:[%s0 + $0x310] sm:$0xff]
  %v132 = vld [vmem:[%s0 + $0x318] sm:$0xff]
  %v133 = vld [vmem:[%s0 + $0x320] sm:$0xff]
  %v134 = vld [vmem:[%s0 + $0x328] sm:$0xff]
  %v135 = vld [vmem:[%s0 + $0x330] sm:$0xff]
  %v136 = vld [vmem:[%s0 + $0x338] sm:$0xff]
  %v137 = vld [vmem:[%s0 + $0x340] sm:$0xff]
  %v138 = vld [vmem:[%s0 + $0x348] sm:$0xff]
  %v139 = vld [vmem:[%s0 + $0x350] sm:$0xff]
  %v140 = vld [vmem:[%s0 + $0x358] sm:$0xff]
  %v141 = vld [vmem:[%s0 + $0x360] sm:$0xff]
  %v142 = vld [vmem:[%s0 + $0x368] sm:$0xff]
  %v143 = vld [vmem:[%s0 + $0x370] sm:$0xff]
  %v144 = vld [vmem:[%s0 + $0x378] sm:$0xff]
  %v145 = vld [vmem:[%s0 + $0x380] sm:$0xff]
  %v146 = vld [vmem:[%s0 + $0x388] sm:$0xff]
  %v147 = vld [vmem:[%s0 + $0x390] sm:$0xff]
  %v148 = vld [vmem:[%s0 + $0x398] sm:$0xff]
  %v149 = vld [vmem:[%s0 + $0x3a0] sm:$0xff]
  %v150 = vld [vmem:[%s0 + $0x3a8] sm:$0xff]
  %v151 = vld [vmem:[%s0 + $0x3b0] sm:$0xff]
  %v152 = vld [vmem:[%s0 + $0x3b8] sm:$0xff]
  %v153 = vld [vmem:[%s0 + $0x3c0] sm:$0xff]
  %v154 = vld [vmem:[%s0 + $0x3c8] sm:$0xff]
  %v155 = vld [vmem:[%s0 + $0x3d0] sm:$0xff]
  %v156 = vld [vmem:[%s0 + $0x3d8] sm:$0xff]
  %v157 = vld [vmem:[%s0 + $0x3e0] sm:$0xff]
  %v158 = vld [vmem:[%s0 + $0x3e8] sm:$0xff]
  %v159 = vld [vmem:[%s0 + $0x3f0] sm:$0xff]
  %v160 = vld [vmem:[%s0 + $0x3f8] sm:$0xff]
  %v161 = vld [vmem:[%s1] sm:$0xf]
  %v162 = vld [vmem:[%s1 + $0x4] sm:$0xf]
  %v163 = vld [vmem:[%s1 + $0x8] sm:$0xf]
  %v164 = vld [vmem:[%s1 + $0xc] sm:$0xf]
  %v165 = vld [vmem:[%s1 + $0x10] sm:$0xf]
  %v166 = vld [vmem:[%s1 + $0x14] sm:$0xf]
  %v167 = vld [vmem:[%s1 + $0x18] sm:$0xf]
  %v168 = vld [vmem:[%s1 + $0x1c] sm:$0xf]
  %v169 = vld [vmem:[%s1 + $0x20] sm:$0xf]
  %v170 = vld [vmem:[%s1 + $0x24] sm:$0xf]
  %v171 = vld [vmem:[%s1 + $0x28] sm:$0xf]
  %v172 = vld [vmem:[%s1 + $0x2c] sm:$0xf]
  %v173 = vld [vmem:[%s1 + $0x30] sm:$0xf]
  %v174 = vld [vmem:[%s1 + $0x34] sm:$0xf]
  %v175 = vld [vmem:[%s1 + $0x38] sm:$0xf]
  %v176 = vld [vmem:[%s1 + $0x3c] sm:$0xf]
  %v177 = vld [vmem:[%s1 + $0x40] sm:$0xf]
  %v178 = vld [vmem:[%s1 + $0x44] sm:$0xf]
  %v179 = vld [vmem:[%s1 + $0x48] sm:$0x7]
  %v308 = vunpack.c.l.b16 %v33
  %v309 = vunpack.c.h.b16 %v33
  %v310 = vunpack.c.l.b16 %v34
  %v311 = vunpack.c.h.b16 %v34
  %v312 = vunpack.c.l.b16 %v35
  %v313 = vunpack.c.h.b16 %v35
  %v314 = vunpack.c.l.b16 %v36
  %v315 = vunpack.c.h.b16 %v36
  %v316 = vunpack.c.l.b16 %v37
  %v317 = vunpack.c.h.b16 %v37
  %v318 = vunpack.c.l.b16 %v38
  %v319 = vunpack.c.h.b16 %v38
  %v320 = vunpack.c.l.b16 %v39
  %v321 = vunpack.c.h.b16 %v39
  %v322 = vunpack.c.l.b16 %v40
  %v323 = vunpack.c.h.b16 %v40
  %v324 = vunpack.c.l.b16 %v41
  %v325 = vunpack.c.h.b16 %v41
  %v326 = vunpack.c.l.b16 %v42
  %v327 = vunpack.c.h.b16 %v42
  %v328 = vunpack.c.l.b16 %v43
  %v329 = vunpack.c.h.b16 %v43
  %v330 = vunpack.c.l.b16 %v44
  %v331 = vunpack.c.h.b16 %v44
  %v332 = vunpack.c.l.b16 %v45
  %v333 = vunpack.c.h.b16 %v45
  %v334 = vunpack.c.l.b16 %v46
  %v335 = vunpack.c.h.b16 %v46
  %v336 = vunpack.c.l.b16 %v47
  %v337 = vunpack.c.h.b16 %v47
  %v338 = vunpack.c.l.b16 %v48
  %v339 = vunpack.c.h.b16 %v48
  %v340 = vunpack.c.l.b16 %v49
  %v341 = vunpack.c.h.b16 %v49
  %v342 = vunpack.c.l.b16 %v50
  %v343 = vunpack.c.h.b16 %v50
  %v344 = vunpack.c.l.b16 %v51
  %v345 = vunpack.c.h.b16 %v51
  %v346 = vunpack.c.l.b16 %v52
  %v347 = vunpack.c.h.b16 %v52
  %v348 = vunpack.c.l.b16 %v53
  %v349 = vunpack.c.h.b16 %v53
  %v350 = vunpack.c.l.b16 %v54
  %v351 = vunpack.c.h.b16 %v54
  %v352 = vunpack.c.l.b16 %v55
  %v353 = vunpack.c.h.b16 %v55
  %v354 = vunpack.c.l.b16 %v56
  %v355 = vunpack.c.h.b16 %v56
  %v356 = vunpack.c.l.b16 %v57
  %v357 = vunpack.c.h.b16 %v57
  %v358 = vunpack.c.l.b16 %v58
  %v359 = vunpack.c.h.b16 %v58
  %v360 = vunpack.c.l.b16 %v59
  %v361 = vunpack.c.h.b16 %v59
  %v362 = vunpack.c.l.b16 %v60
  %v363 = vunpack.c.h.b16 %v60
  %v364 = vunpack.c.l.b16 %v61
  %v365 = vunpack.c.h.b16 %v61
  %v366 = vunpack.c.l.b16 %v62
  %v367 = vunpack.c.h.b16 %v62
  %v368 = vunpack.c.l.b16 %v63
  %v369 = vunpack.c.h.b16 %v63
  %v370 = vunpack.c.l.b16 %v64
  %v371 = vunpack.c.h.b16 %v64
  %v372 = vunpack.c.l.b16 %v65
  %v373 = vunpack.c.h.b16 %v65
  %v374 = vunpack.c.l.b16 %v66
  %v375 = vunpack.c.h.b16 %v66
  %v376 = vunpack.c.l.b16 %v67
  %v377 = vunpack.c.h.b16 %v67
  %v378 = vunpack.c.l.b16 %v68
  %v379 = vunpack.c.h.b16 %v68
  %v380 = vunpack.c.l.b16 %v69
  %v381 = vunpack.c.h.b16 %v69
  %v382 = vunpack.c.l.b16 %v70
  %v383 = vunpack.c.h.b16 %v70
  %v384 = vunpack.c.l.b16 %v71
  %v385 = vunpack.c.h.b16 %v71
  %v386 = vunpack.c.l.b16 %v72
  %v387 = vunpack.c.h.b16 %v72
  %v388 = vunpack.c.l.b16 %v73
  %v389 = vunpack.c.h.b16 %v73
  %v390 = vunpack.c.l.b16 %v74
  %v391 = vunpack.c.h.b16 %v74
  %v392 = vunpack.c.l.b16 %v75
  %v393 = vunpack.c.h.b16 %v75
  %v394 = vunpack.c.l.b16 %v76
  %v395 = vunpack.c.h.b16 %v76
  %v396 = vunpack.c.l.b16 %v77
  %v397 = vunpack.c.h.b16 %v77
  %v398 = vunpack.c.l.b16 %v78
  %v399 = vunpack.c.h.b16 %v78
  %v400 = vunpack.c.l.b16 %v79
  %v401 = vunpack.c.h.b16 %v79
  %v402 = vunpack.c.l.b16 %v80
  %v403 = vunpack.c.h.b16 %v80
  %v404 = vunpack.c.l.b16 %v81
  %v405 = vunpack.c.h.b16 %v81
  %v406 = vunpack.c.l.b16 %v82
  %v407 = vunpack.c.h.b16 %v82
  %v408 = vunpack.c.l.b16 %v83
  %v409 = vunpack.c.h.b16 %v83
  %v410 = vunpack.c.l.b16 %v84
  %v411 = vunpack.c.h.b16 %v84
  %v412 = vunpack.c.l.b16 %v85
  %v413 = vunpack.c.h.b16 %v85
  %v414 = vunpack.c.l.b16 %v86
  %v415 = vunpack.c.h.b16 %v86
  %v416 = vunpack.c.l.b16 %v87
  %v417 = vunpack.c.h.b16 %v87
  %v418 = vunpack.c.l.b16 %v88
  %v419 = vunpack.c.h.b16 %v88
  %v420 = vunpack.c.l.b16 %v89
  %v421 = vunpack.c.h.b16 %v89
  %v422 = vunpack.c.l.b16 %v90
  %v423 = vunpack.c.h.b16 %v90
  %v424 = vunpack.c.l.b16 %v91
  %v425 = vunpack.c.h.b16 %v91
  %v426 = vunpack.c.l.b16 %v92
  %v427 = vunpack.c.h.b16 %v92
  %v428 = vunpack.c.l.b16 %v93
  %v429 = vunpack.c.h.b16 %v93
  %v430 = vunpack.c.l.b16 %v94
  %v431 = vunpack.c.h.b16 %v94
  %v432 = vunpack.c.l.b16 %v95
  %v433 = vunpack.c.h.b16 %v95
  %v434 = vunpack.c.l.b16 %v96
  %v435 = vunpack.c.h.b16 %v96
  %v436 = vunpack.c.l.b16 %v97
  %v437 = vunpack.c.h.b16 %v97
  %v438 = vunpack.c.l.b16 %v98
  %v439 = vunpack.c.h.b16 %v98
  %v440 = vunpack.c.l.b16 %v99
  %v441 = vunpack.c.h.b16 %v99
  %v442 = vunpack.c.l.b16 %v100
  %v443 = vunpack.c.h.b16 %v100
  %v444 = vunpack.c.l.b16 %v101
  %v445 = vunpack.c.h.b16 %v101
  %v446 = vunpack.c.l.b16 %v102
  %v447 = vunpack.c.h.b16 %v102
  %v448 = vunpack.c.l.b16 %v103
  %v449 = vunpack.c.h.b16 %v103
  %v450 = vunpack.c.l.b16 %v104
  %v451 = vunpack.c.h.b16 %v104
  %v452 = vunpack.c.l.b16 %v105
  %v453 = vunpack.c.h.b16 %v105
  %v454 = vunpack.c.l.b16 %v106
  %v455 = vunpack.c.h.b16 %v106
  %v456 = vunpack.c.l.b16 %v107
  %v457 = vunpack.c.h.b16 %v107
  %v458 = vunpack.c.l.b16 %v108
  %v459 = vunpack.c.h.b16 %v108
  %v460 = vunpack.c.l.b16 %v109
  %v461 = vunpack.c.h.b16 %v109
  %v462 = vunpack.c.l.b16 %v110
  %v463 = vunpack.c.h.b16 %v110
  %v464 = vunpack.c.l.b16 %v111
  %v465 = vunpack.c.h.b16 %v111
  %v466 = vunpack.c.l.b16 %v112
  %v467 = vunpack.c.h.b16 %v112
  %v468 = vunpack.c.l.b16 %v113
  %v469 = vunpack.c.h.b16 %v113
  %v470 = vunpack.c.l.b16 %v114
  %v471 = vunpack.c.h.b16 %v114
  %v472 = vunpack.c.l.b16 %v115
  %v473 = vunpack.c.h.b16 %v115
  %v474 = vunpack.c.l.b16 %v116
  %v475 = vunpack.c.h.b16 %v116
  %v476 = vunpack.c.l.b16 %v117
  %v477 = vunpack.c.h.b16 %v117
  %v478 = vunpack.c.l.b16 %v118
  %v479 = vunpack.c.h.b16 %v118
  %v480 = vunpack.c.l.b16 %v119
  %v481 = vunpack.c.h.b16 %v119
  %v482 = vunpack.c.l.b16 %v120
  %v483 = vunpack.c.h.b16 %v120
  %v484 = vunpack.c.l.b16 %v121
  %v485 = vunpack.c.h.b16 %v121
  %v486 = vunpack.c.l.b16 %v122
  %v487 = vunpack.c.h.b16 %v122
  %v488 = vunpack.c.l.b16 %v123
  %v489 = vunpack.c.h.b16 %v123
  %v490 = vunpack.c.l.b16 %v124
  %v491 = vunpack.c.h.b16 %v124
  %v492 = vunpack.c.l.b16 %v125
  %v493 = vunpack.c.h.b16 %v125
  %v494 = vunpack.c.l.b16 %v126
  %v495 = vunpack.c.h.b16 %v126
  %v496 = vunpack.c.l.b16 %v127
  %v497 = vunpack.c.h.b16 %v127
  %v498 = vunpack.c.l.b16 %v128
  %v499 = vunpack.c.h.b16 %v128
  %v500 = vunpack.c.l.b16 %v129
  %v501 = vunpack.c.h.b16 %v129
  %v502 = vunpack.c.l.b16 %v130
  %v503 = vunpack.c.h.b16 %v130
  %v504 = vunpack.c.l.b16 %v131
  %v505 = vunpack.c.h.b16 %v131
  %v506 = vunpack.c.l.b16 %v132
  %v507 = vunpack.c.h.b16 %v132
  %v508 = vunpack.c.l.b16 %v133
  %v509 = vunpack.c.h.b16 %v133
  %v510 = vunpack.c.l.b16 %v134
  %v511 = vunpack.c.h.b16 %v134
  %v512 = vunpack.c.l.b16 %v135
  %v513 = vunpack.c.h.b16 %v135
  %v514 = vunpack.c.l.b16 %v136
  %v515 = vunpack.c.h.b16 %v136
  %v516 = vunpack.c.l.b16 %v137
  %v517 = vunpack.c.h.b16 %v137
  %v518 = vunpack.c.l.b16 %v138
  %v519 = vunpack.c.h.b16 %v138
  %v520 = vunpack.c.l.b16 %v139
  %v521 = vunpack.c.h.b16 %v139
  %v522 = vunpack.c.l.b16 %v140
  %v523 = vunpack.c.h.b16 %v140
  %v524 = vunpack.c.l.b16 %v141
  %v525 = vunpack.c.h.b16 %v141
  %v526 = vunpack.c.l.b16 %v142
  %v527 = vunpack.c.h.b16 %v142
  %v528 = vunpack.c.l.b16 %v143
  %v529 = vunpack.c.h.b16 %v143
  %v530 = vunpack.c.l.b16 %v144
  %v531 = vunpack.c.h.b16 %v144
  %v532 = vunpack.c.l.b16 %v145
  %v533 = vunpack.c.h.b16 %v145
  %v534 = vunpack.c.l.b16 %v146
  %v535 = vunpack.c.h.b16 %v146
  %v536 = vunpack.c.l.b16 %v147
  %v537 = vunpack.c.h.b16 %v147
  %v538 = vunpack.c.l.b16 %v148
  %v539 = vunpack.c.h.b16 %v148
  %v540 = vunpack.c.l.b16 %v149
  %v541 = vunpack.c.h.b16 %v149
  %v542 = vunpack.c.l.b16 %v150
  %v543 = vunpack.c.h.b16 %v150
  %v544 = vunpack.c.l.b16 %v151
  %v545 = vunpack.c.h.b16 %v151
  %v546 = vunpack.c.l.b16 %v152
  %v547 = vunpack.c.h.b16 %v152
  %v548 = vunpack.c.l.b16 %v153
  %v549 = vunpack.c.h.b16 %v153
  %v550 = vunpack.c.l.b16 %v154
  %v551 = vunpack.c.h.b16 %v154
  %v552 = vunpack.c.l.b16 %v155
  %v553 = vunpack.c.h.b16 %v155
  %v554 = vunpack.c.l.b16 %v156
  %v555 = vunpack.c.h.b16 %v156
  %v556 = vunpack.c.l.b16 %v157
  %v557 = vunpack.c.h.b16 %v157
  %v558 = vunpack.c.l.b16 %v158
  %v559 = vunpack.c.h.b16 %v158
  %v560 = vunpack.c.l.b16 %v159
  %v561 = vunpack.c.h.b16 %v159
  %v562 = vunpack.c.l.b16 %v160
  %v563 = vunpack.c.h.b16 %v160
  %v564 = vpack.c.b16 %v310, %v308
  %v565 = vpack.c.b16 %v311, %v309
  %v566 = vpack.c.b16 %v314, %v312
  %v567 = vpack.c.b16 %v315, %v313
  %v568 = vpack.c.b16 %v318, %v316
  %v569 = vpack.c.b16 %v319, %v317
  %v570 = vpack.c.b16 %v322, %v320
  %v571 = vpack.c.b16 %v323, %v321
  %v572 = vpack.c.b16 %v326, %v324
  %v573 = vpack.c.b16 %v327, %v325
  %v574 = vpack.c.b16 %v330, %v328
  %v575 = vpack.c.b16 %v331, %v329
  %v576 = vpack.c.b16 %v334, %v332
  %v577 = vpack.c.b16 %v335, %v333
  %v578 = vpack.c.b16 %v338, %v336
  %v579 = vpack.c.b16 %v339, %v337
  %v580 = vpack.c.b16 %v342, %v340
  %v581 = vpack.c.b16 %v343, %v341
  %v582 = vpack.c.b16 %v346, %v344
  %v583 = vpack.c.b16 %v347, %v345
  %v584 = vpack.c.b16 %v350, %v348
  %v585 = vpack.c.b16 %v351, %v349
  %v586 = vpack.c.b16 %v354, %v352
  %v587 = vpack.c.b16 %v355, %v353
  %v588 = vpack.c.b16 %v358, %v356
  %v589 = vpack.c.b16 %v359, %v357
  %v590 = vpack.c.b16 %v362, %v360
  %v591 = vpack.c.b16 %v363, %v361
  %v592 = vpack.c.b16 %v366, %v364
  %v593 = vpack.c.b16 %v367, %v365
  %v594 = vpack.c.b16 %v370, %v368
  %v595 = vpack.c.b16 %v371, %v369
  %v596 = vpack.c.b16 %v374, %v372
  %v597 = vpack.c.b16 %v375, %v373
  %v598 = vpack.c.b16 %v378, %v376
  %v599 = vpack.c.b16 %v379, %v377
  %v600 = vpack.c.b16 %v382, %v380
  %v601 = vpack.c.b16 %v383, %v381
  %v602 = vpack.c.b16 %v386, %v384
  %v603 = vpack.c.b16 %v387, %v385
  %v604 = vpack.c.b16 %v390, %v388
  %v605 = vpack.c.b16 %v391, %v389
  %v606 = vpack.c.b16 %v394, %v392
  %v607 = vpack.c.b16 %v395, %v393
  %v608 = vpack.c.b16 %v398, %v396
  %v609 = vpack.c.b16 %v399, %v397
  %v610 = vpack.c.b16 %v402, %v400
  %v611 = vpack.c.b16 %v403, %v401
  %v612 = vpack.c.b16 %v406, %v404
  %v613 = vpack.c.b16 %v407, %v405
  %v614 = vpack.c.b16 %v410, %v408
  %v615 = vpack.c.b16 %v411, %v409
  %v616 = vpack.c.b16 %v414, %v412
  %v617 = vpack.c.b16 %v415, %v413
  %v618 = vpack.c.b16 %v418, %v416
  %v619 = vpack.c.b16 %v419, %v417
  %v620 = vpack.c.b16 %v422, %v420
  %v621 = vpack.c.b16 %v423, %v421
  %v622 = vpack.c.b16 %v426, %v424
  %v623 = vpack.c.b16 %v427, %v425
  %v624 = vpack.c.b16 %v430, %v428
  %v625 = vpack.c.b16 %v431, %v429
  %v626 = vpack.c.b16 %v434, %v432
  %v627 = vpack.c.b16 %v435, %v433
  %v628 = vpack.c.b16 %v438, %v436
  %v629 = vpack.c.b16 %v439, %v437
  %v630 = vpack.c.b16 %v442, %v440
  %v631 = vpack.c.b16 %v443, %v441
  %v632 = vpack.c.b16 %v446, %v444
  %v633 = vpack.c.b16 %v447, %v445
  %v634 = vpack.c.b16 %v450, %v448
  %v635 = vpack.c.b16 %v451, %v449
  %v636 = vpack.c.b16 %v454, %v452
  %v637 = vpack.c.b16 %v455, %v453
  %v638 = vpack.c.b16 %v458, %v456
  %v639 = vpack.c.b16 %v459, %v457
  %v640 = vpack.c.b16 %v462, %v460
  %v641 = vpack.c.b16 %v463, %v461
  %v642 = vpack.c.b16 %v466, %v464
  %v643 = vpack.c.b16 %v467, %v465
  %v644 = vpack.c.b16 %v470, %v468
  %v645 = vpack.c.b16 %v471, %v469
  %v646 = vpack.c.b16 %v474, %v472
  %v647 = vpack.c.b16 %v475, %v473
  %v648 = vpack.c.b16 %v478, %v476
  %v649 = vpack.c.b16 %v479, %v477
  %v650 = vpack.c.b16 %v482, %v480
  %v651 = vpack.c.b16 %v483, %v481
  %v652 = vpack.c.b16 %v486, %v484
  %v653 = vpack.c.b16 %v487, %v485
  %v654 = vpack.c.b16 %v490, %v488
  %v655 = vpack.c.b16 %v491, %v489
  %v656 = vpack.c.b16 %v494, %v492
  %v657 = vpack.c.b16 %v495, %v493
  %v658 = vpack.c.b16 %v498, %v496
  %v659 = vpack.c.b16 %v499, %v497
  %v660 = vpack.c.b16 %v502, %v500
  %v661 = vpack.c.b16 %v503, %v501
  %v662 = vpack.c.b16 %v506, %v504
  %v663 = vpack.c.b16 %v507, %v505
  %v664 = vpack.c.b16 %v510, %v508
  %v665 = vpack.c.b16 %v511, %v509
  %v666 = vpack.c.b16 %v514, %v512
  %v667 = vpack.c.b16 %v515, %v513
  %v668 = vpack.c.b16 %v518, %v516
  %v669 = vpack.c.b16 %v519, %v517
  %v670 = vpack.c.b16 %v522, %v520
  %v671 = vpack.c.b16 %v523, %v521
  %v672 = vpack.c.b16 %v526, %v524
  %v673 = vpack.c.b16 %v527, %v525
  %v674 = vpack.c.b16 %v530, %v528
  %v675 = vpack.c.b16 %v531, %v529
  %v676 = vpack.c.b16 %v534, %v532
  %v677 = vpack.c.b16 %v535, %v533
  %v678 = vpack.c.b16 %v538, %v536
  %v679 = vpack.c.b16 %v539, %v537
  %v680 = vpack.c.b16 %v542, %v540
  %v681 = vpack.c.b16 %v543, %v541
  %v682 = vpack.c.b16 %v546, %v544
  %v683 = vpack.c.b16 %v547, %v545
  %v684 = vpack.c.b16 %v550, %v548
  %v685 = vpack.c.b16 %v551, %v549
  %v686 = vpack.c.b16 %v554, %v552
  %v687 = vpack.c.b16 %v555, %v553
  %v688 = vpack.c.b16 %v558, %v556
  %v689 = vpack.c.b16 %v559, %v557
  %v690 = vpack.c.b16 %v562, %v560
  %v691 = vpack.c.b16 %v563, %v561
  %v775 = vunpack.c.l.b16 %v161
  %v776 = vunpack.c.l.b16 %v162
  %v777 = vunpack.c.l.b16 %v163
  %v778 = vunpack.c.l.b16 %v164
  %v779 = vunpack.c.l.b16 %v165
  %v780 = vunpack.c.l.b16 %v166
  %v781 = vunpack.c.l.b16 %v167
  %v782 = vunpack.c.l.b16 %v168
  %v783 = vunpack.c.l.b16 %v169
  %v784 = vunpack.c.l.b16 %v170
  %v785 = vunpack.c.l.b16 %v171
  %v786 = vunpack.c.l.b16 %v172
  %v787 = vunpack.c.l.b16 %v173
  %v788 = vunpack.c.l.b16 %v174
  %v789 = vunpack.c.l.b16 %v175
  %v790 = vunpack.c.l.b16 %v176
  %v791 = vunpack.c.l.b16 %v177
  %v792 = vunpack.c.l.b16 %v178
  %v793 = vunpack.c.l.b16 %v179
  %v794 = vpack.c.b16 %v776, %v775
  %v795 = vpack.c.b16 %v778, %v777
  %v796 = vpack.c.b16 %v780, %v779
  %v797 = vpack.c.b16 %v782, %v781
  %v798 = vpack.c.b16 %v784, %v783
  %v799 = vpack.c.b16 %v786, %v785
  %v800 = vpack.c.b16 %v788, %v787
  %v801 = vpack.c.b16 %v790, %v789
  %v802 = vpack.c.b16 %v792, %v791
  %v803 = vpack.c.b16 %v793, %v793
  %vm813 = vcmask 179200
  %v815 = vsel %vm813, %v565, 0
  %v818 = vsel %vm813, %v567, 0
  %v821 = vsel %vm813, %v569, 0
  %v824 = vsel %vm813, %v571, 0
  %v827 = vsel %vm813, %v573, 0
  %v830 = vsel %vm813, %v575, 0
  %v833 = vsel %vm813, %v577, 0
  %v836 = vsel %vm813, %v579, 0
  %v839 = vsel %vm813, %v581, 0
  %v842 = vsel %vm813, %v583, 0
  %v845 = vsel %vm813, %v585, 0
  %v848 = vsel %vm813, %v587, 0
  %v851 = vsel %vm813, %v589, 0
  %v854 = vsel %vm813, %v591, 0
  %v857 = vsel %vm813, %v593, 0
  %v860 = vsel %vm813, %v595, 0
  %v863 = vsel %vm813, %v597, 0
  %v866 = vsel %vm813, %v599, 0
  %v869 = vsel %vm813, %v601, 0
  %v872 = vsel %vm813, %v603, 0
  %v875 = vsel %vm813, %v605, 0
  %v878 = vsel %vm813, %v607, 0
  %v881 = vsel %vm813, %v609, 0
  %v884 = vsel %vm813, %v611, 0
  %v887 = vsel %vm813, %v613, 0
  %v890 = vsel %vm813, %v615, 0
  %v893 = vsel %vm813, %v617, 0
  %v896 = vsel %vm813, %v619, 0
  %v899 = vsel %vm813, %v621, 0
  %v902 = vsel %vm813, %v623, 0
  %v905 = vsel %vm813, %v625, 0
  %v908 = vsel %vm813, %v627, 0
  %v911 = vsel %vm813, %v629, 0
  %v914 = vsel %vm813, %v631, 0
  %v917 = vsel %vm813, %v633, 0
  %v920 = vsel %vm813, %v635, 0
  %v923 = vsel %vm813, %v637, 0
  %v926 = vsel %vm813, %v639, 0
  %v929 = vsel %vm813, %v641, 0
  %v932 = vsel %vm813, %v643, 0
  %v935 = vsel %vm813, %v645, 0
  %v938 = vsel %vm813, %v647, 0
  %v941 = vsel %vm813, %v649, 0
  %v944 = vsel %vm813, %v651, 0
  %v947 = vsel %vm813, %v653, 0
  %v950 = vsel %vm813, %v655, 0
  %v953 = vsel %vm813, %v657, 0
  %v956 = vsel %vm813, %v659, 0
  %v959 = vsel %vm813, %v661, 0
  %v962 = vsel %vm813, %v663, 0
  %v965 = vsel %vm813, %v665, 0
  %v968 = vsel %vm813, %v667, 0
  %v971 = vsel %vm813, %v669, 0
  %v974 = vsel %vm813, %v671, 0
  %v977 = vsel %vm813, %v673, 0
  %v980 = vsel %vm813, %v675, 0
  %v983 = vsel %vm813, %v677, 0
  %v986 = vsel %vm813, %v679, 0
  %v989 = vsel %vm813, %v681, 0
  %v992 = vsel %vm813, %v683, 0
  %v995 = vsel %vm813, %v685, 0
  %v998 = vsel %vm813, %v687, 0
  %v1001 = vsel %vm813, %v689, 0
  %v1004 = vsel %vm813, %v691, 0
  %vm1006 = vcmask 1042432
  %v1008 = vsel %vm1006, %v803, 0
  %1010 = vmatpush.bf16.msra.mxu0 %v801
  %1011 = vmatpush.bf16.msra.mxu0 %v800
  %1012 = vmatpush.bf16.msra.mxu0 %v799
  %1013 = vmatpush.bf16.msra.mxu0 %v798
  %1014 = vmatpush.bf16.msra.mxu0 %v797
  %1015 = vmatpush.bf16.msra.mxu0 %v796
  %1016 = vmatpush.bf16.msra.mxu0 %v795
  %1017 = vmatpush.bf16.msra.mxu0 %v794
  %1018 = vmatmul.bf16.gmra.mxu0 %v564
  %v1019 = vpop.f32.mrf.mxu0
  %v1020 = vadd.f32 0.0, %v1019
  %v1021 = vpop.f32.mrf.mxu0
  %v1022 = vadd.f32 0.0, %v1021
  %1023 = vmatmul.bf16.gmra.mxu0 %v566
  %v1024 = vpop.f32.mrf.mxu0
  %v1025 = vadd.f32 0.0, %v1024
  %v1026 = vpop.f32.mrf.mxu0
  %v1027 = vadd.f32 0.0, %v1026
  %1028 = vmatmul.bf16.gmra.mxu0 %v568
  %v1029 = vpop.f32.mrf.mxu0
  %v1030 = vadd.f32 0.0, %v1029
  %v1031 = vpop.f32.mrf.mxu0
  %v1032 = vadd.f32 0.0, %v1031
  %1033 = vmatmul.bf16.gmra.mxu0 %v570
  %v1034 = vpop.f32.mrf.mxu0
  %v1035 = vadd.f32 0.0, %v1034
  %v1036 = vpop.f32.mrf.mxu0
  %v1037 = vadd.f32 0.0, %v1036
  %1038 = vmatmul.bf16.gmra.mxu0 %v572
  %v1039 = vpop.f32.mrf.mxu0
  %v1040 = vadd.f32 0.0, %v1039
  %v1041 = vpop.f32.mrf.mxu0
  %v1042 = vadd.f32 0.0, %v1041
  %1043 = vmatmul.bf16.gmra.mxu0 %v574
  %v1044 = vpop.f32.mrf.mxu0
  %v1045 = vadd.f32 0.0, %v1044
  %v1046 = vpop.f32.mrf.mxu0
  %v1047 = vadd.f32 0.0, %v1046
  %1048 = vmatmul.bf16.gmra.mxu0 %v576
  %v1049 = vpop.f32.mrf.mxu0
  %v1050 = vadd.f32 0.0, %v1049
  %v1051 = vpop.f32.mrf.mxu0
  %v1052 = vadd.f32 0.0, %v1051
  %1053 = vmatmul.bf16.gmra.mxu0 %v578
  %v1054 = vpop.f32.mrf.mxu0
  %v1055 = vadd.f32 0.0, %v1054
  %v1056 = vpop.f32.mrf.mxu0
  %v1057 = vadd.f32 0.0, %v1056
  %1058 = vmatmul.bf16.gmra.mxu0 %v580
  %v1059 = vpop.f32.mrf.mxu0
  %v1060 = vadd.f32 0.0, %v1059
  %v1061 = vpop.f32.mrf.mxu0
  %v1062 = vadd.f32 0.0, %v1061
  %1063 = vmatmul.bf16.gmra.mxu0 %v582
  %v1064 = vpop.f32.mrf.mxu0
  %v1065 = vadd.f32 0.0, %v1064
  %v1066 = vpop.f32.mrf.mxu0
  %v1067 = vadd.f32 0.0, %v1066
  %1068 = vmatmul.bf16.gmra.mxu0 %v584
  %v1069 = vpop.f32.mrf.mxu0
  %v1070 = vadd.f32 0.0, %v1069
  %v1071 = vpop.f32.mrf.mxu0
  %v1072 = vadd.f32 0.0, %v1071
  %1073 = vmatmul.bf16.gmra.mxu0 %v586
  %v1074 = vpop.f32.mrf.mxu0
  %v1075 = vadd.f32 0.0, %v1074
  %v1076 = vpop.f32.mrf.mxu0
  %v1077 = vadd.f32 0.0, %v1076
  %1078 = vmatmul.bf16.gmra.mxu0 %v588
  %v1079 = vpop.f32.mrf.mxu0
  %v1080 = vadd.f32 0.0, %v1079
  %v1081 = vpop.f32.mrf.mxu0
  %1082 = vmatmul.bf16.gmra.mxu0 %v590
  %v1083 = vpop.f32.mrf.mxu0
  %v1084 = vpop.f32.mrf.mxu0
  %1085 = vmatmul.bf16.gmra.mxu0 %v592
  %v1086 = vpop.f32.mrf.mxu0
  %v1087 = vpop.f32.mrf.mxu0
  %1088 = vmatmul.bf16.gmra.mxu0 %v594
  %v1089 = vpop.f32.mrf.mxu0
  %v1090 = vpop.f32.mrf.mxu0
  %1091 = vmatmul.bf16.gmra.mxu0 %v596
  %v1092 = vpop.f32.mrf.mxu0
  %v1093 = vadd.f32 0.0, %v1092
  %v1094 = vpop.f32.mrf.mxu0
  %v1095 = vadd.f32 0.0, %v1094
  %1096 = vmatmul.bf16.gmra.mxu0 %v598
  %v1097 = vpop.f32.mrf.mxu0
  %v1098 = vadd.f32 0.0, %v1097
  %v1099 = vpop.f32.mrf.mxu0
  %v1100 = vadd.f32 0.0, %v1099
  %1101 = vmatmul.bf16.gmra.mxu0 %v600
  %v1102 = vpop.f32.mrf.mxu0
  %v1103 = vadd.f32 0.0, %v1102
  %v1104 = vpop.f32.mrf.mxu0
  %v1105 = vadd.f32 0.0, %v1104
  %1106 = vmatmul.bf16.gmra.mxu0 %v602
  %v1107 = vpop.f32.mrf.mxu0
  %v1108 = vadd.f32 0.0, %v1107
  %v1109 = vpop.f32.mrf.mxu0
  %v1110 = vadd.f32 0.0, %v1109
  %1111 = vmatmul.bf16.gmra.mxu0 %v604
  %v1112 = vpop.f32.mrf.mxu0
  %v1113 = vadd.f32 0.0, %v1112
  %v1114 = vpop.f32.mrf.mxu0
  %v1115 = vadd.f32 0.0, %v1114
  %1116 = vmatmul.bf16.gmra.mxu0 %v606
  %v1117 = vpop.f32.mrf.mxu0
  %v1118 = vadd.f32 0.0, %v1117
  %v1119 = vpop.f32.mrf.mxu0
  %v1120 = vadd.f32 0.0, %v1119
  %1121 = vmatmul.bf16.gmra.mxu0 %v608
  %v1122 = vpop.f32.mrf.mxu0
  %v1123 = vadd.f32 0.0, %v1122
  %v1124 = vpop.f32.mrf.mxu0
  %v1125 = vadd.f32 0.0, %v1124
  %1126 = vmatmul.bf16.gmra.mxu0 %v610
  %v1127 = vpop.f32.mrf.mxu0
  %v1128 = vadd.f32 0.0, %v1127
  %v1129 = vpop.f32.mrf.mxu0
  %v1130 = vadd.f32 0.0, %v1129
  %1131 = vmatmul.bf16.gmra.mxu0 %v612
  %v1132 = vpop.f32.mrf.mxu0
  %v1133 = vadd.f32 0.0, %v1132
  %v1134 = vpop.f32.mrf.mxu0
  %v1135 = vadd.f32 0.0, %v1134
  %1136 = vmatmul.bf16.gmra.mxu0 %v614
  %v1137 = vpop.f32.mrf.mxu0
  %v1138 = vadd.f32 0.0, %v1137
  %v1139 = vpop.f32.mrf.mxu0
  %v1140 = vadd.f32 0.0, %v1139
  %1141 = vmatmul.bf16.gmra.mxu0 %v616
  %v1142 = vpop.f32.mrf.mxu0
  %v1143 = vadd.f32 0.0, %v1142
  %v1144 = vpop.f32.mrf.mxu0
  %v1145 = vadd.f32 0.0, %v1144
  %1146 = vmatmul.bf16.gmra.mxu0 %v618
  %v1147 = vpop.f32.mrf.mxu0
  %v1148 = vadd.f32 0.0, %v1147
  %v1149 = vpop.f32.mrf.mxu0
  %v1150 = vadd.f32 0.0, %v1149
  %1151 = vmatmul.bf16.gmra.mxu0 %v620
  %v1152 = vpop.f32.mrf.mxu0
  %v1153 = vadd.f32 0.0, %v1152
  %v1154 = vpop.f32.mrf.mxu0
  %1155 = vmatmul.bf16.gmra.mxu0 %v622
  %v1156 = vpop.f32.mrf.mxu0
  %v1157 = vpop.f32.mrf.mxu0
  %1158 = vmatmul.bf16.gmra.mxu0 %v624
  %v1159 = vpop.f32.mrf.mxu0
  %v1160 = vpop.f32.mrf.mxu0
  %1161 = vmatmul.bf16.gmra.mxu0 %v626
  %v1162 = vpop.f32.mrf.mxu0
  %v1163 = vpop.f32.mrf.mxu0
  %1164 = vmatmul.bf16.gmra.mxu0 %v628
  %v1165 = vpop.f32.mrf.mxu0
  %v1166 = vadd.f32 0.0, %v1165
  %v1167 = vpop.f32.mrf.mxu0
  %v1168 = vadd.f32 0.0, %v1167
  %1169 = vmatmul.bf16.gmra.mxu0 %v630
  %v1170 = vpop.f32.mrf.mxu0
  %v1171 = vadd.f32 0.0, %v1170
  %v1172 = vpop.f32.mrf.mxu0
  %v1173 = vadd.f32 0.0, %v1172
  %1174 = vmatmul.bf16.gmra.mxu0 %v632
  %v1175 = vpop.f32.mrf.mxu0
  %v1176 = vadd.f32 0.0, %v1175
  %v1177 = vpop.f32.mrf.mxu0
  %v1178 = vadd.f32 0.0, %v1177
  %1179 = vmatmul.bf16.gmra.mxu0 %v634
  %v1180 = vpop.f32.mrf.mxu0
  %v1181 = vadd.f32 0.0, %v1180
  %v1182 = vpop.f32.mrf.mxu0
  %v1183 = vadd.f32 0.0, %v1182
  %1184 = vmatmul.bf16.gmra.mxu0 %v636
  %v1185 = vpop.f32.mrf.mxu0
  %v1186 = vadd.f32 0.0, %v1185
  %v1187 = vpop.f32.mrf.mxu0
  %v1188 = vadd.f32 0.0, %v1187
  %1189 = vmatmul.bf16.gmra.mxu0 %v638
  %v1190 = vpop.f32.mrf.mxu0
  %v1191 = vadd.f32 0.0, %v1190
  %v1192 = vpop.f32.mrf.mxu0
  %v1193 = vadd.f32 0.0, %v1192
  %1194 = vmatmul.bf16.gmra.mxu0 %v640
  %v1195 = vpop.f32.mrf.mxu0
  %v1196 = vadd.f32 0.0, %v1195
  %v1197 = vpop.f32.mrf.mxu0
  %v1198 = vadd.f32 0.0, %v1197
  %1199 = vmatmul.bf16.gmra.mxu0 %v642
  %v1200 = vpop.f32.mrf.mxu0
  %v1201 = vadd.f32 0.0, %v1200
  %v1202 = vpop.f32.mrf.mxu0
  %v1203 = vadd.f32 0.0, %v1202
  %1204 = vmatmul.bf16.gmra.mxu0 %v644
  %v1205 = vpop.f32.mrf.mxu0
  %v1206 = vadd.f32 0.0, %v1205
  %v1207 = vpop.f32.mrf.mxu0
  %v1208 = vadd.f32 0.0, %v1207
  %1209 = vmatmul.bf16.gmra.mxu0 %v646
  %v1210 = vpop.f32.mrf.mxu0
  %v1211 = vadd.f32 0.0, %v1210
  %v1212 = vpop.f32.mrf.mxu0
  %v1213 = vadd.f32 0.0, %v1212
  %1214 = vmatmul.bf16.gmra.mxu0 %v648
  %v1215 = vpop.f32.mrf.mxu0
  %v1216 = vadd.f32 0.0, %v1215
  %v1217 = vpop.f32.mrf.mxu0
  %v1218 = vadd.f32 0.0, %v1217
  %1219 = vmatmul.bf16.gmra.mxu0 %v650
  %v1220 = vpop.f32.mrf.mxu0
  %v1221 = vadd.f32 0.0, %v1220
  %v1222 = vpop.f32.mrf.mxu0
  %v1223 = vadd.f32 0.0, %v1222
  %1224 = vmatmul.bf16.gmra.mxu0 %v652
  %v1225 = vpop.f32.mrf.mxu0
  %v1226 = vadd.f32 0.0, %v1225
  %v1227 = vpop.f32.mrf.mxu0
  %1228 = vmatmul.bf16.gmra.mxu0 %v654
  %v1229 = vpop.f32.mrf.mxu0
  %v1230 = vpop.f32.mrf.mxu0
  %1231 = vmatmul.bf16.gmra.mxu0 %v656
  %v1232 = vpop.f32.mrf.mxu0
  %v1233 = vpop.f32.mrf.mxu0
  %1234 = vmatmul.bf16.gmra.mxu0 %v658
  %v1235 = vpop.f32.mrf.mxu0
  %v1236 = vpop.f32.mrf.mxu0
  %1237 = vmatmul.bf16.gmra.mxu0 %v660
  %v1238 = vpop.f32.mrf.mxu0
  %v1239 = vadd.f32 0.0, %v1238
  %v1240 = vpop.f32.mrf.mxu0
  %v1241 = vadd.f32 0.0, %v1240
  %1242 = vmatmul.bf16.gmra.mxu0 %v662
  %v1243 = vpop.f32.mrf.mxu0
  %v1244 = vadd.f32 0.0, %v1243
  %v1245 = vpop.f32.mrf.mxu0
  %v1246 = vadd.f32 0.0, %v1245
  %1247 = vmatmul.bf16.gmra.mxu0 %v664
  %v1248 = vpop.f32.mrf.mxu0
  %v1249 = vadd.f32 0.0, %v1248
  %v1250 = vpop.f32.mrf.mxu0
  %v1251 = vadd.f32 0.0, %v1250
  %1252 = vmatmul.bf16.gmra.mxu0 %v666
  %v1253 = vpop.f32.mrf.mxu0
  %v1254 = vadd.f32 0.0, %v1253
  %v1255 = vpop.f32.mrf.mxu0
  %v1256 = vadd.f32 0.0, %v1255
  %1257 = vmatmul.bf16.gmra.mxu0 %v668
  %v1258 = vpop.f32.mrf.mxu0
  %v1259 = vadd.f32 0.0, %v1258
  %v1260 = vpop.f32.mrf.mxu0
  %v1261 = vadd.f32 0.0, %v1260
  %1262 = vmatmul.bf16.gmra.mxu0 %v670
  %v1263 = vpop.f32.mrf.mxu0
  %v1264 = vadd.f32 0.0, %v1263
  %v1265 = vpop.f32.mrf.mxu0
  %v1266 = vadd.f32 0.0, %v1265
  %1267 = vmatmul.bf16.gmra.mxu0 %v672
  %v1268 = vpop.f32.mrf.mxu0
  %v1269 = vadd.f32 0.0, %v1268
  %v1270 = vpop.f32.mrf.mxu0
  %v1271 = vadd.f32 0.0, %v1270
  %1272 = vmatmul.bf16.gmra.mxu0 %v674
  %v1273 = vpop.f32.mrf.mxu0
  %v1274 = vadd.f32 0.0, %v1273
  %v1275 = vpop.f32.mrf.mxu0
  %v1276 = vadd.f32 0.0, %v1275
  %1277 = vmatmul.bf16.gmra.mxu0 %v676
  %v1278 = vpop.f32.mrf.mxu0
  %v1279 = vadd.f32 0.0, %v1278
  %v1280 = vpop.f32.mrf.mxu0
  %v1281 = vadd.f32 0.0, %v1280
  %1282 = vmatmul.bf16.gmra.mxu0 %v678
  %v1283 = vpop.f32.mrf.mxu0
  %v1284 = vadd.f32 0.0, %v1283
  %v1285 = vpop.f32.mrf.mxu0
  %v1286 = vadd.f32 0.0, %v1285
  %1287 = vmatmul.bf16.gmra.mxu0 %v680
  %v1288 = vpop.f32.mrf.mxu0
  %v1289 = vadd.f32 0.0, %v1288
  %v1290 = vpop.f32.mrf.mxu0
  %v1291 = vadd.f32 0.0, %v1290
  %1292 = vmatmul.bf16.gmra.mxu0 %v682
  %v1293 = vpop.f32.mrf.mxu0
  %v1294 = vadd.f32 0.0, %v1293
  %v1295 = vpop.f32.mrf.mxu0
  %v1296 = vadd.f32 0.0, %v1295
  %1297 = vmatmul.bf16.gmra.mxu0 %v684
  %v1298 = vpop.f32.mrf.mxu0
  %v1299 = vadd.f32 0.0, %v1298
  %v1300 = vpop.f32.mrf.mxu0
  %1301 = vmatmul.bf16.gmra.mxu0 %v686
  %v1302 = vpop.f32.mrf.mxu0
  %v1303 = vpop.f32.mrf.mxu0
  %1304 = vmatmul.bf16.gmra.mxu0 %v688
  %v1305 = vpop.f32.mrf.mxu0
  %v1306 = vpop.f32.mrf.mxu0
  %1307 = vmatmul.bf16.gmra.mxu0 %v690
  %v1308 = vpop.f32.mrf.mxu0
  %v1309 = vpop.f32.mrf.mxu0
  %1310 = vdwg.mxu0
  %1311 = vmatpush.bf16.msra.mxu0 0
  %1312 = vmatpush.bf16.msra.mxu0 0
  %1313 = vmatpush.bf16.msra.mxu0 0
  %1314 = vmatpush.bf16.msra.mxu0 0
  %1315 = vmatpush.bf16.msra.mxu0 0
  %1316 = vmatpush.bf16.msra.mxu0 0
  %1317 = vmatpush.bf16.msra.mxu0 %v1008
  %1318 = vmatpush.bf16.msra.mxu0 %v802
  %1319 = vmatmul.bf16.gmra.mxu0 %v815
  %v1320 = vpop.f32.mrf.mxu0
  %v1321 = vadd.f32 %v1020, %v1320
  %v1322 = vpop.f32.mrf.mxu0
  %v1323 = vadd.f32 %v1022, %v1322
  %1324 = vmatmul.bf16.gmra.mxu0 %v818
  %v1325 = vpop.f32.mrf.mxu0
  %v1326 = vadd.f32 %v1025, %v1325
  %v1327 = vpop.f32.mrf.mxu0
  %v1328 = vadd.f32 %v1027, %v1327
  %1329 = vmatmul.bf16.gmra.mxu0 %v821
  %v1330 = vpop.f32.mrf.mxu0
  %v1331 = vadd.f32 %v1030, %v1330
  %v1332 = vpop.f32.mrf.mxu0
  %v1333 = vadd.f32 %v1032, %v1332
  %1334 = vmatmul.bf16.gmra.mxu0 %v824
  %v1335 = vpop.f32.mrf.mxu0
  %v1336 = vadd.f32 %v1035, %v1335
  %v1337 = vpop.f32.mrf.mxu0
  %v1338 = vadd.f32 %v1037, %v1337
  %1339 = vmatmul.bf16.gmra.mxu0 %v827
  %v1340 = vpop.f32.mrf.mxu0
  %v1341 = vadd.f32 %v1040, %v1340
  %v1342 = vpop.f32.mrf.mxu0
  %v1343 = vadd.f32 %v1042, %v1342
  %1344 = vmatmul.bf16.gmra.mxu0 %v830
  %v1345 = vpop.f32.mrf.mxu0
  %v1346 = vadd.f32 %v1045, %v1345
  %v1347 = vpop.f32.mrf.mxu0
  %v1348 = vadd.f32 %v1047, %v1347
  %1349 = vmatmul.bf16.gmra.mxu0 %v833
  %v1350 = vpop.f32.mrf.mxu0
  %v1351 = vadd.f32 %v1050, %v1350
  %v1352 = vpop.f32.mrf.mxu0
  %v1353 = vadd.f32 %v1052, %v1352
  %1354 = vmatmul.bf16.gmra.mxu0 %v836
  %v1355 = vpop.f32.mrf.mxu0
  %v1356 = vadd.f32 %v1055, %v1355
  %v1357 = vpop.f32.mrf.mxu0
  %v1358 = vadd.f32 %v1057, %v1357
  %1359 = vmatmul.bf16.gmra.mxu0 %v839
  %v1360 = vpop.f32.mrf.mxu0
  %v1361 = vadd.f32 %v1060, %v1360
  %v1362 = vpop.f32.mrf.mxu0
  %v1363 = vadd.f32 %v1062, %v1362
  %1364 = vmatmul.bf16.gmra.mxu0 %v842
  %v1365 = vpop.f32.mrf.mxu0
  %v1366 = vadd.f32 %v1065, %v1365
  %v1367 = vpop.f32.mrf.mxu0
  %v1368 = vadd.f32 %v1067, %v1367
  %1369 = vmatmul.bf16.gmra.mxu0 %v845
  %v1370 = vpop.f32.mrf.mxu0
  %v1371 = vadd.f32 %v1070, %v1370
  %v1372 = vpop.f32.mrf.mxu0
  %v1373 = vadd.f32 %v1072, %v1372
  %1374 = vmatmul.bf16.gmra.mxu0 %v848
  %v1375 = vpop.f32.mrf.mxu0
  %v1376 = vadd.f32 %v1075, %v1375
  %v1377 = vpop.f32.mrf.mxu0
  %v1378 = vadd.f32 %v1077, %v1377
  %1379 = vmatmul.bf16.gmra.mxu0 %v851
  %v1380 = vpop.f32.mrf.mxu0
  %v1381 = vadd.f32 %v1080, %v1380
  %v1382 = vpop.f32.mrf.mxu0
  %1383 = vmatmul.bf16.gmra.mxu0 %v854
  %v1384 = vpop.f32.mrf.mxu0
  %v1385 = vpop.f32.mrf.mxu0
  %1386 = vmatmul.bf16.gmra.mxu0 %v857
  %v1387 = vpop.f32.mrf.mxu0
  %v1388 = vpop.f32.mrf.mxu0
  %1389 = vmatmul.bf16.gmra.mxu0 %v860
  %v1390 = vpop.f32.mrf.mxu0
  %v1391 = vpop.f32.mrf.mxu0
  %1392 = vmatmul.bf16.gmra.mxu0 %v863
  %v1393 = vpop.f32.mrf.mxu0
  %v1394 = vadd.f32 %v1093, %v1393
  %v1395 = vpop.f32.mrf.mxu0
  %v1396 = vadd.f32 %v1095, %v1395
  %1397 = vmatmul.bf16.gmra.mxu0 %v866
  %v1398 = vpop.f32.mrf.mxu0
  %v1399 = vadd.f32 %v1098, %v1398
  %v1400 = vpop.f32.mrf.mxu0
  %v1401 = vadd.f32 %v1100, %v1400
  %1402 = vmatmul.bf16.gmra.mxu0 %v869
  %v1403 = vpop.f32.mrf.mxu0
  %v1404 = vadd.f32 %v1103, %v1403
  %v1405 = vpop.f32.mrf.mxu0
  %v1406 = vadd.f32 %v1105, %v1405
  %1407 = vmatmul.bf16.gmra.mxu0 %v872
  %v1408 = vpop.f32.mrf.mxu0
  %v1409 = vadd.f32 %v1108, %v1408
  %v1410 = vpop.f32.mrf.mxu0
  %v1411 = vadd.f32 %v1110, %v1410
  %1412 = vmatmul.bf16.gmra.mxu0 %v875
  %v1413 = vpop.f32.mrf.mxu0
  %v1414 = vadd.f32 %v1113, %v1413
  %v1415 = vpop.f32.mrf.mxu0
  %v1416 = vadd.f32 %v1115, %v1415
  %1417 = vmatmul.bf16.gmra.mxu0 %v878
  %v1418 = vpop.f32.mrf.mxu0
  %v1419 = vadd.f32 %v1118, %v1418
  %v1420 = vpop.f32.mrf.mxu0
  %v1421 = vadd.f32 %v1120, %v1420
  %1422 = vmatmul.bf16.gmra.mxu0 %v881
  %v1423 = vpop.f32.mrf.mxu0
  %v1424 = vadd.f32 %v1123, %v1423
  %v1425 = vpop.f32.mrf.mxu0
  %v1426 = vadd.f32 %v1125, %v1425
  %1427 = vmatmul.bf16.gmra.mxu0 %v884
  %v1428 = vpop.f32.mrf.mxu0
  %v1429 = vadd.f32 %v1128, %v1428
  %v1430 = vpop.f32.mrf.mxu0
  %v1431 = vadd.f32 %v1130, %v1430
  %1432 = vmatmul.bf16.gmra.mxu0 %v887
  %v1433 = vpop.f32.mrf.mxu0
  %v1434 = vadd.f32 %v1133, %v1433
  %v1435 = vpop.f32.mrf.mxu0
  %v1436 = vadd.f32 %v1135, %v1435
  %1437 = vmatmul.bf16.gmra.mxu0 %v890
  %v1438 = vpop.f32.mrf.mxu0
  %v1439 = vadd.f32 %v1138, %v1438
  %v1440 = vpop.f32.mrf.mxu0
  %v1441 = vadd.f32 %v1140, %v1440
  %1442 = vmatmul.bf16.gmra.mxu0 %v893
  %v1443 = vpop.f32.mrf.mxu0
  %v1444 = vadd.f32 %v1143, %v1443
  %v1445 = vpop.f32.mrf.mxu0
  %v1446 = vadd.f32 %v1145, %v1445
  %1447 = vmatmul.bf16.gmra.mxu0 %v896
  %v1448 = vpop.f32.mrf.mxu0
  %v1449 = vadd.f32 %v1148, %v1448
  %v1450 = vpop.f32.mrf.mxu0
  %v1451 = vadd.f32 %v1150, %v1450
  %1452 = vmatmul.bf16.gmra.mxu0 %v899
  %v1453 = vpop.f32.mrf.mxu0
  %v1454 = vadd.f32 %v1153, %v1453
  %v1455 = vpop.f32.mrf.mxu0
  %1456 = vmatmul.bf16.gmra.mxu0 %v902
  %v1457 = vpop.f32.mrf.mxu0
  %v1458 = vpop.f32.mrf.mxu0
  %1459 = vmatmul.bf16.gmra.mxu0 %v905
  %v1460 = vpop.f32.mrf.mxu0
  %v1461 = vpop.f32.mrf.mxu0
  %1462 = vmatmul.bf16.gmra.mxu0 %v908
  %v1463 = vpop.f32.mrf.mxu0
  %v1464 = vpop.f32.mrf.mxu0
  %1465 = vmatmul.bf16.gmra.mxu0 %v911
  %v1466 = vpop.f32.mrf.mxu0
  %v1467 = vadd.f32 %v1166, %v1466
  %v1468 = vpop.f32.mrf.mxu0
  %v1469 = vadd.f32 %v1168, %v1468
  %1470 = vmatmul.bf16.gmra.mxu0 %v914
  %v1471 = vpop.f32.mrf.mxu0
  %v1472 = vadd.f32 %v1171, %v1471
  %v1473 = vpop.f32.mrf.mxu0
  %v1474 = vadd.f32 %v1173, %v1473
  %1475 = vmatmul.bf16.gmra.mxu0 %v917
  %v1476 = vpop.f32.mrf.mxu0
  %v1477 = vadd.f32 %v1176, %v1476
  %v1478 = vpop.f32.mrf.mxu0
  %v1479 = vadd.f32 %v1178, %v1478
  %1480 = vmatmul.bf16.gmra.mxu0 %v920
  %v1481 = vpop.f32.mrf.mxu0
  %v1482 = vadd.f32 %v1181, %v1481
  %v1483 = vpop.f32.mrf.mxu0
  %v1484 = vadd.f32 %v1183, %v1483
  %1485 = vmatmul.bf16.gmra.mxu0 %v923
  %v1486 = vpop.f32.mrf.mxu0
  %v1487 = vadd.f32 %v1186, %v1486
  %v1488 = vpop.f32.mrf.mxu0
  %v1489 = vadd.f32 %v1188, %v1488
  %1490 = vmatmul.bf16.gmra.mxu0 %v926
  %v1491 = vpop.f32.mrf.mxu0
  %v1492 = vadd.f32 %v1191, %v1491
  %v1493 = vpop.f32.mrf.mxu0
  %v1494 = vadd.f32 %v1193, %v1493
  %1495 = vmatmul.bf16.gmra.mxu0 %v929
  %v1496 = vpop.f32.mrf.mxu0
  %v1497 = vadd.f32 %v1196, %v1496
  %v1498 = vpop.f32.mrf.mxu0
  %v1499 = vadd.f32 %v1198, %v1498
  %1500 = vmatmul.bf16.gmra.mxu0 %v932
  %v1501 = vpop.f32.mrf.mxu0
  %v1502 = vadd.f32 %v1201, %v1501
  %v1503 = vpop.f32.mrf.mxu0
  %v1504 = vadd.f32 %v1203, %v1503
  %1505 = vmatmul.bf16.gmra.mxu0 %v935
  %v1506 = vpop.f32.mrf.mxu0
  %v1507 = vadd.f32 %v1206, %v1506
  %v1508 = vpop.f32.mrf.mxu0
  %v1509 = vadd.f32 %v1208, %v1508
  %1510 = vmatmul.bf16.gmra.mxu0 %v938
  %v1511 = vpop.f32.mrf.mxu0
  %v1512 = vadd.f32 %v1211, %v1511
  %v1513 = vpop.f32.mrf.mxu0
  %v1514 = vadd.f32 %v1213, %v1513
  %1515 = vmatmul.bf16.gmra.mxu0 %v941
  %v1516 = vpop.f32.mrf.mxu0
  %v1517 = vadd.f32 %v1216, %v1516
  %v1518 = vpop.f32.mrf.mxu0
  %v1519 = vadd.f32 %v1218, %v1518
  %1520 = vmatmul.bf16.gmra.mxu0 %v944
  %v1521 = vpop.f32.mrf.mxu0
  %v1522 = vadd.f32 %v1221, %v1521
  %v1523 = vpop.f32.mrf.mxu0
  %v1524 = vadd.f32 %v1223, %v1523
  %1525 = vmatmul.bf16.gmra.mxu0 %v947
  %v1526 = vpop.f32.mrf.mxu0
  %v1527 = vadd.f32 %v1226, %v1526
  %v1528 = vpop.f32.mrf.mxu0
  %1529 = vmatmul.bf16.gmra.mxu0 %v950
  %v1530 = vpop.f32.mrf.mxu0
  %v1531 = vpop.f32.mrf.mxu0
  %1532 = vmatmul.bf16.gmra.mxu0 %v953
  %v1533 = vpop.f32.mrf.mxu0
  %v1534 = vpop.f32.mrf.mxu0
  %1535 = vmatmul.bf16.gmra.mxu0 %v956
  %v1536 = vpop.f32.mrf.mxu0
  %v1537 = vpop.f32.mrf.mxu0
  %1538 = vmatmul.bf16.gmra.mxu0 %v959
  %v1539 = vpop.f32.mrf.mxu0
  %v1540 = vadd.f32 %v1239, %v1539
  %v1541 = vpop.f32.mrf.mxu0
  %v1542 = vadd.f32 %v1241, %v1541
  %1543 = vmatmul.bf16.gmra.mxu0 %v962
  %v1544 = vpop.f32.mrf.mxu0
  %v1545 = vadd.f32 %v1244, %v1544
  %v1546 = vpop.f32.mrf.mxu0
  %v1547 = vadd.f32 %v1246, %v1546
  %1548 = vmatmul.bf16.gmra.mxu0 %v965
  %v1549 = vpop.f32.mrf.mxu0
  %v1550 = vadd.f32 %v1249, %v1549
  %v1551 = vpop.f32.mrf.mxu0
  %v1552 = vadd.f32 %v1251, %v1551
  %1553 = vmatmul.bf16.gmra.mxu0 %v968
  %v1554 = vpop.f32.mrf.mxu0
  %v1555 = vadd.f32 %v1254, %v1554
  %v1556 = vpop.f32.mrf.mxu0
  %v1557 = vadd.f32 %v1256, %v1556
  %1558 = vmatmul.bf16.gmra.mxu0 %v971
  %v1559 = vpop.f32.mrf.mxu0
  %v1560 = vadd.f32 %v1259, %v1559
  %v1561 = vpop.f32.mrf.mxu0
  %v1562 = vadd.f32 %v1261, %v1561
  %1563 = vmatmul.bf16.gmra.mxu0 %v974
  %v1564 = vpop.f32.mrf.mxu0
  %v1565 = vadd.f32 %v1264, %v1564
  %v1566 = vpop.f32.mrf.mxu0
  %v1567 = vadd.f32 %v1266, %v1566
  %1568 = vmatmul.bf16.gmra.mxu0 %v977
  %v1569 = vpop.f32.mrf.mxu0
  %v1570 = vadd.f32 %v1269, %v1569
  %v1571 = vpop.f32.mrf.mxu0
  %v1572 = vadd.f32 %v1271, %v1571
  %1573 = vmatmul.bf16.gmra.mxu0 %v980
  %v1574 = vpop.f32.mrf.mxu0
  %v1575 = vadd.f32 %v1274, %v1574
  %v1576 = vpop.f32.mrf.mxu0
  %v1577 = vadd.f32 %v1276, %v1576
  %1578 = vmatmul.bf16.gmra.mxu0 %v983
  %v1579 = vpop.f32.mrf.mxu0
  %v1580 = vadd.f32 %v1279, %v1579
  %v1581 = vpop.f32.mrf.mxu0
  %v1582 = vadd.f32 %v1281, %v1581
  %1583 = vmatmul.bf16.gmra.mxu0 %v986
  %v1584 = vpop.f32.mrf.mxu0
  %v1585 = vadd.f32 %v1284, %v1584
  %v1586 = vpop.f32.mrf.mxu0
  %v1587 = vadd.f32 %v1286, %v1586
  %1588 = vmatmul.bf16.gmra.mxu0 %v989
  %v1589 = vpop.f32.mrf.mxu0
  %v1590 = vadd.f32 %v1289, %v1589
  %v1591 = vpop.f32.mrf.mxu0
  %v1592 = vadd.f32 %v1291, %v1591
  %1593 = vmatmul.bf16.gmra.mxu0 %v992
  %v1594 = vpop.f32.mrf.mxu0
  %v1595 = vadd.f32 %v1294, %v1594
  %v1596 = vpop.f32.mrf.mxu0
  %v1597 = vadd.f32 %v1296, %v1596
  %1598 = vmatmul.bf16.gmra.mxu0 %v995
  %v1599 = vpop.f32.mrf.mxu0
  %v1600 = vadd.f32 %v1299, %v1599
  %v1601 = vpop.f32.mrf.mxu0
  %1602 = vmatmul.bf16.gmra.mxu0 %v998
  %v1603 = vpop.f32.mrf.mxu0
  %v1604 = vpop.f32.mrf.mxu0
  %1605 = vmatmul.bf16.gmra.mxu0 %v1001
  %v1606 = vpop.f32.mrf.mxu0
  %v1607 = vpop.f32.mrf.mxu0
  %1608 = vmatmul.bf16.gmra.mxu0 %v1004
  %v1609 = vpop.f32.mrf.mxu0
  %v1610 = vpop.f32.mrf.mxu0
  %1611 = vdwg.mxu0
  %v1612 = vmax.f32 %v1321, %v1394
  %v1613 = vmax.f32 %v1323, %v1396
  %v1614 = vmax.f32 %v1326, %v1399
  %v1615 = vmax.f32 %v1328, %v1401
  %v1616 = vmax.f32 %v1331, %v1404
  %v1617 = vmax.f32 %v1333, %v1406
  %v1618 = vmax.f32 %v1336, %v1409
  %v1619 = vmax.f32 %v1338, %v1411
  %v1620 = vmax.f32 %v1341, %v1414
  %v1621 = vmax.f32 %v1343, %v1416
  %v1622 = vmax.f32 %v1346, %v1419
  %v1623 = vmax.f32 %v1348, %v1421
  %v1624 = vmax.f32 %v1351, %v1424
  %v1625 = vmax.f32 %v1353, %v1426
  %v1626 = vmax.f32 %v1356, %v1429
  %v1627 = vmax.f32 %v1358, %v1431
  %v1628 = vmax.f32 %v1361, %v1434
  %v1629 = vmax.f32 %v1363, %v1436
  %v1630 = vmax.f32 %v1366, %v1439
  %v1631 = vmax.f32 %v1368, %v1441
  %v1632 = vmax.f32 %v1371, %v1444
  %v1633 = vmax.f32 %v1373, %v1446
  %v1634 = vmax.f32 %v1376, %v1449
  %v1635 = vmax.f32 %v1378, %v1451
  %v1636 = vmax.f32 %v1381, %v1454
  %v1637 = vmax.f32 %v1467, %v1540
  %v1638 = vmax.f32 %v1469, %v1542
  %v1639 = vmax.f32 %v1472, %v1545
  %v1640 = vmax.f32 %v1474, %v1547
  %v1641 = vmax.f32 %v1477, %v1550
  %v1642 = vmax.f32 %v1479, %v1552
  %v1643 = vmax.f32 %v1482, %v1555
  %v1644 = vmax.f32 %v1484, %v1557
  %v1645 = vmax.f32 %v1487, %v1560
  %v1646 = vmax.f32 %v1489, %v1562
  %v1647 = vmax.f32 %v1492, %v1565
  %v1648 = vmax.f32 %v1494, %v1567
  %v1649 = vmax.f32 %v1497, %v1570
  %v1650 = vmax.f32 %v1499, %v1572
  %v1651 = vmax.f32 %v1502, %v1575
  %v1652 = vmax.f32 %v1504, %v1577
  %v1653 = vmax.f32 %v1507, %v1580
  %v1654 = vmax.f32 %v1509, %v1582
  %v1655 = vmax.f32 %v1512, %v1585
  %v1656 = vmax.f32 %v1514, %v1587
  %v1657 = vmax.f32 %v1517, %v1590
  %v1658 = vmax.f32 %v1519, %v1592
  %v1659 = vmax.f32 %v1522, %v1595
  %v1660 = vmax.f32 %v1524, %v1597
  %v1661 = vmax.f32 %v1527, %v1600
  %v1662 = vmax.f32 %v1612, %v1637
  %v1663 = vmax.f32 %v1613, %v1638
  %v1664 = vmax.f32 %v1614, %v1639
  %v1665 = vmax.f32 %v1615, %v1640
  %v1666 = vmax.f32 %v1616, %v1641
  %v1667 = vmax.f32 %v1617, %v1642
  %v1668 = vmax.f32 %v1618, %v1643
  %v1669 = vmax.f32 %v1619, %v1644
  %v1670 = vmax.f32 %v1620, %v1645
  %v1671 = vmax.f32 %v1621, %v1646
  %v1672 = vmax.f32 %v1622, %v1647
  %v1673 = vmax.f32 %v1623, %v1648
  %v1674 = vmax.f32 %v1624, %v1649
  %v1675 = vmax.f32 %v1625, %v1650
  %v1676 = vmax.f32 %v1626, %v1651
  %v1677 = vmax.f32 %v1627, %v1652
  %v1678 = vmax.f32 %v1628, %v1653
  %v1679 = vmax.f32 %v1629, %v1654
  %v1680 = vmax.f32 %v1630, %v1655
  %v1681 = vmax.f32 %v1631, %v1656
  %v1682 = vmax.f32 %v1632, %v1657
  %v1683 = vmax.f32 %v1633, %v1658
  %v1684 = vmax.f32 %v1634, %v1659
  %v1685 = vmax.f32 %v1635, %v1660
  %v1686 = vmax.f32 %v1636, %v1661
  %v1687 = vld [vmem:[%s2] sm:$0x1]
  %v1689 = vperm.slane %v1687, 0
  %v1691 = vadd.f32 %v1662, %v1689
  %v1692 = vadd.f32 %v1663, %v1689
  %v1693 = vadd.f32 %v1664, %v1689
  %v1694 = vadd.f32 %v1665, %v1689
  %v1695 = vadd.f32 %v1666, %v1689
  %v1696 = vadd.f32 %v1667, %v1689
  %v1697 = vadd.f32 %v1668, %v1689
  %v1698 = vadd.f32 %v1669, %v1689
  %v1699 = vadd.f32 %v1670, %v1689
  %v1700 = vadd.f32 %v1671, %v1689
  %v1701 = vadd.f32 %v1672, %v1689
  %v1702 = vadd.f32 %v1673, %v1689
  %v1703 = vadd.f32 %v1674, %v1689
  %v1704 = vadd.f32 %v1675, %v1689
  %v1705 = vadd.f32 %v1676, %v1689
  %v1706 = vadd.f32 %v1677, %v1689
  %v1707 = vadd.f32 %v1678, %v1689
  %v1708 = vadd.f32 %v1679, %v1689
  %v1709 = vadd.f32 %v1680, %v1689
  %v1710 = vadd.f32 %v1681, %v1689
  %v1711 = vadd.f32 %v1682, %v1689
  %v1712 = vadd.f32 %v1683, %v1689
  %v1713 = vadd.f32 %v1684, %v1689
  %v1714 = vadd.f32 %v1685, %v1689
  %v1715 = vadd.f32 %v1686, %v1689
  %v1716 = vmax.f32 %v1691, 0.0
  %v1717 = vmax.f32 %v1692, 0.0
  %v1718 = vmax.f32 %v1693, 0.0
  %v1719 = vmax.f32 %v1694, 0.0
  %v1720 = vmax.f32 %v1695, 0.0
  %v1721 = vmax.f32 %v1696, 0.0
  %v1722 = vmax.f32 %v1697, 0.0
  %v1723 = vmax.f32 %v1698, 0.0
  %v1724 = vmax.f32 %v1699, 0.0
  %v1725 = vmax.f32 %v1700, 0.0
  %v1726 = vmax.f32 %v1701, 0.0
  %v1727 = vmax.f32 %v1702, 0.0
  %v1728 = vmax.f32 %v1703, 0.0
  %v1729 = vmax.f32 %v1704, 0.0
  %v1730 = vmax.f32 %v1705, 0.0
  %v1731 = vmax.f32 %v1706, 0.0
  %v1732 = vmax.f32 %v1707, 0.0
  %v1733 = vmax.f32 %v1708, 0.0
  %v1734 = vmax.f32 %v1709, 0.0
  %v1735 = vmax.f32 %v1710, 0.0
  %v1736 = vmax.f32 %v1711, 0.0
  %v1737 = vmax.f32 %v1712, 0.0
  %v1738 = vmax.f32 %v1713, 0.0
  %v1739 = vmax.f32 %v1714, 0.0
  %v1740 = vmax.f32 %v1715, 0.0
  %v1741 = vpack.c.bf16 %v1716, %v1716
  %v1742 = vld [vmem:[%s3] sm:$0xf]
  %v1743 = vld [vmem:[%s3 + $0x4] sm:$0xf]
  %v1744 = vpack.c.bf16 %v1717, %v1717
  %v1745 = vld [vmem:[%s3 + $0x8] sm:$0xf]
  %v1746 = vld [vmem:[%s3 + $0xc] sm:$0xf]
  %v1749 = vunpack.c.l.b16 %v1745
  %v1750 = vunpack.c.l.b16 %v1746
  %v1751 = vpack.c.b16 %v1750, %v1749
  %vm1753 = vcmask 130048
  %v1755 = vsel %vm1753, %v1744, 0
  %1757 = vmatpush.bf16.msra.mxu0 0
  %1758 = vmatpush.bf16.msra.mxu0 0
  %1759 = vmatpush.bf16.msra.mxu0 0
  %1760 = vmatpush.bf16.msra.mxu0 0
  %1761 = vmatpush.bf16.msra.mxu0 0
  %1762 = vmatpush.bf16.msra.mxu0 0
  %1763 = vmatpush.bf16.msra.mxu0 0
  %1764 = vmatpush.bf16.msra.mxu0 %v1751
  %1765 = vmatmul.bf16.gmra.mxu0 %v1755
  %v1766 = vpop.f32.mrf.mxu0
  %v1767 = vadd.f32 0.0, %v1766
  %v1768 = vpop.f32.mrf.mxu0
  %1769 = vdwg.mxu0
  %v1772 = vunpack.c.l.b16 %v1742
  %v1773 = vunpack.c.l.b16 %v1743
  %v1774 = vpack.c.b16 %v1773, %v1772
  %v1777 = vsel %vm1753, %v1741, 0
  %1779 = vmatpush.bf16.msra.mxu0 0
  %1780 = vmatpush.bf16.msra.mxu0 0
  %1781 = vmatpush.bf16.msra.mxu0 0
  %1782 = vmatpush.bf16.msra.mxu0 0
  %1783 = vmatpush.bf16.msra.mxu0 0
  %1784 = vmatpush.bf16.msra.mxu0 0
  %1785 = vmatpush.bf16.msra.mxu0 0
  %1786 = vmatpush.bf16.msra.mxu0 %v1774
  %1787 = vmatmul.bf16.gmra.mxu0 %v1777
  %v1788 = vpop.f32.mrf.mxu0
  %v1789 = vadd.f32 %v1767, %v1788
  %v1790 = vpop.f32.mrf.mxu0
  %1791 = vdwg.mxu0
  %v1792 = vpack.c.bf16 %v1718, %v1718
  %v1793 = vld [vmem:[%s3 + $0x10] sm:$0xf]
  %v1794 = vld [vmem:[%s3 + $0x14] sm:$0xf]
  %v1797 = vunpack.c.l.b16 %v1793
  %v1798 = vunpack.c.l.b16 %v1794
  %v1799 = vpack.c.b16 %v1798, %v1797
  %v1802 = vsel %vm1753, %v1792, 0
  %1804 = vmatpush.bf16.msra.mxu0 0
  %1805 = vmatpush.bf16.msra.mxu0 0
  %1806 = vmatpush.bf16.msra.mxu0 0
  %1807 = vmatpush.bf16.msra.mxu0 0
  %1808 = vmatpush.bf16.msra.mxu0 0
  %1809 = vmatpush.bf16.msra.mxu0 0
  %1810 = vmatpush.bf16.msra.mxu0 0
  %1811 = vmatpush.bf16.msra.mxu0 %v1799
  %1812 = vmatmul.bf16.gmra.mxu0 %v1802
  %v1813 = vpop.f32.mrf.mxu0
  %v1814 = vadd.f32 0.0, %v1813
  %v1815 = vpop.f32.mrf.mxu0
  %1816 = vdwg.mxu0
  %v1817 = vadd.f32 %v1789, %v1814
  %v1818 = vpack.c.bf16 %v1719, %v1719
  %v1819 = vld [vmem:[%s3 + $0x18] sm:$0xf]
  %v1820 = vld [vmem:[%s3 + $0x1c] sm:$0xf]
  %v1823 = vunpack.c.l.b16 %v1819
  %v1824 = vunpack.c.l.b16 %v1820
  %v1825 = vpack.c.b16 %v1824, %v1823
  %v1828 = vsel %vm1753, %v1818, 0
  %1830 = vmatpush.bf16.msra.mxu0 0
  %1831 = vmatpush.bf16.msra.mxu0 0
  %1832 = vmatpush.bf16.msra.mxu0 0
  %1833 = vmatpush.bf16.msra.mxu0 0
  %1834 = vmatpush.bf16.msra.mxu0 0
  %1835 = vmatpush.bf16.msra.mxu0 0
  %1836 = vmatpush.bf16.msra.mxu0 0
  %1837 = vmatpush.bf16.msra.mxu0 %v1825
  %1838 = vmatmul.bf16.gmra.mxu0 %v1828
  %v1839 = vpop.f32.mrf.mxu0
  %v1840 = vadd.f32 0.0, %v1839
  %v1841 = vpop.f32.mrf.mxu0
  %1842 = vdwg.mxu0
  %v1843 = vadd.f32 %v1817, %v1840
  %v1844 = vpack.c.bf16 %v1720, %v1720
  %v1845 = vld [vmem:[%s3 + $0x20] sm:$0xf]
  %v1846 = vld [vmem:[%s3 + $0x24] sm:$0xf]
  %v1849 = vunpack.c.l.b16 %v1845
  %v1850 = vunpack.c.l.b16 %v1846
  %v1851 = vpack.c.b16 %v1850, %v1849
  %v1854 = vsel %vm1753, %v1844, 0
  %1856 = vmatpush.bf16.msra.mxu0 0
  %1857 = vmatpush.bf16.msra.mxu0 0
  %1858 = vmatpush.bf16.msra.mxu0 0
  %1859 = vmatpush.bf16.msra.mxu0 0
  %1860 = vmatpush.bf16.msra.mxu0 0
  %1861 = vmatpush.bf16.msra.mxu0 0
  %1862 = vmatpush.bf16.msra.mxu0 0
  %1863 = vmatpush.bf16.msra.mxu0 %v1851
  %1864 = vmatmul.bf16.gmra.mxu0 %v1854
  %v1865 = vpop.f32.mrf.mxu0
  %v1866 = vadd.f32 0.0, %v1865
  %v1867 = vpop.f32.mrf.mxu0
  %1868 = vdwg.mxu0
  %v1869 = vadd.f32 %v1843, %v1866
  %v1870 = vpack.c.bf16 %v1721, %v1721
  %v1871 = vld [vmem:[%s3 + $0x28] sm:$0xf]
  %v1872 = vld [vmem:[%s3 + $0x2c] sm:$0xf]
  %v1875 = vunpack.c.l.b16 %v1871
  %v1876 = vunpack.c.l.b16 %v1872
  %v1877 = vpack.c.b16 %v1876, %v1875
  %v1880 = vsel %vm1753, %v1870, 0
  %1882 = vmatpush.bf16.msra.mxu0 0
  %1883 = vmatpush.bf16.msra.mxu0 0
  %1884 = vmatpush.bf16.msra.mxu0 0
  %1885 = vmatpush.bf16.msra.mxu0 0
  %1886 = vmatpush.bf16.msra.mxu0 0
  %1887 = vmatpush.bf16.msra.mxu0 0
  %1888 = vmatpush.bf16.msra.mxu0 0
  %1889 = vmatpush.bf16.msra.mxu0 %v1877
  %1890 = vmatmul.bf16.gmra.mxu0 %v1880
  %v1891 = vpop.f32.mrf.mxu0
  %v1892 = vadd.f32 0.0, %v1891
  %v1893 = vpop.f32.mrf.mxu0
  %1894 = vdwg.mxu0
  %v1895 = vadd.f32 %v1869, %v1892
  %v1896 = vpack.c.bf16 %v1722, %v1722
  %v1897 = vld [vmem:[%s3 + $0x30] sm:$0xf]
  %v1898 = vld [vmem:[%s3 + $0x34] sm:$0xf]
  %v1901 = vunpack.c.l.b16 %v1897
  %v1902 = vunpack.c.l.b16 %v1898
  %v1903 = vpack.c.b16 %v1902, %v1901
  %v1906 = vsel %vm1753, %v1896, 0
  %1908 = vmatpush.bf16.msra.mxu0 0
  %1909 = vmatpush.bf16.msra.mxu0 0
  %1910 = vmatpush.bf16.msra.mxu0 0
  %1911 = vmatpush.bf16.msra.mxu0 0
  %1912 = vmatpush.bf16.msra.mxu0 0
  %1913 = vmatpush.bf16.msra.mxu0 0
  %1914 = vmatpush.bf16.msra.mxu0 0
  %1915 = vmatpush.bf16.msra.mxu0 %v1903
  %1916 = vmatmul.bf16.gmra.mxu0 %v1906
  %v1917 = vpop.f32.mrf.mxu0
  %v1918 = vadd.f32 0.0, %v1917
  %v1919 = vpop.f32.mrf.mxu0
  %1920 = vdwg.mxu0
  %v1921 = vadd.f32 %v1895, %v1918
  %v1922 = vpack.c.bf16 %v1723, %v1723
  %v1923 = vld [vmem:[%s3 + $0x38] sm:$0xf]
  %v1924 = vld [vmem:[%s3 + $0x3c] sm:$0xf]
  %v1927 = vunpack.c.l.b16 %v1923
  %v1928 = vunpack.c.l.b16 %v1924
  %v1929 = vpack.c.b16 %v1928, %v1927
  %v1932 = vsel %vm1753, %v1922, 0
  %1934 = vmatpush.bf16.msra.mxu0 0
  %1935 = vmatpush.bf16.msra.mxu0 0
  %1936 = vmatpush.bf16.msra.mxu0 0
  %1937 = vmatpush.bf16.msra.mxu0 0
  %1938 = vmatpush.bf16.msra.mxu0 0
  %1939 = vmatpush.bf16.msra.mxu0 0
  %1940 = vmatpush.bf16.msra.mxu0 0
  %1941 = vmatpush.bf16.msra.mxu0 %v1929
  %1942 = vmatmul.bf16.gmra.mxu0 %v1932
  %v1943 = vpop.f32.mrf.mxu0
  %v1944 = vadd.f32 0.0, %v1943
  %v1945 = vpop.f32.mrf.mxu0
  %1946 = vdwg.mxu0
  %v1947 = vadd.f32 %v1921, %v1944
  %v1948 = vpack.c.bf16 %v1724, %v1724
  %v1949 = vld [vmem:[%s3 + $0x40] sm:$0xf]
  %v1950 = vld [vmem:[%s3 + $0x44] sm:$0xf]
  %v1953 = vunpack.c.l.b16 %v1949
  %v1954 = vunpack.c.l.b16 %v1950
  %v1955 = vpack.c.b16 %v1954, %v1953
  %v1958 = vsel %vm1753, %v1948, 0
  %1960 = vmatpush.bf16.msra.mxu0 0
  %1961 = vmatpush.bf16.msra.mxu0 0
  %1962 = vmatpush.bf16.msra.mxu0 0
  %1963 = vmatpush.bf16.msra.mxu0 0
  %1964 = vmatpush.bf16.msra.mxu0 0
  %1965 = vmatpush.bf16.msra.mxu0 0
  %1966 = vmatpush.bf16.msra.mxu0 0
  %1967 = vmatpush.bf16.msra.mxu0 %v1955
  %1968 = vmatmul.bf16.gmra.mxu0 %v1958
  %v1969 = vpop.f32.mrf.mxu0
  %v1970 = vadd.f32 0.0, %v1969
  %v1971 = vpop.f32.mrf.mxu0
  %1972 = vdwg.mxu0
  %v1973 = vadd.f32 %v1947, %v1970
  %v1974 = vpack.c.bf16 %v1725, %v1725
  %v1975 = vld [vmem:[%s3 + $0x48] sm:$0xf]
  %v1976 = vld [vmem:[%s3 + $0x4c] sm:$0xf]
  %v1979 = vunpack.c.l.b16 %v1975
  %v1980 = vunpack.c.l.b16 %v1976
  %v1981 = vpack.c.b16 %v1980, %v1979
  %v1984 = vsel %vm1753, %v1974, 0
  %1986 = vmatpush.bf16.msra.mxu0 0
  %1987 = vmatpush.bf16.msra.mxu0 0
  %1988 = vmatpush.bf16.msra.mxu0 0
  %1989 = vmatpush.bf16.msra.mxu0 0
  %1990 = vmatpush.bf16.msra.mxu0 0
  %1991 = vmatpush.bf16.msra.mxu0 0
  %1992 = vmatpush.bf16.msra.mxu0 0
  %1993 = vmatpush.bf16.msra.mxu0 %v1981
  %1994 = vmatmul.bf16.gmra.mxu0 %v1984
  %v1995 = vpop.f32.mrf.mxu0
  %v1996 = vadd.f32 0.0, %v1995
  %v1997 = vpop.f32.mrf.mxu0
  %1998 = vdwg.mxu0
  %v1999 = vadd.f32 %v1973, %v1996
  %v2000 = vpack.c.bf16 %v1726, %v1726
  %v2001 = vld [vmem:[%s3 + $0x50] sm:$0xf]
  %v2002 = vld [vmem:[%s3 + $0x54] sm:$0xf]
  %v2005 = vunpack.c.l.b16 %v2001
  %v2006 = vunpack.c.l.b16 %v2002
  %v2007 = vpack.c.b16 %v2006, %v2005
  %v2010 = vsel %vm1753, %v2000, 0
  %2012 = vmatpush.bf16.msra.mxu0 0
  %2013 = vmatpush.bf16.msra.mxu0 0
  %2014 = vmatpush.bf16.msra.mxu0 0
  %2015 = vmatpush.bf16.msra.mxu0 0
  %2016 = vmatpush.bf16.msra.mxu0 0
  %2017 = vmatpush.bf16.msra.mxu0 0
  %2018 = vmatpush.bf16.msra.mxu0 0
  %2019 = vmatpush.bf16.msra.mxu0 %v2007
  %2020 = vmatmul.bf16.gmra.mxu0 %v2010
  %v2021 = vpop.f32.mrf.mxu0
  %v2022 = vadd.f32 0.0, %v2021
  %v2023 = vpop.f32.mrf.mxu0
  %2024 = vdwg.mxu0
  %v2025 = vadd.f32 %v1999, %v2022
  %v2026 = vpack.c.bf16 %v1727, %v1727
  %v2027 = vld [vmem:[%s3 + $0x58] sm:$0xf]
  %v2028 = vld [vmem:[%s3 + $0x5c] sm:$0xf]
  %v2031 = vunpack.c.l.b16 %v2027
  %v2032 = vunpack.c.l.b16 %v2028
  %v2033 = vpack.c.b16 %v2032, %v2031
  %v2036 = vsel %vm1753, %v2026, 0
  %2038 = vmatpush.bf16.msra.mxu0 0
  %2039 = vmatpush.bf16.msra.mxu0 0
  %2040 = vmatpush.bf16.msra.mxu0 0
  %2041 = vmatpush.bf16.msra.mxu0 0
  %2042 = vmatpush.bf16.msra.mxu0 0
  %2043 = vmatpush.bf16.msra.mxu0 0
  %2044 = vmatpush.bf16.msra.mxu0 0
  %2045 = vmatpush.bf16.msra.mxu0 %v2033
  %2046 = vmatmul.bf16.gmra.mxu0 %v2036
  %v2047 = vpop.f32.mrf.mxu0
  %v2048 = vadd.f32 0.0, %v2047
  %v2049 = vpop.f32.mrf.mxu0
  %2050 = vdwg.mxu0
  %v2051 = vadd.f32 %v2025, %v2048
  %v2052 = vpack.c.bf16 %v1728, %v1728
  %v2053 = vld [vmem:[%s3 + $0x60] sm:$0xf]
  %v2054 = vld [vmem:[%s3 + $0x64] sm:$0xf]
  %v2057 = vunpack.c.l.b16 %v2053
  %v2058 = vunpack.c.l.b16 %v2054
  %v2059 = vpack.c.b16 %v2058, %v2057
  %v2062 = vsel %vm1753, %v2052, 0
  %2064 = vmatpush.bf16.msra.mxu0 0
  %2065 = vmatpush.bf16.msra.mxu0 0
  %2066 = vmatpush.bf16.msra.mxu0 0
  %2067 = vmatpush.bf16.msra.mxu0 0
  %2068 = vmatpush.bf16.msra.mxu0 0
  %2069 = vmatpush.bf16.msra.mxu0 0
  %2070 = vmatpush.bf16.msra.mxu0 0
  %2071 = vmatpush.bf16.msra.mxu0 %v2059
  %2072 = vmatmul.bf16.gmra.mxu0 %v2062
  %v2073 = vpop.f32.mrf.mxu0
  %v2074 = vadd.f32 0.0, %v2073
  %v2075 = vpop.f32.mrf.mxu0
  %2076 = vdwg.mxu0
  %v2077 = vadd.f32 %v2051, %v2074
  %v2078 = vpack.c.bf16 %v1729, %v1729
  %v2079 = vld [vmem:[%s3 + $0x68] sm:$0xf]
  %v2080 = vld [vmem:[%s3 + $0x6c] sm:$0xf]
  %v2083 = vunpack.c.l.b16 %v2079
  %v2084 = vunpack.c.l.b16 %v2080
  %v2085 = vpack.c.b16 %v2084, %v2083
  %v2088 = vsel %vm1753, %v2078, 0
  %2090 = vmatpush.bf16.msra.mxu0 0
  %2091 = vmatpush.bf16.msra.mxu0 0
  %2092 = vmatpush.bf16.msra.mxu0 0
  %2093 = vmatpush.bf16.msra.mxu0 0
  %2094 = vmatpush.bf16.msra.mxu0 0
  %2095 = vmatpush.bf16.msra.mxu0 0
  %2096 = vmatpush.bf16.msra.mxu0 0
  %2097 = vmatpush.bf16.msra.mxu0 %v2085
  %2098 = vmatmul.bf16.gmra.mxu0 %v2088
  %v2099 = vpop.f32.mrf.mxu0
  %v2100 = vadd.f32 0.0, %v2099
  %v2101 = vpop.f32.mrf.mxu0
  %2102 = vdwg.mxu0
  %v2103 = vadd.f32 %v2077, %v2100
  %v2104 = vpack.c.bf16 %v1730, %v1730
  %v2105 = vld [vmem:[%s3 + $0x70] sm:$0xf]
  %v2106 = vld [vmem:[%s3 + $0x74] sm:$0xf]
  %v2109 = vunpack.c.l.b16 %v2105
  %v2110 = vunpack.c.l.b16 %v2106
  %v2111 = vpack.c.b16 %v2110, %v2109
  %v2114 = vsel %vm1753, %v2104, 0
  %2116 = vmatpush.bf16.msra.mxu0 0
  %2117 = vmatpush.bf16.msra.mxu0 0
  %2118 = vmatpush.bf16.msra.mxu0 0
  %2119 = vmatpush.bf16.msra.mxu0 0
  %2120 = vmatpush.bf16.msra.mxu0 0
  %2121 = vmatpush.bf16.msra.mxu0 0
  %2122 = vmatpush.bf16.msra.mxu0 0
  %2123 = vmatpush.bf16.msra.mxu0 %v2111
  %2124 = vmatmul.bf16.gmra.mxu0 %v2114
  %v2125 = vpop.f32.mrf.mxu0
  %v2126 = vadd.f32 0.0, %v2125
  %v2127 = vpop.f32.mrf.mxu0
  %2128 = vdwg.mxu0
  %v2129 = vadd.f32 %v2103, %v2126
  %v2130 = vpack.c.bf16 %v1731, %v1731
  %v2131 = vld [vmem:[%s3 + $0x78] sm:$0xf]
  %v2132 = vld [vmem:[%s3 + $0x7c] sm:$0xf]
  %v2135 = vunpack.c.l.b16 %v2131
  %v2136 = vunpack.c.l.b16 %v2132
  %v2137 = vpack.c.b16 %v2136, %v2135
  %v2140 = vsel %vm1753, %v2130, 0
  %2142 = vmatpush.bf16.msra.mxu0 0
  %2143 = vmatpush.bf16.msra.mxu0 0
  %2144 = vmatpush.bf16.msra.mxu0 0
  %2145 = vmatpush.bf16.msra.mxu0 0
  %2146 = vmatpush.bf16.msra.mxu0 0
  %2147 = vmatpush.bf16.msra.mxu0 0
  %2148 = vmatpush.bf16.msra.mxu0 0
  %2149 = vmatpush.bf16.msra.mxu0 %v2137
  %2150 = vmatmul.bf16.gmra.mxu0 %v2140
  %v2151 = vpop.f32.mrf.mxu0
  %v2152 = vadd.f32 0.0, %v2151
  %v2153 = vpop.f32.mrf.mxu0
  %2154 = vdwg.mxu0
  %v2155 = vadd.f32 %v2129, %v2152
  %v2156 = vpack.c.bf16 %v1732, %v1732
  %v2157 = vld [vmem:[%s3 + $0x80] sm:$0xf]
  %v2158 = vld [vmem:[%s3 + $0x84] sm:$0xf]
  %v2161 = vunpack.c.l.b16 %v2157
  %v2162 = vunpack.c.l.b16 %v2158
  %v2163 = vpack.c.b16 %v2162, %v2161
  %v2166 = vsel %vm1753, %v2156, 0
  %2168 = vmatpush.bf16.msra.mxu0 0
  %2169 = vmatpush.bf16.msra.mxu0 0
  %2170 = vmatpush.bf16.msra.mxu0 0
  %2171 = vmatpush.bf16.msra.mxu0 0
  %2172 = vmatpush.bf16.msra.mxu0 0
  %2173 = vmatpush.bf16.msra.mxu0 0
  %2174 = vmatpush.bf16.msra.mxu0 0
  %2175 = vmatpush.bf16.msra.mxu0 %v2163
  %2176 = vmatmul.bf16.gmra.mxu0 %v2166
  %v2177 = vpop.f32.mrf.mxu0
  %v2178 = vadd.f32 0.0, %v2177
  %v2179 = vpop.f32.mrf.mxu0
  %2180 = vdwg.mxu0
  %v2181 = vadd.f32 %v2155, %v2178
  %v2182 = vpack.c.bf16 %v1733, %v1733
  %v2183 = vld [vmem:[%s3 + $0x88] sm:$0xf]
  %v2184 = vld [vmem:[%s3 + $0x8c] sm:$0xf]
  %v2187 = vunpack.c.l.b16 %v2183
  %v2188 = vunpack.c.l.b16 %v2184
  %v2189 = vpack.c.b16 %v2188, %v2187
  %v2192 = vsel %vm1753, %v2182, 0
  %2194 = vmatpush.bf16.msra.mxu0 0
  %2195 = vmatpush.bf16.msra.mxu0 0
  %2196 = vmatpush.bf16.msra.mxu0 0
  %2197 = vmatpush.bf16.msra.mxu0 0
  %2198 = vmatpush.bf16.msra.mxu0 0
  %2199 = vmatpush.bf16.msra.mxu0 0
  %2200 = vmatpush.bf16.msra.mxu0 0
  %2201 = vmatpush.bf16.msra.mxu0 %v2189
  %2202 = vmatmul.bf16.gmra.mxu0 %v2192
  %v2203 = vpop.f32.mrf.mxu0
  %v2204 = vadd.f32 0.0, %v2203
  %v2205 = vpop.f32.mrf.mxu0
  %2206 = vdwg.mxu0
  %v2207 = vadd.f32 %v2181, %v2204
  %v2208 = vpack.c.bf16 %v1734, %v1734
  %v2209 = vld [vmem:[%s3 + $0x90] sm:$0xf]
  %v2210 = vld [vmem:[%s3 + $0x94] sm:$0xf]
  %v2213 = vunpack.c.l.b16 %v2209
  %v2214 = vunpack.c.l.b16 %v2210
  %v2215 = vpack.c.b16 %v2214, %v2213
  %v2218 = vsel %vm1753, %v2208, 0
  %2220 = vmatpush.bf16.msra.mxu0 0
  %2221 = vmatpush.bf16.msra.mxu0 0
  %2222 = vmatpush.bf16.msra.mxu0 0
  %2223 = vmatpush.bf16.msra.mxu0 0
  %2224 = vmatpush.bf16.msra.mxu0 0
  %2225 = vmatpush.bf16.msra.mxu0 0
  %2226 = vmatpush.bf16.msra.mxu0 0
  %2227 = vmatpush.bf16.msra.mxu0 %v2215
  %2228 = vmatmul.bf16.gmra.mxu0 %v2218
  %v2229 = vpop.f32.mrf.mxu0
  %v2230 = vadd.f32 0.0, %v2229
  %v2231 = vpop.f32.mrf.mxu0
  %2232 = vdwg.mxu0
  %v2233 = vadd.f32 %v2207, %v2230
  %v2234 = vpack.c.bf16 %v1735, %v1735
  %v2235 = vld [vmem:[%s3 + $0x98] sm:$0xf]
  %v2236 = vld [vmem:[%s3 + $0x9c] sm:$0xf]
  %v2239 = vunpack.c.l.b16 %v2235
  %v2240 = vunpack.c.l.b16 %v2236
  %v2241 = vpack.c.b16 %v2240, %v2239
  %v2244 = vsel %vm1753, %v2234, 0
  %2246 = vmatpush.bf16.msra.mxu0 0
  %2247 = vmatpush.bf16.msra.mxu0 0
  %2248 = vmatpush.bf16.msra.mxu0 0
  %2249 = vmatpush.bf16.msra.mxu0 0
  %2250 = vmatpush.bf16.msra.mxu0 0
  %2251 = vmatpush.bf16.msra.mxu0 0
  %2252 = vmatpush.bf16.msra.mxu0 0
  %2253 = vmatpush.bf16.msra.mxu0 %v2241
  %2254 = vmatmul.bf16.gmra.mxu0 %v2244
  %v2255 = vpop.f32.mrf.mxu0
  %v2256 = vadd.f32 0.0, %v2255
  %v2257 = vpop.f32.mrf.mxu0
  %2258 = vdwg.mxu0
  %v2259 = vadd.f32 %v2233, %v2256
  %v2260 = vpack.c.bf16 %v1736, %v1736
  %v2261 = vld [vmem:[%s3 + $0xa0] sm:$0xf]
  %v2262 = vld [vmem:[%s3 + $0xa4] sm:$0xf]
  %v2265 = vunpack.c.l.b16 %v2261
  %v2266 = vunpack.c.l.b16 %v2262
  %v2267 = vpack.c.b16 %v2266, %v2265
  %v2270 = vsel %vm1753, %v2260, 0
  %2272 = vmatpush.bf16.msra.mxu0 0
  %2273 = vmatpush.bf16.msra.mxu0 0
  %2274 = vmatpush.bf16.msra.mxu0 0
  %2275 = vmatpush.bf16.msra.mxu0 0
  %2276 = vmatpush.bf16.msra.mxu0 0
  %2277 = vmatpush.bf16.msra.mxu0 0
  %2278 = vmatpush.bf16.msra.mxu0 0
  %2279 = vmatpush.bf16.msra.mxu0 %v2267
  %2280 = vmatmul.bf16.gmra.mxu0 %v2270
  %v2281 = vpop.f32.mrf.mxu0
  %v2282 = vadd.f32 0.0, %v2281
  %v2283 = vpop.f32.mrf.mxu0
  %2284 = vdwg.mxu0
  %v2285 = vadd.f32 %v2259, %v2282
  %v2286 = vpack.c.bf16 %v1737, %v1737
  %v2287 = vld [vmem:[%s3 + $0xa8] sm:$0xf]
  %v2288 = vld [vmem:[%s3 + $0xac] sm:$0xf]
  %v2291 = vunpack.c.l.b16 %v2287
  %v2292 = vunpack.c.l.b16 %v2288
  %v2293 = vpack.c.b16 %v2292, %v2291
  %v2296 = vsel %vm1753, %v2286, 0
  %2298 = vmatpush.bf16.msra.mxu0 0
  %2299 = vmatpush.bf16.msra.mxu0 0
  %2300 = vmatpush.bf16.msra.mxu0 0
  %2301 = vmatpush.bf16.msra.mxu0 0
  %2302 = vmatpush.bf16.msra.mxu0 0
  %2303 = vmatpush.bf16.msra.mxu0 0
  %2304 = vmatpush.bf16.msra.mxu0 0
  %2305 = vmatpush.bf16.msra.mxu0 %v2293
  %2306 = vmatmul.bf16.gmra.mxu0 %v2296
  %v2307 = vpop.f32.mrf.mxu0
  %v2308 = vadd.f32 0.0, %v2307
  %v2309 = vpop.f32.mrf.mxu0
  %2310 = vdwg.mxu0
  %v2311 = vadd.f32 %v2285, %v2308
  %v2312 = vpack.c.bf16 %v1738, %v1738
  %v2313 = vld [vmem:[%s3 + $0xb0] sm:$0xf]
  %v2314 = vld [vmem:[%s3 + $0xb4] sm:$0xf]
  %v2317 = vunpack.c.l.b16 %v2313
  %v2318 = vunpack.c.l.b16 %v2314
  %v2319 = vpack.c.b16 %v2318, %v2317
  %v2322 = vsel %vm1753, %v2312, 0
  %2324 = vmatpush.bf16.msra.mxu0 0
  %2325 = vmatpush.bf16.msra.mxu0 0
  %2326 = vmatpush.bf16.msra.mxu0 0
  %2327 = vmatpush.bf16.msra.mxu0 0
  %2328 = vmatpush.bf16.msra.mxu0 0
  %2329 = vmatpush.bf16.msra.mxu0 0
  %2330 = vmatpush.bf16.msra.mxu0 0
  %2331 = vmatpush.bf16.msra.mxu0 %v2319
  %2332 = vmatmul.bf16.gmra.mxu0 %v2322
  %v2333 = vpop.f32.mrf.mxu0
  %v2334 = vadd.f32 0.0, %v2333
  %v2335 = vpop.f32.mrf.mxu0
  %2336 = vdwg.mxu0
  %v2337 = vadd.f32 %v2311, %v2334
  %v2338 = vpack.c.bf16 %v1739, %v1739
  %v2339 = vld [vmem:[%s3 + $0xb8] sm:$0xf]
  %v2340 = vld [vmem:[%s3 + $0xbc] sm:$0xf]
  %v2343 = vunpack.c.l.b16 %v2339
  %v2344 = vunpack.c.l.b16 %v2340
  %v2345 = vpack.c.b16 %v2344, %v2343
  %v2348 = vsel %vm1753, %v2338, 0
  %2350 = vmatpush.bf16.msra.mxu0 0
  %2351 = vmatpush.bf16.msra.mxu0 0
  %2352 = vmatpush.bf16.msra.mxu0 0
  %2353 = vmatpush.bf16.msra.mxu0 0
  %2354 = vmatpush.bf16.msra.mxu0 0
  %2355 = vmatpush.bf16.msra.mxu0 0
  %2356 = vmatpush.bf16.msra.mxu0 0
  %2357 = vmatpush.bf16.msra.mxu0 %v2345
  %2358 = vmatmul.bf16.gmra.mxu0 %v2348
  %v2359 = vpop.f32.mrf.mxu0
  %v2360 = vadd.f32 0.0, %v2359
  %v2361 = vpop.f32.mrf.mxu0
  %2362 = vdwg.mxu0
  %v2363 = vadd.f32 %v2337, %v2360
  %v2364 = vpack.c.bf16 %v1740, %v1740
  %v2365 = vld [vmem:[%s3 + $0xc0] sm:$0xf]
  %v2366 = vld [vmem:[%s3 + $0xc4] sm:$0xf]
  %v2369 = vunpack.c.l.b16 %v2365
  %v2370 = vunpack.c.l.b16 %v2366
  %v2371 = vpack.c.b16 %v2370, %v2369
  %v2374 = vsel %vm1753, %v2364, 0
  %2376 = vmatpush.bf16.msra.mxu0 0
  %2377 = vmatpush.bf16.msra.mxu0 0
  %2378 = vmatpush.bf16.msra.mxu0 0
  %2379 = vmatpush.bf16.msra.mxu0 0
  %2380 = vmatpush.bf16.msra.mxu0 0
  %2381 = vmatpush.bf16.msra.mxu0 0
  %2382 = vmatpush.bf16.msra.mxu0 0
  %2383 = vmatpush.bf16.msra.mxu0 %v2371
  %2384 = vmatmul.bf16.gmra.mxu0 %v2374
  %v2385 = vpop.f32.mrf.mxu0
  %v2386 = vadd.f32 0.0, %v2385
  %v2387 = vpop.f32.mrf.mxu0
  %2388 = vdwg.mxu0
  %v2389 = vadd.f32 %v2363, %v2386
  %v2390 = vld [vmem:[%s4] sm:$0x1]
  %v2392 = vperm.slane %v2390, 0
  %v2394 = vadd.f32 %v2389, %v2392
  %v2395 = vmax.f32 %v2394, 0.0
  %v2396 = vpack.c.bf16 %v2395, %v2395
  %v2397 = vld [vmem:[%s5] sm:$0xf]
  %v2398 = vld [vmem:[%s5 + $0x4] sm:$0xf]
  %v2399 = vld [vmem:[%s5 + $0x8] sm:$0xf]
  %v2400 = vld [vmem:[%s5 + $0xc] sm:$0xf]
  %v2401 = vld [vmem:[%s5 + $0x10] sm:$0xf]
  %v2402 = vld [vmem:[%s5 + $0x14] sm:$0xf]
  %v2403 = vld [vmem:[%s5 + $0x18] sm:$0xf]
  %v2404 = vld [vmem:[%s5 + $0x1c] sm:$0xf]
  %v2405 = vld [vmem:[%s5 + $0x20] sm:$0xf]
  %v2406 = vld [vmem:[%s5 + $0x24] sm:$0xf]
  %v2407 = vld [vmem:[%s5 + $0x28] sm:$0xf]
  %v2408 = vld [vmem:[%s5 + $0x2c] sm:$0xf]
  %v2409 = vld [vmem:[%s5 + $0x30] sm:$0xf]
  %v2410 = vld [vmem:[%s5 + $0x34] sm:$0xf]
  %v2411 = vld [vmem:[%s5 + $0x38] sm:$0xf]
  %v2412 = vld [vmem:[%s5 + $0x3c] sm:$0xf]
  %v2413 = vld [vmem:[%s6] sm:$0x1]
  %v2415 = vperm.slane %v2413, 0
  %v2433 = vunpack.c.l.b16 %v2397
  %v2434 = vunpack.c.l.b16 %v2398
  %v2435 = vunpack.c.l.b16 %v2399
  %v2436 = vunpack.c.l.b16 %v2400
  %v2437 = vunpack.c.l.b16 %v2401
  %v2438 = vunpack.c.l.b16 %v2402
  %v2439 = vunpack.c.l.b16 %v2403
  %v2440 = vunpack.c.l.b16 %v2404
  %v2441 = vunpack.c.l.b16 %v2405
  %v2442 = vunpack.c.l.b16 %v2406
  %v2443 = vunpack.c.l.b16 %v2407
  %v2444 = vunpack.c.l.b16 %v2408
  %v2445 = vunpack.c.l.b16 %v2409
  %v2446 = vunpack.c.l.b16 %v2410
  %v2447 = vunpack.c.l.b16 %v2411
  %v2448 = vunpack.c.l.b16 %v2412
  %v2449 = vpack.c.b16 %v2434, %v2433
  %v2450 = vpack.c.b16 %v2436, %v2435
  %v2451 = vpack.c.b16 %v2438, %v2437
  %v2452 = vpack.c.b16 %v2440, %v2439
  %v2453 = vpack.c.b16 %v2442, %v2441
  %v2454 = vpack.c.b16 %v2444, %v2443
  %v2455 = vpack.c.b16 %v2446, %v2445
  %v2456 = vpack.c.b16 %v2448, %v2447
  %2465 = vmatpush.bf16.msra.mxu0 %v2456
  %2466 = vmatpush.bf16.msra.mxu0 %v2455
  %2467 = vmatpush.bf16.msra.mxu0 %v2454
  %2468 = vmatpush.bf16.msra.mxu0 %v2453
  %2469 = vmatpush.bf16.msra.mxu0 %v2452
  %2470 = vmatpush.bf16.msra.mxu0 %v2451
  %2471 = vmatpush.bf16.msra.mxu0 %v2450
  %2472 = vmatpush.bf16.msra.mxu0 %v2449
  %2473 = vmatmul.bf16.gmra.mxu0 %v2396
  %v2474 = vpop.f32.mrf.mxu0
  %v2475 = vadd.f32 %v2415, %v2474
  %v2476 = vpop.f32.mrf.mxu0
  %2477 = vdwg.mxu0
  %v2478 = vmax.f32 %v2475, 0.0
  %v2479 = vpack.c.bf16 %v2478, %v2478
  %v2480 = vld [vmem:[%s7] sm:$0xf]
  %v2481 = vld [vmem:[%s7 + $0x4] sm:$0xf]
  %v2482 = vld [vmem:[%s7 + $0x8] sm:$0xf]
  %v2483 = vld [vmem:[%s7 + $0xc] sm:$0xf]
  %v2484 = vld [vmem:[%s7 + $0x10] sm:$0xf]
  %v2485 = vld [vmem:[%s7 + $0x14] sm:$0xf]
  %v2486 = vld [vmem:[%s7 + $0x18] sm:$0xf]
  %v2487 = vld [vmem:[%s7 + $0x1c] sm:$0xf]
  %v2488 = vld [vmem:[%s7 + $0x20] sm:$0xf]
  %v2489 = vld [vmem:[%s7 + $0x24] sm:$0xf]
  %v2490 = vld [vmem:[%s7 + $0x28] sm:$0xf]
  %v2491 = vld [vmem:[%s7 + $0x2c] sm:$0xf]
  %v2492 = vld [vmem:[%s7 + $0x30] sm:$0xf]
  %v2493 = vld [vmem:[%s7 + $0x34] sm:$0xf]
  %v2494 = vld [vmem:[%s7 + $0x38] sm:$0xf]
  %v2495 = vld [vmem:[%s7 + $0x3c] sm:$0xf]
  %v2496 = vld [vmem:[%s8] sm:$0x1]
  %v2498 = vperm.slane %v2496, 0
  %v2516 = vunpack.c.l.b16 %v2480
  %v2517 = vunpack.c.l.b16 %v2481
  %v2518 = vunpack.c.l.b16 %v2482
  %v2519 = vunpack.c.l.b16 %v2483
  %v2520 = vunpack.c.l.b16 %v2484
  %v2521 = vunpack.c.l.b16 %v2485
  %v2522 = vunpack.c.l.b16 %v2486
  %v2523 = vunpack.c.l.b16 %v2487
  %v2524 = vunpack.c.l.b16 %v2488
  %v2525 = vunpack.c.l.b16 %v2489
  %v2526 = vunpack.c.l.b16 %v2490
  %v2527 = vunpack.c.l.b16 %v2491
  %v2528 = vunpack.c.l.b16 %v2492
  %v2529 = vunpack.c.l.b16 %v2493
  %v2530 = vunpack.c.l.b16 %v2494
  %v2531 = vunpack.c.l.b16 %v2495
  %v2532 = vpack.c.b16 %v2517, %v2516
  %v2533 = vpack.c.b16 %v2519, %v2518
  %v2534 = vpack.c.b16 %v2521, %v2520
  %v2535 = vpack.c.b16 %v2523, %v2522
  %v2536 = vpack.c.b16 %v2525, %v2524
  %v2537 = vpack.c.b16 %v2527, %v2526
  %v2538 = vpack.c.b16 %v2529, %v2528
  %v2539 = vpack.c.b16 %v2531, %v2530
  %2548 = vmatpush.bf16.msra.mxu0 %v2539
  %2549 = vmatpush.bf16.msra.mxu0 %v2538
  %2550 = vmatpush.bf16.msra.mxu0 %v2537
  %2551 = vmatpush.bf16.msra.mxu0 %v2536
  %2552 = vmatpush.bf16.msra.mxu0 %v2535
  %2553 = vmatpush.bf16.msra.mxu0 %v2534
  %2554 = vmatpush.bf16.msra.mxu0 %v2533
  %2555 = vmatpush.bf16.msra.mxu0 %v2532
  %2556 = vmatmul.bf16.gmra.mxu0 %v2479
  %v2557 = vpop.f32.mrf.mxu0
  %v2558 = vadd.f32 %v2498, %v2557
  %v2559 = vpop.f32.mrf.mxu0
  %2560 = vdwg.mxu0
  %2561 = vst [vmem:[%s9] sm:$0xff] %v2558
  // Predicated region
  $region38: #{net_forward_pallas.3} parent=0 // pred_check
    _
  $region39: #{net_forward_pallas.3} parent=0 // pred_check_branch
    %2563 = sbr.rel (0) target = $region41
  $region40: #{net_forward_pallas.3} parent=0 // pred_region
    _
  $region41: #{net_forward_pallas.3} parent=0 // pred_fallthru
    _
  // Predicated region
  $region42: #{net_forward_pallas.3} parent=0 // pred_check
    _
  $region43: #{net_forward_pallas.3} parent=0 // pred_check_branch
    %2565 = sbr.rel (0) target = $region45
  $region44: #{net_forward_pallas.3} parent=0 // pred_region
    _
  $region45: #{net_forward_pallas.3} parent=0 // pred_fallthru
    _

</llo_original>
